<compile_context>
chip_gen: v7x
topology: tpu7x:2x2x1
jax: 0.10.0
libtpu: 0.0.40
codegen_flags: <defaults>
</compile_context>

<pallas_src>
import functools
import math

import jax
import jax.numpy as jnp
from jax import lax
from jax.experimental import pallas as pl
from jax.experimental.pallas import tpu as pltpu

LN_EPS = 1e-5          # torch.nn.LayerNorm default
_LANE = 128            # lane width / hidden padding target
_TQ = 256              # query-node row tile (fills v6e/v7x 256x256 MXU)
_TK = 256              # key / adjacency-column tile (reduction axis)


def _default_vmem_limit():
    # Generation-aware scoped-VMEM budget: ~3/4 of physical, capped at 96 MiB.
    # (128 MiB parts -> 96 MiB; v7x 64 MiB -> 48 MiB.)
    try:
        cap = int(pltpu.get_tpu_info().vmem_capacity_bytes)
    except Exception:
        cap = 128 * 1024 * 1024
    return int(min(cap * 3 // 4, 96 * 1024 * 1024))


_VMEM_LIMIT = _default_vmem_limit()


def _round_up(x, m):
    return ((x + m - 1) // m) * m


def _pad_to(a, shape):
    return jnp.pad(a, [(0, t - s) for s, t in zip(a.shape, shape)])


# ---------------------------------------------------------------------------
# Kernel 1: GraphConv aggregation (A @ X accumulated over adjacency-column
#           tiles), then in the finalize: deg_inv row-scale, @W_gc, ReLU, and
#           the fused q|k|v|skip projection  [tq,hp] @ [hp,4*hp] + bias.
# ---------------------------------------------------------------------------
def _gc_proj_kernel(adj_ref, x_ref, deg_ref, wg_ref, wc_ref, bc_ref,
                    o_qkv_ref, o_skip_ref, acc_ref, *, hp):
    k = pl.program_id(1)

    @pl.when(k == 0)
    def _():
        acc_ref[...] = jnp.zeros_like(acc_ref)

    # adjacency tile and feature tile share the compute dtype (bf16 or f32)
    acc_ref[...] += jnp.dot(adj_ref[...], x_ref[...],
                            preferred_element_type=jnp.float32)

    @pl.when(k == pl.num_programs(1) - 1)
    def _():
        # D^-1 applied as a row-scale; GraphConv weight applied after the
        # aggregation ((D^-1 H X) W == D^-1 H (X W)), then ReLU.
        agg = (acc_ref[...] * deg_ref[...]).astype(wg_ref.dtype)
        h = jnp.maximum(jnp.dot(agg, wg_ref[...],
                                preferred_element_type=jnp.float32), 0.0)
        # fused q|k|v|skip projection (scale already folded into W_q / b_q)
        proj = jnp.dot(h.astype(wc_ref.dtype), wc_ref[...],
                       preferred_element_type=jnp.float32) + bc_ref[...]
        o_qkv_ref[0] = proj[:, 0 * hp:1 * hp].astype(o_qkv_ref.dtype)   # q
        o_qkv_ref[1] = proj[:, 1 * hp:2 * hp].astype(o_qkv_ref.dtype)   # k
        o_qkv_ref[2] = proj[:, 2 * hp:3 * hp].astype(o_qkv_ref.dtype)   # v
        o_skip_ref[...] = proj[:, 3 * hp:4 * hp].astype(o_skip_ref.dtype)


def _gc_proj(adj_gc, x, deg_inv, w_gc, w_cat, b_cat, *, tq, tk, hp, cdt):
    n_pad, c = x.shape
    return pl.pallas_call(
        functools.partial(_gc_proj_kernel, hp=hp),
        out_shape=(jax.ShapeDtypeStruct((3, n_pad, hp), cdt),        # q,k,v
                   jax.ShapeDtypeStruct((n_pad, hp), jnp.float32)),  # skip
        grid=(n_pad // tq, n_pad // tk),
        in_specs=[
            pl.BlockSpec((tq, tk), lambda i, k: (i, k)),       # adjacency tile
            pl.BlockSpec((tk, c), lambda i, k: (k, 0)),        # raw features
            pl.BlockSpec((tq, 1), lambda i, k: (i, 0)),        # deg_inv
            pl.BlockSpec((c, hp), lambda i, k: (0, 0)),        # GraphConv weight
            pl.BlockSpec((hp, 4 * hp), lambda i, k: (0, 0)),   # fused q|k|v|skip
            pl.BlockSpec((1, 4 * hp), lambda i, k: (0, 0)),    # fused biases
        ],
        out_specs=(
            pl.BlockSpec((3, tq, hp), lambda i, k: (0, i, 0)),
            pl.BlockSpec((tq, hp), lambda i, k: (i, 0)),
        ),
        scratch_shapes=[pltpu.VMEM((tq, c), jnp.float32)],
        compiler_params=pltpu.CompilerParams(
            dimension_semantics=("parallel", "arbitrary"),
            vmem_limit_bytes=_VMEM_LIMIT),
    )(adj_gc, x, deg_inv, w_gc, w_cat, b_cat)


# ---------------------------------------------------------------------------
# Kernel 2: masked attention (online softmax over incoming-edge key tiles),
#           beta-gated skip, LayerNorm over the true hidden channels, ReLU.
# ---------------------------------------------------------------------------
def _attn_ln_kernel(q_ref, k_ref, v_ref, xr_ref, mask_ref, wb_ref, ln_ref,
                    o_ref, m_sc, l_sc, acc_sc, *, h_true):
    kv = pl.program_id(1)

    @pl.when(kv == 0)
    def _():
        m_sc[...] = jnp.full_like(m_sc, -1e30)
        l_sc[...] = jnp.zeros_like(l_sc)
        acc_sc[...] = jnp.zeros_like(acc_sc)

    # scores: 1/sqrt(d) already folded into W_q; contract last dims (no k.T)
    s = lax.dot_general(q_ref[...], k_ref[...], (((1,), (1,)), ((), ())),
                        preferred_element_type=jnp.float32)
    msk = mask_ref[...] != 0                           # int8 incoming-edge mask
    s_m = jnp.where(msk, s, -1e30)
    m_new = jnp.maximum(m_sc[...], jnp.max(s_m, axis=1, keepdims=True))
    corr = jnp.exp(m_sc[...] - m_new)
    # where() around exp is load-bearing for nodes with no in-edges
    p = jnp.where(msk, jnp.exp(s_m - m_new), 0.0)
    l_sc[...] = corr * l_sc[...] + jnp.sum(p, axis=1, keepdims=True)
    acc_sc[...] = corr * acc_sc[...] + jnp.dot(
        p.astype(v_ref.dtype), v_ref[...], preferred_element_type=jnp.float32)
    m_sc[...] = m_new

    @pl.when(kv == pl.num_programs(1) - 1)
    def _():
        l = l_sc[...]
        inv_l = jnp.where(l > 0.0, pl.reciprocal(l, approx=True), 0.0)
        attn = acc_sc[...] * inv_l                     # nodes w/o in-edges -> 0
        x_r = xr_ref[...]
        wb = wb_ref[...]
        logit = jnp.sum(attn * wb[0:1, :] + x_r * wb[1:2, :]
                        + (attn - x_r) * wb[2:3, :], axis=1, keepdims=True)
        gate = jax.nn.sigmoid(logit)
        y = gate * x_r + (1.0 - gate) * attn
        # LayerNorm over the true hidden channels (padded lanes of y are exact
        # zeros); centered variance with a lane mask for precision.
        lane_ok = lax.broadcasted_iota(jnp.int32, y.shape, 1) < h_true
        inv_h = 1.0 / h_true
        mu = jnp.sum(y, axis=1, keepdims=True) * inv_h
        yc = jnp.where(lane_ok, y - mu, 0.0)
        var = jnp.sum(yc * yc, axis=1, keepdims=True) * inv_h
        out = yc * lax.rsqrt(var + LN_EPS) * ln_ref[0:1, :] + ln_ref[1:2, :]
        o_ref[...] = jnp.maximum(out, 0.0).astype(o_ref.dtype)


def _attn_ln(qkv, skip, mask_in, w_beta, ln, *, h_true, tq, tk, out_dtype):
    _, n_pad, hp = qkv.shape
    return pl.pallas_call(
        functools.partial(_attn_ln_kernel, h_true=h_true),
        out_shape=jax.ShapeDtypeStruct((n_pad, hp), out_dtype),
        grid=(n_pad // tq, n_pad // tk),
        in_specs=[
            pl.BlockSpec((None, tq, hp), lambda i, kv: (0, i, 0)),   # q
            pl.BlockSpec((None, tk, hp), lambda i, kv: (1, kv, 0)),  # k
            pl.BlockSpec((None, tk, hp), lambda i, kv: (2, kv, 0)),  # v
            pl.BlockSpec((tq, hp), lambda i, kv: (i, 0)),            # skip (f32)
            pl.BlockSpec((tq, tk), lambda i, kv: (i, kv)),           # int8 mask
            pl.BlockSpec((3, hp), lambda i, kv: (0, 0)),             # lin_beta
            pl.BlockSpec((2, hp), lambda i, kv: (0, 0)),             # LN gamma/beta
        ],
        out_specs=pl.BlockSpec((tq, hp), lambda i, kv: (i, 0)),
        scratch_shapes=[pltpu.VMEM((tq, 1), jnp.float32),
                        pltpu.VMEM((tq, 1), jnp.float32),
                        pltpu.VMEM((tq, hp), jnp.float32)],
        compiler_params=pltpu.CompilerParams(
            dimension_semantics=("parallel", "arbitrary"),
            vmem_limit_bytes=_VMEM_LIMIT),
    )(qkv, qkv, qkv, skip, mask_in, w_beta, ln)


# ---------------------------------------------------------------------------
# Full forward wrapper
# ---------------------------------------------------------------------------
@functools.partial(jax.jit, static_argnames=("adj_norm", "mxu_bf16"))
def graph_trans_conv(x, adj, params, *, adj_norm="true", mxu_bf16=True):
    n, c_in = x.shape
    hidden = params["w1"].shape[1]
    hp = _round_up(hidden, _LANE)
    tq, tk = _TQ, _TK
    n_pad = _round_up(n, max(tq, tk))
    cdt = jnp.bfloat16 if mxu_bf16 else jnp.float32
    scale = 1.0 / math.sqrt(hidden)

    # --- pad node features / adjacency (padded nodes have no edges) ------------
    x_p = _pad_to(x.astype(jnp.float32), (n_pad, c_in)).astype(cdt)
    adj_p = _pad_to(adj.astype(jnp.float32), (n_pad, n_pad))
    adj_t = adj_p.T

    # --- graph-only preprocessing hoisted out of the kernels --------------------
    mask_in = (adj_t != 0.0).astype(jnp.int8)          # mask_in[i, j]: edge j -> i
    if adj_norm == "true":
        eye = jnp.eye(n_pad, dtype=bool)
        adj_gc = jnp.where(eye, 1.0, adj_t)            # H_hat = adj.T w/ unit diag
        deg = jnp.sum(adj_gc, axis=1, keepdims=True)
        deg_inv = jnp.where(deg > 0.0, 1.0 / deg, 0.0)
    else:
        adj_gc = adj_p
        deg_inv = jnp.ones((n_pad, 1), jnp.float32)
    adj_gc = adj_gc.astype(cdt)

    # --- parameters: lane-dense hidden dim, bf16 weight packs, fused q|k|v|skip -
    w1 = _pad_to(params["w1"], (c_in, hp)).astype(cdt)     # gc1.weight (bias unused)
    w2 = _pad_to(params["w2"], (hp, hp)).astype(cdt)       # gc2.weight

    def pack_tconv(w4, b4):
        # w4: (4, hidden, hidden) order (q, k, v, skip); b4: (4, hidden)
        w = _pad_to(w4, (4, hp, hp))
        b = _pad_to(b4, (4, hp))
        w = w.at[0].multiply(scale)                     # fold 1/sqrt(d) into W_q
        b = b.at[0].multiply(scale)                     # ... and b_q
        w_cat = jnp.concatenate([w[0], w[1], w[2], w[3]], axis=1)       # (hp, 4hp)
        b_cat = jnp.concatenate([b[0], b[1], b[2], b[3]], axis=0)[None]  # (1, 4hp)
        return w_cat.astype(cdt), b_cat.astype(jnp.float32)

    c1_w, c1_b = pack_tconv(params["c1_w"], params["c1_b"])
    c2_w, c2_b = pack_tconv(params["c2_w"], params["c2_b"])
    c1_bt = _pad_to(params["c1_beta"], (3, hp))
    c2_bt = _pad_to(params["c2_beta"], (3, hp))
    ln1 = _pad_to(params["ln1"], (2, hp))
    ln2 = _pad_to(params["ln2"], (2, hp))

    # ---- block 1 ----
    qkv1, skip1 = _gc_proj(adj_gc, x_p, deg_inv, w1, c1_w, c1_b,
                           tq=tq, tk=tk, hp=hp, cdt=cdt)
    h1 = _attn_ln(qkv1, skip1, mask_in, c1_bt, ln1, h_true=hidden,
                  tq=tq, tk=tk, out_dtype=cdt)          # bf16: re-streamed by block 2
    # ---- block 2 ----
    qkv2, skip2 = _gc_proj(adj_gc, h1, deg_inv, w2, c2_w, c2_b,
                           tq=tq, tk=tk, hp=hp, cdt=cdt)
    h2 = _attn_ln(qkv2, skip2, mask_in, c2_bt, ln2, h_true=hidden,
                  tq=tq, tk=tk, out_dtype=jnp.float32)

    return h2[:n, :hidden]


# ---------------------------------------------------------------------------
# Pure-JAX f32 reference (same formulas, unpadded, no tiling)
# ---------------------------------------------------------------------------
def _layer_norm(x, gamma, beta):
    mu = jnp.mean(x, axis=-1, keepdims=True)
    var = jnp.mean((x - mu) ** 2, axis=-1, keepdims=True)
    return (x - mu) * lax.rsqrt(var + LN_EPS) * gamma + beta


def _normalized_operator(adj):
    n = adj.shape[0]
    eye = jnp.eye(n, dtype=bool)
    h_hat = jnp.where(eye, 1.0, adj.T)
    deg = jnp.sum(h_hat, axis=1, keepdims=True)
    deg_inv = jnp.where(deg != 0.0, 1.0 / deg, 0.0)
    return deg_inv * h_hat


def _graph_conv(x, h_op, w):
    return jnp.dot(h_op, jnp.dot(x, w, preferred_element_type=jnp.float32),
                   preferred_element_type=jnp.float32)


def _transformer_conv(x, adj, w_pack, b_pack, w_beta, hidden):
    wq, wk, wv, ws = w_pack[0], w_pack[1], w_pack[2], w_pack[3]
    q = jnp.dot(x, wq) + b_pack[0:1, :]
    k = jnp.dot(x, wk) + b_pack[1:2, :]
    v = jnp.dot(x, wv) + b_pack[2:3, :]
    scores = jnp.dot(q, k.T) * (1.0 / math.sqrt(hidden))
    mask = adj.T != 0.0
    neg = jnp.where(mask, scores, -1e30)
    m = jnp.max(neg, axis=1, keepdims=True)
    e = jnp.where(mask, jnp.exp(neg - m), 0.0)
    denom = jnp.sum(e, axis=1, keepdims=True)
    alpha = e * jnp.where(denom > 0.0, 1.0 / denom, 0.0)
    attn = jnp.dot(alpha, v)
    x_r = jnp.dot(x, ws) + b_pack[3:4, :]
    logit = jnp.sum(attn * w_beta[0:1, :] + x_r * w_beta[1:2, :]
                    + (attn - x_r) * w_beta[2:3, :], axis=1, keepdims=True)
    gate = jax.nn.sigmoid(logit)
    return gate * x_r + (1.0 - gate) * attn


def graph_trans_conv_ref(x, adj, params, *, adj_norm="true"):
    hidden = params["w1"].shape[1]
    h_op = _normalized_operator(adj) if adj_norm == "true" else adj
    h = jnp.maximum(_graph_conv(x, h_op, params["w1"]), 0.0)
    h = _transformer_conv(h, adj, params["c1_w"], params["c1_b"], params["c1_beta"], hidden)
    h = jnp.maximum(_layer_norm(h, params["ln1"][0:1, :], params["ln1"][1:2, :]), 0.0)
    h = jnp.maximum(_graph_conv(h, h_op, params["w2"]), 0.0)
    h = _transformer_conv(h, adj, params["c2_w"], params["c2_b"], params["c2_beta"], hidden)
    h = jnp.maximum(_layer_norm(h, params["ln2"][0:1, :], params["ln2"][1:2, :]), 0.0)
    return h


def _xavier(key, shape):
    fan_in, fan_out = shape[-2], shape[-1]
    bound = math.sqrt(6.0 / (fan_in + fan_out))
    return jax.random.uniform(key, shape, jnp.float32, -bound, bound)


if __name__ == "__main__":
    N, C_IN, HIDDEN = 200, 16, 32          # N padded to 256 internally -> 1x1 grid

    key = jax.random.PRNGKey(0)
    keys = jax.random.split(key, 12)

    x = jax.random.normal(keys[0], (N, C_IN), jnp.float32)
    adj = (jax.random.uniform(keys[1], (N, N)) < 0.05).astype(jnp.float32)

    params = {
        "w1": _xavier(keys[2], (C_IN, HIDDEN)),            # gc1.weight
        "w2": _xavier(keys[3], (HIDDEN, HIDDEN)),          # gc2.weight
        # TransformerConv 1: packed (W_q, W_k, W_v, W_skip), biases, lin_beta
        "c1_w": _xavier(keys[4], (4, HIDDEN, HIDDEN)),
        "c1_b": 0.1 * jax.random.normal(keys[5], (4, HIDDEN), jnp.float32),
        "c1_beta": _xavier(keys[6], (3, HIDDEN)),
        # TransformerConv 2
        "c2_w": _xavier(keys[7], (4, HIDDEN, HIDDEN)),
        "c2_b": 0.1 * jax.random.normal(keys[8], (4, HIDDEN), jnp.float32),
        "c2_beta": _xavier(keys[9], (3, HIDDEN)),
        # LayerNorm affine params (row 0 = gamma, row 1 = beta), default init
        "ln1": jnp.concatenate([jnp.ones((1, HIDDEN), jnp.float32),
                                jnp.zeros((1, HIDDEN), jnp.float32)], axis=0),
        "ln2": jnp.concatenate([jnp.ones((1, HIDDEN), jnp.float32),
                                jnp.zeros((1, HIDDEN), jnp.float32)], axis=0),
    }

    ref = jax.block_until_ready(graph_trans_conv_ref(x, adj, params, adj_norm="true"))

    # f32-operand path: tight check of reordered GraphConv / fused projection /
    # online softmax / LayerNorm / padding logic.
    out_f32 = jax.block_until_ready(
        graph_trans_conv(x, adj, params, adj_norm="true", mxu_bf16=False))
    assert out_f32.shape == (N, HIDDEN)
    assert bool(jnp.all(jnp.isfinite(out_f32)))
    assert jnp.allclose(out_f32, ref, rtol=2e-2, atol=2e-2), "f32 kernel/reference mismatch"

    # Default fast path: bf16 weights / intermediates / MXU operands.
    # Looser, statistics-based check (bf16 rounding through 2 blocks).
    out = jax.block_until_ready(
        graph_trans_conv(x, adj, params, adj_norm="true", mxu_bf16=True))
    assert out.shape == (N, HIDDEN)
    assert bool(jnp.all(jnp.isfinite(out)))
    abs_err = jnp.abs(out - ref)
    assert float(jnp.mean(abs_err)) < 0.05, "bf16 kernel mean error too large"
    assert float(jnp.max(abs_err)) < 0.5, "bf16 kernel max error too large"

    print("KERNEL_OK")
</pallas_src>

<mosaic_0001>
module attributes {stable_mosaic.version = 11 : i64} {
  func.func @_gc_proj_kernel(%arg0: i32, %arg1: i32, %arg2: memref<256x256xf32, #tpu.memory_space<vmem>>, %arg3: memref<256x16xf32, #tpu.memory_space<vmem>>, %arg4: memref<256x1xf32, #tpu.memory_space<vmem>>, %arg5: memref<16x128xf32, #tpu.memory_space<vmem>>, %arg6: memref<128x512xf32, #tpu.memory_space<vmem>>, %arg7: memref<1x512xf32, #tpu.memory_space<vmem>>, %arg8: memref<3x256x128xf32, #tpu.memory_space<vmem>>, %arg9: memref<256x128xf32, #tpu.memory_space<vmem>>, %arg10: memref<256x16xf32, #tpu.memory_space<vmem>>) attributes {dimension_semantics = [#tpu.dimension_semantics<parallel>, #tpu.dimension_semantics<arbitrary>], iteration_bounds = array<i64: 1, 1>, scalar_prefetch = 0 : i64, scratch_operands = 1 : i64, tpu.core_type = #tpu.core_type<tc>, window_params = [{transform_indices = @transform_0, window_bounds = array<i64: 256, 256>}, {transform_indices = @transform_1, window_bounds = array<i64: 256, 16>}, {transform_indices = @transform_2, window_bounds = array<i64: 256, 1>}, {pipeline_mode = #tpu.pipeline_mode<synchronous>, transform_indices = @transform_3, window_bounds = array<i64: 16, 128>}, {pipeline_mode = #tpu.pipeline_mode<synchronous>, transform_indices = @transform_4, window_bounds = array<i64: 128, 512>}, {pipeline_mode = #tpu.pipeline_mode<synchronous>, transform_indices = @transform_5, window_bounds = array<i64: 1, 512>}, {transform_indices = @transform_6, window_bounds = array<i64: 3, 256, 128>}, {transform_indices = @transform_7, window_bounds = array<i64: 256, 128>}]} {
    %c0_i32 = arith.constant 0 : i32
    %0 = arith.cmpi eq, %arg1, %c0_i32 : i32
    %1 = arith.extui %0 : i1 to i32
    %c0_i32_0 = arith.constant 0 : i32
    %2 = arith.cmpi ne, %1, %c0_i32_0 : i32
    scf.if %2 {
      %cst_10 = arith.constant 0.000000e+00 : f32
      %12 = vector.broadcast %cst_10 : f32 to vector<256x16xf32>
      %c0_11 = arith.constant 0 : index
      %c0_12 = arith.constant 0 : index
      %13 = vector.load %arg10[%c0_11, %c0_12] : memref<256x16xf32, #tpu.memory_space<vmem>>, vector<256x16xf32>
      tpu.vector_store %arg10[%c0_11, %c0_12], %12 {strides = array<i32>} : memref<256x16xf32, #tpu.memory_space<vmem>>, vector<256x16xf32>,
    } else {
    }
    %c0 = arith.constant 0 : index
    %c0_1 = arith.constant 0 : index
    %3 = vector.load %arg10[%c0, %c0_1] : memref<256x16xf32, #tpu.memory_space<vmem>>, vector<256x16xf32>
    %c0_2 = arith.constant 0 : index
    %c0_3 = arith.constant 0 : index
    %4 = vector.load %arg2[%c0_2, %c0_3] : memref<256x256xf32, #tpu.memory_space<vmem>>, vector<256x256xf32>
    %c0_4 = arith.constant 0 : index
    %c0_5 = arith.constant 0 : index
    %5 = vector.load %arg3[%c0_4, %c0_5] : memref<256x16xf32, #tpu.memory_space<vmem>>, vector<256x16xf32>
    %cst = arith.constant dense<0.000000e+00> : vector<256x16xf32>
    %6 = tpu.matmul %4, %5, %cst {dimension_numbers = #tpu.dot_dimension_numbers<[1], [0], [0], [1], [0, 0, 1, 1], [], []>} : vector<256x256xf32>, vector<256x16xf32>, vector<256x16xf32> -> vector<256x16xf32>
    %7 = arith.addf %3, %6 : vector<256x16xf32>
    %c0_6 = arith.constant 0 : index
    %c0_7 = arith.constant 0 : index
    %8 = vector.load %arg10[%c0_6, %c0_7] : memref<256x16xf32, #tpu.memory_space<vmem>>, vector<256x16xf32>
    tpu.vector_store %arg10[%c0_6, %c0_7], %7 {strides = array<i32>} : memref<256x16xf32, #tpu.memory_space<vmem>>, vector<256x16xf32>,
    %c0_i32_8 = arith.constant 0 : i32
    %9 = arith.cmpi eq, %arg1, %c0_i32_8 : i32
    %10 = arith.extui %9 : i1 to i32
    %c0_i32_9 = arith.constant 0 : i32
    %11 = arith.cmpi ne, %10, %c0_i32_9 : i32
    scf.if %11 {
      %c0_10 = arith.constant 0 : index
      %c0_11 = arith.constant 0 : index
      %12 = vector.load %arg10[%c0_10, %c0_11] : memref<256x16xf32, #tpu.memory_space<vmem>>, vector<256x16xf32>
      %c0_12 = arith.constant 0 : index
      %c0_13 = arith.constant 0 : index
      %13 = vector.load %arg4[%c0_12, %c0_13] : memref<256x1xf32, #tpu.memory_space<vmem>>, vector<256x1xf32>
      %14 = vector.broadcast %13 : vector<256x1xf32> to vector<256x16xf32>
      %15 = arith.mulf %12, %14 : vector<256x16xf32>
      %c0_14 = arith.constant 0 : index
      %c0_15 = arith.constant 0 : index
      %16 = vector.load %arg5[%c0_14, %c0_15] : memref<16x128xf32, #tpu.memory_space<vmem>>, vector<16x128xf32>
      %cst_16 = arith.constant dense<0.000000e+00> : vector<256x128xf32>
      %17 = tpu.matmul %15, %16, %cst_16 {dimension_numbers = #tpu.dot_dimension_numbers<[1], [0], [0], [1], [0, 0, 1, 1], [], []>} : vector<256x16xf32>, vector<16x128xf32>, vector<256x128xf32> -> vector<256x128xf32>
      %cst_17 = arith.constant 0.000000e+00 : f32
      %18 = vector.broadcast %cst_17 : f32 to vector<256x128xf32>
      %19 = arith.maximumf %17, %18 : vector<256x128xf32>
      %c0_18 = arith.constant 0 : index
      %c0_19 = arith.constant 0 : index
      %20 = vector.load %arg6[%c0_18, %c0_19] : memref<128x512xf32, #tpu.memory_space<vmem>>, vector<128x512xf32>
      %cst_20 = arith.constant dense<0.000000e+00> : vector<256x512xf32>
      %21 = tpu.matmul %19, %20, %cst_20 {dimension_numbers = #tpu.dot_dimension_numbers<[1], [0], [0], [1], [0, 0, 1, 1], [], []>} : vector<256x128xf32>, vector<128x512xf32>, vector<256x512xf32> -> vector<256x512xf32>
      %c0_21 = arith.constant 0 : index
      %c0_22 = arith.constant 0 : index
      %22 = vector.load %arg7[%c0_21, %c0_22] : memref<1x512xf32, #tpu.memory_space<vmem>>, vector<1x512xf32>
      %23 = vector.broadcast %22 : vector<1x512xf32> to vector<256x512xf32>
      %24 = arith.addf %21, %23 : vector<256x512xf32>
      %25 = vector.extract_strided_slice %24 {offsets = [0, 0], sizes = [256, 128], strides = [1, 1]} : vector<256x512xf32> to vector<256x128xf32>
      %c0_23 = arith.constant 0 : index
      %c0_24 = arith.constant 0 : index
      %c0_25 = arith.constant 0 : index
      %26 = vector.load %arg8[%c0_23, %c0_24, %c0_25] : memref<3x256x128xf32, #tpu.memory_space<vmem>>, vector<1x256x128xf32>
      %27 = vector.shape_cast %26 : vector<1x256x128xf32> to vector<256x128xf32>
      %28 = vector.shape_cast %25 : vector<256x128xf32> to vector<1x256x128xf32>
      tpu.vector_store %arg8[%c0_23, %c0_24, %c0_25], %28 {strides = array<i32>} : memref<3x256x128xf32, #tpu.memory_space<vmem>>, vector<1x256x128xf32>,
      %29 = vector.extract_strided_slice %24 {offsets = [0, 128], sizes = [256, 128], strides = [1, 1]} : vector<256x512xf32> to vector<256x128xf32>
      %c1 = arith.constant 1 : index
      %c0_26 = arith.constant 0 : index
      %c0_27 = arith.constant 0 : index
      %30 = vector.load %arg8[%c1, %c0_26, %c0_27] : memref<3x256x128xf32, #tpu.memory_space<vmem>>, vector<1x256x128xf32>
      %31 = vector.shape_cast %30 : vector<1x256x128xf32> to vector<256x128xf32>
      %32 = vector.shape_cast %29 : vector<256x128xf32> to vector<1x256x128xf32>
      tpu.vector_store %arg8[%c1, %c0_26, %c0_27], %32 {strides = array<i32>} : memref<3x256x128xf32, #tpu.memory_space<vmem>>, vector<1x256x128xf32>,
      %33 = vector.extract_strided_slice %24 {offsets = [0, 256], sizes = [256, 128], strides = [1, 1]} : vector<256x512xf32> to vector<256x128xf32>
      %c2 = arith.constant 2 : index
      %c0_28 = arith.constant 0 : index
      %c0_29 = arith.constant 0 : index
      %34 = vector.load %arg8[%c2, %c0_28, %c0_29] : memref<3x256x128xf32, #tpu.memory_space<vmem>>, vector<1x256x128xf32>
      %35 = vector.shape_cast %34 : vector<1x256x128xf32> to vector<256x128xf32>
      %36 = vector.shape_cast %33 : vector<256x128xf32> to vector<1x256x128xf32>
      tpu.vector_store %arg8[%c2, %c0_28, %c0_29], %36 {strides = array<i32>} : memref<3x256x128xf32, #tpu.memory_space<vmem>>, vector<1x256x128xf32>,
      %37 = vector.extract_strided_slice %24 {offsets = [0, 384], sizes = [256, 128], strides = [1, 1]} : vector<256x512xf32> to vector<256x128xf32>
      %c0_30 = arith.constant 0 : index
      %c0_31 = arith.constant 0 : index
      %38 = vector.load %arg9[%c0_30, %c0_31] : memref<256x128xf32, #tpu.memory_space<vmem>>, vector<256x128xf32>
      tpu.vector_store %arg9[%c0_30, %c0_31], %37 {strides = array<i32>} : memref<256x128xf32, #tpu.memory_space<vmem>>, vector<256x128xf32>,
    } else {
    }
    return
  }
  func.func @transform_0(%arg0: i32, %arg1: i32) -> (i32, i32) {
    %c0_i32 = arith.constant 0 : i32
    return %arg0, %arg1 : i32, i32
  }
  func.func @transform_1(%arg0: i32, %arg1: i32) -> (i32, i32) {
    %c0_i32 = arith.constant 0 : i32
    %c0_i32_0 = arith.constant 0 : i32
    return %arg1, %c0_i32 : i32, i32
  }
  func.func @transform_2(%arg0: i32, %arg1: i32) -> (i32, i32) {
    %c0_i32 = arith.constant 0 : i32
    %c0_i32_0 = arith.constant 0 : i32
    return %arg0, %c0_i32 : i32, i32
  }
  func.func @transform_3(%arg0: i32, %arg1: i32) -> (i32, i32) {
    %c0_i32 = arith.constant 0 : i32
    %c0_i32_0 = arith.constant 0 : i32
    %c0_i32_1 = arith.constant 0 : i32
    return %c0_i32, %c0_i32_0 : i32, i32
  }
  func.func @transform_4(%arg0: i32, %arg1: i32) -> (i32, i32) {
    %c0_i32 = arith.constant 0 : i32
    %c0_i32_0 = arith.constant 0 : i32
    %c0_i32_1 = arith.constant 0 : i32
    return %c0_i32, %c0_i32_0 : i32, i32
  }
  func.func @transform_5(%arg0: i32, %arg1: i32) -> (i32, i32) {
    %c0_i32 = arith.constant 0 : i32
    %c0_i32_0 = arith.constant 0 : i32
    %c0_i32_1 = arith.constant 0 : i32
    return %c0_i32, %c0_i32_0 : i32, i32
  }
  func.func @transform_6(%arg0: i32, %arg1: i32) -> (i32, i32, i32) {
    %c0_i32 = arith.constant 0 : i32
    %c0_i32_0 = arith.constant 0 : i32
    %c0_i32_1 = arith.constant 0 : i32
    return %c0_i32, %arg0, %c0_i32_0 : i32, i32, i32
  }
  func.func @transform_7(%arg0: i32, %arg1: i32) -> (i32, i32) {
    %c0_i32 = arith.constant 0 : i32
    %c0_i32_0 = arith.constant 0 : i32
    return %arg0, %c0_i32 : i32, i32
  }
}

module attributes {stable_mosaic.version = 11 : i64} {
  func.func @_attn_ln_kernel(%arg0: i32, %arg1: i32, %arg2: memref<1x256x128xf32, #tpu.memory_space<vmem>>, %arg3: memref<1x256x128xf32, #tpu.memory_space<vmem>>, %arg4: memref<1x256x128xf32, #tpu.memory_space<vmem>>, %arg5: memref<256x128xf32, #tpu.memory_space<vmem>>, %arg6: memref<256x256xi8, #tpu.memory_space<vmem>>, %arg7: memref<3x128xf32, #tpu.memory_space<vmem>>, %arg8: memref<2x128xf32, #tpu.memory_space<vmem>>, %arg9: memref<256x128xf32, #tpu.memory_space<vmem>>, %arg10: memref<256x1xf32, #tpu.memory_space<vmem>>, %arg11: memref<256x1xf32, #tpu.memory_space<vmem>>, %arg12: memref<256x128xf32, #tpu.memory_space<vmem>>) attributes {dimension_semantics = [#tpu.dimension_semantics<parallel>, #tpu.dimension_semantics<arbitrary>], iteration_bounds = array<i64: 1, 1>, scalar_prefetch = 0 : i64, scratch_operands = 3 : i64, tpu.core_type = #tpu.core_type<tc>, window_params = [{transform_indices = @transform_0, window_bounds = array<i64: 1, 256, 128>}, {transform_indices = @transform_1, window_bounds = array<i64: 1, 256, 128>}, {transform_indices = @transform_2, window_bounds = array<i64: 1, 256, 128>}, {transform_indices = @transform_3, window_bounds = array<i64: 256, 128>}, {transform_indices = @transform_4, window_bounds = array<i64: 256, 256>}, {pipeline_mode = #tpu.pipeline_mode<synchronous>, transform_indices = @transform_5, window_bounds = array<i64: 3, 128>}, {pipeline_mode = #tpu.pipeline_mode<synchronous>, transform_indices = @transform_6, window_bounds = array<i64: 2, 128>}, {transform_indices = @transform_7, window_bounds = array<i64: 256, 128>}]} {
    %c0_i32 = arith.constant 0 : i32
    %0 = arith.cmpi eq, %arg1, %c0_i32 : i32
    %1 = arith.extui %0 : i1 to i32
    %c0_i32_0 = arith.constant 0 : i32
    %2 = arith.cmpi ne, %1, %c0_i32_0 : i32
    scf.if %2 {
      %cst_32 = arith.constant -1.000000e+30 : f32
      %43 = vector.broadcast %cst_32 : f32 to vector<256x1xf32>
      %c0_33 = arith.constant 0 : index
      %c0_34 = arith.constant 0 : index
      %44 = vector.load %arg10[%c0_33, %c0_34] : memref<256x1xf32, #tpu.memory_space<vmem>>, vector<256x1xf32>
      tpu.vector_store %arg10[%c0_33, %c0_34], %43 {strides = array<i32>} : memref<256x1xf32, #tpu.memory_space<vmem>>, vector<256x1xf32>,
      %cst_35 = arith.constant 0.000000e+00 : f32
      %45 = vector.broadcast %cst_35 : f32 to vector<256x1xf32>
      %c0_36 = arith.constant 0 : index
      %c0_37 = arith.constant 0 : index
      %46 = vector.load %arg11[%c0_36, %c0_37] : memref<256x1xf32, #tpu.memory_space<vmem>>, vector<256x1xf32>
      tpu.vector_store %arg11[%c0_36, %c0_37], %45 {strides = array<i32>} : memref<256x1xf32, #tpu.memory_space<vmem>>, vector<256x1xf32>,
      %cst_38 = arith.constant 0.000000e+00 : f32
      %47 = vector.broadcast %cst_38 : f32 to vector<256x128xf32>
      %c0_39 = arith.constant 0 : index
      %c0_40 = arith.constant 0 : index
      %48 = vector.load %arg12[%c0_39, %c0_40] : memref<256x128xf32, #tpu.memory_space<vmem>>, vector<256x128xf32>
      tpu.vector_store %arg12[%c0_39, %c0_40], %47 {strides = array<i32>} : memref<256x128xf32, #tpu.memory_space<vmem>>, vector<256x128xf32>,
    } else {
    }
    %c0 = arith.constant 0 : index
    %c0_1 = arith.constant 0 : index
    %c0_2 = arith.constant 0 : index
    %3 = vector.load %arg2[%c0, %c0_1, %c0_2] : memref<1x256x128xf32, #tpu.memory_space<vmem>>, vector<1x256x128xf32>
    %4 = vector.shape_cast %3 : vector<1x256x128xf32> to vector<256x128xf32>
    %c0_3 = arith.constant 0 : index
    %c0_4 = arith.constant 0 : index
    %c0_5 = arith.constant 0 : index
    %5 = vector.load %arg3[%c0_3, %c0_4, %c0_5] : memref<1x256x128xf32, #tpu.memory_space<vmem>>, vector<1x256x128xf32>
    %6 = vector.shape_cast %5 : vector<1x256x128xf32> to vector<256x128xf32>
    %cst = arith.constant dense<0.000000e+00> : vector<256x256xf32>
    %7 = tpu.matmul %4, %6, %cst {dimension_numbers = #tpu.dot_dimension_numbers<[1], [1], [0], [0], [0, 0, 1, 0], [], []>} : vector<256x128xf32>, vector<256x128xf32>, vector<256x256xf32> -> vector<256x256xf32>
    %c0_6 = arith.constant 0 : index
    %c0_7 = arith.constant 0 : index
    %8 = vector.load %arg6[%c0_6, %c0_7] : memref<256x256xi8, #tpu.memory_space<vmem>>, vector<256x256xi8>
    %c0_i8 = arith.constant 0 : i8
    %9 = vector.broadcast %c0_i8 : i8 to vector<256x256xi8>
    %10 = arith.cmpi ne, %8, %9 : vector<256x256xi8>
    %cst_8 = arith.constant -1.000000e+30 : f32
    %11 = vector.broadcast %cst_8 : f32 to vector<256x256xf32>
    %12 = arith.select %10, %7, %11 : vector<256x256xi1>, vector<256x256xf32>
    %c0_9 = arith.constant 0 : index
    %c0_10 = arith.constant 0 : index
    %13 = vector.load %arg10[%c0_9, %c0_10] : memref<256x1xf32, #tpu.memory_space<vmem>>, vector<256x1xf32>
    %cst_11 = arith.constant dense<0xFF800000> : vector<256xf32>
    %14 = vector.multi_reduction <maximumf>, %12, %cst_11 [1] : vector<256x256xf32> to vector<256xf32>
    %15 = vector.shape_cast %14 : vector<256xf32> to vector<256x1xf32>
    %16 = arith.maximumf %13, %15 : vector<256x1xf32>
    %c0_12 = arith.constant 0 : index
    %c0_13 = arith.constant 0 : index
    %17 = vector.load %arg10[%c0_12, %c0_13] : memref<256x1xf32, #tpu.memory_space<vmem>>, vector<256x1xf32>
    %18 = arith.subf %17, %16 : vector<256x1xf32>
    %19 = math.exp %18 : vector<256x1xf32>
    %20 = vector.broadcast %16 : vector<256x1xf32> to vector<256x256xf32>
    %21 = arith.subf %12, %20 : vector<256x256xf32>
    %22 = math.exp %21 : vector<256x256xf32>
    %cst_14 = arith.constant 0.000000e+00 : f32
    %23 = vector.broadcast %cst_14 : f32 to vector<256x256xf32>
    %24 = arith.select %10, %22, %23 : vector<256x256xi1>, vector<256x256xf32>
    %c0_15 = arith.constant 0 : index
    %c0_16 = arith.constant 0 : index
    %25 = vector.load %arg11[%c0_15, %c0_16] : memref<256x1xf32, #tpu.memory_space<vmem>>, vector<256x1xf32>
    %26 = arith.mulf %19, %25 : vector<256x1xf32>
    %cst_17 = arith.constant dense<0.000000e+00> : vector<256xf32>
    %27 = vector.multi_reduction <add>, %24, %cst_17 [1] : vector<256x256xf32> to vector<256xf32>
    %28 = vector.shape_cast %27 : vector<256xf32> to vector<256x1xf32>
    %29 = arith.addf %26, %28 : vector<256x1xf32>
    %c0_18 = arith.constant 0 : index
    %c0_19 = arith.constant 0 : index
    %30 = vector.load %arg11[%c0_18, %c0_19] : memref<256x1xf32, #tpu.memory_space<vmem>>, vector<256x1xf32>
    tpu.vector_store %arg11[%c0_18, %c0_19], %29 {strides = array<i32>} : memref<256x1xf32, #tpu.memory_space<vmem>>, vector<256x1xf32>,
    %c0_20 = arith.constant 0 : index
    %c0_21 = arith.constant 0 : index
    %31 = vector.load %arg12[%c0_20, %c0_21] : memref<256x128xf32, #tpu.memory_space<vmem>>, vector<256x128xf32>
    %32 = vector.broadcast %19 : vector<256x1xf32> to vector<256x128xf32>
    %33 = arith.mulf %32, %31 : vector<256x128xf32>
    %c0_22 = arith.constant 0 : index
    %c0_23 = arith.constant 0 : index
    %c0_24 = arith.constant 0 : index
    %34 = vector.load %arg4[%c0_22, %c0_23, %c0_24] : memref<1x256x128xf32, #tpu.memory_space<vmem>>, vector<1x256x128xf32>
    %35 = vector.shape_cast %34 : vector<1x256x128xf32> to vector<256x128xf32>
    %cst_25 = arith.constant dense<0.000000e+00> : vector<256x128xf32>
    %36 = tpu.matmul %24, %35, %cst_25 {dimension_numbers = #tpu.dot_dimension_numbers<[1], [0], [0], [1], [0, 0, 1, 1], [], []>} : vector<256x256xf32>, vector<256x128xf32>, vector<256x128xf32> -> vector<256x128xf32>
    %37 = arith.addf %33, %36 : vector<256x128xf32>
    %c0_26 = arith.constant 0 : index
    %c0_27 = arith.constant 0 : index
    %38 = vector.load %arg12[%c0_26, %c0_27] : memref<256x128xf32, #tpu.memory_space<vmem>>, vector<256x128xf32>
    tpu.vector_store %arg12[%c0_26, %c0_27], %37 {strides = array<i32>} : memref<256x128xf32, #tpu.memory_space<vmem>>, vector<256x128xf32>,
    %c0_28 = arith.constant 0 : index
    %c0_29 = arith.constant 0 : index
    %39 = vector.load %arg10[%c0_28, %c0_29] : memref<256x1xf32, #tpu.memory_space<vmem>>, vector<256x1xf32>
    tpu.vector_store %arg10[%c0_28, %c0_29], %16 {strides = array<i32>} : memref<256x1xf32, #tpu.memory_space<vmem>>, vector<256x1xf32>,
    %c0_i32_30 = arith.constant 0 : i32
    %40 = arith.cmpi eq, %arg1, %c0_i32_30 : i32
    %41 = arith.extui %40 : i1 to i32
    %c0_i32_31 = arith.constant 0 : i32
    %42 = arith.cmpi ne, %41, %c0_i32_31 : i32
    scf.if %42 {
      %c0_32 = arith.constant 0 : index
      %c0_33 = arith.constant 0 : index
      %43 = vector.load %arg11[%c0_32, %c0_33] : memref<256x1xf32, #tpu.memory_space<vmem>>, vector<256x1xf32>
      %cst_34 = arith.constant 0.000000e+00 : f32
      %44 = vector.broadcast %cst_34 : f32 to vector<256x1xf32>
      %45 = arith.cmpf ogt, %43, %44 : vector<256x1xf32>
      %46 = tpu.reciprocal %43 {approx = true} : vector<256x1xf32> -> vector<256x1xf32>
      %cst_35 = arith.constant 0.000000e+00 : f32
      %47 = vector.broadcast %cst_35 : f32 to vector<256x1xf32>
      %48 = arith.select %45, %46, %47 : vector<256x1xi1>, vector<256x1xf32>
      %c0_36 = arith.constant 0 : index
      %c0_37 = arith.constant 0 : index
      %49 = vector.load %arg12[%c0_36, %c0_37] : memref<256x128xf32, #tpu.memory_space<vmem>>, vector<256x128xf32>
      %50 = vector.broadcast %48 : vector<256x1xf32> to vector<256x128xf32>
      %51 = arith.mulf %49, %50 : vector<256x128xf32>
      %c0_38 = arith.constant 0 : index
      %c0_39 = arith.constant 0 : index
      %52 = vector.load %arg5[%c0_38, %c0_39] : memref<256x128xf32, #tpu.memory_space<vmem>>, vector<256x128xf32>
      %c0_40 = arith.constant 0 : index
      %c0_41 = arith.constant 0 : index
      %53 = vector.load %arg7[%c0_40, %c0_41] : memref<3x128xf32, #tpu.memory_space<vmem>>, vector<3x128xf32>
      %54 = vector.extract_strided_slice %53 {offsets = [0, 0], sizes = [1, 128], strides = [1, 1]} : vector<3x128xf32> to vector<1x128xf32>
      %55 = vector.broadcast %54 : vector<1x128xf32> to vector<256x128xf32>
      %56 = arith.mulf %51, %55 : vector<256x128xf32>
      %57 = vector.extract_strided_slice %53 {offsets = [1, 0], sizes = [1, 128], strides = [1, 1]} : vector<3x128xf32> to vector<1x128xf32>
      %58 = vector.broadcast %57 : vector<1x128xf32> to vector<256x128xf32>
      %59 = arith.mulf %52, %58 : vector<256x128xf32>
      %60 = arith.addf %56, %59 : vector<256x128xf32>
      %61 = arith.subf %51, %52 : vector<256x128xf32>
      %62 = vector.extract_strided_slice %53 {offsets = [2, 0], sizes = [1, 128], strides = [1, 1]} : vector<3x128xf32> to vector<1x128xf32>
      %63 = vector.broadcast %62 : vector<1x128xf32> to vector<256x128xf32>
      %64 = arith.mulf %61, %63 : vector<256x128xf32>
      %65 = arith.addf %60, %64 : vector<256x128xf32>
      %cst_42 = arith.constant dense<0.000000e+00> : vector<256xf32>
      %66 = vector.multi_reduction <add>, %65, %cst_42 [1] : vector<256x128xf32> to vector<256xf32>
      %67 = vector.shape_cast %66 : vector<256xf32> to vector<256x1xf32>
      %68 = arith.negf %67 : vector<256x1xf32>
      %69 = math.exp %68 : vector<256x1xf32>
      %cst_43 = arith.constant 1.000000e+00 : f32
      %70 = vector.broadcast %cst_43 : f32 to vector<256x1xf32>
      %71 = arith.addf %70, %69 : vector<256x1xf32>
      %72 = arith.divf %70, %71 : vector<256x1xf32>
      %73 = vector.broadcast %72 : vector<256x1xf32> to vector<256x128xf32>
      %74 = arith.mulf %73, %52 : vector<256x128xf32>
      %cst_44 = arith.constant 1.000000e+00 : f32
      %75 = vector.broadcast %cst_44 : f32 to vector<256x1xf32>
      %76 = arith.subf %75, %72 : vector<256x1xf32>
      %77 = vector.broadcast %76 : vector<256x1xf32> to vector<256x128xf32>
      %78 = arith.mulf %77, %51 : vector<256x128xf32>
      %79 = arith.addf %74, %78 : vector<256x128xf32>
      %80 = tpu.iota {dimensions = array<i32: 1>} : vector<256x128xi32>
      %c32_i32 = arith.constant 32 : i32
      %81 = vector.broadcast %c32_i32 : i32 to vector<256x128xi32>
      %82 = arith.cmpi slt, %80, %81 : vector<256x128xi32>
      %cst_45 = arith.constant dense<0.000000e+00> : vector<256xf32>
      %83 = vector.multi_reduction <add>, %79, %cst_45 [1] : vector<256x128xf32> to vector<256xf32>
      %84 = vector.shape_cast %83 : vector<256xf32> to vector<256x1xf32>
      %cst_46 = arith.constant 3.125000e-02 : f32
      %85 = vector.broadcast %cst_46 : f32 to vector<256x1xf32>
      %86 = arith.mulf %84, %85 : vector<256x1xf32>
      %87 = vector.broadcast %86 : vector<256x1xf32> to vector<256x128xf32>
      %88 = arith.subf %79, %87 : vector<256x128xf32>
      %cst_47 = arith.constant 0.000000e+00 : f32
      %89 = vector.broadcast %cst_47 : f32 to vector<256x128xf32>
      %90 = arith.select %82, %88, %89 : vector<256x128xi1>, vector<256x128xf32>
      %91 = arith.mulf %90, %90 : vector<256x128xf32>
      %cst_48 = arith.constant dense<0.000000e+00> : vector<256xf32>
      %92 = vector.multi_reduction <add>, %91, %cst_48 [1] : vector<256x128xf32> to vector<256xf32>
      %93 = vector.shape_cast %92 : vector<256xf32> to vector<256x1xf32>
      %cst_49 = arith.constant 3.125000e-02 : f32
      %94 = vector.broadcast %cst_49 : f32 to vector<256x1xf32>
      %95 = arith.mulf %93, %94 : vector<256x1xf32>
      %cst_50 = arith.constant 9.99999974E-6 : f32
      %96 = vector.broadcast %cst_50 : f32 to vector<256x1xf32>
      %97 = arith.addf %95, %96 : vector<256x1xf32>
      %98 = math.rsqrt %97 : vector<256x1xf32>
      %99 = vector.broadcast %98 : vector<256x1xf32> to vector<256x128xf32>
      %100 = arith.mulf %90, %99 : vector<256x128xf32>
      %c0_51 = arith.constant 0 : index
      %c0_52 = arith.constant 0 : index
      %101 = vector.load %arg8[%c0_51, %c0_52] : memref<2x128xf32, #tpu.memory_space<vmem>>, vector<1x128xf32>
      %102 = vector.broadcast %101 : vector<1x128xf32> to vector<256x128xf32>
      %103 = arith.mulf %100, %102 : vector<256x128xf32>
      %c1 = arith.constant 1 : index
      %c0_53 = arith.constant 0 : index
      %104 = vector.load %arg8[%c1, %c0_53] : memref<2x128xf32, #tpu.memory_space<vmem>>, vector<1x128xf32>
      %105 = vector.broadcast %104 : vector<1x128xf32> to vector<256x128xf32>
      %106 = arith.addf %103, %105 : vector<256x128xf32>
      %cst_54 = arith.constant 0.000000e+00 : f32
      %107 = vector.broadcast %cst_54 : f32 to vector<256x128xf32>
      %108 = arith.maximumf %106, %107 : vector<256x128xf32>
      %c0_55 = arith.constant 0 : index
      %c0_56 = arith.constant 0 : index
      %109 = vector.load %arg9[%c0_55, %c0_56] : memref<256x128xf32, #tpu.memory_space<vmem>>, vector<256x128xf32>
      tpu.vector_store %arg9[%c0_55, %c0_56], %108 {strides = array<i32>} : memref<256x128xf32, #tpu.memory_space<vmem>>, vector<256x128xf32>,
    } else {
    }
    return
  }
  func.func @transform_0(%arg0: i32, %arg1: i32) -> (i32, i32, i32) {
    %c0_i32 = arith.constant 0 : i32
    %c0_i32_0 = arith.constant 0 : i32
    %c0_i32_1 = arith.constant 0 : i32
    return %c0_i32, %arg0, %c0_i32_0 : i32, i32, i32
  }
  func.func @transform_1(%arg0: i32, %arg1: i32) -> (i32, i32, i32) {
    %c1_i32 = arith.constant 1 : i32
    %c0_i32 = arith.constant 0 : i32
    %c0_i32_0 = arith.constant 0 : i32
    return %c1_i32, %arg1, %c0_i32 : i32, i32, i32
  }
  func.func @transform_2(%arg0: i32, %arg1: i32) -> (i32, i32, i32) {
    %c2_i32 = arith.constant 2 : i32
    %c0_i32 = arith.constant 0 : i32
    %c0_i32_0 = arith.constant 0 : i32
    return %c2_i32, %arg1, %c0_i32 : i32, i32, i32
  }
  func.func @transform_3(%arg0: i32, %arg1: i32) -> (i32, i32) {
    %c0_i32 = arith.constant 0 : i32
    %c0_i32_0 = arith.constant 0 : i32
    return %arg0, %c0_i32 : i32, i32
  }
  func.func @transform_4(%arg0: i32, %arg1: i32) -> (i32, i32) {
    %c0_i32 = arith.constant 0 : i32
    return %arg0, %arg1 : i32, i32
  }
  func.func @transform_5(%arg0: i32, %arg1: i32) -> (i32, i32) {
    %c0_i32 = arith.constant 0 : i32
    %c0_i32_0 = arith.constant 0 : i32
    %c0_i32_1 = arith.constant 0 : i32
    return %c0_i32, %c0_i32_0 : i32, i32
  }
  func.func @transform_6(%arg0: i32, %arg1: i32) -> (i32, i32) {
    %c0_i32 = arith.constant 0 : i32
    %c0_i32_0 = arith.constant 0 : i32
    %c0_i32_1 = arith.constant 0 : i32
    return %c0_i32, %c0_i32_0 : i32, i32
  }
  func.func @transform_7(%arg0: i32, %arg1: i32) -> (i32, i32) {
    %c0_i32 = arith.constant 0 : i32
    %c0_i32_0 = arith.constant 0 : i32
    return %arg0, %c0_i32 : i32, i32
  }
}

module attributes {stable_mosaic.version = 11 : i64} {
  func.func @_gc_proj_kernel(%arg0: i32, %arg1: i32, %arg2: memref<256x256xf32, #tpu.memory_space<vmem>>, %arg3: memref<256x128xf32, #tpu.memory_space<vmem>>, %arg4: memref<256x1xf32, #tpu.memory_space<vmem>>, %arg5: memref<128x128xf32, #tpu.memory_space<vmem>>, %arg6: memref<128x512xf32, #tpu.memory_space<vmem>>, %arg7: memref<1x512xf32, #tpu.memory_space<vmem>>, %arg8: memref<3x256x128xf32, #tpu.memory_space<vmem>>, %arg9: memref<256x128xf32, #tpu.memory_space<vmem>>, %arg10: memref<256x128xf32, #tpu.memory_space<vmem>>) attributes {dimension_semantics = [#tpu.dimension_semantics<parallel>, #tpu.dimension_semantics<arbitrary>], iteration_bounds = array<i64: 1, 1>, scalar_prefetch = 0 : i64, scratch_operands = 1 : i64, tpu.core_type = #tpu.core_type<tc>, window_params = [{transform_indices = @transform_0, window_bounds = array<i64: 256, 256>}, {transform_indices = @transform_1, window_bounds = array<i64: 256, 128>}, {transform_indices = @transform_2, window_bounds = array<i64: 256, 1>}, {pipeline_mode = #tpu.pipeline_mode<synchronous>, transform_indices = @transform_3, window_bounds = array<i64: 128, 128>}, {pipeline_mode = #tpu.pipeline_mode<synchronous>, transform_indices = @transform_4, window_bounds = array<i64: 128, 512>}, {pipeline_mode = #tpu.pipeline_mode<synchronous>, transform_indices = @transform_5, window_bounds = array<i64: 1, 512>}, {transform_indices = @transform_6, window_bounds = array<i64: 3, 256, 128>}, {transform_indices = @transform_7, window_bounds = array<i64: 256, 128>}]} {
    %c0_i32 = arith.constant 0 : i32
    %0 = arith.cmpi eq, %arg1, %c0_i32 : i32
    %1 = arith.extui %0 : i1 to i32
    %c0_i32_0 = arith.constant 0 : i32
    %2 = arith.cmpi ne, %1, %c0_i32_0 : i32
    scf.if %2 {
      %cst_10 = arith.constant 0.000000e+00 : f32
      %12 = vector.broadcast %cst_10 : f32 to vector<256x128xf32>
      %c0_11 = arith.constant 0 : index
      %c0_12 = arith.constant 0 : index
      %13 = vector.load %arg10[%c0_11, %c0_12] : memref<256x128xf32, #tpu.memory_space<vmem>>, vector<256x128xf32>
      tpu.vector_store %arg10[%c0_11, %c0_12], %12 {strides = array<i32>} : memref<256x128xf32, #tpu.memory_space<vmem>>, vector<256x128xf32>,
    } else {
    }
    %c0 = arith.constant 0 : index
    %c0_1 = arith.constant 0 : index
    %3 = vector.load %arg10[%c0, %c0_1] : memref<256x128xf32, #tpu.memory_space<vmem>>, vector<256x128xf32>
    %c0_2 = arith.constant 0 : index
    %c0_3 = arith.constant 0 : index
    %4 = vector.load %arg2[%c0_2, %c0_3] : memref<256x256xf32, #tpu.memory_space<vmem>>, vector<256x256xf32>
    %c0_4 = arith.constant 0 : index
    %c0_5 = arith.constant 0 : index
    %5 = vector.load %arg3[%c0_4, %c0_5] : memref<256x128xf32, #tpu.memory_space<vmem>>, vector<256x128xf32>
    %cst = arith.constant dense<0.000000e+00> : vector<256x128xf32>
    %6 = tpu.matmul %4, %5, %cst {dimension_numbers = #tpu.dot_dimension_numbers<[1], [0], [0], [1], [0, 0, 1, 1], [], []>} : vector<256x256xf32>, vector<256x128xf32>, vector<256x128xf32> -> vector<256x128xf32>
    %7 = arith.addf %3, %6 : vector<256x128xf32>
    %c0_6 = arith.constant 0 : index
    %c0_7 = arith.constant 0 : index
    %8 = vector.load %arg10[%c0_6, %c0_7] : memref<256x128xf32, #tpu.memory_space<vmem>>, vector<256x128xf32>
    tpu.vector_store %arg10[%c0_6, %c0_7], %7 {strides = array<i32>} : memref<256x128xf32, #tpu.memory_space<vmem>>, vector<256x128xf32>,
    %c0_i32_8 = arith.constant 0 : i32
    %9 = arith.cmpi eq, %arg1, %c0_i32_8 : i32
    %10 = arith.extui %9 : i1 to i32
    %c0_i32_9 = arith.constant 0 : i32
    %11 = arith.cmpi ne, %10, %c0_i32_9 : i32
    scf.if %11 {
      %c0_10 = arith.constant 0 : index
      %c0_11 = arith.constant 0 : index
      %12 = vector.load %arg10[%c0_10, %c0_11] : memref<256x128xf32, #tpu.memory_space<vmem>>, vector<256x128xf32>
      %c0_12 = arith.constant 0 : index
      %c0_13 = arith.constant 0 : index
      %13 = vector.load %arg4[%c0_12, %c0_13] : memref<256x1xf32, #tpu.memory_space<vmem>>, vector<256x1xf32>
      %14 = vector.broadcast %13 : vector<256x1xf32> to vector<256x128xf32>
      %15 = arith.mulf %12, %14 : vector<256x128xf32>
      %c0_14 = arith.constant 0 : index
      %c0_15 = arith.constant 0 : index
      %16 = vector.load %arg5[%c0_14, %c0_15] : memref<128x128xf32, #tpu.memory_space<vmem>>, vector<128x128xf32>
      %cst_16 = arith.constant dense<0.000000e+00> : vector<256x128xf32>
      %17 = tpu.matmul %15, %16, %cst_16 {dimension_numbers = #tpu.dot_dimension_numbers<[1], [0], [0], [1], [0, 0, 1, 1], [], []>} : vector<256x128xf32>, vector<128x128xf32>, vector<256x128xf32> -> vector<256x128xf32>
      %cst_17 = arith.constant 0.000000e+00 : f32
      %18 = vector.broadcast %cst_17 : f32 to vector<256x128xf32>
      %19 = arith.maximumf %17, %18 : vector<256x128xf32>
      %c0_18 = arith.constant 0 : index
      %c0_19 = arith.constant 0 : index
      %20 = vector.load %arg6[%c0_18, %c0_19] : memref<128x512xf32, #tpu.memory_space<vmem>>, vector<128x512xf32>
      %cst_20 = arith.constant dense<0.000000e+00> : vector<256x512xf32>
      %21 = tpu.matmul %19, %20, %cst_20 {dimension_numbers = #tpu.dot_dimension_numbers<[1], [0], [0], [1], [0, 0, 1, 1], [], []>} : vector<256x128xf32>, vector<128x512xf32>, vector<256x512xf32> -> vector<256x512xf32>
      %c0_21 = arith.constant 0 : index
      %c0_22 = arith.constant 0 : index
      %22 = vector.load %arg7[%c0_21, %c0_22] : memref<1x512xf32, #tpu.memory_space<vmem>>, vector<1x512xf32>
      %23 = vector.broadcast %22 : vector<1x512xf32> to vector<256x512xf32>
      %24 = arith.addf %21, %23 : vector<256x512xf32>
      %25 = vector.extract_strided_slice %24 {offsets = [0, 0], sizes = [256, 128], strides = [1, 1]} : vector<256x512xf32> to vector<256x128xf32>
      %c0_23 = arith.constant 0 : index
      %c0_24 = arith.constant 0 : index
      %c0_25 = arith.constant 0 : index
      %26 = vector.load %arg8[%c0_23, %c0_24, %c0_25] : memref<3x256x128xf32, #tpu.memory_space<vmem>>, vector<1x256x128xf32>
      %27 = vector.shape_cast %26 : vector<1x256x128xf32> to vector<256x128xf32>
      %28 = vector.shape_cast %25 : vector<256x128xf32> to vector<1x256x128xf32>
      tpu.vector_store %arg8[%c0_23, %c0_24, %c0_25], %28 {strides = array<i32>} : memref<3x256x128xf32, #tpu.memory_space<vmem>>, vector<1x256x128xf32>,
      %29 = vector.extract_strided_slice %24 {offsets = [0, 128], sizes = [256, 128], strides = [1, 1]} : vector<256x512xf32> to vector<256x128xf32>
      %c1 = arith.constant 1 : index
      %c0_26 = arith.constant 0 : index
      %c0_27 = arith.constant 0 : index
      %30 = vector.load %arg8[%c1, %c0_26, %c0_27] : memref<3x256x128xf32, #tpu.memory_space<vmem>>, vector<1x256x128xf32>
      %31 = vector.shape_cast %30 : vector<1x256x128xf32> to vector<256x128xf32>
      %32 = vector.shape_cast %29 : vector<256x128xf32> to vector<1x256x128xf32>
      tpu.vector_store %arg8[%c1, %c0_26, %c0_27], %32 {strides = array<i32>} : memref<3x256x128xf32, #tpu.memory_space<vmem>>, vector<1x256x128xf32>,
      %33 = vector.extract_strided_slice %24 {offsets = [0, 256], sizes = [256, 128], strides = [1, 1]} : vector<256x512xf32> to vector<256x128xf32>
      %c2 = arith.constant 2 : index
      %c0_28 = arith.constant 0 : index
      %c0_29 = arith.constant 0 : index
      %34 = vector.load %arg8[%c2, %c0_28, %c0_29] : memref<3x256x128xf32, #tpu.memory_space<vmem>>, vector<1x256x128xf32>
      %35 = vector.shape_cast %34 : vector<1x256x128xf32> to vector<256x128xf32>
      %36 = vector.shape_cast %33 : vector<256x128xf32> to vector<1x256x128xf32>
      tpu.vector_store %arg8[%c2, %c0_28, %c0_29], %36 {strides = array<i32>} : memref<3x256x128xf32, #tpu.memory_space<vmem>>, vector<1x256x128xf32>,
      %37 = vector.extract_strided_slice %24 {offsets = [0, 384], sizes = [256, 128], strides = [1, 1]} : vector<256x512xf32> to vector<256x128xf32>
      %c0_30 = arith.constant 0 : index
      %c0_31 = arith.constant 0 : index
      %38 = vector.load %arg9[%c0_30, %c0_31] : memref<256x128xf32, #tpu.memory_space<vmem>>, vector<256x128xf32>
      tpu.vector_store %arg9[%c0_30, %c0_31], %37 {strides = array<i32>} : memref<256x128xf32, #tpu.memory_space<vmem>>, vector<256x128xf32>,
    } else {
    }
    return
  }
  func.func @transform_0(%arg0: i32, %arg1: i32) -> (i32, i32) {
    %c0_i32 = arith.constant 0 : i32
    return %arg0, %arg1 : i32, i32
  }
  func.func @transform_1(%arg0: i32, %arg1: i32) -> (i32, i32) {
    %c0_i32 = arith.constant 0 : i32
    %c0_i32_0 = arith.constant 0 : i32
    return %arg1, %c0_i32 : i32, i32
  }
  func.func @transform_2(%arg0: i32, %arg1: i32) -> (i32, i32) {
    %c0_i32 = arith.constant 0 : i32
    %c0_i32_0 = arith.constant 0 : i32
    return %arg0, %c0_i32 : i32, i32
  }
  func.func @transform_3(%arg0: i32, %arg1: i32) -> (i32, i32) {
    %c0_i32 = arith.constant 0 : i32
    %c0_i32_0 = arith.constant 0 : i32
    %c0_i32_1 = arith.constant 0 : i32
    return %c0_i32, %c0_i32_0 : i32, i32
  }
  func.func @transform_4(%arg0: i32, %arg1: i32) -> (i32, i32) {
    %c0_i32 = arith.constant 0 : i32
    %c0_i32_0 = arith.constant 0 : i32
    %c0_i32_1 = arith.constant 0 : i32
    return %c0_i32, %c0_i32_0 : i32, i32
  }
  func.func @transform_5(%arg0: i32, %arg1: i32) -> (i32, i32) {
    %c0_i32 = arith.constant 0 : i32
    %c0_i32_0 = arith.constant 0 : i32
    %c0_i32_1 = arith.constant 0 : i32
    return %c0_i32, %c0_i32_0 : i32, i32
  }
  func.func @transform_6(%arg0: i32, %arg1: i32) -> (i32, i32, i32) {
    %c0_i32 = arith.constant 0 : i32
    %c0_i32_0 = arith.constant 0 : i32
    %c0_i32_1 = arith.constant 0 : i32
    return %c0_i32, %arg0, %c0_i32_0 : i32, i32, i32
  }
  func.func @transform_7(%arg0: i32, %arg1: i32) -> (i32, i32) {
    %c0_i32 = arith.constant 0 : i32
    %c0_i32_0 = arith.constant 0 : i32
    return %arg0, %c0_i32 : i32, i32
  }
}

</mosaic_0001>

<llo_original>
// kernel: graph_trans_conv.4
$region0: #{graph_trans_conv.4}
  #allocation0 [shape = 'u32[]', space=smem, size = 0x4, offset = 0x4, fixed_abs, tag = 'smem constant byte address 0x4 - core index']
  #allocation1 [shape = 'u32[144,128]{1,0:T(1,128)}', space=vmem, size = 0x12000, scoped, tag = 'internal scratch']
  #allocation2 [shape = 'f32[256,16]{1,0:T(8,128)}', space=vmem, size = 0x20000, scoped, tag = 'scratch operand']
  %s0 = inlined_call_operand.hbm [shape: f32[256,256], index: 0, kind: input, shape index: {}]
  %s1 = inlined_call_operand.hbm [shape: f32[256,16], index: 1, kind: input, shape index: {}]
  %s2 = inlined_call_operand.hbm [shape: f32[256,1], index: 2, kind: input, shape index: {}]
  %s3 = inlined_call_operand.hbm [shape: f32[16,128], index: 3, kind: input, shape index: {}]
  %s4 = inlined_call_operand.hbm [shape: f32[128,512], index: 4, kind: input, shape index: {}]
  %s5 = inlined_call_operand.hbm [shape: f32[1,512], index: 5, kind: input, shape index: {}]
  %s6 = inlined_call_operand.hbm [shape: f32[3,256,128], index: 6, kind: output, shape index: {0}]
  %s7 = inlined_call_operand.hbm [shape: f32[256,128], index: 7, kind: output, shape index: {1}]
  %8 = xla_tuple %s6, %s7
  %s9 = sld [smem:[#allocation0]]
  $region74: #{graph_trans_conv.4} parent=0
    _
  %s11 = ssub.s32 1, %s9
  %s12 = scalar_select 0, %s11, %s9
  $region1: #{graph_trans_conv.4} parent=0
    #allocation3 [shape = 'u8[262144]{0}', space=vmem, size = 0x40000, scoped, tag = 'input window, operand 0, single buffered']
    #allocation4 [shape = 's32[1]{0}', space=sflag, size = 0x4, scoped, tag = 'scoped memory for graph_trans_conv.4']
    #allocation5 [shape = 's32[1]{0}', space=sflag, size = 0x4, scoped, tag = 'scoped memory for graph_trans_conv.4']
    #allocation6 [shape = 'u8[131072]{0}', space=vmem, size = 0x20000, scoped, tag = 'input window, operand 1, single buffered']
    #allocation7 [shape = 's32[1]{0}', space=sflag, size = 0x4, scoped, tag = 'scoped memory for graph_trans_conv.4']
    #allocation8 [shape = 'u8[131072]{0}', space=vmem, size = 0x20000, scoped, tag = 'input window, operand 2, single buffered']
    #allocation9 [shape = 'u8[8192]{0}', space=vmem, size = 0x2000, scoped, tag = 'input window, operand 3, single buffered']
    #allocation10 [shape = 's32[1]{0}', space=sflag, size = 0x4, scoped, tag = 'scoped memory for graph_trans_conv.4']
    #allocation11 [shape = 'u8[262144]{0}', space=vmem, size = 0x40000, scoped, tag = 'input window, operand 4, single buffered']
    #allocation12 [shape = 'u8[2048]{0}', space=vmem, size = 0x800, scoped, tag = 'input window, operand 5, single buffered']
    #allocation13 [shape = 's32[1]{0}', space=sflag, size = 0x4, scoped, tag = 'scoped memory for graph_trans_conv.4']
    #allocation14 [shape = 'u8[393216]{0}', space=vmem, size = 0x60000, scoped, tag = 'output window, operand 0, single buffered']
    #allocation15 [shape = 'u8[131072]{0}', space=vmem, size = 0x20000, scoped, tag = 'output window, operand 1, single buffered']
    #allocation16 [shape = 's32[1]{0}', space=sflag, size = 0x4, scoped, tag = 'scoped memory for graph_trans_conv.4']
    %13 = vsyncpa [#allocation4], 0
    %14 = vsyncpa [#allocation7], 0
    %15 = vsyncpa [#allocation10], 0
    %16 = vsyncpa [#allocation13], 0
    %17 = vsyncpa [#allocation5], 0
    %18 = vsyncpa [#allocation16], 0
    // Predicated region
    $region2: #{graph_trans_conv.4} parent=1 // pred_check
      _
    $region3: #{graph_trans_conv.4} parent=1 // pred_check_branch
      %20 = sbr.rel (0) target = $region5
    $region4: #{graph_trans_conv.4} parent=1 // pred_region
      %s22 = ssub.s32 8192, 8192
      %23 = vsyncadd [#allocation4], %s22
      %s24 = sshll.u32 [#allocation3], 4
      %s25 = int_to_ptr.vmem [resolvable:$true] %s24
      %30 = dma.hbm_to_vmem [thread:$0]  %s0, 8192, %s25, [#allocation4], 256, 256, 16
    $region5: #{graph_trans_conv.4} parent=1 // pred_fallthru
      _
    // Predicated region
    $region6: #{graph_trans_conv.4} parent=1 // pred_check
      _
    $region7: #{graph_trans_conv.4} parent=1 // pred_check_branch
      %32 = sbr.rel (0) target = $region9
    $region8: #{graph_trans_conv.4} parent=1 // pred_region
      %s34 = ssub.s32 4096, 4096
      %35 = vsyncadd [#allocation7], %s34
      %s36 = sshll.u32 [#allocation6], 4
      %s37 = int_to_ptr.vmem [resolvable:$true] %s36
      %42 = dma.hbm_to_vmem [thread:$0]  %s1, 4096, %s37, [#allocation7], 128, 128, 8
    $region9: #{graph_trans_conv.4} parent=1 // pred_fallthru
      _
    // Predicated region
    $region10: #{graph_trans_conv.4} parent=1 // pred_check
      _
    $region11: #{graph_trans_conv.4} parent=1 // pred_check_branch
      %44 = sbr.rel (0) target = $region13
    $region12: #{graph_trans_conv.4} parent=1 // pred_region
      %s46 = ssub.s32 4096, 4096
      %47 = vsyncadd [#allocation7], %s46
      %s48 = sshll.u32 [#allocation8], 4
      %s49 = int_to_ptr.vmem [resolvable:$true] %s48
      %54 = dma.hbm_to_vmem [thread:$0]  %s2, 4096, %s49, [#allocation7], 128, 128, 8
    $region13: #{graph_trans_conv.4} parent=1 // pred_fallthru
      _
    // Predicated region
    $region14: #{graph_trans_conv.4} parent=1 // pred_check
      _
    $region15: #{graph_trans_conv.4} parent=1 // pred_check_branch
      %56 = sbr.rel (0) target = $region17
    $region16: #{graph_trans_conv.4} parent=1 // pred_region
      %s58 = ssub.s32 256, 256
      %59 = vsyncadd [#allocation10], %s58
      %s60 = sshll.u32 [#allocation9], 4
      %s61 = int_to_ptr.vmem [resolvable:$true] %s60
      %66 = dma.hbm_to_vmem [thread:$0]  %s3, 256, %s61, [#allocation10], 128, 128, 8
    $region17: #{graph_trans_conv.4} parent=1 // pred_fallthru
      _
    // Predicated region
    $region18: #{graph_trans_conv.4} parent=1 // pred_check
      _
    $region19: #{graph_trans_conv.4} parent=1 // pred_check_branch
      %68 = sbr.rel (0) target = $region21
    $region20: #{graph_trans_conv.4} parent=1 // pred_region
      %s70 = ssub.s32 8192, 8192
      %71 = vsyncadd [#allocation10], %s70
      %s72 = sshll.u32 [#allocation11], 4
      %s73 = int_to_ptr.vmem [resolvable:$true] %s72
      %78 = dma.hbm_to_vmem [thread:$0]  %s4, 8192, %s73, [#allocation10], 512, 512, 32
    $region21: #{graph_trans_conv.4} parent=1 // pred_fallthru
      _
    // Predicated region
    $region22: #{graph_trans_conv.4} parent=1 // pred_check
      _
    $region23: #{graph_trans_conv.4} parent=1 // pred_check_branch
      %80 = sbr.rel (0) target = $region25
    $region24: #{graph_trans_conv.4} parent=1 // pred_region
      %s82 = ssub.s32 64, 64
      %83 = vsyncadd [#allocation13], %s82
      %s85 = sshll.u32 [#allocation12], 4
      %s86 = int_to_ptr.vmem [resolvable:$true] %s85
      %88 = dma.hbm_to_vmem [thread:$0]  %s5, 64, %s86, [#allocation13]
    $region25: #{graph_trans_conv.4} parent=1 // pred_fallthru
      _
    // Predicated region
    $region26: #{graph_trans_conv.4} parent=1 // pred_check
      _
    $region27: #{graph_trans_conv.4} parent=1 // pred_check_branch
      %90 = sbr.rel (0) target = $region29
    $region28: #{graph_trans_conv.4} parent=1 // pred_region
      %91 = dma.done [#allocation4], 8192
    $region29: #{graph_trans_conv.4} parent=1 // pred_fallthru
      _
    // Predicated region
    $region30: #{graph_trans_conv.4} parent=1 // pred_check
      _
    $region31: #{graph_trans_conv.4} parent=1 // pred_check_branch
      %93 = sbr.rel (0) target = $region33
    $region32: #{graph_trans_conv.4} parent=1 // pred_region
      %94 = dma.done [#allocation7], 4096
    $region33: #{graph_trans_conv.4} parent=1 // pred_fallthru
      _
    // Predicated region
    $region34: #{graph_trans_conv.4} parent=1 // pred_check
      _
    $region35: #{graph_trans_conv.4} parent=1 // pred_check_branch
      %96 = sbr.rel (0) target = $region37
    $region36: #{graph_trans_conv.4} parent=1 // pred_region
      %97 = dma.done [#allocation7], 4096
    $region37: #{graph_trans_conv.4} parent=1 // pred_fallthru
      _
    // Predicated region
    $region38: #{graph_trans_conv.4} parent=1 // pred_check
      _
    $region39: #{graph_trans_conv.4} parent=1 // pred_check_branch
      %99 = sbr.rel (0) target = $region41
    $region40: #{graph_trans_conv.4} parent=1 // pred_region
      %100 = dma.done [#allocation10], 256
    $region41: #{graph_trans_conv.4} parent=1 // pred_fallthru
      _
    // Predicated region
    $region42: #{graph_trans_conv.4} parent=1 // pred_check
      _
    $region43: #{graph_trans_conv.4} parent=1 // pred_check_branch
      %102 = sbr.rel (0) target = $region45
    $region44: #{graph_trans_conv.4} parent=1 // pred_region
      %103 = dma.done [#allocation10], 8192
    $region45: #{graph_trans_conv.4} parent=1 // pred_fallthru
      _
    // Predicated region
    $region46: #{graph_trans_conv.4} parent=1 // pred_check
      _
    $region47: #{graph_trans_conv.4} parent=1 // pred_check_branch
      %105 = sbr.rel (0) target = $region49
    $region48: #{graph_trans_conv.4} parent=1 // pred_region
      %106 = dma.done [#allocation13], 64
    $region49: #{graph_trans_conv.4} parent=1 // pred_fallthru
      _
    %p107 = scmp.eq.s32.totalorder 0, 0
    // Predicated region
    $region50: #{graph_trans_conv.4} parent=1 // pred_check
      %p108 = pneg %p107
    $region51: #{graph_trans_conv.4} parent=1 // pred_check_branch
      %110 = sbr.rel (%p108) target = $region53
    $region52: #{graph_trans_conv.4} parent=1 // pred_region
      %vm111 = vcmask 130048
      %112 = vst.msk [vmem:[#allocation2] sm:$0xff] %vm111, 0.0
      %113 = vst.msk [vmem:[#allocation2 + $0x8] sm:$0xff] %vm111, 0.0
      %114 = vst.msk [vmem:[#allocation2 + $0x10] sm:$0xff] %vm111, 0.0
      %115 = vst.msk [vmem:[#allocation2 + $0x18] sm:$0xff] %vm111, 0.0
      %116 = vst.msk [vmem:[#allocation2 + $0x20] sm:$0xff] %vm111, 0.0
      %117 = vst.msk [vmem:[#allocation2 + $0x28] sm:$0xff] %vm111, 0.0
      %118 = vst.msk [vmem:[#allocation2 + $0x30] sm:$0xff] %vm111, 0.0
      %119 = vst.msk [vmem:[#allocation2 + $0x38] sm:$0xff] %vm111, 0.0
      %120 = vst.msk [vmem:[#allocation2 + $0x40] sm:$0xff] %vm111, 0.0
      %121 = vst.msk [vmem:[#allocation2 + $0x48] sm:$0xff] %vm111, 0.0
      %122 = vst.msk [vmem:[#allocation2 + $0x50] sm:$0xff] %vm111, 0.0
      %123 = vst.msk [vmem:[#allocation2 + $0x58] sm:$0xff] %vm111, 0.0
      %124 = vst.msk [vmem:[#allocation2 + $0x60] sm:$0xff] %vm111, 0.0
      %125 = vst.msk [vmem:[#allocation2 + $0x68] sm:$0xff] %vm111, 0.0
      %126 = vst.msk [vmem:[#allocation2 + $0x70] sm:$0xff] %vm111, 0.0
      %127 = vst.msk [vmem:[#allocation2 + $0x78] sm:$0xff] %vm111, 0.0
      %128 = vst.msk [vmem:[#allocation2 + $0x80] sm:$0xff] %vm111, 0.0
      %129 = vst.msk [vmem:[#allocation2 + $0x88] sm:$0xff] %vm111, 0.0
      %130 = vst.msk [vmem:[#allocation2 + $0x90] sm:$0xff] %vm111, 0.0
      %131 = vst.msk [vmem:[#allocation2 + $0x98] sm:$0xff] %vm111, 0.0
      %132 = vst.msk [vmem:[#allocation2 + $0xa0] sm:$0xff] %vm111, 0.0
      %133 = vst.msk [vmem:[#allocation2 + $0xa8] sm:$0xff] %vm111, 0.0
      %134 = vst.msk [vmem:[#allocation2 + $0xb0] sm:$0xff] %vm111, 0.0
      %135 = vst.msk [vmem:[#allocation2 + $0xb8] sm:$0xff] %vm111, 0.0
      %136 = vst.msk [vmem:[#allocation2 + $0xc0] sm:$0xff] %vm111, 0.0
      %137 = vst.msk [vmem:[#allocation2 + $0xc8] sm:$0xff] %vm111, 0.0
      %138 = vst.msk [vmem:[#allocation2 + $0xd0] sm:$0xff] %vm111, 0.0
      %139 = vst.msk [vmem:[#allocation2 + $0xd8] sm:$0xff] %vm111, 0.0
      %140 = vst.msk [vmem:[#allocation2 + $0xe0] sm:$0xff] %vm111, 0.0
      %141 = vst.msk [vmem:[#allocation2 + $0xe8] sm:$0xff] %vm111, 0.0
      %142 = vst.msk [vmem:[#allocation2 + $0xf0] sm:$0xff] %vm111, 0.0
      %143 = vst.msk [vmem:[#allocation2 + $0xf8] sm:$0xff] %vm111, 0.0
    $region53: #{graph_trans_conv.4} parent=1 // pred_fallthru
      _
    %v144 = vld [vmem:[#allocation2] sm:$0xff]
    %v145 = vld [vmem:[#allocation2 + $0x8] sm:$0xff]
    %v146 = vld [vmem:[#allocation2 + $0x10] sm:$0xff]
    %v147 = vld [vmem:[#allocation2 + $0x18] sm:$0xff]
    %v148 = vld [vmem:[#allocation2 + $0x20] sm:$0xff]
    %v149 = vld [vmem:[#allocation2 + $0x28] sm:$0xff]
    %v150 = vld [vmem:[#allocation2 + $0x30] sm:$0xff]
    %v151 = vld [vmem:[#allocation2 + $0x38] sm:$0xff]
    %v152 = vld [vmem:[#allocation2 + $0x40] sm:$0xff]
    %v153 = vld [vmem:[#allocation2 + $0x48] sm:$0xff]
    %v154 = vld [vmem:[#allocation2 + $0x50] sm:$0xff]
    %v155 = vld [vmem:[#allocation2 + $0x58] sm:$0xff]
    %v156 = vld [vmem:[#allocation2 + $0x60] sm:$0xff]
    %v157 = vld [vmem:[#allocation2 + $0x68] sm:$0xff]
    %v158 = vld [vmem:[#allocation2 + $0x70] sm:$0xff]
    %v159 = vld [vmem:[#allocation2 + $0x78] sm:$0xff]
    %v160 = vld [vmem:[#allocation2 + $0x80] sm:$0xff]
    %v161 = vld [vmem:[#allocation2 + $0x88] sm:$0xff]
    %v162 = vld [vmem:[#allocation2 + $0x90] sm:$0xff]
    %v163 = vld [vmem:[#allocation2 + $0x98] sm:$0xff]
    %v164 = vld [vmem:[#allocation2 + $0xa0] sm:$0xff]
    %v165 = vld [vmem:[#allocation2 + $0xa8] sm:$0xff]
    %v166 = vld [vmem:[#allocation2 + $0xb0] sm:$0xff]
    %v167 = vld [vmem:[#allocation2 + $0xb8] sm:$0xff]
    %v168 = vld [vmem:[#allocation2 + $0xc0] sm:$0xff]
    %v169 = vld [vmem:[#allocation2 + $0xc8] sm:$0xff]
    %v170 = vld [vmem:[#allocation2 + $0xd0] sm:$0xff]
    %v171 = vld [vmem:[#allocation2 + $0xd8] sm:$0xff]
    %v172 = vld [vmem:[#allocation2 + $0xe0] sm:$0xff]
    %v173 = vld [vmem:[#allocation2 + $0xe8] sm:$0xff]
    %v174 = vld [vmem:[#allocation2 + $0xf0] sm:$0xff]
    %v175 = vld [vmem:[#allocation2 + $0xf8] sm:$0xff]
    %v176 = vld [vmem:[#allocation3] sm:$0xff]
    %v177 = vld [vmem:[#allocation3 + $0x8] sm:$0xff]
    %v178 = vld [vmem:[#allocation3 + $0x10] sm:$0xff]
    %v179 = vld [vmem:[#allocation3 + $0x18] sm:$0xff]
    %v180 = vld [vmem:[#allocation3 + $0x20] sm:$0xff]
    %v181 = vld [vmem:[#allocation3 + $0x28] sm:$0xff]
    %v182 = vld [vmem:[#allocation3 + $0x30] sm:$0xff]
    %v183 = vld [vmem:[#allocation3 + $0x38] sm:$0xff]
    %v184 = vld [vmem:[#allocation3 + $0x40] sm:$0xff]
    %v185 = vld [vmem:[#allocation3 + $0x48] sm:$0xff]
    %v186 = vld [vmem:[#allocation3 + $0x50] sm:$0xff]
    %v187 = vld [vmem:[#allocation3 + $0x58] sm:$0xff]
    %v188 = vld [vmem:[#allocation3 + $0x60] sm:$0xff]
    %v189 = vld [vmem:[#allocation3 + $0x68] sm:$0xff]
    %v190 = vld [vmem:[#allocation3 + $0x70] sm:$0xff]
    %v191 = vld [vmem:[#allocation3 + $0x78] sm:$0xff]
    %v192 = vld [vmem:[#allocation3 + $0x80] sm:$0xff]
    %v193 = vld [vmem:[#allocation3 + $0x88] sm:$0xff]
    %v194 = vld [vmem:[#allocation3 + $0x90] sm:$0xff]
    %v195 = vld [vmem:[#allocation3 + $0x98] sm:$0xff]
    %v196 = vld [vmem:[#allocation3 + $0xa0] sm:$0xff]
    %v197 = vld [vmem:[#allocation3 + $0xa8] sm:$0xff]
    %v198 = vld [vmem:[#allocation3 + $0xb0] sm:$0xff]
    %v199 = vld [vmem:[#allocation3 + $0xb8] sm:$0xff]
    %v200 = vld [vmem:[#allocation3 + $0xc0] sm:$0xff]
    %v201 = vld [vmem:[#allocation3 + $0xc8] sm:$0xff]
    %v202 = vld [vmem:[#allocation3 + $0xd0] sm:$0xff]
    %v203 = vld [vmem:[#allocation3 + $0xd8] sm:$0xff]
    %v204 = vld [vmem:[#allocation3 + $0xe0] sm:$0xff]
    %v205 = vld [vmem:[#allocation3 + $0xe8] sm:$0xff]
    %v206 = vld [vmem:[#allocation3 + $0xf0] sm:$0xff]
    %v207 = vld [vmem:[#allocation3 + $0xf8] sm:$0xff]
    %v208 = vld [vmem:[#allocation3 + $0x100] sm:$0xff]
    %v209 = vld [vmem:[#allocation3 + $0x108] sm:$0xff]
    %v210 = vld [vmem:[#allocation3 + $0x110] sm:$0xff]
    %v211 = vld [vmem:[#allocation3 + $0x118] sm:$0xff]
    %v212 = vld [vmem:[#allocation3 + $0x120] sm:$0xff]
    %v213 = vld [vmem:[#allocation3 + $0x128] sm:$0xff]
    %v214 = vld [vmem:[#allocation3 + $0x130] sm:$0xff]
    %v215 = vld [vmem:[#allocation3 + $0x138] sm:$0xff]
    %v216 = vld [vmem:[#allocation3 + $0x140] sm:$0xff]
    %v217 = vld [vmem:[#allocation3 + $0x148] sm:$0xff]
    %v218 = vld [vmem:[#allocation3 + $0x150] sm:$0xff]
    %v219 = vld [vmem:[#allocation3 + $0x158] sm:$0xff]
    %v220 = vld [vmem:[#allocation3 + $0x160] sm:$0xff]
    %v221 = vld [vmem:[#allocation3 + $0x168] sm:$0xff]
    %v222 = vld [vmem:[#allocation3 + $0x170] sm:$0xff]
    %v223 = vld [vmem:[#allocation3 + $0x178] sm:$0xff]
    %v224 = vld [vmem:[#allocation3 + $0x180] sm:$0xff]
    %v225 = vld [vmem:[#allocation3 + $0x188] sm:$0xff]
    %v226 = vld [vmem:[#allocation3 + $0x190] sm:$0xff]
    %v227 = vld [vmem:[#allocation3 + $0x198] sm:$0xff]
    %v228 = vld [vmem:[#allocation3 + $0x1a0] sm:$0xff]
    %v229 = vld [vmem:[#allocation3 + $0x1a8] sm:$0xff]
    %v230 = vld [vmem:[#allocation3 + $0x1b0] sm:$0xff]
    %v231 = vld [vmem:[#allocation3 + $0x1b8] sm:$0xff]
    %v232 = vld [vmem:[#allocation3 + $0x1c0] sm:$0xff]
    %v233 = vld [vmem:[#allocation3 + $0x1c8] sm:$0xff]
    %v234 = vld [vmem:[#allocation3 + $0x1d0] sm:$0xff]
    %v235 = vld [vmem:[#allocation3 + $0x1d8] sm:$0xff]
    %v236 = vld [vmem:[#allocation3 + $0x1e0] sm:$0xff]
    %v237 = vld [vmem:[#allocation3 + $0x1e8] sm:$0xff]
    %v238 = vld [vmem:[#allocation3 + $0x1f0] sm:$0xff]
    %v239 = vld [vmem:[#allocation3 + $0x1f8] sm:$0xff]
    %v240 = vld [vmem:[#allocation6] sm:$0xff]
    %v241 = vld [vmem:[#allocation6 + $0x8] sm:$0xff]
    %v242 = vld [vmem:[#allocation6 + $0x10] sm:$0xff]
    %v243 = vld [vmem:[#allocation6 + $0x18] sm:$0xff]
    %v244 = vld [vmem:[#allocation6 + $0x20] sm:$0xff]
    %v245 = vld [vmem:[#allocation6 + $0x28] sm:$0xff]
    %v246 = vld [vmem:[#allocation6 + $0x30] sm:$0xff]
    %v247 = vld [vmem:[#allocation6 + $0x38] sm:$0xff]
    %v248 = vld [vmem:[#allocation6 + $0x40] sm:$0xff]
    %v249 = vld [vmem:[#allocation6 + $0x48] sm:$0xff]
    %v250 = vld [vmem:[#allocation6 + $0x50] sm:$0xff]
    %v251 = vld [vmem:[#allocation6 + $0x58] sm:$0xff]
    %v252 = vld [vmem:[#allocation6 + $0x60] sm:$0xff]
    %v253 = vld [vmem:[#allocation6 + $0x68] sm:$0xff]
    %v254 = vld [vmem:[#allocation6 + $0x70] sm:$0xff]
    %v255 = vld [vmem:[#allocation6 + $0x78] sm:$0xff]
    %v256 = vld [vmem:[#allocation6 + $0x80] sm:$0xff]
    %v257 = vld [vmem:[#allocation6 + $0x88] sm:$0xff]
    %v258 = vld [vmem:[#allocation6 + $0x90] sm:$0xff]
    %v259 = vld [vmem:[#allocation6 + $0x98] sm:$0xff]
    %v260 = vld [vmem:[#allocation6 + $0xa0] sm:$0xff]
    %v261 = vld [vmem:[#allocation6 + $0xa8] sm:$0xff]
    %v262 = vld [vmem:[#allocation6 + $0xb0] sm:$0xff]
    %v263 = vld [vmem:[#allocation6 + $0xb8] sm:$0xff]
    %v264 = vld [vmem:[#allocation6 + $0xc0] sm:$0xff]
    %v265 = vld [vmem:[#allocation6 + $0xc8] sm:$0xff]
    %v266 = vld [vmem:[#allocation6 + $0xd0] sm:$0xff]
    %v267 = vld [vmem:[#allocation6 + $0xd8] sm:$0xff]
    %v268 = vld [vmem:[#allocation6 + $0xe0] sm:$0xff]
    %v269 = vld [vmem:[#allocation6 + $0xe8] sm:$0xff]
    %v270 = vld [vmem:[#allocation6 + $0xf0] sm:$0xff]
    %v271 = vld [vmem:[#allocation6 + $0xf8] sm:$0xff]
    %272 = vmatprep.subr.mxu0 0.0
    %273 = vmatpush1.msra.mxu0 %v240
    %274 = vmatprep.subr.mxu0 0.0
    %275 = vmatpush1.msra.mxu0 %v241
    %276 = vmatprep.subr.mxu0 0.0
    %277 = vmatpush1.msra.mxu0 %v242
    %278 = vmatprep.subr.mxu0 0.0
    %279 = vmatpush1.msra.mxu0 %v243
    %280 = vmatprep.subr.mxu0 0.0
    %281 = vmatpush1.msra.mxu0 %v244
    %282 = vmatprep.subr.mxu0 0.0
    %283 = vmatpush1.msra.mxu0 %v245
    %284 = vmatprep.subr.mxu0 0.0
    %285 = vmatpush1.msra.mxu0 %v246
    %286 = vmatprep.subr.mxu0 0.0
    %287 = vmatpush1.msra.mxu0 %v247
    %288 = vmatprep.subr.mxu0 0.0
    %289 = vmatpush1.msra.mxu0 %v248
    %290 = vmatprep.subr.mxu0 0.0
    %291 = vmatpush1.msra.mxu0 %v249
    %292 = vmatprep.subr.mxu0 0.0
    %293 = vmatpush1.msra.mxu0 %v250
    %294 = vmatprep.subr.mxu0 0.0
    %295 = vmatpush1.msra.mxu0 %v251
    %296 = vmatprep.subr.mxu0 0.0
    %297 = vmatpush1.msra.mxu0 %v252
    %298 = vmatprep.subr.mxu0 0.0
    %299 = vmatpush1.msra.mxu0 %v253
    %300 = vmatprep.subr.mxu0 0.0
    %301 = vmatpush1.msra.mxu0 %v254
    %302 = vmatprep.subr.mxu0 0.0
    %303 = vmatpush1.msra.mxu0 %v255
    %304 = vmatprep.subr.mxu0 0.0
    %305 = vmatpush1.msra.mxu0 %v256
    %306 = vmatprep.subr.mxu0 0.0
    %307 = vmatpush1.msra.mxu0 %v257
    %308 = vmatprep.subr.mxu0 0.0
    %309 = vmatpush1.msra.mxu0 %v258
    %310 = vmatprep.subr.mxu0 0.0
    %311 = vmatpush1.msra.mxu0 %v259
    %312 = vmatprep.subr.mxu0 0.0
    %313 = vmatpush1.msra.mxu0 %v260
    %314 = vmatprep.subr.mxu0 0.0
    %315 = vmatpush1.msra.mxu0 %v261
    %316 = vmatprep.subr.mxu0 0.0
    %317 = vmatpush1.msra.mxu0 %v262
    %318 = vmatprep.subr.mxu0 0.0
    %319 = vmatpush1.msra.mxu0 %v263
    %320 = vmatprep.subr.mxu0 0.0
    %321 = vmatpush1.msra.mxu0 %v264
    %322 = vmatprep.subr.mxu0 0.0
    %323 = vmatpush1.msra.mxu0 %v265
    %324 = vmatprep.subr.mxu0 0.0
    %325 = vmatpush1.msra.mxu0 %v266
    %326 = vmatprep.subr.mxu0 0.0
    %327 = vmatpush1.msra.mxu0 %v267
    %328 = vmatprep.subr.mxu0 0.0
    %329 = vmatpush1.msra.mxu0 %v268
    %330 = vmatprep.subr.mxu0 0.0
    %331 = vmatpush1.msra.mxu0 %v269
    %332 = vmatprep.subr.mxu0 0.0
    %333 = vmatpush1.msra.mxu0 %v270
    %334 = vmatprep.subr.mxu0 0.0
    %335 = vmatpush1.msra.mxu0 %v271
    %336 = vmatprep.mubr.f32.mxu0 %v177
    %337 = vmatmul.mubr.f32.gmra.mrb[0].mxu0 %v176
    %v338 = vpop.f32.mrb[0].mxu0
    %v339 = vadd.f32 0.0, %v338
    %v340 = vpop.f32.mrb[0].mxu0
    %341 = vmatprep.mubr.f32.mxu0 %v179
    %342 = vmatmul.mubr.f32.gmra.mrb[0].mxu0 %v178
    %v343 = vpop.f32.mrb[0].mxu0
    %v344 = vadd.f32 0.0, %v343
    %v345 = vpop.f32.mrb[0].mxu0
    %346 = vmatprep.mubr.f32.mxu0 %v181
    %347 = vmatmul.mubr.f32.gmra.mrb[0].mxu0 %v180
    %v348 = vpop.f32.mrb[0].mxu0
    %v349 = vadd.f32 0.0, %v348
    %v350 = vpop.f32.mrb[0].mxu0
    %351 = vmatprep.mubr.f32.mxu0 %v183
    %352 = vmatmul.mubr.f32.gmra.mrb[0].mxu0 %v182
    %v353 = vpop.f32.mrb[0].mxu0
    %v354 = vadd.f32 0.0, %v353
    %v355 = vpop.f32.mrb[0].mxu0
    %356 = vmatprep.mubr.f32.mxu0 %v185
    %357 = vmatmul.mubr.f32.gmra.mrb[0].mxu0 %v184
    %v358 = vpop.f32.mrb[0].mxu0
    %v359 = vadd.f32 0.0, %v358
    %v360 = vpop.f32.mrb[0].mxu0
    %361 = vmatprep.mubr.f32.mxu0 %v187
    %362 = vmatmul.mubr.f32.gmra.mrb[0].mxu0 %v186
    %v363 = vpop.f32.mrb[0].mxu0
    %v364 = vadd.f32 0.0, %v363
    %v365 = vpop.f32.mrb[0].mxu0
    %366 = vmatprep.mubr.f32.mxu0 %v189
    %367 = vmatmul.mubr.f32.gmra.mrb[0].mxu0 %v188
    %v368 = vpop.f32.mrb[0].mxu0
    %v369 = vadd.f32 0.0, %v368
    %v370 = vpop.f32.mrb[0].mxu0
    %371 = vmatprep.mubr.f32.mxu0 %v191
    %372 = vmatmul.mubr.f32.gmra.mrb[0].mxu0 %v190
    %v373 = vpop.f32.mrb[0].mxu0
    %v374 = vadd.f32 0.0, %v373
    %v375 = vpop.f32.mrb[0].mxu0
    %376 = vmatprep.mubr.f32.mxu0 %v193
    %377 = vmatmul.mubr.f32.gmra.mrb[0].mxu0 %v192
    %v378 = vpop.f32.mrb[0].mxu0
    %v379 = vadd.f32 0.0, %v378
    %v380 = vpop.f32.mrb[0].mxu0
    %381 = vmatprep.mubr.f32.mxu0 %v195
    %382 = vmatmul.mubr.f32.gmra.mrb[0].mxu0 %v194
    %v383 = vpop.f32.mrb[0].mxu0
    %v384 = vadd.f32 0.0, %v383
    %v385 = vpop.f32.mrb[0].mxu0
    %386 = vmatprep.mubr.f32.mxu0 %v197
    %387 = vmatmul.mubr.f32.gmra.mrb[0].mxu0 %v196
    %v388 = vpop.f32.mrb[0].mxu0
    %v389 = vadd.f32 0.0, %v388
    %v390 = vpop.f32.mrb[0].mxu0
    %391 = vmatprep.mubr.f32.mxu0 %v199
    %392 = vmatmul.mubr.f32.gmra.mrb[0].mxu0 %v198
    %v393 = vpop.f32.mrb[0].mxu0
    %v394 = vadd.f32 0.0, %v393
    %v395 = vpop.f32.mrb[0].mxu0
    %396 = vmatprep.mubr.f32.mxu0 %v201
    %397 = vmatmul.mubr.f32.gmra.mrb[0].mxu0 %v200
    %v398 = vpop.f32.mrb[0].mxu0
    %v399 = vadd.f32 0.0, %v398
    %v400 = vpop.f32.mrb[0].mxu0
    %401 = vmatprep.mubr.f32.mxu0 %v203
    %402 = vmatmul.mubr.f32.gmra.mrb[0].mxu0 %v202
    %v403 = vpop.f32.mrb[0].mxu0
    %v404 = vadd.f32 0.0, %v403
    %v405 = vpop.f32.mrb[0].mxu0
    %406 = vmatprep.mubr.f32.mxu0 %v205
    %407 = vmatmul.mubr.f32.gmra.mrb[0].mxu0 %v204
    %v408 = vpop.f32.mrb[0].mxu0
    %v409 = vadd.f32 0.0, %v408
    %v410 = vpop.f32.mrb[0].mxu0
    %411 = vmatprep.mubr.f32.mxu0 %v207
    %412 = vmatmul.mubr.f32.gmra.mrb[0].mxu0 %v206
    %v413 = vpop.f32.mrb[0].mxu0
    %v414 = vadd.f32 0.0, %v413
    %v415 = vpop.f32.mrb[0].mxu0
    %416 = vmatprep.mubr.f32.mxu0 %v209
    %417 = vmatmul.mubr.f32.gmra.mrb[0].mxu0 %v208
    %v418 = vpop.f32.mrb[0].mxu0
    %v419 = vadd.f32 0.0, %v418
    %v420 = vpop.f32.mrb[0].mxu0
    %421 = vmatprep.mubr.f32.mxu0 %v211
    %422 = vmatmul.mubr.f32.gmra.mrb[0].mxu0 %v210
    %v423 = vpop.f32.mrb[0].mxu0
    %v424 = vadd.f32 0.0, %v423
    %v425 = vpop.f32.mrb[0].mxu0
    %426 = vmatprep.mubr.f32.mxu0 %v213
    %427 = vmatmul.mubr.f32.gmra.mrb[0].mxu0 %v212
    %v428 = vpop.f32.mrb[0].mxu0
    %v429 = vadd.f32 0.0, %v428
    %v430 = vpop.f32.mrb[0].mxu0
    %431 = vmatprep.mubr.f32.mxu0 %v215
    %432 = vmatmul.mubr.f32.gmra.mrb[0].mxu0 %v214
    %v433 = vpop.f32.mrb[0].mxu0
    %v434 = vadd.f32 0.0, %v433
    %v435 = vpop.f32.mrb[0].mxu0
    %436 = vmatprep.mubr.f32.mxu0 %v217
    %437 = vmatmul.mubr.f32.gmra.mrb[0].mxu0 %v216
    %v438 = vpop.f32.mrb[0].mxu0
    %v439 = vadd.f32 0.0, %v438
    %v440 = vpop.f32.mrb[0].mxu0
    %441 = vmatprep.mubr.f32.mxu0 %v219
    %442 = vmatmul.mubr.f32.gmra.mrb[0].mxu0 %v218
    %v443 = vpop.f32.mrb[0].mxu0
    %v444 = vadd.f32 0.0, %v443
    %v445 = vpop.f32.mrb[0].mxu0
    %446 = vmatprep.mubr.f32.mxu0 %v221
    %447 = vmatmul.mubr.f32.gmra.mrb[0].mxu0 %v220
    %v448 = vpop.f32.mrb[0].mxu0
    %v449 = vadd.f32 0.0, %v448
    %v450 = vpop.f32.mrb[0].mxu0
    %451 = vmatprep.mubr.f32.mxu0 %v223
    %452 = vmatmul.mubr.f32.gmra.mrb[0].mxu0 %v222
    %v453 = vpop.f32.mrb[0].mxu0
    %v454 = vadd.f32 0.0, %v453
    %v455 = vpop.f32.mrb[0].mxu0
    %456 = vmatprep.mubr.f32.mxu0 %v225
    %457 = vmatmul.mubr.f32.gmra.mrb[0].mxu0 %v224
    %v458 = vpop.f32.mrb[0].mxu0
    %v459 = vadd.f32 0.0, %v458
    %v460 = vpop.f32.mrb[0].mxu0
    %461 = vmatprep.mubr.f32.mxu0 %v227
    %462 = vmatmul.mubr.f32.gmra.mrb[0].mxu0 %v226
    %v463 = vpop.f32.mrb[0].mxu0
    %v464 = vadd.f32 0.0, %v463
    %v465 = vpop.f32.mrb[0].mxu0
    %466 = vmatprep.mubr.f32.mxu0 %v229
    %467 = vmatmul.mubr.f32.gmra.mrb[0].mxu0 %v228
    %v468 = vpop.f32.mrb[0].mxu0
    %v469 = vadd.f32 0.0, %v468
    %v470 = vpop.f32.mrb[0].mxu0
    %471 = vmatprep.mubr.f32.mxu0 %v231
    %472 = vmatmul.mubr.f32.gmra.mrb[0].mxu0 %v230
    %v473 = vpop.f32.mrb[0].mxu0
    %v474 = vadd.f32 0.0, %v473
    %v475 = vpop.f32.mrb[0].mxu0
    %476 = vmatprep.mubr.f32.mxu0 %v233
    %477 = vmatmul.mubr.f32.gmra.mrb[0].mxu0 %v232
    %v478 = vpop.f32.mrb[0].mxu0
    %v479 = vadd.f32 0.0, %v478
    %v480 = vpop.f32.mrb[0].mxu0
    %481 = vmatprep.mubr.f32.mxu0 %v235
    %482 = vmatmul.mubr.f32.gmra.mrb[0].mxu0 %v234
    %v483 = vpop.f32.mrb[0].mxu0
    %v484 = vadd.f32 0.0, %v483
    %v485 = vpop.f32.mrb[0].mxu0
    %486 = vmatprep.mubr.f32.mxu0 %v237
    %487 = vmatmul.mubr.f32.gmra.mrb[0].mxu0 %v236
    %v488 = vpop.f32.mrb[0].mxu0
    %v489 = vadd.f32 0.0, %v488
    %v490 = vpop.f32.mrb[0].mxu0
    %491 = vmatprep.mubr.f32.mxu0 %v239
    %492 = vmatmul.mubr.f32.gmra.mrb[0].mxu0 %v238
    %v493 = vpop.f32.mrb[0].mxu0
    %v494 = vadd.f32 0.0, %v493
    %v495 = vpop.f32.mrb[0].mxu0
    %496 = vdwg.mxu0
    %v497 = vadd.f32 %v144, %v339
    %v498 = vadd.f32 %v145, %v344
    %v499 = vadd.f32 %v146, %v349
    %v500 = vadd.f32 %v147, %v354
    %v501 = vadd.f32 %v148, %v359
    %v502 = vadd.f32 %v149, %v364
    %v503 = vadd.f32 %v150, %v369
    %v504 = vadd.f32 %v151, %v374
    %v505 = vadd.f32 %v152, %v379
    %v506 = vadd.f32 %v153, %v384
    %v507 = vadd.f32 %v154, %v389
    %v508 = vadd.f32 %v155, %v394
    %v509 = vadd.f32 %v156, %v399
    %v510 = vadd.f32 %v157, %v404
    %v511 = vadd.f32 %v158, %v409
    %v512 = vadd.f32 %v159, %v414
    %v513 = vadd.f32 %v160, %v419
    %v514 = vadd.f32 %v161, %v424
    %v515 = vadd.f32 %v162, %v429
    %v516 = vadd.f32 %v163, %v434
    %v517 = vadd.f32 %v164, %v439
    %v518 = vadd.f32 %v165, %v444
    %v519 = vadd.f32 %v166, %v449
    %v520 = vadd.f32 %v167, %v454
    %v521 = vadd.f32 %v168, %v459
    %v522 = vadd.f32 %v169, %v464
    %v523 = vadd.f32 %v170, %v469
    %v524 = vadd.f32 %v171, %v474
    %v525 = vadd.f32 %v172, %v479
    %v526 = vadd.f32 %v173, %v484
    %v527 = vadd.f32 %v174, %v489
    %v528 = vadd.f32 %v175, %v494
    %vm529 = vcmask 130048
    %530 = vst.msk [vmem:[#allocation2] sm:$0xff] %vm529, %v497
    %531 = vst.msk [vmem:[#allocation2 + $0x8] sm:$0xff] %vm529, %v498
    %532 = vst.msk [vmem:[#allocation2 + $0x10] sm:$0xff] %vm529, %v499
    %533 = vst.msk [vmem:[#allocation2 + $0x18] sm:$0xff] %vm529, %v500
    %534 = vst.msk [vmem:[#allocation2 + $0x20] sm:$0xff] %vm529, %v501
    %535 = vst.msk [vmem:[#allocation2 + $0x28] sm:$0xff] %vm529, %v502
    %536 = vst.msk [vmem:[#allocation2 + $0x30] sm:$0xff] %vm529, %v503
    %537 = vst.msk [vmem:[#allocation2 + $0x38] sm:$0xff] %vm529, %v504
    %538 = vst.msk [vmem:[#allocation2 + $0x40] sm:$0xff] %vm529, %v505
    %539 = vst.msk [vmem:[#allocation2 + $0x48] sm:$0xff] %vm529, %v506
    %540 = vst.msk [vmem:[#allocation2 + $0x50] sm:$0xff] %vm529, %v507
    %541 = vst.msk [vmem:[#allocation2 + $0x58] sm:$0xff] %vm529, %v508
    %542 = vst.msk [vmem:[#allocation2 + $0x60] sm:$0xff] %vm529, %v509
    %543 = vst.msk [vmem:[#allocation2 + $0x68] sm:$0xff] %vm529, %v510
    %544 = vst.msk [vmem:[#allocation2 + $0x70] sm:$0xff] %vm529, %v511
    %545 = vst.msk [vmem:[#allocation2 + $0x78] sm:$0xff] %vm529, %v512
    %546 = vst.msk [vmem:[#allocation2 + $0x80] sm:$0xff] %vm529, %v513
    %547 = vst.msk [vmem:[#allocation2 + $0x88] sm:$0xff] %vm529, %v514
    %548 = vst.msk [vmem:[#allocation2 + $0x90] sm:$0xff] %vm529, %v515
    %549 = vst.msk [vmem:[#allocation2 + $0x98] sm:$0xff] %vm529, %v516
    %550 = vst.msk [vmem:[#allocation2 + $0xa0] sm:$0xff] %vm529, %v517
    %551 = vst.msk [vmem:[#allocation2 + $0xa8] sm:$0xff] %vm529, %v518
    %552 = vst.msk [vmem:[#allocation2 + $0xb0] sm:$0xff] %vm529, %v519
    %553 = vst.msk [vmem:[#allocation2 + $0xb8] sm:$0xff] %vm529, %v520
    %554 = vst.msk [vmem:[#allocation2 + $0xc0] sm:$0xff] %vm529, %v521
    %555 = vst.msk [vmem:[#allocation2 + $0xc8] sm:$0xff] %vm529, %v522
    %556 = vst.msk [vmem:[#allocation2 + $0xd0] sm:$0xff] %vm529, %v523
    %557 = vst.msk [vmem:[#allocation2 + $0xd8] sm:$0xff] %vm529, %v524
    %558 = vst.msk [vmem:[#allocation2 + $0xe0] sm:$0xff] %vm529, %v525
    %559 = vst.msk [vmem:[#allocation2 + $0xe8] sm:$0xff] %vm529, %v526
    %560 = vst.msk [vmem:[#allocation2 + $0xf0] sm:$0xff] %vm529, %v527
    %561 = vst.msk [vmem:[#allocation2 + $0xf8] sm:$0xff] %vm529, %v528
    // Predicated region
    $region54: #{graph_trans_conv.4} parent=1 // pred_check
      %p562 = pneg %p107
    $region55: #{graph_trans_conv.4} parent=1 // pred_check_branch
      %564 = sbr.rel (%p562) target = $region57
    $region56: #{graph_trans_conv.4} parent=1 // pred_region
      %v565 = vld [vmem:[#allocation2] sm:$0xff]
      %v566 = vld [vmem:[#allocation2 + $0x8] sm:$0xff]
      %v567 = vld [vmem:[#allocation2 + $0x10] sm:$0xff]
      %v568 = vld [vmem:[#allocation2 + $0x18] sm:$0xff]
      %v569 = vld [vmem:[#allocation2 + $0x20] sm:$0xff]
      %v570 = vld [vmem:[#allocation2 + $0x28] sm:$0xff]
      %v571 = vld [vmem:[#allocation2 + $0x30] sm:$0xff]
      %v572 = vld [vmem:[#allocation2 + $0x38] sm:$0xff]
      %v573 = vld [vmem:[#allocation2 + $0x40] sm:$0xff]
      %v574 = vld [vmem:[#allocation2 + $0x48] sm:$0xff]
      %v575 = vld [vmem:[#allocation2 + $0x50] sm:$0xff]
      %v576 = vld [vmem:[#allocation2 + $0x58] sm:$0xff]
      %v577 = vld [vmem:[#allocation2 + $0x60] sm:$0xff]
      %v578 = vld [vmem:[#allocation2 + $0x68] sm:$0xff]
      %v579 = vld [vmem:[#allocation2 + $0x70] sm:$0xff]
      %v580 = vld [vmem:[#allocation2 + $0x78] sm:$0xff]
      %v581 = vld [vmem:[#allocation2 + $0x80] sm:$0xff]
      %v582 = vld [vmem:[#allocation2 + $0x88] sm:$0xff]
      %v583 = vld [vmem:[#allocation2 + $0x90] sm:$0xff]
      %v584 = vld [vmem:[#allocation2 + $0x98] sm:$0xff]
      %v585 = vld [vmem:[#allocation2 + $0xa0] sm:$0xff]
      %v586 = vld [vmem:[#allocation2 + $0xa8] sm:$0xff]
      %v587 = vld [vmem:[#allocation2 + $0xb0] sm:$0xff]
      %v588 = vld [vmem:[#allocation2 + $0xb8] sm:$0xff]
      %v589 = vld [vmem:[#allocation2 + $0xc0] sm:$0xff]
      %v590 = vld [vmem:[#allocation2 + $0xc8] sm:$0xff]
      %v591 = vld [vmem:[#allocation2 + $0xd0] sm:$0xff]
      %v592 = vld [vmem:[#allocation2 + $0xd8] sm:$0xff]
      %v593 = vld [vmem:[#allocation2 + $0xe0] sm:$0xff]
      %v594 = vld [vmem:[#allocation2 + $0xe8] sm:$0xff]
      %v595 = vld [vmem:[#allocation2 + $0xf0] sm:$0xff]
      %v596 = vld [vmem:[#allocation2 + $0xf8] sm:$0xff]
      %v597 = vld [vmem:[#allocation8] sm:$0xff]
      %v598 = vld [vmem:[#allocation8 + $0x8] sm:$0xff]
      %v599 = vld [vmem:[#allocation8 + $0x10] sm:$0xff]
      %v600 = vld [vmem:[#allocation8 + $0x18] sm:$0xff]
      %v601 = vld [vmem:[#allocation8 + $0x20] sm:$0xff]
      %v602 = vld [vmem:[#allocation8 + $0x28] sm:$0xff]
      %v603 = vld [vmem:[#allocation8 + $0x30] sm:$0xff]
      %v604 = vld [vmem:[#allocation8 + $0x38] sm:$0xff]
      %v605 = vld [vmem:[#allocation8 + $0x40] sm:$0xff]
      %v606 = vld [vmem:[#allocation8 + $0x48] sm:$0xff]
      %v607 = vld [vmem:[#allocation8 + $0x50] sm:$0xff]
      %v608 = vld [vmem:[#allocation8 + $0x58] sm:$0xff]
      %v609 = vld [vmem:[#allocation8 + $0x60] sm:$0xff]
      %v610 = vld [vmem:[#allocation8 + $0x68] sm:$0xff]
      %v611 = vld [vmem:[#allocation8 + $0x70] sm:$0xff]
      %v612 = vld [vmem:[#allocation8 + $0x78] sm:$0xff]
      %v613 = vld [vmem:[#allocation8 + $0x80] sm:$0xff]
      %v614 = vld [vmem:[#allocation8 + $0x88] sm:$0xff]
      %v615 = vld [vmem:[#allocation8 + $0x90] sm:$0xff]
      %v616 = vld [vmem:[#allocation8 + $0x98] sm:$0xff]
      %v617 = vld [vmem:[#allocation8 + $0xa0] sm:$0xff]
      %v618 = vld [vmem:[#allocation8 + $0xa8] sm:$0xff]
      %v619 = vld [vmem:[#allocation8 + $0xb0] sm:$0xff]
      %v620 = vld [vmem:[#allocation8 + $0xb8] sm:$0xff]
      %v621 = vld [vmem:[#allocation8 + $0xc0] sm:$0xff]
      %v622 = vld [vmem:[#allocation8 + $0xc8] sm:$0xff]
      %v623 = vld [vmem:[#allocation8 + $0xd0] sm:$0xff]
      %v624 = vld [vmem:[#allocation8 + $0xd8] sm:$0xff]
      %v625 = vld [vmem:[#allocation8 + $0xe0] sm:$0xff]
      %v626 = vld [vmem:[#allocation8 + $0xe8] sm:$0xff]
      %v627 = vld [vmem:[#allocation8 + $0xf0] sm:$0xff]
      %v628 = vld [vmem:[#allocation8 + $0xf8] sm:$0xff]
      %630 = vset.pattern.permute.xlu0 0
      %631 = vperm.xlu0 %630, %v597
      %v632 = vpop.permute.xlu0 %631
      %635 = vset.pattern.permute.xlu0 0
      %636 = vperm.xlu0 %635, %v598
      %v637 = vpop.permute.xlu0 %636
      %640 = vset.pattern.permute.xlu0 0
      %641 = vperm.xlu0 %640, %v599
      %v642 = vpop.permute.xlu0 %641
      %645 = vset.pattern.permute.xlu0 0
      %646 = vperm.xlu0 %645, %v600
      %v647 = vpop.permute.xlu0 %646
      %650 = vset.pattern.permute.xlu0 0
      %651 = vperm.xlu0 %650, %v601
      %v652 = vpop.permute.xlu0 %651
      %655 = vset.pattern.permute.xlu0 0
      %656 = vperm.xlu0 %655, %v602
      %v657 = vpop.permute.xlu0 %656
      %660 = vset.pattern.permute.xlu0 0
      %661 = vperm.xlu0 %660, %v603
      %v662 = vpop.permute.xlu0 %661
      %665 = vset.pattern.permute.xlu0 0
      %666 = vperm.xlu0 %665, %v604
      %v667 = vpop.permute.xlu0 %666
      %670 = vset.pattern.permute.xlu0 0
      %671 = vperm.xlu0 %670, %v605
      %v672 = vpop.permute.xlu0 %671
      %675 = vset.pattern.permute.xlu0 0
      %676 = vperm.xlu0 %675, %v606
      %v677 = vpop.permute.xlu0 %676
      %680 = vset.pattern.permute.xlu0 0
      %681 = vperm.xlu0 %680, %v607
      %v682 = vpop.permute.xlu0 %681
      %685 = vset.pattern.permute.xlu0 0
      %686 = vperm.xlu0 %685, %v608
      %v687 = vpop.permute.xlu0 %686
      %690 = vset.pattern.permute.xlu0 0
      %691 = vperm.xlu0 %690, %v609
      %v692 = vpop.permute.xlu0 %691
      %695 = vset.pattern.permute.xlu0 0
      %696 = vperm.xlu0 %695, %v610
      %v697 = vpop.permute.xlu0 %696
      %700 = vset.pattern.permute.xlu0 0
      %701 = vperm.xlu0 %700, %v611
      %v702 = vpop.permute.xlu0 %701
      %705 = vset.pattern.permute.xlu0 0
      %706 = vperm.xlu0 %705, %v612
      %v707 = vpop.permute.xlu0 %706
      %710 = vset.pattern.permute.xlu0 0
      %711 = vperm.xlu0 %710, %v613
      %v712 = vpop.permute.xlu0 %711
      %715 = vset.pattern.permute.xlu0 0
      %716 = vperm.xlu0 %715, %v614
      %v717 = vpop.permute.xlu0 %716
      %720 = vset.pattern.permute.xlu0 0
      %721 = vperm.xlu0 %720, %v615
      %v722 = vpop.permute.xlu0 %721
      %725 = vset.pattern.permute.xlu0 0
      %726 = vperm.xlu0 %725, %v616
      %v727 = vpop.permute.xlu0 %726
      %730 = vset.pattern.permute.xlu0 0
      %731 = vperm.xlu0 %730, %v617
      %v732 = vpop.permute.xlu0 %731
      %735 = vset.pattern.permute.xlu0 0
      %736 = vperm.xlu0 %735, %v618
      %v737 = vpop.permute.xlu0 %736
      %740 = vset.pattern.permute.xlu0 0
      %741 = vperm.xlu0 %740, %v619
      %v742 = vpop.permute.xlu0 %741
      %745 = vset.pattern.permute.xlu0 0
      %746 = vperm.xlu0 %745, %v620
      %v747 = vpop.permute.xlu0 %746
      %750 = vset.pattern.permute.xlu0 0
      %751 = vperm.xlu0 %750, %v621
      %v752 = vpop.permute.xlu0 %751
      %755 = vset.pattern.permute.xlu0 0
      %756 = vperm.xlu0 %755, %v622
      %v757 = vpop.permute.xlu0 %756
      %760 = vset.pattern.permute.xlu0 0
      %761 = vperm.xlu0 %760, %v623
      %v762 = vpop.permute.xlu0 %761
      %765 = vset.pattern.permute.xlu0 0
      %766 = vperm.xlu0 %765, %v624
      %v767 = vpop.permute.xlu0 %766
      %770 = vset.pattern.permute.xlu0 0
      %771 = vperm.xlu0 %770, %v625
      %v772 = vpop.permute.xlu0 %771
      %775 = vset.pattern.permute.xlu0 0
      %776 = vperm.xlu0 %775, %v626
      %v777 = vpop.permute.xlu0 %776
      %780 = vset.pattern.permute.xlu0 0
      %781 = vperm.xlu0 %780, %v627
      %v782 = vpop.permute.xlu0 %781
      %785 = vset.pattern.permute.xlu0 0
      %786 = vperm.xlu0 %785, %v628
      %v787 = vpop.permute.xlu0 %786
      %v789 = vmul.f32 %v565, %v632
      %v790 = vmul.f32 %v566, %v637
      %v791 = vmul.f32 %v567, %v642
      %v792 = vmul.f32 %v568, %v647
      %v793 = vmul.f32 %v569, %v652
      %v794 = vmul.f32 %v570, %v657
      %v795 = vmul.f32 %v571, %v662
      %v796 = vmul.f32 %v572, %v667
      %v797 = vmul.f32 %v573, %v672
      %v798 = vmul.f32 %v574, %v677
      %v799 = vmul.f32 %v575, %v682
      %v800 = vmul.f32 %v576, %v687
      %v801 = vmul.f32 %v577, %v692
      %v802 = vmul.f32 %v578, %v697
      %v803 = vmul.f32 %v579, %v702
      %v804 = vmul.f32 %v580, %v707
      %v805 = vmul.f32 %v581, %v712
      %v806 = vmul.f32 %v582, %v717
      %v807 = vmul.f32 %v583, %v722
      %v808 = vmul.f32 %v584, %v727
      %v809 = vmul.f32 %v585, %v732
      %v810 = vmul.f32 %v586, %v737
      %v811 = vmul.f32 %v587, %v742
      %v812 = vmul.f32 %v588, %v747
      %v813 = vmul.f32 %v589, %v752
      %v814 = vmul.f32 %v590, %v757
      %v815 = vmul.f32 %v591, %v762
      %v816 = vmul.f32 %v592, %v767
      %v817 = vmul.f32 %v593, %v772
      %v818 = vmul.f32 %v594, %v777
      %v819 = vmul.f32 %v595, %v782
      %v820 = vmul.f32 %v596, %v787
      %v821 = vld [vmem:[#allocation9] sm:$0xff]
      %v822 = vld [vmem:[#allocation9 + $0x8] sm:$0xff]
      %v824 = vsel %vm529, %v789, 0
      %v827 = vsel %vm529, %v790, 0
      %v830 = vsel %vm529, %v791, 0
      %v833 = vsel %vm529, %v792, 0
      %v836 = vsel %vm529, %v793, 0
      %v839 = vsel %vm529, %v794, 0
      %v842 = vsel %vm529, %v795, 0
      %v845 = vsel %vm529, %v796, 0
      %v848 = vsel %vm529, %v797, 0
      %v851 = vsel %vm529, %v798, 0
      %v854 = vsel %vm529, %v799, 0
      %v857 = vsel %vm529, %v800, 0
      %v860 = vsel %vm529, %v801, 0
      %v863 = vsel %vm529, %v802, 0
      %v866 = vsel %vm529, %v803, 0
      %v869 = vsel %vm529, %v804, 0
      %v872 = vsel %vm529, %v805, 0
      %v875 = vsel %vm529, %v806, 0
      %v878 = vsel %vm529, %v807, 0
      %v881 = vsel %vm529, %v808, 0
      %v884 = vsel %vm529, %v809, 0
      %v887 = vsel %vm529, %v810, 0
      %v890 = vsel %vm529, %v811, 0
      %v893 = vsel %vm529, %v812, 0
      %v896 = vsel %vm529, %v813, 0
      %v899 = vsel %vm529, %v814, 0
      %v902 = vsel %vm529, %v815, 0
      %v905 = vsel %vm529, %v816, 0
      %v908 = vsel %vm529, %v817, 0
      %v911 = vsel %vm529, %v818, 0
      %v914 = vsel %vm529, %v819, 0
      %v917 = vsel %vm529, %v820, 0
      %919 = vmatprep.subr.mxu0 0.0
      %920 = vmatpush1.msra.mxu0 %v821
      %921 = vmatprep.subr.mxu0 0.0
      %922 = vmatpush1.msra.mxu0 %v822
      %923 = vmatprep.subr.mxu0 0.0
      %924 = vmatpush1.msra.mxu0 0.0
      %925 = vmatprep.subr.mxu0 0.0
      %926 = vmatpush1.msra.mxu0 0.0
      %927 = vmatprep.subr.mxu0 0.0
      %928 = vmatpush1.msra.mxu0 0.0
      %929 = vmatprep.subr.mxu0 0.0
      %930 = vmatpush1.msra.mxu0 0.0
      %931 = vmatprep.subr.mxu0 0.0
      %932 = vmatpush1.msra.mxu0 0.0
      %933 = vmatprep.subr.mxu0 0.0
      %934 = vmatpush1.msra.mxu0 0.0
      %935 = vmatprep.subr.mxu0 0.0
      %936 = vmatpush1.msra.mxu0 0.0
      %937 = vmatprep.subr.mxu0 0.0
      %938 = vmatpush1.msra.mxu0 0.0
      %939 = vmatprep.subr.mxu0 0.0
      %940 = vmatpush1.msra.mxu0 0.0
      %941 = vmatprep.subr.mxu0 0.0
      %942 = vmatpush1.msra.mxu0 0.0
      %943 = vmatprep.subr.mxu0 0.0
      %944 = vmatpush1.msra.mxu0 0.0
      %945 = vmatprep.subr.mxu0 0.0
      %946 = vmatpush1.msra.mxu0 0.0
      %947 = vmatprep.subr.mxu0 0.0
      %948 = vmatpush1.msra.mxu0 0.0
      %949 = vmatprep.subr.mxu0 0.0
      %950 = vmatpush1.msra.mxu0 0.0
      %951 = vmatprep.subr.mxu0 0.0
      %952 = vmatpush1.msra.mxu0 0.0
      %953 = vmatprep.subr.mxu0 0.0
      %954 = vmatpush1.msra.mxu0 0.0
      %955 = vmatprep.subr.mxu0 0.0
      %956 = vmatpush1.msra.mxu0 0.0
      %957 = vmatprep.subr.mxu0 0.0
      %958 = vmatpush1.msra.mxu0 0.0
      %959 = vmatprep.subr.mxu0 0.0
      %960 = vmatpush1.msra.mxu0 0.0
      %961 = vmatprep.subr.mxu0 0.0
      %962 = vmatpush1.msra.mxu0 0.0
      %963 = vmatprep.subr.mxu0 0.0
      %964 = vmatpush1.msra.mxu0 0.0
      %965 = vmatprep.subr.mxu0 0.0
      %966 = vmatpush1.msra.mxu0 0.0
      %967 = vmatprep.subr.mxu0 0.0
      %968 = vmatpush1.msra.mxu0 0.0
      %969 = vmatprep.subr.mxu0 0.0
      %970 = vmatpush1.msra.mxu0 0.0
      %971 = vmatprep.subr.mxu0 0.0
      %972 = vmatpush1.msra.mxu0 0.0
      %973 = vmatprep.subr.mxu0 0.0
      %974 = vmatpush1.msra.mxu0 0.0
      %975 = vmatprep.subr.mxu0 0.0
      %976 = vmatpush1.msra.mxu0 0.0
      %977 = vmatprep.subr.mxu0 0.0
      %978 = vmatpush1.msra.mxu0 0.0
      %979 = vmatprep.subr.mxu0 0.0
      %980 = vmatpush1.msra.mxu0 0.0
      %981 = vmatprep.subr.mxu0 0.0
      %982 = vmatpush1.msra.mxu0 0.0
      %983 = vmatprep.mubr.f32.mxu0 0.0
      %984 = vmatmul.mubr.f32.gmra.mrb[0].mxu0 %v824
      %v985 = vpop.f32.mrb[0].mxu0
      %v986 = vadd.f32 0.0, %v985
      %v987 = vpop.f32.mrb[0].mxu0
      %988 = vmatprep.mubr.f32.mxu0 0.0
      %989 = vmatmul.mubr.f32.gmra.mrb[0].mxu0 %v827
      %v990 = vpop.f32.mrb[0].mxu0
      %v991 = vadd.f32 0.0, %v990
      %v992 = vpop.f32.mrb[0].mxu0
      %993 = vmatprep.mubr.f32.mxu0 0.0
      %994 = vmatmul.mubr.f32.gmra.mrb[0].mxu0 %v830
      %v995 = vpop.f32.mrb[0].mxu0
      %v996 = vadd.f32 0.0, %v995
      %v997 = vpop.f32.mrb[0].mxu0
      %998 = vmatprep.mubr.f32.mxu0 0.0
      %999 = vmatmul.mubr.f32.gmra.mrb[0].mxu0 %v833
      %v1000 = vpop.f32.mrb[0].mxu0
      %v1001 = vadd.f32 0.0, %v1000
      %v1002 = vpop.f32.mrb[0].mxu0
      %1003 = vmatprep.mubr.f32.mxu0 0.0
      %1004 = vmatmul.mubr.f32.gmra.mrb[0].mxu0 %v836
      %v1005 = vpop.f32.mrb[0].mxu0
      %v1006 = vadd.f32 0.0, %v1005
      %v1007 = vpop.f32.mrb[0].mxu0
      %1008 = vmatprep.mubr.f32.mxu0 0.0
      %1009 = vmatmul.mubr.f32.gmra.mrb[0].mxu0 %v839
      %v1010 = vpop.f32.mrb[0].mxu0
      %v1011 = vadd.f32 0.0, %v1010
      %v1012 = vpop.f32.mrb[0].mxu0
      %1013 = vmatprep.mubr.f32.mxu0 0.0
      %1014 = vmatmul.mubr.f32.gmra.mrb[0].mxu0 %v842
      %v1015 = vpop.f32.mrb[0].mxu0
      %v1016 = vadd.f32 0.0, %v1015
      %v1017 = vpop.f32.mrb[0].mxu0
      %1018 = vmatprep.mubr.f32.mxu0 0.0
      %1019 = vmatmul.mubr.f32.gmra.mrb[0].mxu0 %v845
      %v1020 = vpop.f32.mrb[0].mxu0
      %v1021 = vadd.f32 0.0, %v1020
      %v1022 = vpop.f32.mrb[0].mxu0
      %1023 = vmatprep.mubr.f32.mxu0 0.0
      %1024 = vmatmul.mubr.f32.gmra.mrb[0].mxu0 %v848
      %v1025 = vpop.f32.mrb[0].mxu0
      %v1026 = vadd.f32 0.0, %v1025
      %v1027 = vpop.f32.mrb[0].mxu0
      %1028 = vmatprep.mubr.f32.mxu0 0.0
      %1029 = vmatmul.mubr.f32.gmra.mrb[0].mxu0 %v851
      %v1030 = vpop.f32.mrb[0].mxu0
      %v1031 = vadd.f32 0.0, %v1030
      %v1032 = vpop.f32.mrb[0].mxu0
      %1033 = vmatprep.mubr.f32.mxu0 0.0
      %1034 = vmatmul.mubr.f32.gmra.mrb[0].mxu0 %v854
      %v1035 = vpop.f32.mrb[0].mxu0
      %v1036 = vadd.f32 0.0, %v1035
      %v1037 = vpop.f32.mrb[0].mxu0
      %1038 = vmatprep.mubr.f32.mxu0 0.0
      %1039 = vmatmul.mubr.f32.gmra.mrb[0].mxu0 %v857
      %v1040 = vpop.f32.mrb[0].mxu0
      %v1041 = vadd.f32 0.0, %v1040
      %v1042 = vpop.f32.mrb[0].mxu0
      %1043 = vmatprep.mubr.f32.mxu0 0.0
      %1044 = vmatmul.mubr.f32.gmra.mrb[0].mxu0 %v860
      %v1045 = vpop.f32.mrb[0].mxu0
      %v1046 = vadd.f32 0.0, %v1045
      %v1047 = vpop.f32.mrb[0].mxu0
      %1048 = vmatprep.mubr.f32.mxu0 0.0
      %1049 = vmatmul.mubr.f32.gmra.mrb[0].mxu0 %v863
      %v1050 = vpop.f32.mrb[0].mxu0
      %v1051 = vadd.f32 0.0, %v1050
      %v1052 = vpop.f32.mrb[0].mxu0
      %1053 = vmatprep.mubr.f32.mxu0 0.0
      %1054 = vmatmul.mubr.f32.gmra.mrb[0].mxu0 %v866
      %v1055 = vpop.f32.mrb[0].mxu0
      %v1056 = vadd.f32 0.0, %v1055
      %v1057 = vpop.f32.mrb[0].mxu0
      %1058 = vmatprep.mubr.f32.mxu0 0.0
      %1059 = vmatmul.mubr.f32.gmra.mrb[0].mxu0 %v869
      %v1060 = vpop.f32.mrb[0].mxu0
      %v1061 = vadd.f32 0.0, %v1060
      %v1062 = vpop.f32.mrb[0].mxu0
      %1063 = vmatprep.mubr.f32.mxu0 0.0
      %1064 = vmatmul.mubr.f32.gmra.mrb[0].mxu0 %v872
      %v1065 = vpop.f32.mrb[0].mxu0
      %v1066 = vadd.f32 0.0, %v1065
      %v1067 = vpop.f32.mrb[0].mxu0
      %1068 = vmatprep.mubr.f32.mxu0 0.0
      %1069 = vmatmul.mubr.f32.gmra.mrb[0].mxu0 %v875
      %v1070 = vpop.f32.mrb[0].mxu0
      %v1071 = vadd.f32 0.0, %v1070
      %v1072 = vpop.f32.mrb[0].mxu0
      %1073 = vmatprep.mubr.f32.mxu0 0.0
      %1074 = vmatmul.mubr.f32.gmra.mrb[0].mxu0 %v878
      %v1075 = vpop.f32.mrb[0].mxu0
      %v1076 = vadd.f32 0.0, %v1075
      %v1077 = vpop.f32.mrb[0].mxu0
      %1078 = vmatprep.mubr.f32.mxu0 0.0
      %1079 = vmatmul.mubr.f32.gmra.mrb[0].mxu0 %v881
      %v1080 = vpop.f32.mrb[0].mxu0
      %v1081 = vadd.f32 0.0, %v1080
      %v1082 = vpop.f32.mrb[0].mxu0
      %1083 = vmatprep.mubr.f32.mxu0 0.0
      %1084 = vmatmul.mubr.f32.gmra.mrb[0].mxu0 %v884
      %v1085 = vpop.f32.mrb[0].mxu0
      %v1086 = vadd.f32 0.0, %v1085
      %v1087 = vpop.f32.mrb[0].mxu0
      %1088 = vmatprep.mubr.f32.mxu0 0.0
      %1089 = vmatmul.mubr.f32.gmra.mrb[0].mxu0 %v887
      %v1090 = vpop.f32.mrb[0].mxu0
      %v1091 = vadd.f32 0.0, %v1090
      %v1092 = vpop.f32.mrb[0].mxu0
      %1093 = vmatprep.mubr.f32.mxu0 0.0
      %1094 = vmatmul.mubr.f32.gmra.mrb[0].mxu0 %v890
      %v1095 = vpop.f32.mrb[0].mxu0
      %v1096 = vadd.f32 0.0, %v1095
      %v1097 = vpop.f32.mrb[0].mxu0
      %1098 = vmatprep.mubr.f32.mxu0 0.0
      %1099 = vmatmul.mubr.f32.gmra.mrb[0].mxu0 %v893
      %v1100 = vpop.f32.mrb[0].mxu0
      %v1101 = vadd.f32 0.0, %v1100
      %v1102 = vpop.f32.mrb[0].mxu0
      %1103 = vmatprep.mubr.f32.mxu0 0.0
      %1104 = vmatmul.mubr.f32.gmra.mrb[0].mxu0 %v896
      %v1105 = vpop.f32.mrb[0].mxu0
      %v1106 = vadd.f32 0.0, %v1105
      %v1107 = vpop.f32.mrb[0].mxu0
      %1108 = vmatprep.mubr.f32.mxu0 0.0
      %1109 = vmatmul.mubr.f32.gmra.mrb[0].mxu0 %v899
      %v1110 = vpop.f32.mrb[0].mxu0
      %v1111 = vadd.f32 0.0, %v1110
      %v1112 = vpop.f32.mrb[0].mxu0
      %1113 = vmatprep.mubr.f32.mxu0 0.0
      %1114 = vmatmul.mubr.f32.gmra.mrb[0].mxu0 %v902
      %v1115 = vpop.f32.mrb[0].mxu0
      %v1116 = vadd.f32 0.0, %v1115
      %v1117 = vpop.f32.mrb[0].mxu0
      %1118 = vmatprep.mubr.f32.mxu0 0.0
      %1119 = vmatmul.mubr.f32.gmra.mrb[0].mxu0 %v905
      %v1120 = vpop.f32.mrb[0].mxu0
      %v1121 = vadd.f32 0.0, %v1120
      %v1122 = vpop.f32.mrb[0].mxu0
      %1123 = vmatprep.mubr.f32.mxu0 0.0
      %1124 = vmatmul.mubr.f32.gmra.mrb[0].mxu0 %v908
      %v1125 = vpop.f32.mrb[0].mxu0
      %v1126 = vadd.f32 0.0, %v1125
      %v1127 = vpop.f32.mrb[0].mxu0
      %1128 = vmatprep.mubr.f32.mxu0 0.0
      %1129 = vmatmul.mubr.f32.gmra.mrb[0].mxu0 %v911
      %v1130 = vpop.f32.mrb[0].mxu0
      %v1131 = vadd.f32 0.0, %v1130
      %v1132 = vpop.f32.mrb[0].mxu0
      %1133 = vmatprep.mubr.f32.mxu0 0.0
      %1134 = vmatmul.mubr.f32.gmra.mrb[0].mxu0 %v914
      %v1135 = vpop.f32.mrb[0].mxu0
      %v1136 = vadd.f32 0.0, %v1135
      %v1137 = vpop.f32.mrb[0].mxu0
      %1138 = vmatprep.mubr.f32.mxu0 0.0
      %1139 = vmatmul.mubr.f32.gmra.mrb[0].mxu0 %v917
      %v1140 = vpop.f32.mrb[0].mxu0
      %v1141 = vadd.f32 0.0, %v1140
      %v1142 = vpop.f32.mrb[0].mxu0
      %1143 = vdwg.mxu0
      %v1144 = vmax.f32 %v986, 0.0
      %v1145 = vmax.f32 %v991, 0.0
      %v1146 = vmax.f32 %v996, 0.0
      %v1147 = vmax.f32 %v1001, 0.0
      %v1148 = vmax.f32 %v1006, 0.0
      %v1149 = vmax.f32 %v1011, 0.0
      %v1150 = vmax.f32 %v1016, 0.0
      %v1151 = vmax.f32 %v1021, 0.0
      %v1152 = vmax.f32 %v1026, 0.0
      %v1153 = vmax.f32 %v1031, 0.0
      %v1154 = vmax.f32 %v1036, 0.0
      %v1155 = vmax.f32 %v1041, 0.0
      %v1156 = vmax.f32 %v1046, 0.0
      %v1157 = vmax.f32 %v1051, 0.0
      %v1158 = vmax.f32 %v1056, 0.0
      %v1159 = vmax.f32 %v1061, 0.0
      %v1160 = vmax.f32 %v1066, 0.0
      %v1161 = vmax.f32 %v1071, 0.0
      %v1162 = vmax.f32 %v1076, 0.0
      %v1163 = vmax.f32 %v1081, 0.0
      %v1164 = vmax.f32 %v1086, 0.0
      %v1165 = vmax.f32 %v1091, 0.0
      %v1166 = vmax.f32 %v1096, 0.0
      %v1167 = vmax.f32 %v1101, 0.0
      %v1168 = vmax.f32 %v1106, 0.0
      %v1169 = vmax.f32 %v1111, 0.0
      %v1170 = vmax.f32 %v1116, 0.0
      %v1171 = vmax.f32 %v1121, 0.0
      %v1172 = vmax.f32 %v1126, 0.0
      %v1173 = vmax.f32 %v1131, 0.0
      %v1174 = vmax.f32 %v1136, 0.0
      %v1175 = vmax.f32 %v1141, 0.0
      %v1176 = vld [vmem:[#allocation11] sm:$0xff]
      %v1177 = vld [vmem:[#allocation11 + $0x8] sm:$0xff]
      %v1178 = vld [vmem:[#allocation11 + $0x10] sm:$0xff]
      %v1179 = vld [vmem:[#allocation11 + $0x18] sm:$0xff]
      %v1180 = vld [vmem:[#allocation11 + $0x20] sm:$0xff]
      %v1181 = vld [vmem:[#allocation11 + $0x28] sm:$0xff]
      %v1182 = vld [vmem:[#allocation11 + $0x30] sm:$0xff]
      %v1183 = vld [vmem:[#allocation11 + $0x38] sm:$0xff]
      %v1184 = vld [vmem:[#allocation11 + $0x40] sm:$0xff]
      %v1185 = vld [vmem:[#allocation11 + $0x48] sm:$0xff]
      %v1186 = vld [vmem:[#allocation11 + $0x50] sm:$0xff]
      %v1187 = vld [vmem:[#allocation11 + $0x58] sm:$0xff]
      %v1188 = vld [vmem:[#allocation11 + $0x60] sm:$0xff]
      %v1189 = vld [vmem:[#allocation11 + $0x68] sm:$0xff]
      %v1190 = vld [vmem:[#allocation11 + $0x70] sm:$0xff]
      %v1191 = vld [vmem:[#allocation11 + $0x78] sm:$0xff]
      %v1192 = vld [vmem:[#allocation11 + $0x80] sm:$0xff]
      %v1193 = vld [vmem:[#allocation11 + $0x88] sm:$0xff]
      %v1194 = vld [vmem:[#allocation11 + $0x90] sm:$0xff]
      %v1195 = vld [vmem:[#allocation11 + $0x98] sm:$0xff]
      %v1196 = vld [vmem:[#allocation11 + $0xa0] sm:$0xff]
      %v1197 = vld [vmem:[#allocation11 + $0xa8] sm:$0xff]
      %v1198 = vld [vmem:[#allocation11 + $0xb0] sm:$0xff]
      %v1199 = vld [vmem:[#allocation11 + $0xb8] sm:$0xff]
      %v1200 = vld [vmem:[#allocation11 + $0xc0] sm:$0xff]
      %v1201 = vld [vmem:[#allocation11 + $0xc8] sm:$0xff]
      %v1202 = vld [vmem:[#allocation11 + $0xd0] sm:$0xff]
      %v1203 = vld [vmem:[#allocation11 + $0xd8] sm:$0xff]
      %v1204 = vld [vmem:[#allocation11 + $0xe0] sm:$0xff]
      %v1205 = vld [vmem:[#allocation11 + $0xe8] sm:$0xff]
      %v1206 = vld [vmem:[#allocation11 + $0xf0] sm:$0xff]
      %v1207 = vld [vmem:[#allocation11 + $0xf8] sm:$0xff]
      %v1208 = vld [vmem:[#allocation11 + $0x100] sm:$0xff]
      %v1209 = vld [vmem:[#allocation11 + $0x108] sm:$0xff]
      %v1210 = vld [vmem:[#allocation11 + $0x110] sm:$0xff]
      %v1211 = vld [vmem:[#allocation11 + $0x118] sm:$0xff]
      %v1212 = vld [vmem:[#allocation11 + $0x120] sm:$0xff]
      %v1213 = vld [vmem:[#allocation11 + $0x128] sm:$0xff]
      %v1214 = vld [vmem:[#allocation11 + $0x130] sm:$0xff]
      %v1215 = vld [vmem:[#allocation11 + $0x138] sm:$0xff]
      %v1216 = vld [vmem:[#allocation11 + $0x140] sm:$0xff]
      %v1217 = vld [vmem:[#allocation11 + $0x148] sm:$0xff]
      %v1218 = vld [vmem:[#allocation11 + $0x150] sm:$0xff]
      %v1219 = vld [vmem:[#allocation11 + $0x158] sm:$0xff]
      %v1220 = vld [vmem:[#allocation11 + $0x160] sm:$0xff]
      %v1221 = vld [vmem:[#allocation11 + $0x168] sm:$0xff]
      %v1222 = vld [vmem:[#allocation11 + $0x170] sm:$0xff]
      %v1223 = vld [vmem:[#allocation11 + $0x178] sm:$0xff]
      %v1224 = vld [vmem:[#allocation11 + $0x180] sm:$0xff]
      %v1225 = vld [vmem:[#allocation11 + $0x188] sm:$0xff]
      %v1226 = vld [vmem:[#allocation11 + $0x190] sm:$0xff]
      %v1227 = vld [vmem:[#allocation11 + $0x198] sm:$0xff]
      %v1228 = vld [vmem:[#allocation11 + $0x1a0] sm:$0xff]
      %v1229 = vld [vmem:[#allocation11 + $0x1a8] sm:$0xff]
      %v1230 = vld [vmem:[#allocation11 + $0x1b0] sm:$0xff]
      %v1231 = vld [vmem:[#allocation11 + $0x1b8] sm:$0xff]
      %v1232 = vld [vmem:[#allocation11 + $0x1c0] sm:$0xff]
      %v1233 = vld [vmem:[#allocation11 + $0x1c8] sm:$0xff]
      %v1234 = vld [vmem:[#allocation11 + $0x1d0] sm:$0xff]
      %v1235 = vld [vmem:[#allocation11 + $0x1d8] sm:$0xff]
      %v1236 = vld [vmem:[#allocation11 + $0x1e0] sm:$0xff]
      %v1237 = vld [vmem:[#allocation11 + $0x1e8] sm:$0xff]
      %v1238 = vld [vmem:[#allocation11 + $0x1f0] sm:$0xff]
      %v1239 = vld [vmem:[#allocation11 + $0x1f8] sm:$0xff]
      %v1240 = vld [vmem:[#allocation12] sm:$0xf]
      %v1242 = vlaneseq
      %v1243 = vshrl.u32 %v1242, 7
      %v1244 = vsub.s32 0, %v1243
      %v1245 = vrot.slane %v1240, %v1244
      %v1246 = vlaneseq
      %v1247 = vshrl.u32 %v1246, 7
      %v1248 = vsub.s32 1, %v1247
      %v1249 = vrot.slane %v1240, %v1248
      %v1250 = vlaneseq
      %v1251 = vshrl.u32 %v1250, 7
      %v1252 = vsub.s32 2, %v1251
      %v1253 = vrot.slane %v1240, %v1252
      %v1254 = vlaneseq
      %v1255 = vshrl.u32 %v1254, 7
      %v1256 = vsub.s32 3, %v1255
      %v1257 = vrot.slane %v1240, %v1256
      %1262 = vmatprep.subr.mxu0 %v1177
      %1263 = vmatpush1.msra.mxu0 %v1176
      %1264 = vmatprep.subr.mxu0 %v1181
      %1265 = vmatpush1.msra.mxu0 %v1180
      %1266 = vmatprep.subr.mxu0 %v1185
      %1267 = vmatpush1.msra.mxu0 %v1184
      %1268 = vmatprep.subr.mxu0 %v1189
      %1269 = vmatpush1.msra.mxu0 %v1188
      %1270 = vmatprep.subr.mxu0 %v1193
      %1271 = vmatpush1.msra.mxu0 %v1192
      %1272 = vmatprep.subr.mxu0 %v1197
      %1273 = vmatpush1.msra.mxu0 %v1196
      %1274 = vmatprep.subr.mxu0 %v1201
      %1275 = vmatpush1.msra.mxu0 %v1200
      %1276 = vmatprep.subr.mxu0 %v1205
      %1277 = vmatpush1.msra.mxu0 %v1204
      %1278 = vmatprep.subr.mxu0 %v1209
      %1279 = vmatpush1.msra.mxu0 %v1208
      %1280 = vmatprep.subr.mxu0 %v1213
      %1281 = vmatpush1.msra.mxu0 %v1212
      %1282 = vmatprep.subr.mxu0 %v1217
      %1283 = vmatpush1.msra.mxu0 %v1216
      %1284 = vmatprep.subr.mxu0 %v1221
      %1285 = vmatpush1.msra.mxu0 %v1220
      %1286 = vmatprep.subr.mxu0 %v1225
      %1287 = vmatpush1.msra.mxu0 %v1224
      %1288 = vmatprep.subr.mxu0 %v1229
      %1289 = vmatpush1.msra.mxu0 %v1228
      %1290 = vmatprep.subr.mxu0 %v1233
      %1291 = vmatpush1.msra.mxu0 %v1232
      %1292 = vmatprep.subr.mxu0 %v1237
      %1293 = vmatpush1.msra.mxu0 %v1236
      %1294 = vmatprep.subr.mxu0 0.0
      %1295 = vmatpush1.msra.mxu0 0.0
      %1296 = vmatprep.subr.mxu0 0.0
      %1297 = vmatpush1.msra.mxu0 0.0
      %1298 = vmatprep.subr.mxu0 0.0
      %1299 = vmatpush1.msra.mxu0 0.0
      %1300 = vmatprep.subr.mxu0 0.0
      %1301 = vmatpush1.msra.mxu0 0.0
      %1302 = vmatprep.subr.mxu0 0.0
      %1303 = vmatpush1.msra.mxu0 0.0
      %1304 = vmatprep.subr.mxu0 0.0
      %1305 = vmatpush1.msra.mxu0 0.0
      %1306 = vmatprep.subr.mxu0 0.0
      %1307 = vmatpush1.msra.mxu0 0.0
      %1308 = vmatprep.subr.mxu0 0.0
      %1309 = vmatpush1.msra.mxu0 0.0
      %1310 = vmatprep.subr.mxu0 0.0
      %1311 = vmatpush1.msra.mxu0 0.0
      %1312 = vmatprep.subr.mxu0 0.0
      %1313 = vmatpush1.msra.mxu0 0.0
      %1314 = vmatprep.subr.mxu0 0.0
      %1315 = vmatpush1.msra.mxu0 0.0
      %1316 = vmatprep.subr.mxu0 0.0
      %1317 = vmatpush1.msra.mxu0 0.0
      %1318 = vmatprep.subr.mxu0 0.0
      %1319 = vmatpush1.msra.mxu0 0.0
      %1320 = vmatprep.subr.mxu0 0.0
      %1321 = vmatpush1.msra.mxu0 0.0
      %1322 = vmatprep.subr.mxu0 0.0
      %1323 = vmatpush1.msra.mxu0 0.0
      %1324 = vmatprep.subr.mxu0 0.0
      %1325 = vmatpush1.msra.mxu0 0.0
      %1326 = vmatprep.mubr.f32.mxu0 0.0
      %1327 = vmatmul.mubr.f32.gmra.mrb[0].mxu0 %v1144
      %v1328 = vpop.f32.mrb[0].mxu0
      %v1329 = vadd.f32 %v1245, %v1328
      %v1330 = vpop.f32.mrb[0].mxu0
      %v1331 = vadd.f32 %v1249, %v1330
      %1332 = vmatprep.mubr.f32.mxu0 0.0
      %1333 = vmatmul.mubr.f32.gmra.mrb[0].mxu0 %v1145
      %v1334 = vpop.f32.mrb[0].mxu0
      %v1335 = vadd.f32 %v1245, %v1334
      %v1336 = vpop.f32.mrb[0].mxu0
      %v1337 = vadd.f32 %v1249, %v1336
      %1338 = vmatprep.mubr.f32.mxu0 0.0
      %1339 = vmatmul.mubr.f32.gmra.mrb[0].mxu0 %v1146
      %v1340 = vpop.f32.mrb[0].mxu0
      %v1341 = vadd.f32 %v1245, %v1340
      %v1342 = vpop.f32.mrb[0].mxu0
      %v1343 = vadd.f32 %v1249, %v1342
      %1344 = vmatprep.mubr.f32.mxu0 0.0
      %1345 = vmatmul.mubr.f32.gmra.mrb[0].mxu0 %v1147
      %v1346 = vpop.f32.mrb[0].mxu0
      %v1347 = vadd.f32 %v1245, %v1346
      %v1348 = vpop.f32.mrb[0].mxu0
      %v1349 = vadd.f32 %v1249, %v1348
      %1350 = vmatprep.mubr.f32.mxu0 0.0
      %1351 = vmatmul.mubr.f32.gmra.mrb[0].mxu0 %v1148
      %v1352 = vpop.f32.mrb[0].mxu0
      %v1353 = vadd.f32 %v1245, %v1352
      %v1354 = vpop.f32.mrb[0].mxu0
      %v1355 = vadd.f32 %v1249, %v1354
      %1356 = vmatprep.mubr.f32.mxu0 0.0
      %1357 = vmatmul.mubr.f32.gmra.mrb[0].mxu0 %v1149
      %v1358 = vpop.f32.mrb[0].mxu0
      %v1359 = vadd.f32 %v1245, %v1358
      %v1360 = vpop.f32.mrb[0].mxu0
      %v1361 = vadd.f32 %v1249, %v1360
      %1362 = vmatprep.mubr.f32.mxu0 0.0
      %1363 = vmatmul.mubr.f32.gmra.mrb[0].mxu0 %v1150
      %v1364 = vpop.f32.mrb[0].mxu0
      %v1365 = vadd.f32 %v1245, %v1364
      %v1366 = vpop.f32.mrb[0].mxu0
      %v1367 = vadd.f32 %v1249, %v1366
      %1368 = vmatprep.mubr.f32.mxu0 0.0
      %1369 = vmatmul.mubr.f32.gmra.mrb[0].mxu0 %v1151
      %v1370 = vpop.f32.mrb[0].mxu0
      %v1371 = vadd.f32 %v1245, %v1370
      %v1372 = vpop.f32.mrb[0].mxu0
      %v1373 = vadd.f32 %v1249, %v1372
      %1374 = vmatprep.mubr.f32.mxu0 0.0
      %1375 = vmatmul.mubr.f32.gmra.mrb[0].mxu0 %v1152
      %v1376 = vpop.f32.mrb[0].mxu0
      %v1377 = vadd.f32 %v1245, %v1376
      %v1378 = vpop.f32.mrb[0].mxu0
      %v1379 = vadd.f32 %v1249, %v1378
      %1380 = vmatprep.mubr.f32.mxu0 0.0
      %1381 = vmatmul.mubr.f32.gmra.mrb[0].mxu0 %v1153
      %v1382 = vpop.f32.mrb[0].mxu0
      %v1383 = vadd.f32 %v1245, %v1382
      %v1384 = vpop.f32.mrb[0].mxu0
      %v1385 = vadd.f32 %v1249, %v1384
      %1386 = vmatprep.mubr.f32.mxu0 0.0
      %1387 = vmatmul.mubr.f32.gmra.mrb[0].mxu0 %v1154
      %v1388 = vpop.f32.mrb[0].mxu0
      %v1389 = vadd.f32 %v1245, %v1388
      %v1390 = vpop.f32.mrb[0].mxu0
      %v1391 = vadd.f32 %v1249, %v1390
      %1392 = vmatprep.mubr.f32.mxu0 0.0
      %1393 = vmatmul.mubr.f32.gmra.mrb[0].mxu0 %v1155
      %v1394 = vpop.f32.mrb[0].mxu0
      %v1395 = vadd.f32 %v1245, %v1394
      %v1396 = vpop.f32.mrb[0].mxu0
      %v1397 = vadd.f32 %v1249, %v1396
      %1398 = vmatprep.mubr.f32.mxu0 0.0
      %1399 = vmatmul.mubr.f32.gmra.mrb[0].mxu0 %v1156
      %v1400 = vpop.f32.mrb[0].mxu0
      %v1401 = vadd.f32 %v1245, %v1400
      %v1402 = vpop.f32.mrb[0].mxu0
      %v1403 = vadd.f32 %v1249, %v1402
      %1404 = vmatprep.mubr.f32.mxu0 0.0
      %1405 = vmatmul.mubr.f32.gmra.mrb[0].mxu0 %v1157
      %v1406 = vpop.f32.mrb[0].mxu0
      %v1407 = vadd.f32 %v1245, %v1406
      %v1408 = vpop.f32.mrb[0].mxu0
      %v1409 = vadd.f32 %v1249, %v1408
      %1410 = vmatprep.mubr.f32.mxu0 0.0
      %1411 = vmatmul.mubr.f32.gmra.mrb[0].mxu0 %v1158
      %v1412 = vpop.f32.mrb[0].mxu0
      %v1413 = vadd.f32 %v1245, %v1412
      %v1414 = vpop.f32.mrb[0].mxu0
      %v1415 = vadd.f32 %v1249, %v1414
      %1416 = vmatprep.mubr.f32.mxu0 0.0
      %1417 = vmatmul.mubr.f32.gmra.mrb[0].mxu0 %v1159
      %v1418 = vpop.f32.mrb[0].mxu0
      %v1419 = vadd.f32 %v1245, %v1418
      %v1420 = vpop.f32.mrb[0].mxu0
      %v1421 = vadd.f32 %v1249, %v1420
      %1422 = vmatprep.mubr.f32.mxu0 0.0
      %1423 = vmatmul.mubr.f32.gmra.mrb[0].mxu0 %v1160
      %v1424 = vpop.f32.mrb[0].mxu0
      %v1425 = vadd.f32 %v1245, %v1424
      %v1426 = vpop.f32.mrb[0].mxu0
      %v1427 = vadd.f32 %v1249, %v1426
      %1428 = vmatprep.mubr.f32.mxu0 0.0
      %1429 = vmatmul.mubr.f32.gmra.mrb[0].mxu0 %v1161
      %v1430 = vpop.f32.mrb[0].mxu0
      %v1431 = vadd.f32 %v1245, %v1430
      %v1432 = vpop.f32.mrb[0].mxu0
      %v1433 = vadd.f32 %v1249, %v1432
      %1434 = vmatprep.mubr.f32.mxu0 0.0
      %1435 = vmatmul.mubr.f32.gmra.mrb[0].mxu0 %v1162
      %v1436 = vpop.f32.mrb[0].mxu0
      %v1437 = vadd.f32 %v1245, %v1436
      %v1438 = vpop.f32.mrb[0].mxu0
      %v1439 = vadd.f32 %v1249, %v1438
      %1440 = vmatprep.mubr.f32.mxu0 0.0
      %1441 = vmatmul.mubr.f32.gmra.mrb[0].mxu0 %v1163
      %v1442 = vpop.f32.mrb[0].mxu0
      %v1443 = vadd.f32 %v1245, %v1442
      %v1444 = vpop.f32.mrb[0].mxu0
      %v1445 = vadd.f32 %v1249, %v1444
      %1446 = vmatprep.mubr.f32.mxu0 0.0
      %1447 = vmatmul.mubr.f32.gmra.mrb[0].mxu0 %v1164
      %v1448 = vpop.f32.mrb[0].mxu0
      %v1449 = vadd.f32 %v1245, %v1448
      %v1450 = vpop.f32.mrb[0].mxu0
      %v1451 = vadd.f32 %v1249, %v1450
      %1452 = vmatprep.mubr.f32.mxu0 0.0
      %1453 = vmatmul.mubr.f32.gmra.mrb[0].mxu0 %v1165
      %v1454 = vpop.f32.mrb[0].mxu0
      %v1455 = vadd.f32 %v1245, %v1454
      %v1456 = vpop.f32.mrb[0].mxu0
      %v1457 = vadd.f32 %v1249, %v1456
      %1458 = vmatprep.mubr.f32.mxu0 0.0
      %1459 = vmatmul.mubr.f32.gmra.mrb[0].mxu0 %v1166
      %v1460 = vpop.f32.mrb[0].mxu0
      %v1461 = vadd.f32 %v1245, %v1460
      %v1462 = vpop.f32.mrb[0].mxu0
      %v1463 = vadd.f32 %v1249, %v1462
      %1464 = vmatprep.mubr.f32.mxu0 0.0
      %1465 = vmatmul.mubr.f32.gmra.mrb[0].mxu0 %v1167
      %v1466 = vpop.f32.mrb[0].mxu0
      %v1467 = vadd.f32 %v1245, %v1466
      %v1468 = vpop.f32.mrb[0].mxu0
      %v1469 = vadd.f32 %v1249, %v1468
      %1470 = vmatprep.mubr.f32.mxu0 0.0
      %1471 = vmatmul.mubr.f32.gmra.mrb[0].mxu0 %v1168
      %v1472 = vpop.f32.mrb[0].mxu0
      %v1473 = vadd.f32 %v1245, %v1472
      %v1474 = vpop.f32.mrb[0].mxu0
      %v1475 = vadd.f32 %v1249, %v1474
      %1476 = vmatprep.mubr.f32.mxu0 0.0
      %1477 = vmatmul.mubr.f32.gmra.mrb[0].mxu0 %v1169
      %v1478 = vpop.f32.mrb[0].mxu0
      %v1479 = vadd.f32 %v1245, %v1478
      %v1480 = vpop.f32.mrb[0].mxu0
      %v1481 = vadd.f32 %v1249, %v1480
      %1482 = vmatprep.mubr.f32.mxu0 0.0
      %1483 = vmatmul.mubr.f32.gmra.mrb[0].mxu0 %v1170
      %v1484 = vpop.f32.mrb[0].mxu0
      %v1485 = vadd.f32 %v1245, %v1484
      %v1486 = vpop.f32.mrb[0].mxu0
      %v1487 = vadd.f32 %v1249, %v1486
      %1488 = vmatprep.mubr.f32.mxu0 0.0
      %1489 = vmatmul.mubr.f32.gmra.mrb[0].mxu0 %v1171
      %v1490 = vpop.f32.mrb[0].mxu0
      %v1491 = vadd.f32 %v1245, %v1490
      %v1492 = vpop.f32.mrb[0].mxu0
      %v1493 = vadd.f32 %v1249, %v1492
      %1494 = vmatprep.mubr.f32.mxu0 0.0
      %1495 = vmatmul.mubr.f32.gmra.mrb[0].mxu0 %v1172
      %v1496 = vpop.f32.mrb[0].mxu0
      %v1497 = vadd.f32 %v1245, %v1496
      %v1498 = vpop.f32.mrb[0].mxu0
      %v1499 = vadd.f32 %v1249, %v1498
      %1500 = vmatprep.mubr.f32.mxu0 0.0
      %1501 = vmatmul.mubr.f32.gmra.mrb[0].mxu0 %v1173
      %v1502 = vpop.f32.mrb[0].mxu0
      %v1503 = vadd.f32 %v1245, %v1502
      %v1504 = vpop.f32.mrb[0].mxu0
      %v1505 = vadd.f32 %v1249, %v1504
      %1506 = vmatprep.mubr.f32.mxu0 0.0
      %1507 = vmatmul.mubr.f32.gmra.mrb[0].mxu0 %v1174
      %v1508 = vpop.f32.mrb[0].mxu0
      %v1509 = vadd.f32 %v1245, %v1508
      %v1510 = vpop.f32.mrb[0].mxu0
      %v1511 = vadd.f32 %v1249, %v1510
      %1512 = vmatprep.mubr.f32.mxu0 0.0
      %1513 = vmatmul.mubr.f32.gmra.mrb[0].mxu0 %v1175
      %v1514 = vpop.f32.mrb[0].mxu0
      %v1515 = vadd.f32 %v1245, %v1514
      %v1516 = vpop.f32.mrb[0].mxu0
      %v1517 = vadd.f32 %v1249, %v1516
      %1518 = vdwg.mxu0
      %1519 = vmatprep.subr.mxu0 %v1179
      %1520 = vmatpush1.msra.mxu0 %v1178
      %1521 = vmatprep.subr.mxu0 %v1183
      %1522 = vmatpush1.msra.mxu0 %v1182
      %1523 = vmatprep.subr.mxu0 %v1187
      %1524 = vmatpush1.msra.mxu0 %v1186
      %1525 = vmatprep.subr.mxu0 %v1191
      %1526 = vmatpush1.msra.mxu0 %v1190
      %1527 = vmatprep.subr.mxu0 %v1195
      %1528 = vmatpush1.msra.mxu0 %v1194
      %1529 = vmatprep.subr.mxu0 %v1199
      %1530 = vmatpush1.msra.mxu0 %v1198
      %1531 = vmatprep.subr.mxu0 %v1203
      %1532 = vmatpush1.msra.mxu0 %v1202
      %1533 = vmatprep.subr.mxu0 %v1207
      %1534 = vmatpush1.msra.mxu0 %v1206
      %1535 = vmatprep.subr.mxu0 %v1211
      %1536 = vmatpush1.msra.mxu0 %v1210
      %1537 = vmatprep.subr.mxu0 %v1215
      %1538 = vmatpush1.msra.mxu0 %v1214
      %1539 = vmatprep.subr.mxu0 %v1219
      %1540 = vmatpush1.msra.mxu0 %v1218
      %1541 = vmatprep.subr.mxu0 %v1223
      %1542 = vmatpush1.msra.mxu0 %v1222
      %1543 = vmatprep.subr.mxu0 %v1227
      %1544 = vmatpush1.msra.mxu0 %v1226
      %1545 = vmatprep.subr.mxu0 %v1231
      %1546 = vmatpush1.msra.mxu0 %v1230
      %1547 = vmatprep.subr.mxu0 %v1235
      %1548 = vmatpush1.msra.mxu0 %v1234
      %1549 = vmatprep.subr.mxu0 %v1239
      %1550 = vmatpush1.msra.mxu0 %v1238
      %1551 = vmatprep.subr.mxu0 0.0
      %1552 = vmatpush1.msra.mxu0 0.0
      %1553 = vmatprep.subr.mxu0 0.0
      %1554 = vmatpush1.msra.mxu0 0.0
      %1555 = vmatprep.subr.mxu0 0.0
      %1556 = vmatpush1.msra.mxu0 0.0
      %1557 = vmatprep.subr.mxu0 0.0
      %1558 = vmatpush1.msra.mxu0 0.0
      %1559 = vmatprep.subr.mxu0 0.0
      %1560 = vmatpush1.msra.mxu0 0.0
      %1561 = vmatprep.subr.mxu0 0.0
      %1562 = vmatpush1.msra.mxu0 0.0
      %1563 = vmatprep.subr.mxu0 0.0
      %1564 = vmatpush1.msra.mxu0 0.0
      %1565 = vmatprep.subr.mxu0 0.0
      %1566 = vmatpush1.msra.mxu0 0.0
      %1567 = vmatprep.subr.mxu0 0.0
      %1568 = vmatpush1.msra.mxu0 0.0
      %1569 = vmatprep.subr.mxu0 0.0
      %1570 = vmatpush1.msra.mxu0 0.0
      %1571 = vmatprep.subr.mxu0 0.0
      %1572 = vmatpush1.msra.mxu0 0.0
      %1573 = vmatprep.subr.mxu0 0.0
      %1574 = vmatpush1.msra.mxu0 0.0
      %1575 = vmatprep.subr.mxu0 0.0
      %1576 = vmatpush1.msra.mxu0 0.0
      %1577 = vmatprep.subr.mxu0 0.0
      %1578 = vmatpush1.msra.mxu0 0.0
      %1579 = vmatprep.subr.mxu0 0.0
      %1580 = vmatpush1.msra.mxu0 0.0
      %1581 = vmatprep.subr.mxu0 0.0
      %1582 = vmatpush1.msra.mxu0 0.0
      %1583 = vmatprep.mubr.f32.mxu0 0.0
      %1584 = vmatmul.mubr.f32.gmra.mrb[0].mxu0 %v1144
      %v1585 = vpop.f32.mrb[0].mxu0
      %v1586 = vadd.f32 %v1253, %v1585
      %v1587 = vpop.f32.mrb[0].mxu0
      %v1588 = vadd.f32 %v1257, %v1587
      %1589 = vmatprep.mubr.f32.mxu0 0.0
      %1590 = vmatmul.mubr.f32.gmra.mrb[0].mxu0 %v1145
      %v1591 = vpop.f32.mrb[0].mxu0
      %v1592 = vadd.f32 %v1253, %v1591
      %v1593 = vpop.f32.mrb[0].mxu0
      %v1594 = vadd.f32 %v1257, %v1593
      %1595 = vmatprep.mubr.f32.mxu0 0.0
      %1596 = vmatmul.mubr.f32.gmra.mrb[0].mxu0 %v1146
      %v1597 = vpop.f32.mrb[0].mxu0
      %v1598 = vadd.f32 %v1253, %v1597
      %v1599 = vpop.f32.mrb[0].mxu0
      %v1600 = vadd.f32 %v1257, %v1599
      %1601 = vmatprep.mubr.f32.mxu0 0.0
      %1602 = vmatmul.mubr.f32.gmra.mrb[0].mxu0 %v1147
      %v1603 = vpop.f32.mrb[0].mxu0
      %v1604 = vadd.f32 %v1253, %v1603
      %v1605 = vpop.f32.mrb[0].mxu0
      %v1606 = vadd.f32 %v1257, %v1605
      %1607 = vmatprep.mubr.f32.mxu0 0.0
      %1608 = vmatmul.mubr.f32.gmra.mrb[0].mxu0 %v1148
      %v1609 = vpop.f32.mrb[0].mxu0
      %v1610 = vadd.f32 %v1253, %v1609
      %v1611 = vpop.f32.mrb[0].mxu0
      %v1612 = vadd.f32 %v1257, %v1611
      %1613 = vmatprep.mubr.f32.mxu0 0.0
      %1614 = vmatmul.mubr.f32.gmra.mrb[0].mxu0 %v1149
      %v1615 = vpop.f32.mrb[0].mxu0
      %v1616 = vadd.f32 %v1253, %v1615
      %v1617 = vpop.f32.mrb[0].mxu0
      %v1618 = vadd.f32 %v1257, %v1617
      %1619 = vmatprep.mubr.f32.mxu0 0.0
      %1620 = vmatmul.mubr.f32.gmra.mrb[0].mxu0 %v1150
      %v1621 = vpop.f32.mrb[0].mxu0
      %v1622 = vadd.f32 %v1253, %v1621
      %v1623 = vpop.f32.mrb[0].mxu0
      %v1624 = vadd.f32 %v1257, %v1623
      %1625 = vmatprep.mubr.f32.mxu0 0.0
      %1626 = vmatmul.mubr.f32.gmra.mrb[0].mxu0 %v1151
      %v1627 = vpop.f32.mrb[0].mxu0
      %v1628 = vadd.f32 %v1253, %v1627
      %v1629 = vpop.f32.mrb[0].mxu0
      %v1630 = vadd.f32 %v1257, %v1629
      %1631 = vmatprep.mubr.f32.mxu0 0.0
      %1632 = vmatmul.mubr.f32.gmra.mrb[0].mxu0 %v1152
      %v1633 = vpop.f32.mrb[0].mxu0
      %v1634 = vadd.f32 %v1253, %v1633
      %v1635 = vpop.f32.mrb[0].mxu0
      %v1636 = vadd.f32 %v1257, %v1635
      %1637 = vmatprep.mubr.f32.mxu0 0.0
      %1638 = vmatmul.mubr.f32.gmra.mrb[0].mxu0 %v1153
      %v1639 = vpop.f32.mrb[0].mxu0
      %v1640 = vadd.f32 %v1253, %v1639
      %v1641 = vpop.f32.mrb[0].mxu0
      %v1642 = vadd.f32 %v1257, %v1641
      %1643 = vmatprep.mubr.f32.mxu0 0.0
      %1644 = vmatmul.mubr.f32.gmra.mrb[0].mxu0 %v1154
      %v1645 = vpop.f32.mrb[0].mxu0
      %v1646 = vadd.f32 %v1253, %v1645
      %v1647 = vpop.f32.mrb[0].mxu0
      %v1648 = vadd.f32 %v1257, %v1647
      %1649 = vmatprep.mubr.f32.mxu0 0.0
      %1650 = vmatmul.mubr.f32.gmra.mrb[0].mxu0 %v1155
      %v1651 = vpop.f32.mrb[0].mxu0
      %v1652 = vadd.f32 %v1253, %v1651
      %v1653 = vpop.f32.mrb[0].mxu0
      %v1654 = vadd.f32 %v1257, %v1653
      %1655 = vmatprep.mubr.f32.mxu0 0.0
      %1656 = vmatmul.mubr.f32.gmra.mrb[0].mxu0 %v1156
      %v1657 = vpop.f32.mrb[0].mxu0
      %v1658 = vadd.f32 %v1253, %v1657
      %v1659 = vpop.f32.mrb[0].mxu0
      %v1660 = vadd.f32 %v1257, %v1659
      %1661 = vmatprep.mubr.f32.mxu0 0.0
      %1662 = vmatmul.mubr.f32.gmra.mrb[0].mxu0 %v1157
      %v1663 = vpop.f32.mrb[0].mxu0
      %v1664 = vadd.f32 %v1253, %v1663
      %v1665 = vpop.f32.mrb[0].mxu0
      %v1666 = vadd.f32 %v1257, %v1665
      %1667 = vmatprep.mubr.f32.mxu0 0.0
      %1668 = vmatmul.mubr.f32.gmra.mrb[0].mxu0 %v1158
      %v1669 = vpop.f32.mrb[0].mxu0
      %v1670 = vadd.f32 %v1253, %v1669
      %v1671 = vpop.f32.mrb[0].mxu0
      %v1672 = vadd.f32 %v1257, %v1671
      %1673 = vmatprep.mubr.f32.mxu0 0.0
      %1674 = vmatmul.mubr.f32.gmra.mrb[0].mxu0 %v1159
      %v1675 = vpop.f32.mrb[0].mxu0
      %v1676 = vadd.f32 %v1253, %v1675
      %v1677 = vpop.f32.mrb[0].mxu0
      %v1678 = vadd.f32 %v1257, %v1677
      %1679 = vmatprep.mubr.f32.mxu0 0.0
      %1680 = vmatmul.mubr.f32.gmra.mrb[0].mxu0 %v1160
      %v1681 = vpop.f32.mrb[0].mxu0
      %v1682 = vadd.f32 %v1253, %v1681
      %v1683 = vpop.f32.mrb[0].mxu0
      %v1684 = vadd.f32 %v1257, %v1683
      %1685 = vmatprep.mubr.f32.mxu0 0.0
      %1686 = vmatmul.mubr.f32.gmra.mrb[0].mxu0 %v1161
      %v1687 = vpop.f32.mrb[0].mxu0
      %v1688 = vadd.f32 %v1253, %v1687
      %v1689 = vpop.f32.mrb[0].mxu0
      %v1690 = vadd.f32 %v1257, %v1689
      %1691 = vmatprep.mubr.f32.mxu0 0.0
      %1692 = vmatmul.mubr.f32.gmra.mrb[0].mxu0 %v1162
      %v1693 = vpop.f32.mrb[0].mxu0
      %v1694 = vadd.f32 %v1253, %v1693
      %v1695 = vpop.f32.mrb[0].mxu0
      %v1696 = vadd.f32 %v1257, %v1695
      %1697 = vmatprep.mubr.f32.mxu0 0.0
      %1698 = vmatmul.mubr.f32.gmra.mrb[0].mxu0 %v1163
      %v1699 = vpop.f32.mrb[0].mxu0
      %v1700 = vadd.f32 %v1253, %v1699
      %v1701 = vpop.f32.mrb[0].mxu0
      %v1702 = vadd.f32 %v1257, %v1701
      %1703 = vmatprep.mubr.f32.mxu0 0.0
      %1704 = vmatmul.mubr.f32.gmra.mrb[0].mxu0 %v1164
      %v1705 = vpop.f32.mrb[0].mxu0
      %v1706 = vadd.f32 %v1253, %v1705
      %v1707 = vpop.f32.mrb[0].mxu0
      %v1708 = vadd.f32 %v1257, %v1707
      %1709 = vmatprep.mubr.f32.mxu0 0.0
      %1710 = vmatmul.mubr.f32.gmra.mrb[0].mxu0 %v1165
      %v1711 = vpop.f32.mrb[0].mxu0
      %v1712 = vadd.f32 %v1253, %v1711
      %v1713 = vpop.f32.mrb[0].mxu0
      %v1714 = vadd.f32 %v1257, %v1713
      %1715 = vmatprep.mubr.f32.mxu0 0.0
      %1716 = vmatmul.mubr.f32.gmra.mrb[0].mxu0 %v1166
      %v1717 = vpop.f32.mrb[0].mxu0
      %v1718 = vadd.f32 %v1253, %v1717
      %v1719 = vpop.f32.mrb[0].mxu0
      %v1720 = vadd.f32 %v1257, %v1719
      %1721 = vmatprep.mubr.f32.mxu0 0.0
      %1722 = vmatmul.mubr.f32.gmra.mrb[0].mxu0 %v1167
      %v1723 = vpop.f32.mrb[0].mxu0
      %v1724 = vadd.f32 %v1253, %v1723
      %v1725 = vpop.f32.mrb[0].mxu0
      %v1726 = vadd.f32 %v1257, %v1725
      %1727 = vmatprep.mubr.f32.mxu0 0.0
      %1728 = vmatmul.mubr.f32.gmra.mrb[0].mxu0 %v1168
      %v1729 = vpop.f32.mrb[0].mxu0
      %v1730 = vadd.f32 %v1253, %v1729
      %v1731 = vpop.f32.mrb[0].mxu0
      %v1732 = vadd.f32 %v1257, %v1731
      %1733 = vmatprep.mubr.f32.mxu0 0.0
      %1734 = vmatmul.mubr.f32.gmra.mrb[0].mxu0 %v1169
      %v1735 = vpop.f32.mrb[0].mxu0
      %v1736 = vadd.f32 %v1253, %v1735
      %v1737 = vpop.f32.mrb[0].mxu0
      %v1738 = vadd.f32 %v1257, %v1737
      %1739 = vmatprep.mubr.f32.mxu0 0.0
      %1740 = vmatmul.mubr.f32.gmra.mrb[0].mxu0 %v1170
      %v1741 = vpop.f32.mrb[0].mxu0
      %v1742 = vadd.f32 %v1253, %v1741
      %v1743 = vpop.f32.mrb[0].mxu0
      %v1744 = vadd.f32 %v1257, %v1743
      %1745 = vmatprep.mubr.f32.mxu0 0.0
      %1746 = vmatmul.mubr.f32.gmra.mrb[0].mxu0 %v1171
      %v1747 = vpop.f32.mrb[0].mxu0
      %v1748 = vadd.f32 %v1253, %v1747
      %v1749 = vpop.f32.mrb[0].mxu0
      %v1750 = vadd.f32 %v1257, %v1749
      %1751 = vmatprep.mubr.f32.mxu0 0.0
      %1752 = vmatmul.mubr.f32.gmra.mrb[0].mxu0 %v1172
      %v1753 = vpop.f32.mrb[0].mxu0
      %v1754 = vadd.f32 %v1253, %v1753
      %v1755 = vpop.f32.mrb[0].mxu0
      %v1756 = vadd.f32 %v1257, %v1755
      %1757 = vmatprep.mubr.f32.mxu0 0.0
      %1758 = vmatmul.mubr.f32.gmra.mrb[0].mxu0 %v1173
      %v1759 = vpop.f32.mrb[0].mxu0
      %v1760 = vadd.f32 %v1253, %v1759
      %v1761 = vpop.f32.mrb[0].mxu0
      %v1762 = vadd.f32 %v1257, %v1761
      %1763 = vmatprep.mubr.f32.mxu0 0.0
      %1764 = vmatmul.mubr.f32.gmra.mrb[0].mxu0 %v1174
      %v1765 = vpop.f32.mrb[0].mxu0
      %v1766 = vadd.f32 %v1253, %v1765
      %v1767 = vpop.f32.mrb[0].mxu0
      %v1768 = vadd.f32 %v1257, %v1767
      %1769 = vmatprep.mubr.f32.mxu0 0.0
      %1770 = vmatmul.mubr.f32.gmra.mrb[0].mxu0 %v1175
      %v1771 = vpop.f32.mrb[0].mxu0
      %v1772 = vadd.f32 %v1253, %v1771
      %v1773 = vpop.f32.mrb[0].mxu0
      %v1774 = vadd.f32 %v1257, %v1773
      %1775 = vdwg.mxu0
      %1776 = vst [vmem:[#allocation14] sm:$0xff] %v1329
      %1777 = vst [vmem:[#allocation14 + $0x8] sm:$0xff] %v1335
      %1778 = vst [vmem:[#allocation14 + $0x10] sm:$0xff] %v1341
      %1779 = vst [vmem:[#allocation14 + $0x18] sm:$0xff] %v1347
      %1780 = vst [vmem:[#allocation14 + $0x20] sm:$0xff] %v1353
      %1781 = vst [vmem:[#allocation14 + $0x28] sm:$0xff] %v1359
      %1782 = vst [vmem:[#allocation14 + $0x30] sm:$0xff] %v1365
      %1783 = vst [vmem:[#allocation14 + $0x38] sm:$0xff] %v1371
      %1784 = vst [vmem:[#allocation14 + $0x40] sm:$0xff] %v1377
      %1785 = vst [vmem:[#allocation14 + $0x48] sm:$0xff] %v1383
      %1786 = vst [vmem:[#allocation14 + $0x50] sm:$0xff] %v1389
      %1787 = vst [vmem:[#allocation14 + $0x58] sm:$0xff] %v1395
      %1788 = vst [vmem:[#allocation14 + $0x60] sm:$0xff] %v1401
      %1789 = vst [vmem:[#allocation14 + $0x68] sm:$0xff] %v1407
      %1790 = vst [vmem:[#allocation14 + $0x70] sm:$0xff] %v1413
      %1791 = vst [vmem:[#allocation14 + $0x78] sm:$0xff] %v1419
      %1792 = vst [vmem:[#allocation14 + $0x80] sm:$0xff] %v1425
      %1793 = vst [vmem:[#allocation14 + $0x88] sm:$0xff] %v1431
      %1794 = vst [vmem:[#allocation14 + $0x90] sm:$0xff] %v1437
      %1795 = vst [vmem:[#allocation14 + $0x98] sm:$0xff] %v1443
      %1796 = vst [vmem:[#allocation14 + $0xa0] sm:$0xff] %v1449
      %1797 = vst [vmem:[#allocation14 + $0xa8] sm:$0xff] %v1455
      %1798 = vst [vmem:[#allocation14 + $0xb0] sm:$0xff] %v1461
      %1799 = vst [vmem:[#allocation14 + $0xb8] sm:$0xff] %v1467
      %1800 = vst [vmem:[#allocation14 + $0xc0] sm:$0xff] %v1473
      %1801 = vst [vmem:[#allocation14 + $0xc8] sm:$0xff] %v1479
      %1802 = vst [vmem:[#allocation14 + $0xd0] sm:$0xff] %v1485
      %1803 = vst [vmem:[#allocation14 + $0xd8] sm:$0xff] %v1491
      %1804 = vst [vmem:[#allocation14 + $0xe0] sm:$0xff] %v1497
      %1805 = vst [vmem:[#allocation14 + $0xe8] sm:$0xff] %v1503
      %1806 = vst [vmem:[#allocation14 + $0xf0] sm:$0xff] %v1509
      %1807 = vst [vmem:[#allocation14 + $0xf8] sm:$0xff] %v1515
      %s1808 = scalar_lea.vmem [#allocation14], 256
      %1809 = vst [vmem:[%s1808] sm:$0xff] %v1331
      %1810 = vst [vmem:[%s1808 + $0x8] sm:$0xff] %v1337
      %1811 = vst [vmem:[%s1808 + $0x10] sm:$0xff] %v1343
      %1812 = vst [vmem:[%s1808 + $0x18] sm:$0xff] %v1349
      %1813 = vst [vmem:[%s1808 + $0x20] sm:$0xff] %v1355
      %1814 = vst [vmem:[%s1808 + $0x28] sm:$0xff] %v1361
      %1815 = vst [vmem:[%s1808 + $0x30] sm:$0xff] %v1367
      %1816 = vst [vmem:[%s1808 + $0x38] sm:$0xff] %v1373
      %1817 = vst [vmem:[%s1808 + $0x40] sm:$0xff] %v1379
      %1818 = vst [vmem:[%s1808 + $0x48] sm:$0xff] %v1385
      %1819 = vst [vmem:[%s1808 + $0x50] sm:$0xff] %v1391
      %1820 = vst [vmem:[%s1808 + $0x58] sm:$0xff] %v1397
      %1821 = vst [vmem:[%s1808 + $0x60] sm:$0xff] %v1403
      %1822 = vst [vmem:[%s1808 + $0x68] sm:$0xff] %v1409
      %1823 = vst [vmem:[%s1808 + $0x70] sm:$0xff] %v1415
      %1824 = vst [vmem:[%s1808 + $0x78] sm:$0xff] %v1421
      %1825 = vst [vmem:[%s1808 + $0x80] sm:$0xff] %v1427
      %1826 = vst [vmem:[%s1808 + $0x88] sm:$0xff] %v1433
      %1827 = vst [vmem:[%s1808 + $0x90] sm:$0xff] %v1439
      %1828 = vst [vmem:[%s1808 + $0x98] sm:$0xff] %v1445
      %1829 = vst [vmem:[%s1808 + $0xa0] sm:$0xff] %v1451
      %1830 = vst [vmem:[%s1808 + $0xa8] sm:$0xff] %v1457
      %1831 = vst [vmem:[%s1808 + $0xb0] sm:$0xff] %v1463
      %1832 = vst [vmem:[%s1808 + $0xb8] sm:$0xff] %v1469
      %1833 = vst [vmem:[%s1808 + $0xc0] sm:$0xff] %v1475
      %1834 = vst [vmem:[%s1808 + $0xc8] sm:$0xff] %v1481
      %1835 = vst [vmem:[%s1808 + $0xd0] sm:$0xff] %v1487
      %1836 = vst [vmem:[%s1808 + $0xd8] sm:$0xff] %v1493
      %1837 = vst [vmem:[%s1808 + $0xe0] sm:$0xff] %v1499
      %1838 = vst [vmem:[%s1808 + $0xe8] sm:$0xff] %v1505
      %1839 = vst [vmem:[%s1808 + $0xf0] sm:$0xff] %v1511
      %1840 = vst [vmem:[%s1808 + $0xf8] sm:$0xff] %v1517
      %s1841 = scalar_lea.vmem [#allocation14], 512
      %1842 = vst [vmem:[%s1841] sm:$0xff] %v1586
      %1843 = vst [vmem:[%s1841 + $0x8] sm:$0xff] %v1592
      %1844 = vst [vmem:[%s1841 + $0x10] sm:$0xff] %v1598
      %1845 = vst [vmem:[%s1841 + $0x18] sm:$0xff] %v1604
      %1846 = vst [vmem:[%s1841 + $0x20] sm:$0xff] %v1610
      %1847 = vst [vmem:[%s1841 + $0x28] sm:$0xff] %v1616
      %1848 = vst [vmem:[%s1841 + $0x30] sm:$0xff] %v1622
      %1849 = vst [vmem:[%s1841 + $0x38] sm:$0xff] %v1628
      %1850 = vst [vmem:[%s1841 + $0x40] sm:$0xff] %v1634
      %1851 = vst [vmem:[%s1841 + $0x48] sm:$0xff] %v1640
      %1852 = vst [vmem:[%s1841 + $0x50] sm:$0xff] %v1646
      %1853 = vst [vmem:[%s1841 + $0x58] sm:$0xff] %v1652
      %1854 = vst [vmem:[%s1841 + $0x60] sm:$0xff] %v1658
      %1855 = vst [vmem:[%s1841 + $0x68] sm:$0xff] %v1664
      %1856 = vst [vmem:[%s1841 + $0x70] sm:$0xff] %v1670
      %1857 = vst [vmem:[%s1841 + $0x78] sm:$0xff] %v1676
      %1858 = vst [vmem:[%s1841 + $0x80] sm:$0xff] %v1682
      %1859 = vst [vmem:[%s1841 + $0x88] sm:$0xff] %v1688
      %1860 = vst [vmem:[%s1841 + $0x90] sm:$0xff] %v1694
      %1861 = vst [vmem:[%s1841 + $0x98] sm:$0xff] %v1700
      %1862 = vst [vmem:[%s1841 + $0xa0] sm:$0xff] %v1706
      %1863 = vst [vmem:[%s1841 + $0xa8] sm:$0xff] %v1712
      %1864 = vst [vmem:[%s1841 + $0xb0] sm:$0xff] %v1718
      %1865 = vst [vmem:[%s1841 + $0xb8] sm:$0xff] %v1724
      %1866 = vst [vmem:[%s1841 + $0xc0] sm:$0xff] %v1730
      %1867 = vst [vmem:[%s1841 + $0xc8] sm:$0xff] %v1736
      %1868 = vst [vmem:[%s1841 + $0xd0] sm:$0xff] %v1742
      %1869 = vst [vmem:[%s1841 + $0xd8] sm:$0xff] %v1748
      %1870 = vst [vmem:[%s1841 + $0xe0] sm:$0xff] %v1754
      %1871 = vst [vmem:[%s1841 + $0xe8] sm:$0xff] %v1760
      %1872 = vst [vmem:[%s1841 + $0xf0] sm:$0xff] %v1766
      %1873 = vst [vmem:[%s1841 + $0xf8] sm:$0xff] %v1772
      %1874 = vst [vmem:[#allocation15] sm:$0xff] %v1588
      %1875 = vst [vmem:[#allocation15 + $0x8] sm:$0xff] %v1594
      %1876 = vst [vmem:[#allocation15 + $0x10] sm:$0xff] %v1600
      %1877 = vst [vmem:[#allocation15 + $0x18] sm:$0xff] %v1606
      %1878 = vst [vmem:[#allocation15 + $0x20] sm:$0xff] %v1612
      %1879 = vst [vmem:[#allocation15 + $0x28] sm:$0xff] %v1618
      %1880 = vst [vmem:[#allocation15 + $0x30] sm:$0xff] %v1624
      %1881 = vst [vmem:[#allocation15 + $0x38] sm:$0xff] %v1630
      %1882 = vst [vmem:[#allocation15 + $0x40] sm:$0xff] %v1636
      %1883 = vst [vmem:[#allocation15 + $0x48] sm:$0xff] %v1642
      %1884 = vst [vmem:[#allocation15 + $0x50] sm:$0xff] %v1648
      %1885 = vst [vmem:[#allocation15 + $0x58] sm:$0xff] %v1654
      %1886 = vst [vmem:[#allocation15 + $0x60] sm:$0xff] %v1660
      %1887 = vst [vmem:[#allocation15 + $0x68] sm:$0xff] %v1666
      %1888 = vst [vmem:[#allocation15 + $0x70] sm:$0xff] %v1672
      %1889 = vst [vmem:[#allocation15 + $0x78] sm:$0xff] %v1678
      %1890 = vst [vmem:[#allocation15 + $0x80] sm:$0xff] %v1684
      %1891 = vst [vmem:[#allocation15 + $0x88] sm:$0xff] %v1690
      %1892 = vst [vmem:[#allocation15 + $0x90] sm:$0xff] %v1696
      %1893 = vst [vmem:[#allocation15 + $0x98] sm:$0xff] %v1702
      %1894 = vst [vmem:[#allocation15 + $0xa0] sm:$0xff] %v1708
      %1895 = vst [vmem:[#allocation15 + $0xa8] sm:$0xff] %v1714
      %1896 = vst [vmem:[#allocation15 + $0xb0] sm:$0xff] %v1720
      %1897 = vst [vmem:[#allocation15 + $0xb8] sm:$0xff] %v1726
      %1898 = vst [vmem:[#allocation15 + $0xc0] sm:$0xff] %v1732
      %1899 = vst [vmem:[#allocation15 + $0xc8] sm:$0xff] %v1738
      %1900 = vst [vmem:[#allocation15 + $0xd0] sm:$0xff] %v1744
      %1901 = vst [vmem:[#allocation15 + $0xd8] sm:$0xff] %v1750
      %1902 = vst [vmem:[#allocation15 + $0xe0] sm:$0xff] %v1756
      %1903 = vst [vmem:[#allocation15 + $0xe8] sm:$0xff] %v1762
      %1904 = vst [vmem:[#allocation15 + $0xf0] sm:$0xff] %v1768
      %1905 = vst [vmem:[#allocation15 + $0xf8] sm:$0xff] %v1774
    $region57: #{graph_trans_conv.4} parent=1 // pred_fallthru
      _
    // Predicated region
    $region58: #{graph_trans_conv.4} parent=1 // pred_check
      _
    $region59: #{graph_trans_conv.4} parent=1 // pred_check_branch
      %1907 = sbr.rel (0) target = $region61
    $region60: #{graph_trans_conv.4} parent=1 // pred_region
      %s1909 = ssub.s32 12288, 12288
      %1910 = vsyncadd [#allocation5], %s1909
      %s1911 = sshll.u32 [#allocation14], 4
      %s1912 = int_to_ptr.vmem [resolvable:$true] %s1911
      %1917 = dma.vmem_to_hbm [thread:$0]  %s1912, 12288, %s6, [#allocation5], 128, 128, 8
    $region61: #{graph_trans_conv.4} parent=1 // pred_fallthru
      _
    // Predicated region
    $region62: #{graph_trans_conv.4} parent=1 // pred_check
      _
    $region63: #{graph_trans_conv.4} parent=1 // pred_check_branch
      %1919 = sbr.rel (0) target = $region65
    $region64: #{graph_trans_conv.4} parent=1 // pred_region
      %s1921 = ssub.s32 4096, 4096
      %1922 = vsyncadd [#allocation16], %s1921
      %s1923 = sshll.u32 [#allocation15], 4
      %s1924 = int_to_ptr.vmem [resolvable:$true] %s1923
      %1929 = dma.vmem_to_hbm [thread:$0]  %s1924, 4096, %s7, [#allocation16], 128, 128, 8
    $region65: #{graph_trans_conv.4} parent=1 // pred_fallthru
      _
    // Predicated region
    $region66: #{graph_trans_conv.4} parent=1 // pred_check
      _
    $region67: #{graph_trans_conv.4} parent=1 // pred_check_branch
      %1931 = sbr.rel (0) target = $region69
    $region68: #{graph_trans_conv.4} parent=1 // pred_region
      %1932 = dma.done [#allocation5], 12288
    $region69: #{graph_trans_conv.4} parent=1 // pred_fallthru
      _
    // Predicated region
    $region70: #{graph_trans_conv.4} parent=1 // pred_check
      _
    $region71: #{graph_trans_conv.4} parent=1 // pred_check_branch
      %1934 = sbr.rel (0) target = $region73
    $region72: #{graph_trans_conv.4} parent=1 // pred_region
      %1935 = dma.done [#allocation16], 4096
    $region73: #{graph_trans_conv.4} parent=1 // pred_fallthru
      _
    %1936 = vsyncpa [#allocation4], 1
    %1937 = vsyncpa [#allocation7], 1
    %1938 = vsyncpa [#allocation10], 1
    %1939 = vsyncpa [#allocation13], 1
    %1940 = vsyncpa [#allocation5], 1
    %1941 = vsyncpa [#allocation16], 1

// kernel: graph_trans_conv.6
$region0: #{graph_trans_conv.6}
  #allocation0 [shape = 'u32[]', space=smem, size = 0x4, offset = 0x4, fixed_abs, tag = 'smem constant byte address 0x4 - core index']
  #allocation1 [shape = 'u32[144,128]{1,0:T(1,128)}', space=vmem, size = 0x12000, scoped, tag = 'internal scratch']
  #allocation2 [shape = 'f32[256,128]{1,0:T(8,128)}', space=vmem, size = 0x20000, scoped, tag = 'scratch operand']
  %s0 = inlined_call_operand.hbm [shape: f32[256,256], index: 0, kind: input, shape index: {}]
  %s1 = inlined_call_operand.hbm [shape: f32[256,128], index: 1, kind: input, shape index: {}]
  %s2 = inlined_call_operand.hbm [shape: f32[256,1], index: 2, kind: input, shape index: {}]
  %s3 = inlined_call_operand.hbm [shape: f32[128,128], index: 3, kind: input, shape index: {}]
  %s4 = inlined_call_operand.hbm [shape: f32[128,512], index: 4, kind: input, shape index: {}]
  %s5 = inlined_call_operand.hbm [shape: f32[1,512], index: 5, kind: input, shape index: {}]
  %s6 = inlined_call_operand.hbm [shape: f32[3,256,128], index: 6, kind: output, shape index: {0}]
  %s7 = inlined_call_operand.hbm [shape: f32[256,128], index: 7, kind: output, shape index: {1}]
  %8 = xla_tuple %s6, %s7
  %s9 = sld [smem:[#allocation0]]
  $region74: #{graph_trans_conv.6} parent=0
    _
  %s11 = ssub.s32 1, %s9
  %s12 = scalar_select 0, %s11, %s9
  $region1: #{graph_trans_conv.6} parent=0
    #allocation3 [shape = 'u8[262144]{0}', space=vmem, size = 0x40000, scoped, tag = 'input window, operand 0, single buffered']
    #allocation4 [shape = 's32[1]{0}', space=sflag, size = 0x4, scoped, tag = 'scoped memory for graph_trans_conv.6']
    #allocation5 [shape = 's32[1]{0}', space=sflag, size = 0x4, scoped, tag = 'scoped memory for graph_trans_conv.6']
    #allocation6 [shape = 'u8[131072]{0}', space=vmem, size = 0x20000, scoped, tag = 'input window, operand 1, single buffered']
    #allocation7 [shape = 's32[1]{0}', space=sflag, size = 0x4, scoped, tag = 'scoped memory for graph_trans_conv.6']
    #allocation8 [shape = 'u8[131072]{0}', space=vmem, size = 0x20000, scoped, tag = 'input window, operand 2, single buffered']
    #allocation9 [shape = 'u8[65536]{0}', space=vmem, size = 0x10000, scoped, tag = 'input window, operand 3, single buffered']
    #allocation10 [shape = 's32[1]{0}', space=sflag, size = 0x4, scoped, tag = 'scoped memory for graph_trans_conv.6']
    #allocation11 [shape = 'u8[262144]{0}', space=vmem, size = 0x40000, scoped, tag = 'input window, operand 4, single buffered']
    #allocation12 [shape = 'u8[2048]{0}', space=vmem, size = 0x800, scoped, tag = 'input window, operand 5, single buffered']
    #allocation13 [shape = 's32[1]{0}', space=sflag, size = 0x4, scoped, tag = 'scoped memory for graph_trans_conv.6']
    #allocation14 [shape = 'u8[393216]{0}', space=vmem, size = 0x60000, scoped, tag = 'output window, operand 0, single buffered']
    #allocation15 [shape = 'u8[131072]{0}', space=vmem, size = 0x20000, scoped, tag = 'output window, operand 1, single buffered']
    #allocation16 [shape = 's32[1]{0}', space=sflag, size = 0x4, scoped, tag = 'scoped memory for graph_trans_conv.6']
    %13 = vsyncpa [#allocation4], 0
    %14 = vsyncpa [#allocation7], 0
    %15 = vsyncpa [#allocation10], 0
    %16 = vsyncpa [#allocation13], 0
    %17 = vsyncpa [#allocation5], 0
    %18 = vsyncpa [#allocation16], 0
    // Predicated region
    $region2: #{graph_trans_conv.6} parent=1 // pred_check
      _
    $region3: #{graph_trans_conv.6} parent=1 // pred_check_branch
      %20 = sbr.rel (0) target = $region5
    $region4: #{graph_trans_conv.6} parent=1 // pred_region
      %s22 = ssub.s32 8192, 8192
      %23 = vsyncadd [#allocation4], %s22
      %s24 = sshll.u32 [#allocation3], 4
      %s25 = int_to_ptr.vmem [resolvable:$true] %s24
      %30 = dma.hbm_to_vmem [thread:$0]  %s0, 8192, %s25, [#allocation4], 256, 256, 16
    $region5: #{graph_trans_conv.6} parent=1 // pred_fallthru
      _
    // Predicated region
    $region6: #{graph_trans_conv.6} parent=1 // pred_check
      _
    $region7: #{graph_trans_conv.6} parent=1 // pred_check_branch
      %32 = sbr.rel (0) target = $region9
    $region8: #{graph_trans_conv.6} parent=1 // pred_region
      %s34 = ssub.s32 4096, 4096
      %35 = vsyncadd [#allocation7], %s34
      %s36 = sshll.u32 [#allocation6], 4
      %s37 = int_to_ptr.vmem [resolvable:$true] %s36
      %42 = dma.hbm_to_vmem [thread:$0]  %s1, 4096, %s37, [#allocation7], 128, 128, 8
    $region9: #{graph_trans_conv.6} parent=1 // pred_fallthru
      _
    // Predicated region
    $region10: #{graph_trans_conv.6} parent=1 // pred_check
      _
    $region11: #{graph_trans_conv.6} parent=1 // pred_check_branch
      %44 = sbr.rel (0) target = $region13
    $region12: #{graph_trans_conv.6} parent=1 // pred_region
      %s46 = ssub.s32 4096, 4096
      %47 = vsyncadd [#allocation7], %s46
      %s48 = sshll.u32 [#allocation8], 4
      %s49 = int_to_ptr.vmem [resolvable:$true] %s48
      %54 = dma.hbm_to_vmem [thread:$0]  %s2, 4096, %s49, [#allocation7], 128, 128, 8
    $region13: #{graph_trans_conv.6} parent=1 // pred_fallthru
      _
    // Predicated region
    $region14: #{graph_trans_conv.6} parent=1 // pred_check
      _
    $region15: #{graph_trans_conv.6} parent=1 // pred_check_branch
      %56 = sbr.rel (0) target = $region17
    $region16: #{graph_trans_conv.6} parent=1 // pred_region
      %s58 = ssub.s32 2048, 2048
      %59 = vsyncadd [#allocation10], %s58
      %s60 = sshll.u32 [#allocation9], 4
      %s61 = int_to_ptr.vmem [resolvable:$true] %s60
      %66 = dma.hbm_to_vmem [thread:$0]  %s3, 2048, %s61, [#allocation10], 128, 128, 8
    $region17: #{graph_trans_conv.6} parent=1 // pred_fallthru
      _
    // Predicated region
    $region18: #{graph_trans_conv.6} parent=1 // pred_check
      _
    $region19: #{graph_trans_conv.6} parent=1 // pred_check_branch
      %68 = sbr.rel (0) target = $region21
    $region20: #{graph_trans_conv.6} parent=1 // pred_region
      %s70 = ssub.s32 8192, 8192
      %71 = vsyncadd [#allocation10], %s70
      %s72 = sshll.u32 [#allocation11], 4
      %s73 = int_to_ptr.vmem [resolvable:$true] %s72
      %78 = dma.hbm_to_vmem [thread:$0]  %s4, 8192, %s73, [#allocation10], 512, 512, 32
    $region21: #{graph_trans_conv.6} parent=1 // pred_fallthru
      _
    // Predicated region
    $region22: #{graph_trans_conv.6} parent=1 // pred_check
      _
    $region23: #{graph_trans_conv.6} parent=1 // pred_check_branch
      %80 = sbr.rel (0) target = $region25
    $region24: #{graph_trans_conv.6} parent=1 // pred_region
      %s82 = ssub.s32 64, 64
      %83 = vsyncadd [#allocation13], %s82
      %s85 = sshll.u32 [#allocation12], 4
      %s86 = int_to_ptr.vmem [resolvable:$true] %s85
      %88 = dma.hbm_to_vmem [thread:$0]  %s5, 64, %s86, [#allocation13]
    $region25: #{graph_trans_conv.6} parent=1 // pred_fallthru
      _
    // Predicated region
    $region26: #{graph_trans_conv.6} parent=1 // pred_check
      _
    $region27: #{graph_trans_conv.6} parent=1 // pred_check_branch
      %90 = sbr.rel (0) target = $region29
    $region28: #{graph_trans_conv.6} parent=1 // pred_region
      %91 = dma.done [#allocation4], 8192
    $region29: #{graph_trans_conv.6} parent=1 // pred_fallthru
      _
    // Predicated region
    $region30: #{graph_trans_conv.6} parent=1 // pred_check
      _
    $region31: #{graph_trans_conv.6} parent=1 // pred_check_branch
      %93 = sbr.rel (0) target = $region33
    $region32: #{graph_trans_conv.6} parent=1 // pred_region
      %94 = dma.done [#allocation7], 4096
    $region33: #{graph_trans_conv.6} parent=1 // pred_fallthru
      _
    // Predicated region
    $region34: #{graph_trans_conv.6} parent=1 // pred_check
      _
    $region35: #{graph_trans_conv.6} parent=1 // pred_check_branch
      %96 = sbr.rel (0) target = $region37
    $region36: #{graph_trans_conv.6} parent=1 // pred_region
      %97 = dma.done [#allocation7], 4096
    $region37: #{graph_trans_conv.6} parent=1 // pred_fallthru
      _
    // Predicated region
    $region38: #{graph_trans_conv.6} parent=1 // pred_check
      _
    $region39: #{graph_trans_conv.6} parent=1 // pred_check_branch
      %99 = sbr.rel (0) target = $region41
    $region40: #{graph_trans_conv.6} parent=1 // pred_region
      %100 = dma.done [#allocation10], 2048
    $region41: #{graph_trans_conv.6} parent=1 // pred_fallthru
      _
    // Predicated region
    $region42: #{graph_trans_conv.6} parent=1 // pred_check
      _
    $region43: #{graph_trans_conv.6} parent=1 // pred_check_branch
      %102 = sbr.rel (0) target = $region45
    $region44: #{graph_trans_conv.6} parent=1 // pred_region
      %103 = dma.done [#allocation10], 8192
    $region45: #{graph_trans_conv.6} parent=1 // pred_fallthru
      _
    // Predicated region
    $region46: #{graph_trans_conv.6} parent=1 // pred_check
      _
    $region47: #{graph_trans_conv.6} parent=1 // pred_check_branch
      %105 = sbr.rel (0) target = $region49
    $region48: #{graph_trans_conv.6} parent=1 // pred_region
      %106 = dma.done [#allocation13], 64
    $region49: #{graph_trans_conv.6} parent=1 // pred_fallthru
      _
    %p107 = scmp.eq.s32.totalorder 0, 0
    // Predicated region
    $region50: #{graph_trans_conv.6} parent=1 // pred_check
      %p108 = pneg %p107
    $region51: #{graph_trans_conv.6} parent=1 // pred_check_branch
      %110 = sbr.rel (%p108) target = $region53
    $region52: #{graph_trans_conv.6} parent=1 // pred_region
      %111 = vst [vmem:[#allocation2] sm:$0xff] 0.0
      %112 = vst [vmem:[#allocation2 + $0x8] sm:$0xff] 0.0
      %113 = vst [vmem:[#allocation2 + $0x10] sm:$0xff] 0.0
      %114 = vst [vmem:[#allocation2 + $0x18] sm:$0xff] 0.0
      %115 = vst [vmem:[#allocation2 + $0x20] sm:$0xff] 0.0
      %116 = vst [vmem:[#allocation2 + $0x28] sm:$0xff] 0.0
      %117 = vst [vmem:[#allocation2 + $0x30] sm:$0xff] 0.0
      %118 = vst [vmem:[#allocation2 + $0x38] sm:$0xff] 0.0
      %119 = vst [vmem:[#allocation2 + $0x40] sm:$0xff] 0.0
      %120 = vst [vmem:[#allocation2 + $0x48] sm:$0xff] 0.0
      %121 = vst [vmem:[#allocation2 + $0x50] sm:$0xff] 0.0
      %122 = vst [vmem:[#allocation2 + $0x58] sm:$0xff] 0.0
      %123 = vst [vmem:[#allocation2 + $0x60] sm:$0xff] 0.0
      %124 = vst [vmem:[#allocation2 + $0x68] sm:$0xff] 0.0
      %125 = vst [vmem:[#allocation2 + $0x70] sm:$0xff] 0.0
      %126 = vst [vmem:[#allocation2 + $0x78] sm:$0xff] 0.0
      %127 = vst [vmem:[#allocation2 + $0x80] sm:$0xff] 0.0
      %128 = vst [vmem:[#allocation2 + $0x88] sm:$0xff] 0.0
      %129 = vst [vmem:[#allocation2 + $0x90] sm:$0xff] 0.0
      %130 = vst [vmem:[#allocation2 + $0x98] sm:$0xff] 0.0
      %131 = vst [vmem:[#allocation2 + $0xa0] sm:$0xff] 0.0
      %132 = vst [vmem:[#allocation2 + $0xa8] sm:$0xff] 0.0
      %133 = vst [vmem:[#allocation2 + $0xb0] sm:$0xff] 0.0
      %134 = vst [vmem:[#allocation2 + $0xb8] sm:$0xff] 0.0
      %135 = vst [vmem:[#allocation2 + $0xc0] sm:$0xff] 0.0
      %136 = vst [vmem:[#allocation2 + $0xc8] sm:$0xff] 0.0
      %137 = vst [vmem:[#allocation2 + $0xd0] sm:$0xff] 0.0
      %138 = vst [vmem:[#allocation2 + $0xd8] sm:$0xff] 0.0
      %139 = vst [vmem:[#allocation2 + $0xe0] sm:$0xff] 0.0
      %140 = vst [vmem:[#allocation2 + $0xe8] sm:$0xff] 0.0
      %141 = vst [vmem:[#allocation2 + $0xf0] sm:$0xff] 0.0
      %142 = vst [vmem:[#allocation2 + $0xf8] sm:$0xff] 0.0
    $region53: #{graph_trans_conv.6} parent=1 // pred_fallthru
      _
    %v143 = vld [vmem:[#allocation2] sm:$0xff]
    %v144 = vld [vmem:[#allocation2 + $0x8] sm:$0xff]
    %v145 = vld [vmem:[#allocation2 + $0x10] sm:$0xff]
    %v146 = vld [vmem:[#allocation2 + $0x18] sm:$0xff]
    %v147 = vld [vmem:[#allocation2 + $0x20] sm:$0xff]
    %v148 = vld [vmem:[#allocation2 + $0x28] sm:$0xff]
    %v149 = vld [vmem:[#allocation2 + $0x30] sm:$0xff]
    %v150 = vld [vmem:[#allocation2 + $0x38] sm:$0xff]
    %v151 = vld [vmem:[#allocation2 + $0x40] sm:$0xff]
    %v152 = vld [vmem:[#allocation2 + $0x48] sm:$0xff]
    %v153 = vld [vmem:[#allocation2 + $0x50] sm:$0xff]
    %v154 = vld [vmem:[#allocation2 + $0x58] sm:$0xff]
    %v155 = vld [vmem:[#allocation2 + $0x60] sm:$0xff]
    %v156 = vld [vmem:[#allocation2 + $0x68] sm:$0xff]
    %v157 = vld [vmem:[#allocation2 + $0x70] sm:$0xff]
    %v158 = vld [vmem:[#allocation2 + $0x78] sm:$0xff]
    %v159 = vld [vmem:[#allocation2 + $0x80] sm:$0xff]
    %v160 = vld [vmem:[#allocation2 + $0x88] sm:$0xff]
    %v161 = vld [vmem:[#allocation2 + $0x90] sm:$0xff]
    %v162 = vld [vmem:[#allocation2 + $0x98] sm:$0xff]
    %v163 = vld [vmem:[#allocation2 + $0xa0] sm:$0xff]
    %v164 = vld [vmem:[#allocation2 + $0xa8] sm:$0xff]
    %v165 = vld [vmem:[#allocation2 + $0xb0] sm:$0xff]
    %v166 = vld [vmem:[#allocation2 + $0xb8] sm:$0xff]
    %v167 = vld [vmem:[#allocation2 + $0xc0] sm:$0xff]
    %v168 = vld [vmem:[#allocation2 + $0xc8] sm:$0xff]
    %v169 = vld [vmem:[#allocation2 + $0xd0] sm:$0xff]
    %v170 = vld [vmem:[#allocation2 + $0xd8] sm:$0xff]
    %v171 = vld [vmem:[#allocation2 + $0xe0] sm:$0xff]
    %v172 = vld [vmem:[#allocation2 + $0xe8] sm:$0xff]
    %v173 = vld [vmem:[#allocation2 + $0xf0] sm:$0xff]
    %v174 = vld [vmem:[#allocation2 + $0xf8] sm:$0xff]
    %v175 = vld [vmem:[#allocation3] sm:$0xff]
    %v176 = vld [vmem:[#allocation3 + $0x8] sm:$0xff]
    %v177 = vld [vmem:[#allocation3 + $0x10] sm:$0xff]
    %v178 = vld [vmem:[#allocation3 + $0x18] sm:$0xff]
    %v179 = vld [vmem:[#allocation3 + $0x20] sm:$0xff]
    %v180 = vld [vmem:[#allocation3 + $0x28] sm:$0xff]
    %v181 = vld [vmem:[#allocation3 + $0x30] sm:$0xff]
    %v182 = vld [vmem:[#allocation3 + $0x38] sm:$0xff]
    %v183 = vld [vmem:[#allocation3 + $0x40] sm:$0xff]
    %v184 = vld [vmem:[#allocation3 + $0x48] sm:$0xff]
    %v185 = vld [vmem:[#allocation3 + $0x50] sm:$0xff]
    %v186 = vld [vmem:[#allocation3 + $0x58] sm:$0xff]
    %v187 = vld [vmem:[#allocation3 + $0x60] sm:$0xff]
    %v188 = vld [vmem:[#allocation3 + $0x68] sm:$0xff]
    %v189 = vld [vmem:[#allocation3 + $0x70] sm:$0xff]
    %v190 = vld [vmem:[#allocation3 + $0x78] sm:$0xff]
    %v191 = vld [vmem:[#allocation3 + $0x80] sm:$0xff]
    %v192 = vld [vmem:[#allocation3 + $0x88] sm:$0xff]
    %v193 = vld [vmem:[#allocation3 + $0x90] sm:$0xff]
    %v194 = vld [vmem:[#allocation3 + $0x98] sm:$0xff]
    %v195 = vld [vmem:[#allocation3 + $0xa0] sm:$0xff]
    %v196 = vld [vmem:[#allocation3 + $0xa8] sm:$0xff]
    %v197 = vld [vmem:[#allocation3 + $0xb0] sm:$0xff]
    %v198 = vld [vmem:[#allocation3 + $0xb8] sm:$0xff]
    %v199 = vld [vmem:[#allocation3 + $0xc0] sm:$0xff]
    %v200 = vld [vmem:[#allocation3 + $0xc8] sm:$0xff]
    %v201 = vld [vmem:[#allocation3 + $0xd0] sm:$0xff]
    %v202 = vld [vmem:[#allocation3 + $0xd8] sm:$0xff]
    %v203 = vld [vmem:[#allocation3 + $0xe0] sm:$0xff]
    %v204 = vld [vmem:[#allocation3 + $0xe8] sm:$0xff]
    %v205 = vld [vmem:[#allocation3 + $0xf0] sm:$0xff]
    %v206 = vld [vmem:[#allocation3 + $0xf8] sm:$0xff]
    %v207 = vld [vmem:[#allocation3 + $0x100] sm:$0xff]
    %v208 = vld [vmem:[#allocation3 + $0x108] sm:$0xff]
    %v209 = vld [vmem:[#allocation3 + $0x110] sm:$0xff]
    %v210 = vld [vmem:[#allocation3 + $0x118] sm:$0xff]
    %v211 = vld [vmem:[#allocation3 + $0x120] sm:$0xff]
    %v212 = vld [vmem:[#allocation3 + $0x128] sm:$0xff]
    %v213 = vld [vmem:[#allocation3 + $0x130] sm:$0xff]
    %v214 = vld [vmem:[#allocation3 + $0x138] sm:$0xff]
    %v215 = vld [vmem:[#allocation3 + $0x140] sm:$0xff]
    %v216 = vld [vmem:[#allocation3 + $0x148] sm:$0xff]
    %v217 = vld [vmem:[#allocation3 + $0x150] sm:$0xff]
    %v218 = vld [vmem:[#allocation3 + $0x158] sm:$0xff]
    %v219 = vld [vmem:[#allocation3 + $0x160] sm:$0xff]
    %v220 = vld [vmem:[#allocation3 + $0x168] sm:$0xff]
    %v221 = vld [vmem:[#allocation3 + $0x170] sm:$0xff]
    %v222 = vld [vmem:[#allocation3 + $0x178] sm:$0xff]
    %v223 = vld [vmem:[#allocation3 + $0x180] sm:$0xff]
    %v224 = vld [vmem:[#allocation3 + $0x188] sm:$0xff]
    %v225 = vld [vmem:[#allocation3 + $0x190] sm:$0xff]
    %v226 = vld [vmem:[#allocation3 + $0x198] sm:$0xff]
    %v227 = vld [vmem:[#allocation3 + $0x1a0] sm:$0xff]
    %v228 = vld [vmem:[#allocation3 + $0x1a8] sm:$0xff]
    %v229 = vld [vmem:[#allocation3 + $0x1b0] sm:$0xff]
    %v230 = vld [vmem:[#allocation3 + $0x1b8] sm:$0xff]
    %v231 = vld [vmem:[#allocation3 + $0x1c0] sm:$0xff]
    %v232 = vld [vmem:[#allocation3 + $0x1c8] sm:$0xff]
    %v233 = vld [vmem:[#allocation3 + $0x1d0] sm:$0xff]
    %v234 = vld [vmem:[#allocation3 + $0x1d8] sm:$0xff]
    %v235 = vld [vmem:[#allocation3 + $0x1e0] sm:$0xff]
    %v236 = vld [vmem:[#allocation3 + $0x1e8] sm:$0xff]
    %v237 = vld [vmem:[#allocation3 + $0x1f0] sm:$0xff]
    %v238 = vld [vmem:[#allocation3 + $0x1f8] sm:$0xff]
    %v239 = vld [vmem:[#allocation6] sm:$0xff]
    %v240 = vld [vmem:[#allocation6 + $0x8] sm:$0xff]
    %v241 = vld [vmem:[#allocation6 + $0x10] sm:$0xff]
    %v242 = vld [vmem:[#allocation6 + $0x18] sm:$0xff]
    %v243 = vld [vmem:[#allocation6 + $0x20] sm:$0xff]
    %v244 = vld [vmem:[#allocation6 + $0x28] sm:$0xff]
    %v245 = vld [vmem:[#allocation6 + $0x30] sm:$0xff]
    %v246 = vld [vmem:[#allocation6 + $0x38] sm:$0xff]
    %v247 = vld [vmem:[#allocation6 + $0x40] sm:$0xff]
    %v248 = vld [vmem:[#allocation6 + $0x48] sm:$0xff]
    %v249 = vld [vmem:[#allocation6 + $0x50] sm:$0xff]
    %v250 = vld [vmem:[#allocation6 + $0x58] sm:$0xff]
    %v251 = vld [vmem:[#allocation6 + $0x60] sm:$0xff]
    %v252 = vld [vmem:[#allocation6 + $0x68] sm:$0xff]
    %v253 = vld [vmem:[#allocation6 + $0x70] sm:$0xff]
    %v254 = vld [vmem:[#allocation6 + $0x78] sm:$0xff]
    %v255 = vld [vmem:[#allocation6 + $0x80] sm:$0xff]
    %v256 = vld [vmem:[#allocation6 + $0x88] sm:$0xff]
    %v257 = vld [vmem:[#allocation6 + $0x90] sm:$0xff]
    %v258 = vld [vmem:[#allocation6 + $0x98] sm:$0xff]
    %v259 = vld [vmem:[#allocation6 + $0xa0] sm:$0xff]
    %v260 = vld [vmem:[#allocation6 + $0xa8] sm:$0xff]
    %v261 = vld [vmem:[#allocation6 + $0xb0] sm:$0xff]
    %v262 = vld [vmem:[#allocation6 + $0xb8] sm:$0xff]
    %v263 = vld [vmem:[#allocation6 + $0xc0] sm:$0xff]
    %v264 = vld [vmem:[#allocation6 + $0xc8] sm:$0xff]
    %v265 = vld [vmem:[#allocation6 + $0xd0] sm:$0xff]
    %v266 = vld [vmem:[#allocation6 + $0xd8] sm:$0xff]
    %v267 = vld [vmem:[#allocation6 + $0xe0] sm:$0xff]
    %v268 = vld [vmem:[#allocation6 + $0xe8] sm:$0xff]
    %v269 = vld [vmem:[#allocation6 + $0xf0] sm:$0xff]
    %v270 = vld [vmem:[#allocation6 + $0xf8] sm:$0xff]
    %271 = vmatprep.subr.mxu0 0.0
    %272 = vmatpush1.msra.mxu0 %v239
    %273 = vmatprep.subr.mxu0 0.0
    %274 = vmatpush1.msra.mxu0 %v240
    %275 = vmatprep.subr.mxu0 0.0
    %276 = vmatpush1.msra.mxu0 %v241
    %277 = vmatprep.subr.mxu0 0.0
    %278 = vmatpush1.msra.mxu0 %v242
    %279 = vmatprep.subr.mxu0 0.0
    %280 = vmatpush1.msra.mxu0 %v243
    %281 = vmatprep.subr.mxu0 0.0
    %282 = vmatpush1.msra.mxu0 %v244
    %283 = vmatprep.subr.mxu0 0.0
    %284 = vmatpush1.msra.mxu0 %v245
    %285 = vmatprep.subr.mxu0 0.0
    %286 = vmatpush1.msra.mxu0 %v246
    %287 = vmatprep.subr.mxu0 0.0
    %288 = vmatpush1.msra.mxu0 %v247
    %289 = vmatprep.subr.mxu0 0.0
    %290 = vmatpush1.msra.mxu0 %v248
    %291 = vmatprep.subr.mxu0 0.0
    %292 = vmatpush1.msra.mxu0 %v249
    %293 = vmatprep.subr.mxu0 0.0
    %294 = vmatpush1.msra.mxu0 %v250
    %295 = vmatprep.subr.mxu0 0.0
    %296 = vmatpush1.msra.mxu0 %v251
    %297 = vmatprep.subr.mxu0 0.0
    %298 = vmatpush1.msra.mxu0 %v252
    %299 = vmatprep.subr.mxu0 0.0
    %300 = vmatpush1.msra.mxu0 %v253
    %301 = vmatprep.subr.mxu0 0.0
    %302 = vmatpush1.msra.mxu0 %v254
    %303 = vmatprep.subr.mxu0 0.0
    %304 = vmatpush1.msra.mxu0 %v255
    %305 = vmatprep.subr.mxu0 0.0
    %306 = vmatpush1.msra.mxu0 %v256
    %307 = vmatprep.subr.mxu0 0.0
    %308 = vmatpush1.msra.mxu0 %v257
    %309 = vmatprep.subr.mxu0 0.0
    %310 = vmatpush1.msra.mxu0 %v258
    %311 = vmatprep.subr.mxu0 0.0
    %312 = vmatpush1.msra.mxu0 %v259
    %313 = vmatprep.subr.mxu0 0.0
    %314 = vmatpush1.msra.mxu0 %v260
    %315 = vmatprep.subr.mxu0 0.0
    %316 = vmatpush1.msra.mxu0 %v261
    %317 = vmatprep.subr.mxu0 0.0
    %318 = vmatpush1.msra.mxu0 %v262
    %319 = vmatprep.subr.mxu0 0.0
    %320 = vmatpush1.msra.mxu0 %v263
    %321 = vmatprep.subr.mxu0 0.0
    %322 = vmatpush1.msra.mxu0 %v264
    %323 = vmatprep.subr.mxu0 0.0
    %324 = vmatpush1.msra.mxu0 %v265
    %325 = vmatprep.subr.mxu0 0.0
    %326 = vmatpush1.msra.mxu0 %v266
    %327 = vmatprep.subr.mxu0 0.0
    %328 = vmatpush1.msra.mxu0 %v267
    %329 = vmatprep.subr.mxu0 0.0
    %330 = vmatpush1.msra.mxu0 %v268
    %331 = vmatprep.subr.mxu0 0.0
    %332 = vmatpush1.msra.mxu0 %v269
    %333 = vmatprep.subr.mxu0 0.0
    %334 = vmatpush1.msra.mxu0 %v270
    %335 = vmatprep.mubr.f32.mxu0 %v176
    %336 = vmatmul.mubr.f32.gmra.mrb[0].mxu0 %v175
    %v337 = vpop.f32.mrb[0].mxu0
    %v338 = vadd.f32 0.0, %v337
    %v339 = vpop.f32.mrb[0].mxu0
    %340 = vmatprep.mubr.f32.mxu0 %v178
    %341 = vmatmul.mubr.f32.gmra.mrb[0].mxu0 %v177
    %v342 = vpop.f32.mrb[0].mxu0
    %v343 = vadd.f32 0.0, %v342
    %v344 = vpop.f32.mrb[0].mxu0
    %345 = vmatprep.mubr.f32.mxu0 %v180
    %346 = vmatmul.mubr.f32.gmra.mrb[0].mxu0 %v179
    %v347 = vpop.f32.mrb[0].mxu0
    %v348 = vadd.f32 0.0, %v347
    %v349 = vpop.f32.mrb[0].mxu0
    %350 = vmatprep.mubr.f32.mxu0 %v182
    %351 = vmatmul.mubr.f32.gmra.mrb[0].mxu0 %v181
    %v352 = vpop.f32.mrb[0].mxu0
    %v353 = vadd.f32 0.0, %v352
    %v354 = vpop.f32.mrb[0].mxu0
    %355 = vmatprep.mubr.f32.mxu0 %v184
    %356 = vmatmul.mubr.f32.gmra.mrb[0].mxu0 %v183
    %v357 = vpop.f32.mrb[0].mxu0
    %v358 = vadd.f32 0.0, %v357
    %v359 = vpop.f32.mrb[0].mxu0
    %360 = vmatprep.mubr.f32.mxu0 %v186
    %361 = vmatmul.mubr.f32.gmra.mrb[0].mxu0 %v185
    %v362 = vpop.f32.mrb[0].mxu0
    %v363 = vadd.f32 0.0, %v362
    %v364 = vpop.f32.mrb[0].mxu0
    %365 = vmatprep.mubr.f32.mxu0 %v188
    %366 = vmatmul.mubr.f32.gmra.mrb[0].mxu0 %v187
    %v367 = vpop.f32.mrb[0].mxu0
    %v368 = vadd.f32 0.0, %v367
    %v369 = vpop.f32.mrb[0].mxu0
    %370 = vmatprep.mubr.f32.mxu0 %v190
    %371 = vmatmul.mubr.f32.gmra.mrb[0].mxu0 %v189
    %v372 = vpop.f32.mrb[0].mxu0
    %v373 = vadd.f32 0.0, %v372
    %v374 = vpop.f32.mrb[0].mxu0
    %375 = vmatprep.mubr.f32.mxu0 %v192
    %376 = vmatmul.mubr.f32.gmra.mrb[0].mxu0 %v191
    %v377 = vpop.f32.mrb[0].mxu0
    %v378 = vadd.f32 0.0, %v377
    %v379 = vpop.f32.mrb[0].mxu0
    %380 = vmatprep.mubr.f32.mxu0 %v194
    %381 = vmatmul.mubr.f32.gmra.mrb[0].mxu0 %v193
    %v382 = vpop.f32.mrb[0].mxu0
    %v383 = vadd.f32 0.0, %v382
    %v384 = vpop.f32.mrb[0].mxu0
    %385 = vmatprep.mubr.f32.mxu0 %v196
    %386 = vmatmul.mubr.f32.gmra.mrb[0].mxu0 %v195
    %v387 = vpop.f32.mrb[0].mxu0
    %v388 = vadd.f32 0.0, %v387
    %v389 = vpop.f32.mrb[0].mxu0
    %390 = vmatprep.mubr.f32.mxu0 %v198
    %391 = vmatmul.mubr.f32.gmra.mrb[0].mxu0 %v197
    %v392 = vpop.f32.mrb[0].mxu0
    %v393 = vadd.f32 0.0, %v392
    %v394 = vpop.f32.mrb[0].mxu0
    %395 = vmatprep.mubr.f32.mxu0 %v200
    %396 = vmatmul.mubr.f32.gmra.mrb[0].mxu0 %v199
    %v397 = vpop.f32.mrb[0].mxu0
    %v398 = vadd.f32 0.0, %v397
    %v399 = vpop.f32.mrb[0].mxu0
    %400 = vmatprep.mubr.f32.mxu0 %v202
    %401 = vmatmul.mubr.f32.gmra.mrb[0].mxu0 %v201
    %v402 = vpop.f32.mrb[0].mxu0
    %v403 = vadd.f32 0.0, %v402
    %v404 = vpop.f32.mrb[0].mxu0
    %405 = vmatprep.mubr.f32.mxu0 %v204
    %406 = vmatmul.mubr.f32.gmra.mrb[0].mxu0 %v203
    %v407 = vpop.f32.mrb[0].mxu0
    %v408 = vadd.f32 0.0, %v407
    %v409 = vpop.f32.mrb[0].mxu0
    %410 = vmatprep.mubr.f32.mxu0 %v206
    %411 = vmatmul.mubr.f32.gmra.mrb[0].mxu0 %v205
    %v412 = vpop.f32.mrb[0].mxu0
    %v413 = vadd.f32 0.0, %v412
    %v414 = vpop.f32.mrb[0].mxu0
    %415 = vmatprep.mubr.f32.mxu0 %v208
    %416 = vmatmul.mubr.f32.gmra.mrb[0].mxu0 %v207
    %v417 = vpop.f32.mrb[0].mxu0
    %v418 = vadd.f32 0.0, %v417
    %v419 = vpop.f32.mrb[0].mxu0
    %420 = vmatprep.mubr.f32.mxu0 %v210
    %421 = vmatmul.mubr.f32.gmra.mrb[0].mxu0 %v209
    %v422 = vpop.f32.mrb[0].mxu0
    %v423 = vadd.f32 0.0, %v422
    %v424 = vpop.f32.mrb[0].mxu0
    %425 = vmatprep.mubr.f32.mxu0 %v212
    %426 = vmatmul.mubr.f32.gmra.mrb[0].mxu0 %v211
    %v427 = vpop.f32.mrb[0].mxu0
    %v428 = vadd.f32 0.0, %v427
    %v429 = vpop.f32.mrb[0].mxu0
    %430 = vmatprep.mubr.f32.mxu0 %v214
    %431 = vmatmul.mubr.f32.gmra.mrb[0].mxu0 %v213
    %v432 = vpop.f32.mrb[0].mxu0
    %v433 = vadd.f32 0.0, %v432
    %v434 = vpop.f32.mrb[0].mxu0
    %435 = vmatprep.mubr.f32.mxu0 %v216
    %436 = vmatmul.mubr.f32.gmra.mrb[0].mxu0 %v215
    %v437 = vpop.f32.mrb[0].mxu0
    %v438 = vadd.f32 0.0, %v437
    %v439 = vpop.f32.mrb[0].mxu0
    %440 = vmatprep.mubr.f32.mxu0 %v218
    %441 = vmatmul.mubr.f32.gmra.mrb[0].mxu0 %v217
    %v442 = vpop.f32.mrb[0].mxu0
    %v443 = vadd.f32 0.0, %v442
    %v444 = vpop.f32.mrb[0].mxu0
    %445 = vmatprep.mubr.f32.mxu0 %v220
    %446 = vmatmul.mubr.f32.gmra.mrb[0].mxu0 %v219
    %v447 = vpop.f32.mrb[0].mxu0
    %v448 = vadd.f32 0.0, %v447
    %v449 = vpop.f32.mrb[0].mxu0
    %450 = vmatprep.mubr.f32.mxu0 %v222
    %451 = vmatmul.mubr.f32.gmra.mrb[0].mxu0 %v221
    %v452 = vpop.f32.mrb[0].mxu0
    %v453 = vadd.f32 0.0, %v452
    %v454 = vpop.f32.mrb[0].mxu0
    %455 = vmatprep.mubr.f32.mxu0 %v224
    %456 = vmatmul.mubr.f32.gmra.mrb[0].mxu0 %v223
    %v457 = vpop.f32.mrb[0].mxu0
    %v458 = vadd.f32 0.0, %v457
    %v459 = vpop.f32.mrb[0].mxu0
    %460 = vmatprep.mubr.f32.mxu0 %v226
    %461 = vmatmul.mubr.f32.gmra.mrb[0].mxu0 %v225
    %v462 = vpop.f32.mrb[0].mxu0
    %v463 = vadd.f32 0.0, %v462
    %v464 = vpop.f32.mrb[0].mxu0
    %465 = vmatprep.mubr.f32.mxu0 %v228
    %466 = vmatmul.mubr.f32.gmra.mrb[0].mxu0 %v227
    %v467 = vpop.f32.mrb[0].mxu0
    %v468 = vadd.f32 0.0, %v467
    %v469 = vpop.f32.mrb[0].mxu0
    %470 = vmatprep.mubr.f32.mxu0 %v230
    %471 = vmatmul.mubr.f32.gmra.mrb[0].mxu0 %v229
    %v472 = vpop.f32.mrb[0].mxu0
    %v473 = vadd.f32 0.0, %v472
    %v474 = vpop.f32.mrb[0].mxu0
    %475 = vmatprep.mubr.f32.mxu0 %v232
    %476 = vmatmul.mubr.f32.gmra.mrb[0].mxu0 %v231
    %v477 = vpop.f32.mrb[0].mxu0
    %v478 = vadd.f32 0.0, %v477
    %v479 = vpop.f32.mrb[0].mxu0
    %480 = vmatprep.mubr.f32.mxu0 %v234
    %481 = vmatmul.mubr.f32.gmra.mrb[0].mxu0 %v233
    %v482 = vpop.f32.mrb[0].mxu0
    %v483 = vadd.f32 0.0, %v482
    %v484 = vpop.f32.mrb[0].mxu0
    %485 = vmatprep.mubr.f32.mxu0 %v236
    %486 = vmatmul.mubr.f32.gmra.mrb[0].mxu0 %v235
    %v487 = vpop.f32.mrb[0].mxu0
    %v488 = vadd.f32 0.0, %v487
    %v489 = vpop.f32.mrb[0].mxu0
    %490 = vmatprep.mubr.f32.mxu0 %v238
    %491 = vmatmul.mubr.f32.gmra.mrb[0].mxu0 %v237
    %v492 = vpop.f32.mrb[0].mxu0
    %v493 = vadd.f32 0.0, %v492
    %v494 = vpop.f32.mrb[0].mxu0
    %495 = vdwg.mxu0
    %v496 = vadd.f32 %v143, %v338
    %v497 = vadd.f32 %v144, %v343
    %v498 = vadd.f32 %v145, %v348
    %v499 = vadd.f32 %v146, %v353
    %v500 = vadd.f32 %v147, %v358
    %v501 = vadd.f32 %v148, %v363
    %v502 = vadd.f32 %v149, %v368
    %v503 = vadd.f32 %v150, %v373
    %v504 = vadd.f32 %v151, %v378
    %v505 = vadd.f32 %v152, %v383
    %v506 = vadd.f32 %v153, %v388
    %v507 = vadd.f32 %v154, %v393
    %v508 = vadd.f32 %v155, %v398
    %v509 = vadd.f32 %v156, %v403
    %v510 = vadd.f32 %v157, %v408
    %v511 = vadd.f32 %v158, %v413
    %v512 = vadd.f32 %v159, %v418
    %v513 = vadd.f32 %v160, %v423
    %v514 = vadd.f32 %v161, %v428
    %v515 = vadd.f32 %v162, %v433
    %v516 = vadd.f32 %v163, %v438
    %v517 = vadd.f32 %v164, %v443
    %v518 = vadd.f32 %v165, %v448
    %v519 = vadd.f32 %v166, %v453
    %v520 = vadd.f32 %v167, %v458
    %v521 = vadd.f32 %v168, %v463
    %v522 = vadd.f32 %v169, %v468
    %v523 = vadd.f32 %v170, %v473
    %v524 = vadd.f32 %v171, %v478
    %v525 = vadd.f32 %v172, %v483
    %v526 = vadd.f32 %v173, %v488
    %v527 = vadd.f32 %v174, %v493
    %528 = vst [vmem:[#allocation2] sm:$0xff] %v496
    %529 = vst [vmem:[#allocation2 + $0x8] sm:$0xff] %v497
    %530 = vst [vmem:[#allocation2 + $0x10] sm:$0xff] %v498
    %531 = vst [vmem:[#allocation2 + $0x18] sm:$0xff] %v499
    %532 = vst [vmem:[#allocation2 + $0x20] sm:$0xff] %v500
    %533 = vst [vmem:[#allocation2 + $0x28] sm:$0xff] %v501
    %534 = vst [vmem:[#allocation2 + $0x30] sm:$0xff] %v502
    %535 = vst [vmem:[#allocation2 + $0x38] sm:$0xff] %v503
    %536 = vst [vmem:[#allocation2 + $0x40] sm:$0xff] %v504
    %537 = vst [vmem:[#allocation2 + $0x48] sm:$0xff] %v505
    %538 = vst [vmem:[#allocation2 + $0x50] sm:$0xff] %v506
    %539 = vst [vmem:[#allocation2 + $0x58] sm:$0xff] %v507
    %540 = vst [vmem:[#allocation2 + $0x60] sm:$0xff] %v508
    %541 = vst [vmem:[#allocation2 + $0x68] sm:$0xff] %v509
    %542 = vst [vmem:[#allocation2 + $0x70] sm:$0xff] %v510
    %543 = vst [vmem:[#allocation2 + $0x78] sm:$0xff] %v511
    %544 = vst [vmem:[#allocation2 + $0x80] sm:$0xff] %v512
    %545 = vst [vmem:[#allocation2 + $0x88] sm:$0xff] %v513
    %546 = vst [vmem:[#allocation2 + $0x90] sm:$0xff] %v514
    %547 = vst [vmem:[#allocation2 + $0x98] sm:$0xff] %v515
    %548 = vst [vmem:[#allocation2 + $0xa0] sm:$0xff] %v516
    %549 = vst [vmem:[#allocation2 + $0xa8] sm:$0xff] %v517
    %550 = vst [vmem:[#allocation2 + $0xb0] sm:$0xff] %v518
    %551 = vst [vmem:[#allocation2 + $0xb8] sm:$0xff] %v519
    %552 = vst [vmem:[#allocation2 + $0xc0] sm:$0xff] %v520
    %553 = vst [vmem:[#allocation2 + $0xc8] sm:$0xff] %v521
    %554 = vst [vmem:[#allocation2 + $0xd0] sm:$0xff] %v522
    %555 = vst [vmem:[#allocation2 + $0xd8] sm:$0xff] %v523
    %556 = vst [vmem:[#allocation2 + $0xe0] sm:$0xff] %v524
    %557 = vst [vmem:[#allocation2 + $0xe8] sm:$0xff] %v525
    %558 = vst [vmem:[#allocation2 + $0xf0] sm:$0xff] %v526
    %559 = vst [vmem:[#allocation2 + $0xf8] sm:$0xff] %v527
    // Predicated region
    $region54: #{graph_trans_conv.6} parent=1 // pred_check
      %p560 = pneg %p107
    $region55: #{graph_trans_conv.6} parent=1 // pred_check_branch
      %562 = sbr.rel (%p560) target = $region57
    $region56: #{graph_trans_conv.6} parent=1 // pred_region
      %v563 = vld [vmem:[#allocation2] sm:$0xff]
      %v564 = vld [vmem:[#allocation2 + $0x8] sm:$0xff]
      %v565 = vld [vmem:[#allocation2 + $0x10] sm:$0xff]
      %v566 = vld [vmem:[#allocation2 + $0x18] sm:$0xff]
      %v567 = vld [vmem:[#allocation2 + $0x20] sm:$0xff]
      %v568 = vld [vmem:[#allocation2 + $0x28] sm:$0xff]
      %v569 = vld [vmem:[#allocation2 + $0x30] sm:$0xff]
      %v570 = vld [vmem:[#allocation2 + $0x38] sm:$0xff]
      %v571 = vld [vmem:[#allocation2 + $0x40] sm:$0xff]
      %v572 = vld [vmem:[#allocation2 + $0x48] sm:$0xff]
      %v573 = vld [vmem:[#allocation2 + $0x50] sm:$0xff]
      %v574 = vld [vmem:[#allocation2 + $0x58] sm:$0xff]
      %v575 = vld [vmem:[#allocation2 + $0x60] sm:$0xff]
      %v576 = vld [vmem:[#allocation2 + $0x68] sm:$0xff]
      %v577 = vld [vmem:[#allocation2 + $0x70] sm:$0xff]
      %v578 = vld [vmem:[#allocation2 + $0x78] sm:$0xff]
      %v579 = vld [vmem:[#allocation2 + $0x80] sm:$0xff]
      %v580 = vld [vmem:[#allocation2 + $0x88] sm:$0xff]
      %v581 = vld [vmem:[#allocation2 + $0x90] sm:$0xff]
      %v582 = vld [vmem:[#allocation2 + $0x98] sm:$0xff]
      %v583 = vld [vmem:[#allocation2 + $0xa0] sm:$0xff]
      %v584 = vld [vmem:[#allocation2 + $0xa8] sm:$0xff]
      %v585 = vld [vmem:[#allocation2 + $0xb0] sm:$0xff]
      %v586 = vld [vmem:[#allocation2 + $0xb8] sm:$0xff]
      %v587 = vld [vmem:[#allocation2 + $0xc0] sm:$0xff]
      %v588 = vld [vmem:[#allocation2 + $0xc8] sm:$0xff]
      %v589 = vld [vmem:[#allocation2 + $0xd0] sm:$0xff]
      %v590 = vld [vmem:[#allocation2 + $0xd8] sm:$0xff]
      %v591 = vld [vmem:[#allocation2 + $0xe0] sm:$0xff]
      %v592 = vld [vmem:[#allocation2 + $0xe8] sm:$0xff]
      %v593 = vld [vmem:[#allocation2 + $0xf0] sm:$0xff]
      %v594 = vld [vmem:[#allocation2 + $0xf8] sm:$0xff]
      %v595 = vld [vmem:[#allocation8] sm:$0xff]
      %v596 = vld [vmem:[#allocation8 + $0x8] sm:$0xff]
      %v597 = vld [vmem:[#allocation8 + $0x10] sm:$0xff]
      %v598 = vld [vmem:[#allocation8 + $0x18] sm:$0xff]
      %v599 = vld [vmem:[#allocation8 + $0x20] sm:$0xff]
      %v600 = vld [vmem:[#allocation8 + $0x28] sm:$0xff]
      %v601 = vld [vmem:[#allocation8 + $0x30] sm:$0xff]
      %v602 = vld [vmem:[#allocation8 + $0x38] sm:$0xff]
      %v603 = vld [vmem:[#allocation8 + $0x40] sm:$0xff]
      %v604 = vld [vmem:[#allocation8 + $0x48] sm:$0xff]
      %v605 = vld [vmem:[#allocation8 + $0x50] sm:$0xff]
      %v606 = vld [vmem:[#allocation8 + $0x58] sm:$0xff]
      %v607 = vld [vmem:[#allocation8 + $0x60] sm:$0xff]
      %v608 = vld [vmem:[#allocation8 + $0x68] sm:$0xff]
      %v609 = vld [vmem:[#allocation8 + $0x70] sm:$0xff]
      %v610 = vld [vmem:[#allocation8 + $0x78] sm:$0xff]
      %v611 = vld [vmem:[#allocation8 + $0x80] sm:$0xff]
      %v612 = vld [vmem:[#allocation8 + $0x88] sm:$0xff]
      %v613 = vld [vmem:[#allocation8 + $0x90] sm:$0xff]
      %v614 = vld [vmem:[#allocation8 + $0x98] sm:$0xff]
      %v615 = vld [vmem:[#allocation8 + $0xa0] sm:$0xff]
      %v616 = vld [vmem:[#allocation8 + $0xa8] sm:$0xff]
      %v617 = vld [vmem:[#allocation8 + $0xb0] sm:$0xff]
      %v618 = vld [vmem:[#allocation8 + $0xb8] sm:$0xff]
      %v619 = vld [vmem:[#allocation8 + $0xc0] sm:$0xff]
      %v620 = vld [vmem:[#allocation8 + $0xc8] sm:$0xff]
      %v621 = vld [vmem:[#allocation8 + $0xd0] sm:$0xff]
      %v622 = vld [vmem:[#allocation8 + $0xd8] sm:$0xff]
      %v623 = vld [vmem:[#allocation8 + $0xe0] sm:$0xff]
      %v624 = vld [vmem:[#allocation8 + $0xe8] sm:$0xff]
      %v625 = vld [vmem:[#allocation8 + $0xf0] sm:$0xff]
      %v626 = vld [vmem:[#allocation8 + $0xf8] sm:$0xff]
      %628 = vset.pattern.permute.xlu0 0
      %629 = vperm.xlu0 %628, %v595
      %v630 = vpop.permute.xlu0 %629
      %633 = vset.pattern.permute.xlu0 0
      %634 = vperm.xlu0 %633, %v596
      %v635 = vpop.permute.xlu0 %634
      %638 = vset.pattern.permute.xlu0 0
      %639 = vperm.xlu0 %638, %v597
      %v640 = vpop.permute.xlu0 %639
      %643 = vset.pattern.permute.xlu0 0
      %644 = vperm.xlu0 %643, %v598
      %v645 = vpop.permute.xlu0 %644
      %648 = vset.pattern.permute.xlu0 0
      %649 = vperm.xlu0 %648, %v599
      %v650 = vpop.permute.xlu0 %649
      %653 = vset.pattern.permute.xlu0 0
      %654 = vperm.xlu0 %653, %v600
      %v655 = vpop.permute.xlu0 %654
      %658 = vset.pattern.permute.xlu0 0
      %659 = vperm.xlu0 %658, %v601
      %v660 = vpop.permute.xlu0 %659
      %663 = vset.pattern.permute.xlu0 0
      %664 = vperm.xlu0 %663, %v602
      %v665 = vpop.permute.xlu0 %664
      %668 = vset.pattern.permute.xlu0 0
      %669 = vperm.xlu0 %668, %v603
      %v670 = vpop.permute.xlu0 %669
      %673 = vset.pattern.permute.xlu0 0
      %674 = vperm.xlu0 %673, %v604
      %v675 = vpop.permute.xlu0 %674
      %678 = vset.pattern.permute.xlu0 0
      %679 = vperm.xlu0 %678, %v605
      %v680 = vpop.permute.xlu0 %679
      %683 = vset.pattern.permute.xlu0 0
      %684 = vperm.xlu0 %683, %v606
      %v685 = vpop.permute.xlu0 %684
      %688 = vset.pattern.permute.xlu0 0
      %689 = vperm.xlu0 %688, %v607
      %v690 = vpop.permute.xlu0 %689
      %693 = vset.pattern.permute.xlu0 0
      %694 = vperm.xlu0 %693, %v608
      %v695 = vpop.permute.xlu0 %694
      %698 = vset.pattern.permute.xlu0 0
      %699 = vperm.xlu0 %698, %v609
      %v700 = vpop.permute.xlu0 %699
      %703 = vset.pattern.permute.xlu0 0
      %704 = vperm.xlu0 %703, %v610
      %v705 = vpop.permute.xlu0 %704
      %708 = vset.pattern.permute.xlu0 0
      %709 = vperm.xlu0 %708, %v611
      %v710 = vpop.permute.xlu0 %709
      %713 = vset.pattern.permute.xlu0 0
      %714 = vperm.xlu0 %713, %v612
      %v715 = vpop.permute.xlu0 %714
      %718 = vset.pattern.permute.xlu0 0
      %719 = vperm.xlu0 %718, %v613
      %v720 = vpop.permute.xlu0 %719
      %723 = vset.pattern.permute.xlu0 0
      %724 = vperm.xlu0 %723, %v614
      %v725 = vpop.permute.xlu0 %724
      %728 = vset.pattern.permute.xlu0 0
      %729 = vperm.xlu0 %728, %v615
      %v730 = vpop.permute.xlu0 %729
      %733 = vset.pattern.permute.xlu0 0
      %734 = vperm.xlu0 %733, %v616
      %v735 = vpop.permute.xlu0 %734
      %738 = vset.pattern.permute.xlu0 0
      %739 = vperm.xlu0 %738, %v617
      %v740 = vpop.permute.xlu0 %739
      %743 = vset.pattern.permute.xlu0 0
      %744 = vperm.xlu0 %743, %v618
      %v745 = vpop.permute.xlu0 %744
      %748 = vset.pattern.permute.xlu0 0
      %749 = vperm.xlu0 %748, %v619
      %v750 = vpop.permute.xlu0 %749
      %753 = vset.pattern.permute.xlu0 0
      %754 = vperm.xlu0 %753, %v620
      %v755 = vpop.permute.xlu0 %754
      %758 = vset.pattern.permute.xlu0 0
      %759 = vperm.xlu0 %758, %v621
      %v760 = vpop.permute.xlu0 %759
      %763 = vset.pattern.permute.xlu0 0
      %764 = vperm.xlu0 %763, %v622
      %v765 = vpop.permute.xlu0 %764
      %768 = vset.pattern.permute.xlu0 0
      %769 = vperm.xlu0 %768, %v623
      %v770 = vpop.permute.xlu0 %769
      %773 = vset.pattern.permute.xlu0 0
      %774 = vperm.xlu0 %773, %v624
      %v775 = vpop.permute.xlu0 %774
      %778 = vset.pattern.permute.xlu0 0
      %779 = vperm.xlu0 %778, %v625
      %v780 = vpop.permute.xlu0 %779
      %783 = vset.pattern.permute.xlu0 0
      %784 = vperm.xlu0 %783, %v626
      %v785 = vpop.permute.xlu0 %784
      %v787 = vmul.f32 %v563, %v630
      %v788 = vmul.f32 %v564, %v635
      %v789 = vmul.f32 %v565, %v640
      %v790 = vmul.f32 %v566, %v645
      %v791 = vmul.f32 %v567, %v650
      %v792 = vmul.f32 %v568, %v655
      %v793 = vmul.f32 %v569, %v660
      %v794 = vmul.f32 %v570, %v665
      %v795 = vmul.f32 %v571, %v670
      %v796 = vmul.f32 %v572, %v675
      %v797 = vmul.f32 %v573, %v680
      %v798 = vmul.f32 %v574, %v685
      %v799 = vmul.f32 %v575, %v690
      %v800 = vmul.f32 %v576, %v695
      %v801 = vmul.f32 %v577, %v700
      %v802 = vmul.f32 %v578, %v705
      %v803 = vmul.f32 %v579, %v710
      %v804 = vmul.f32 %v580, %v715
      %v805 = vmul.f32 %v581, %v720
      %v806 = vmul.f32 %v582, %v725
      %v807 = vmul.f32 %v583, %v730
      %v808 = vmul.f32 %v584, %v735
      %v809 = vmul.f32 %v585, %v740
      %v810 = vmul.f32 %v586, %v745
      %v811 = vmul.f32 %v587, %v750
      %v812 = vmul.f32 %v588, %v755
      %v813 = vmul.f32 %v589, %v760
      %v814 = vmul.f32 %v590, %v765
      %v815 = vmul.f32 %v591, %v770
      %v816 = vmul.f32 %v592, %v775
      %v817 = vmul.f32 %v593, %v780
      %v818 = vmul.f32 %v594, %v785
      %v819 = vld [vmem:[#allocation9] sm:$0xff]
      %v820 = vld [vmem:[#allocation9 + $0x8] sm:$0xff]
      %v821 = vld [vmem:[#allocation9 + $0x10] sm:$0xff]
      %v822 = vld [vmem:[#allocation9 + $0x18] sm:$0xff]
      %v823 = vld [vmem:[#allocation9 + $0x20] sm:$0xff]
      %v824 = vld [vmem:[#allocation9 + $0x28] sm:$0xff]
      %v825 = vld [vmem:[#allocation9 + $0x30] sm:$0xff]
      %v826 = vld [vmem:[#allocation9 + $0x38] sm:$0xff]
      %v827 = vld [vmem:[#allocation9 + $0x40] sm:$0xff]
      %v828 = vld [vmem:[#allocation9 + $0x48] sm:$0xff]
      %v829 = vld [vmem:[#allocation9 + $0x50] sm:$0xff]
      %v830 = vld [vmem:[#allocation9 + $0x58] sm:$0xff]
      %v831 = vld [vmem:[#allocation9 + $0x60] sm:$0xff]
      %v832 = vld [vmem:[#allocation9 + $0x68] sm:$0xff]
      %v833 = vld [vmem:[#allocation9 + $0x70] sm:$0xff]
      %v834 = vld [vmem:[#allocation9 + $0x78] sm:$0xff]
      %835 = vmatprep.subr.mxu0 0.0
      %836 = vmatpush1.msra.mxu0 %v819
      %837 = vmatprep.subr.mxu0 0.0
      %838 = vmatpush1.msra.mxu0 %v820
      %839 = vmatprep.subr.mxu0 0.0
      %840 = vmatpush1.msra.mxu0 %v821
      %841 = vmatprep.subr.mxu0 0.0
      %842 = vmatpush1.msra.mxu0 %v822
      %843 = vmatprep.subr.mxu0 0.0
      %844 = vmatpush1.msra.mxu0 %v823
      %845 = vmatprep.subr.mxu0 0.0
      %846 = vmatpush1.msra.mxu0 %v824
      %847 = vmatprep.subr.mxu0 0.0
      %848 = vmatpush1.msra.mxu0 %v825
      %849 = vmatprep.subr.mxu0 0.0
      %850 = vmatpush1.msra.mxu0 %v826
      %851 = vmatprep.subr.mxu0 0.0
      %852 = vmatpush1.msra.mxu0 %v827
      %853 = vmatprep.subr.mxu0 0.0
      %854 = vmatpush1.msra.mxu0 %v828
      %855 = vmatprep.subr.mxu0 0.0
      %856 = vmatpush1.msra.mxu0 %v829
      %857 = vmatprep.subr.mxu0 0.0
      %858 = vmatpush1.msra.mxu0 %v830
      %859 = vmatprep.subr.mxu0 0.0
      %860 = vmatpush1.msra.mxu0 %v831
      %861 = vmatprep.subr.mxu0 0.0
      %862 = vmatpush1.msra.mxu0 %v832
      %863 = vmatprep.subr.mxu0 0.0
      %864 = vmatpush1.msra.mxu0 %v833
      %865 = vmatprep.subr.mxu0 0.0
      %866 = vmatpush1.msra.mxu0 %v834
      %867 = vmatprep.subr.mxu0 0.0
      %868 = vmatpush1.msra.mxu0 0.0
      %869 = vmatprep.subr.mxu0 0.0
      %870 = vmatpush1.msra.mxu0 0.0
      %871 = vmatprep.subr.mxu0 0.0
      %872 = vmatpush1.msra.mxu0 0.0
      %873 = vmatprep.subr.mxu0 0.0
      %874 = vmatpush1.msra.mxu0 0.0
      %875 = vmatprep.subr.mxu0 0.0
      %876 = vmatpush1.msra.mxu0 0.0
      %877 = vmatprep.subr.mxu0 0.0
      %878 = vmatpush1.msra.mxu0 0.0
      %879 = vmatprep.subr.mxu0 0.0
      %880 = vmatpush1.msra.mxu0 0.0
      %881 = vmatprep.subr.mxu0 0.0
      %882 = vmatpush1.msra.mxu0 0.0
      %883 = vmatprep.subr.mxu0 0.0
      %884 = vmatpush1.msra.mxu0 0.0
      %885 = vmatprep.subr.mxu0 0.0
      %886 = vmatpush1.msra.mxu0 0.0
      %887 = vmatprep.subr.mxu0 0.0
      %888 = vmatpush1.msra.mxu0 0.0
      %889 = vmatprep.subr.mxu0 0.0
      %890 = vmatpush1.msra.mxu0 0.0
      %891 = vmatprep.subr.mxu0 0.0
      %892 = vmatpush1.msra.mxu0 0.0
      %893 = vmatprep.subr.mxu0 0.0
      %894 = vmatpush1.msra.mxu0 0.0
      %895 = vmatprep.subr.mxu0 0.0
      %896 = vmatpush1.msra.mxu0 0.0
      %897 = vmatprep.subr.mxu0 0.0
      %898 = vmatpush1.msra.mxu0 0.0
      %899 = vmatprep.mubr.f32.mxu0 0.0
      %900 = vmatmul.mubr.f32.gmra.mrb[0].mxu0 %v787
      %v901 = vpop.f32.mrb[0].mxu0
      %v902 = vadd.f32 0.0, %v901
      %v903 = vpop.f32.mrb[0].mxu0
      %904 = vmatprep.mubr.f32.mxu0 0.0
      %905 = vmatmul.mubr.f32.gmra.mrb[0].mxu0 %v788
      %v906 = vpop.f32.mrb[0].mxu0
      %v907 = vadd.f32 0.0, %v906
      %v908 = vpop.f32.mrb[0].mxu0
      %909 = vmatprep.mubr.f32.mxu0 0.0
      %910 = vmatmul.mubr.f32.gmra.mrb[0].mxu0 %v789
      %v911 = vpop.f32.mrb[0].mxu0
      %v912 = vadd.f32 0.0, %v911
      %v913 = vpop.f32.mrb[0].mxu0
      %914 = vmatprep.mubr.f32.mxu0 0.0
      %915 = vmatmul.mubr.f32.gmra.mrb[0].mxu0 %v790
      %v916 = vpop.f32.mrb[0].mxu0
      %v917 = vadd.f32 0.0, %v916
      %v918 = vpop.f32.mrb[0].mxu0
      %919 = vmatprep.mubr.f32.mxu0 0.0
      %920 = vmatmul.mubr.f32.gmra.mrb[0].mxu0 %v791
      %v921 = vpop.f32.mrb[0].mxu0
      %v922 = vadd.f32 0.0, %v921
      %v923 = vpop.f32.mrb[0].mxu0
      %924 = vmatprep.mubr.f32.mxu0 0.0
      %925 = vmatmul.mubr.f32.gmra.mrb[0].mxu0 %v792
      %v926 = vpop.f32.mrb[0].mxu0
      %v927 = vadd.f32 0.0, %v926
      %v928 = vpop.f32.mrb[0].mxu0
      %929 = vmatprep.mubr.f32.mxu0 0.0
      %930 = vmatmul.mubr.f32.gmra.mrb[0].mxu0 %v793
      %v931 = vpop.f32.mrb[0].mxu0
      %v932 = vadd.f32 0.0, %v931
      %v933 = vpop.f32.mrb[0].mxu0
      %934 = vmatprep.mubr.f32.mxu0 0.0
      %935 = vmatmul.mubr.f32.gmra.mrb[0].mxu0 %v794
      %v936 = vpop.f32.mrb[0].mxu0
      %v937 = vadd.f32 0.0, %v936
      %v938 = vpop.f32.mrb[0].mxu0
      %939 = vmatprep.mubr.f32.mxu0 0.0
      %940 = vmatmul.mubr.f32.gmra.mrb[0].mxu0 %v795
      %v941 = vpop.f32.mrb[0].mxu0
      %v942 = vadd.f32 0.0, %v941
      %v943 = vpop.f32.mrb[0].mxu0
      %944 = vmatprep.mubr.f32.mxu0 0.0
      %945 = vmatmul.mubr.f32.gmra.mrb[0].mxu0 %v796
      %v946 = vpop.f32.mrb[0].mxu0
      %v947 = vadd.f32 0.0, %v946
      %v948 = vpop.f32.mrb[0].mxu0
      %949 = vmatprep.mubr.f32.mxu0 0.0
      %950 = vmatmul.mubr.f32.gmra.mrb[0].mxu0 %v797
      %v951 = vpop.f32.mrb[0].mxu0
      %v952 = vadd.f32 0.0, %v951
      %v953 = vpop.f32.mrb[0].mxu0
      %954 = vmatprep.mubr.f32.mxu0 0.0
      %955 = vmatmul.mubr.f32.gmra.mrb[0].mxu0 %v798
      %v956 = vpop.f32.mrb[0].mxu0
      %v957 = vadd.f32 0.0, %v956
      %v958 = vpop.f32.mrb[0].mxu0
      %959 = vmatprep.mubr.f32.mxu0 0.0
      %960 = vmatmul.mubr.f32.gmra.mrb[0].mxu0 %v799
      %v961 = vpop.f32.mrb[0].mxu0
      %v962 = vadd.f32 0.0, %v961
      %v963 = vpop.f32.mrb[0].mxu0
      %964 = vmatprep.mubr.f32.mxu0 0.0
      %965 = vmatmul.mubr.f32.gmra.mrb[0].mxu0 %v800
      %v966 = vpop.f32.mrb[0].mxu0
      %v967 = vadd.f32 0.0, %v966
      %v968 = vpop.f32.mrb[0].mxu0
      %969 = vmatprep.mubr.f32.mxu0 0.0
      %970 = vmatmul.mubr.f32.gmra.mrb[0].mxu0 %v801
      %v971 = vpop.f32.mrb[0].mxu0
      %v972 = vadd.f32 0.0, %v971
      %v973 = vpop.f32.mrb[0].mxu0
      %974 = vmatprep.mubr.f32.mxu0 0.0
      %975 = vmatmul.mubr.f32.gmra.mrb[0].mxu0 %v802
      %v976 = vpop.f32.mrb[0].mxu0
      %v977 = vadd.f32 0.0, %v976
      %v978 = vpop.f32.mrb[0].mxu0
      %979 = vmatprep.mubr.f32.mxu0 0.0
      %980 = vmatmul.mubr.f32.gmra.mrb[0].mxu0 %v803
      %v981 = vpop.f32.mrb[0].mxu0
      %v982 = vadd.f32 0.0, %v981
      %v983 = vpop.f32.mrb[0].mxu0
      %984 = vmatprep.mubr.f32.mxu0 0.0
      %985 = vmatmul.mubr.f32.gmra.mrb[0].mxu0 %v804
      %v986 = vpop.f32.mrb[0].mxu0
      %v987 = vadd.f32 0.0, %v986
      %v988 = vpop.f32.mrb[0].mxu0
      %989 = vmatprep.mubr.f32.mxu0 0.0
      %990 = vmatmul.mubr.f32.gmra.mrb[0].mxu0 %v805
      %v991 = vpop.f32.mrb[0].mxu0
      %v992 = vadd.f32 0.0, %v991
      %v993 = vpop.f32.mrb[0].mxu0
      %994 = vmatprep.mubr.f32.mxu0 0.0
      %995 = vmatmul.mubr.f32.gmra.mrb[0].mxu0 %v806
      %v996 = vpop.f32.mrb[0].mxu0
      %v997 = vadd.f32 0.0, %v996
      %v998 = vpop.f32.mrb[0].mxu0
      %999 = vmatprep.mubr.f32.mxu0 0.0
      %1000 = vmatmul.mubr.f32.gmra.mrb[0].mxu0 %v807
      %v1001 = vpop.f32.mrb[0].mxu0
      %v1002 = vadd.f32 0.0, %v1001
      %v1003 = vpop.f32.mrb[0].mxu0
      %1004 = vmatprep.mubr.f32.mxu0 0.0
      %1005 = vmatmul.mubr.f32.gmra.mrb[0].mxu0 %v808
      %v1006 = vpop.f32.mrb[0].mxu0
      %v1007 = vadd.f32 0.0, %v1006
      %v1008 = vpop.f32.mrb[0].mxu0
      %1009 = vmatprep.mubr.f32.mxu0 0.0
      %1010 = vmatmul.mubr.f32.gmra.mrb[0].mxu0 %v809
      %v1011 = vpop.f32.mrb[0].mxu0
      %v1012 = vadd.f32 0.0, %v1011
      %v1013 = vpop.f32.mrb[0].mxu0
      %1014 = vmatprep.mubr.f32.mxu0 0.0
      %1015 = vmatmul.mubr.f32.gmra.mrb[0].mxu0 %v810
      %v1016 = vpop.f32.mrb[0].mxu0
      %v1017 = vadd.f32 0.0, %v1016
      %v1018 = vpop.f32.mrb[0].mxu0
      %1019 = vmatprep.mubr.f32.mxu0 0.0
      %1020 = vmatmul.mubr.f32.gmra.mrb[0].mxu0 %v811
      %v1021 = vpop.f32.mrb[0].mxu0
      %v1022 = vadd.f32 0.0, %v1021
      %v1023 = vpop.f32.mrb[0].mxu0
      %1024 = vmatprep.mubr.f32.mxu0 0.0
      %1025 = vmatmul.mubr.f32.gmra.mrb[0].mxu0 %v812
      %v1026 = vpop.f32.mrb[0].mxu0
      %v1027 = vadd.f32 0.0, %v1026
      %v1028 = vpop.f32.mrb[0].mxu0
      %1029 = vmatprep.mubr.f32.mxu0 0.0
      %1030 = vmatmul.mubr.f32.gmra.mrb[0].mxu0 %v813
      %v1031 = vpop.f32.mrb[0].mxu0
      %v1032 = vadd.f32 0.0, %v1031
      %v1033 = vpop.f32.mrb[0].mxu0
      %1034 = vmatprep.mubr.f32.mxu0 0.0
      %1035 = vmatmul.mubr.f32.gmra.mrb[0].mxu0 %v814
      %v1036 = vpop.f32.mrb[0].mxu0
      %v1037 = vadd.f32 0.0, %v1036
      %v1038 = vpop.f32.mrb[0].mxu0
      %1039 = vmatprep.mubr.f32.mxu0 0.0
      %1040 = vmatmul.mubr.f32.gmra.mrb[0].mxu0 %v815
      %v1041 = vpop.f32.mrb[0].mxu0
      %v1042 = vadd.f32 0.0, %v1041
      %v1043 = vpop.f32.mrb[0].mxu0
      %1044 = vmatprep.mubr.f32.mxu0 0.0
      %1045 = vmatmul.mubr.f32.gmra.mrb[0].mxu0 %v816
      %v1046 = vpop.f32.mrb[0].mxu0
      %v1047 = vadd.f32 0.0, %v1046
      %v1048 = vpop.f32.mrb[0].mxu0
      %1049 = vmatprep.mubr.f32.mxu0 0.0
      %1050 = vmatmul.mubr.f32.gmra.mrb[0].mxu0 %v817
      %v1051 = vpop.f32.mrb[0].mxu0
      %v1052 = vadd.f32 0.0, %v1051
      %v1053 = vpop.f32.mrb[0].mxu0
      %1054 = vmatprep.mubr.f32.mxu0 0.0
      %1055 = vmatmul.mubr.f32.gmra.mrb[0].mxu0 %v818
      %v1056 = vpop.f32.mrb[0].mxu0
      %v1057 = vadd.f32 0.0, %v1056
      %v1058 = vpop.f32.mrb[0].mxu0
      %1059 = vdwg.mxu0
      %v1060 = vmax.f32 %v902, 0.0
      %v1061 = vmax.f32 %v907, 0.0
      %v1062 = vmax.f32 %v912, 0.0
      %v1063 = vmax.f32 %v917, 0.0
      %v1064 = vmax.f32 %v922, 0.0
      %v1065 = vmax.f32 %v927, 0.0
      %v1066 = vmax.f32 %v932, 0.0
      %v1067 = vmax.f32 %v937, 0.0
      %v1068 = vmax.f32 %v942, 0.0
      %v1069 = vmax.f32 %v947, 0.0
      %v1070 = vmax.f32 %v952, 0.0
      %v1071 = vmax.f32 %v957, 0.0
      %v1072 = vmax.f32 %v962, 0.0
      %v1073 = vmax.f32 %v967, 0.0
      %v1074 = vmax.f32 %v972, 0.0
      %v1075 = vmax.f32 %v977, 0.0
      %v1076 = vmax.f32 %v982, 0.0
      %v1077 = vmax.f32 %v987, 0.0
      %v1078 = vmax.f32 %v992, 0.0
      %v1079 = vmax.f32 %v997, 0.0
      %v1080 = vmax.f32 %v1002, 0.0
      %v1081 = vmax.f32 %v1007, 0.0
      %v1082 = vmax.f32 %v1012, 0.0
      %v1083 = vmax.f32 %v1017, 0.0
      %v1084 = vmax.f32 %v1022, 0.0
      %v1085 = vmax.f32 %v1027, 0.0
      %v1086 = vmax.f32 %v1032, 0.0
      %v1087 = vmax.f32 %v1037, 0.0
      %v1088 = vmax.f32 %v1042, 0.0
      %v1089 = vmax.f32 %v1047, 0.0
      %v1090 = vmax.f32 %v1052, 0.0
      %v1091 = vmax.f32 %v1057, 0.0
      %v1092 = vld [vmem:[#allocation11] sm:$0xff]
      %v1093 = vld [vmem:[#allocation11 + $0x8] sm:$0xff]
      %v1094 = vld [vmem:[#allocation11 + $0x10] sm:$0xff]
      %v1095 = vld [vmem:[#allocation11 + $0x18] sm:$0xff]
      %v1096 = vld [vmem:[#allocation11 + $0x20] sm:$0xff]
      %v1097 = vld [vmem:[#allocation11 + $0x28] sm:$0xff]
      %v1098 = vld [vmem:[#allocation11 + $0x30] sm:$0xff]
      %v1099 = vld [vmem:[#allocation11 + $0x38] sm:$0xff]
      %v1100 = vld [vmem:[#allocation11 + $0x40] sm:$0xff]
      %v1101 = vld [vmem:[#allocation11 + $0x48] sm:$0xff]
      %v1102 = vld [vmem:[#allocation11 + $0x50] sm:$0xff]
      %v1103 = vld [vmem:[#allocation11 + $0x58] sm:$0xff]
      %v1104 = vld [vmem:[#allocation11 + $0x60] sm:$0xff]
      %v1105 = vld [vmem:[#allocation11 + $0x68] sm:$0xff]
      %v1106 = vld [vmem:[#allocation11 + $0x70] sm:$0xff]
      %v1107 = vld [vmem:[#allocation11 + $0x78] sm:$0xff]
      %v1108 = vld [vmem:[#allocation11 + $0x80] sm:$0xff]
      %v1109 = vld [vmem:[#allocation11 + $0x88] sm:$0xff]
      %v1110 = vld [vmem:[#allocation11 + $0x90] sm:$0xff]
      %v1111 = vld [vmem:[#allocation11 + $0x98] sm:$0xff]
      %v1112 = vld [vmem:[#allocation11 + $0xa0] sm:$0xff]
      %v1113 = vld [vmem:[#allocation11 + $0xa8] sm:$0xff]
      %v1114 = vld [vmem:[#allocation11 + $0xb0] sm:$0xff]
      %v1115 = vld [vmem:[#allocation11 + $0xb8] sm:$0xff]
      %v1116 = vld [vmem:[#allocation11 + $0xc0] sm:$0xff]
      %v1117 = vld [vmem:[#allocation11 + $0xc8] sm:$0xff]
      %v1118 = vld [vmem:[#allocation11 + $0xd0] sm:$0xff]
      %v1119 = vld [vmem:[#allocation11 + $0xd8] sm:$0xff]
      %v1120 = vld [vmem:[#allocation11 + $0xe0] sm:$0xff]
      %v1121 = vld [vmem:[#allocation11 + $0xe8] sm:$0xff]
      %v1122 = vld [vmem:[#allocation11 + $0xf0] sm:$0xff]
      %v1123 = vld [vmem:[#allocation11 + $0xf8] sm:$0xff]
      %v1124 = vld [vmem:[#allocation11 + $0x100] sm:$0xff]
      %v1125 = vld [vmem:[#allocation11 + $0x108] sm:$0xff]
      %v1126 = vld [vmem:[#allocation11 + $0x110] sm:$0xff]
      %v1127 = vld [vmem:[#allocation11 + $0x118] sm:$0xff]
      %v1128 = vld [vmem:[#allocation11 + $0x120] sm:$0xff]
      %v1129 = vld [vmem:[#allocation11 + $0x128] sm:$0xff]
      %v1130 = vld [vmem:[#allocation11 + $0x130] sm:$0xff]
      %v1131 = vld [vmem:[#allocation11 + $0x138] sm:$0xff]
      %v1132 = vld [vmem:[#allocation11 + $0x140] sm:$0xff]
      %v1133 = vld [vmem:[#allocation11 + $0x148] sm:$0xff]
      %v1134 = vld [vmem:[#allocation11 + $0x150] sm:$0xff]
      %v1135 = vld [vmem:[#allocation11 + $0x158] sm:$0xff]
      %v1136 = vld [vmem:[#allocation11 + $0x160] sm:$0xff]
      %v1137 = vld [vmem:[#allocation11 + $0x168] sm:$0xff]
      %v1138 = vld [vmem:[#allocation11 + $0x170] sm:$0xff]
      %v1139 = vld [vmem:[#allocation11 + $0x178] sm:$0xff]
      %v1140 = vld [vmem:[#allocation11 + $0x180] sm:$0xff]
      %v1141 = vld [vmem:[#allocation11 + $0x188] sm:$0xff]
      %v1142 = vld [vmem:[#allocation11 + $0x190] sm:$0xff]
      %v1143 = vld [vmem:[#allocation11 + $0x198] sm:$0xff]
      %v1144 = vld [vmem:[#allocation11 + $0x1a0] sm:$0xff]
      %v1145 = vld [vmem:[#allocation11 + $0x1a8] sm:$0xff]
      %v1146 = vld [vmem:[#allocation11 + $0x1b0] sm:$0xff]
      %v1147 = vld [vmem:[#allocation11 + $0x1b8] sm:$0xff]
      %v1148 = vld [vmem:[#allocation11 + $0x1c0] sm:$0xff]
      %v1149 = vld [vmem:[#allocation11 + $0x1c8] sm:$0xff]
      %v1150 = vld [vmem:[#allocation11 + $0x1d0] sm:$0xff]
      %v1151 = vld [vmem:[#allocation11 + $0x1d8] sm:$0xff]
      %v1152 = vld [vmem:[#allocation11 + $0x1e0] sm:$0xff]
      %v1153 = vld [vmem:[#allocation11 + $0x1e8] sm:$0xff]
      %v1154 = vld [vmem:[#allocation11 + $0x1f0] sm:$0xff]
      %v1155 = vld [vmem:[#allocation11 + $0x1f8] sm:$0xff]
      %v1156 = vld [vmem:[#allocation12] sm:$0xf]
      %v1158 = vlaneseq
      %v1159 = vshrl.u32 %v1158, 7
      %v1160 = vsub.s32 0, %v1159
      %v1161 = vrot.slane %v1156, %v1160
      %v1162 = vlaneseq
      %v1163 = vshrl.u32 %v1162, 7
      %v1164 = vsub.s32 1, %v1163
      %v1165 = vrot.slane %v1156, %v1164
      %v1166 = vlaneseq
      %v1167 = vshrl.u32 %v1166, 7
      %v1168 = vsub.s32 2, %v1167
      %v1169 = vrot.slane %v1156, %v1168
      %v1170 = vlaneseq
      %v1171 = vshrl.u32 %v1170, 7
      %v1172 = vsub.s32 3, %v1171
      %v1173 = vrot.slane %v1156, %v1172
      %1178 = vmatprep.subr.mxu0 %v1093
      %1179 = vmatpush1.msra.mxu0 %v1092
      %1180 = vmatprep.subr.mxu0 %v1097
      %1181 = vmatpush1.msra.mxu0 %v1096
      %1182 = vmatprep.subr.mxu0 %v1101
      %1183 = vmatpush1.msra.mxu0 %v1100
      %1184 = vmatprep.subr.mxu0 %v1105
      %1185 = vmatpush1.msra.mxu0 %v1104
      %1186 = vmatprep.subr.mxu0 %v1109
      %1187 = vmatpush1.msra.mxu0 %v1108
      %1188 = vmatprep.subr.mxu0 %v1113
      %1189 = vmatpush1.msra.mxu0 %v1112
      %1190 = vmatprep.subr.mxu0 %v1117
      %1191 = vmatpush1.msra.mxu0 %v1116
      %1192 = vmatprep.subr.mxu0 %v1121
      %1193 = vmatpush1.msra.mxu0 %v1120
      %1194 = vmatprep.subr.mxu0 %v1125
      %1195 = vmatpush1.msra.mxu0 %v1124
      %1196 = vmatprep.subr.mxu0 %v1129
      %1197 = vmatpush1.msra.mxu0 %v1128
      %1198 = vmatprep.subr.mxu0 %v1133
      %1199 = vmatpush1.msra.mxu0 %v1132
      %1200 = vmatprep.subr.mxu0 %v1137
      %1201 = vmatpush1.msra.mxu0 %v1136
      %1202 = vmatprep.subr.mxu0 %v1141
      %1203 = vmatpush1.msra.mxu0 %v1140
      %1204 = vmatprep.subr.mxu0 %v1145
      %1205 = vmatpush1.msra.mxu0 %v1144
      %1206 = vmatprep.subr.mxu0 %v1149
      %1207 = vmatpush1.msra.mxu0 %v1148
      %1208 = vmatprep.subr.mxu0 %v1153
      %1209 = vmatpush1.msra.mxu0 %v1152
      %1210 = vmatprep.subr.mxu0 0.0
      %1211 = vmatpush1.msra.mxu0 0.0
      %1212 = vmatprep.subr.mxu0 0.0
      %1213 = vmatpush1.msra.mxu0 0.0
      %1214 = vmatprep.subr.mxu0 0.0
      %1215 = vmatpush1.msra.mxu0 0.0
      %1216 = vmatprep.subr.mxu0 0.0
      %1217 = vmatpush1.msra.mxu0 0.0
      %1218 = vmatprep.subr.mxu0 0.0
      %1219 = vmatpush1.msra.mxu0 0.0
      %1220 = vmatprep.subr.mxu0 0.0
      %1221 = vmatpush1.msra.mxu0 0.0
      %1222 = vmatprep.subr.mxu0 0.0
      %1223 = vmatpush1.msra.mxu0 0.0
      %1224 = vmatprep.subr.mxu0 0.0
      %1225 = vmatpush1.msra.mxu0 0.0
      %1226 = vmatprep.subr.mxu0 0.0
      %1227 = vmatpush1.msra.mxu0 0.0
      %1228 = vmatprep.subr.mxu0 0.0
      %1229 = vmatpush1.msra.mxu0 0.0
      %1230 = vmatprep.subr.mxu0 0.0
      %1231 = vmatpush1.msra.mxu0 0.0
      %1232 = vmatprep.subr.mxu0 0.0
      %1233 = vmatpush1.msra.mxu0 0.0
      %1234 = vmatprep.subr.mxu0 0.0
      %1235 = vmatpush1.msra.mxu0 0.0
      %1236 = vmatprep.subr.mxu0 0.0
      %1237 = vmatpush1.msra.mxu0 0.0
      %1238 = vmatprep.subr.mxu0 0.0
      %1239 = vmatpush1.msra.mxu0 0.0
      %1240 = vmatprep.subr.mxu0 0.0
      %1241 = vmatpush1.msra.mxu0 0.0
      %1242 = vmatprep.mubr.f32.mxu0 0.0
      %1243 = vmatmul.mubr.f32.gmra.mrb[0].mxu0 %v1060
      %v1244 = vpop.f32.mrb[0].mxu0
      %v1245 = vadd.f32 %v1161, %v1244
      %v1246 = vpop.f32.mrb[0].mxu0
      %v1247 = vadd.f32 %v1165, %v1246
      %1248 = vmatprep.mubr.f32.mxu0 0.0
      %1249 = vmatmul.mubr.f32.gmra.mrb[0].mxu0 %v1061
      %v1250 = vpop.f32.mrb[0].mxu0
      %v1251 = vadd.f32 %v1161, %v1250
      %v1252 = vpop.f32.mrb[0].mxu0
      %v1253 = vadd.f32 %v1165, %v1252
      %1254 = vmatprep.mubr.f32.mxu0 0.0
      %1255 = vmatmul.mubr.f32.gmra.mrb[0].mxu0 %v1062
      %v1256 = vpop.f32.mrb[0].mxu0
      %v1257 = vadd.f32 %v1161, %v1256
      %v1258 = vpop.f32.mrb[0].mxu0
      %v1259 = vadd.f32 %v1165, %v1258
      %1260 = vmatprep.mubr.f32.mxu0 0.0
      %1261 = vmatmul.mubr.f32.gmra.mrb[0].mxu0 %v1063
      %v1262 = vpop.f32.mrb[0].mxu0
      %v1263 = vadd.f32 %v1161, %v1262
      %v1264 = vpop.f32.mrb[0].mxu0
      %v1265 = vadd.f32 %v1165, %v1264
      %1266 = vmatprep.mubr.f32.mxu0 0.0
      %1267 = vmatmul.mubr.f32.gmra.mrb[0].mxu0 %v1064
      %v1268 = vpop.f32.mrb[0].mxu0
      %v1269 = vadd.f32 %v1161, %v1268
      %v1270 = vpop.f32.mrb[0].mxu0
      %v1271 = vadd.f32 %v1165, %v1270
      %1272 = vmatprep.mubr.f32.mxu0 0.0
      %1273 = vmatmul.mubr.f32.gmra.mrb[0].mxu0 %v1065
      %v1274 = vpop.f32.mrb[0].mxu0
      %v1275 = vadd.f32 %v1161, %v1274
      %v1276 = vpop.f32.mrb[0].mxu0
      %v1277 = vadd.f32 %v1165, %v1276
      %1278 = vmatprep.mubr.f32.mxu0 0.0
      %1279 = vmatmul.mubr.f32.gmra.mrb[0].mxu0 %v1066
      %v1280 = vpop.f32.mrb[0].mxu0
      %v1281 = vadd.f32 %v1161, %v1280
      %v1282 = vpop.f32.mrb[0].mxu0
      %v1283 = vadd.f32 %v1165, %v1282
      %1284 = vmatprep.mubr.f32.mxu0 0.0
      %1285 = vmatmul.mubr.f32.gmra.mrb[0].mxu0 %v1067
      %v1286 = vpop.f32.mrb[0].mxu0
      %v1287 = vadd.f32 %v1161, %v1286
      %v1288 = vpop.f32.mrb[0].mxu0
      %v1289 = vadd.f32 %v1165, %v1288
      %1290 = vmatprep.mubr.f32.mxu0 0.0
      %1291 = vmatmul.mubr.f32.gmra.mrb[0].mxu0 %v1068
      %v1292 = vpop.f32.mrb[0].mxu0
      %v1293 = vadd.f32 %v1161, %v1292
      %v1294 = vpop.f32.mrb[0].mxu0
      %v1295 = vadd.f32 %v1165, %v1294
      %1296 = vmatprep.mubr.f32.mxu0 0.0
      %1297 = vmatmul.mubr.f32.gmra.mrb[0].mxu0 %v1069
      %v1298 = vpop.f32.mrb[0].mxu0
      %v1299 = vadd.f32 %v1161, %v1298
      %v1300 = vpop.f32.mrb[0].mxu0
      %v1301 = vadd.f32 %v1165, %v1300
      %1302 = vmatprep.mubr.f32.mxu0 0.0
      %1303 = vmatmul.mubr.f32.gmra.mrb[0].mxu0 %v1070
      %v1304 = vpop.f32.mrb[0].mxu0
      %v1305 = vadd.f32 %v1161, %v1304
      %v1306 = vpop.f32.mrb[0].mxu0
      %v1307 = vadd.f32 %v1165, %v1306
      %1308 = vmatprep.mubr.f32.mxu0 0.0
      %1309 = vmatmul.mubr.f32.gmra.mrb[0].mxu0 %v1071
      %v1310 = vpop.f32.mrb[0].mxu0
      %v1311 = vadd.f32 %v1161, %v1310
      %v1312 = vpop.f32.mrb[0].mxu0
      %v1313 = vadd.f32 %v1165, %v1312
      %1314 = vmatprep.mubr.f32.mxu0 0.0
      %1315 = vmatmul.mubr.f32.gmra.mrb[0].mxu0 %v1072
      %v1316 = vpop.f32.mrb[0].mxu0
      %v1317 = vadd.f32 %v1161, %v1316
      %v1318 = vpop.f32.mrb[0].mxu0
      %v1319 = vadd.f32 %v1165, %v1318
      %1320 = vmatprep.mubr.f32.mxu0 0.0
      %1321 = vmatmul.mubr.f32.gmra.mrb[0].mxu0 %v1073
      %v1322 = vpop.f32.mrb[0].mxu0
      %v1323 = vadd.f32 %v1161, %v1322
      %v1324 = vpop.f32.mrb[0].mxu0
      %v1325 = vadd.f32 %v1165, %v1324
      %1326 = vmatprep.mubr.f32.mxu0 0.0
      %1327 = vmatmul.mubr.f32.gmra.mrb[0].mxu0 %v1074
      %v1328 = vpop.f32.mrb[0].mxu0
      %v1329 = vadd.f32 %v1161, %v1328
      %v1330 = vpop.f32.mrb[0].mxu0
      %v1331 = vadd.f32 %v1165, %v1330
      %1332 = vmatprep.mubr.f32.mxu0 0.0
      %1333 = vmatmul.mubr.f32.gmra.mrb[0].mxu0 %v1075
      %v1334 = vpop.f32.mrb[0].mxu0
      %v1335 = vadd.f32 %v1161, %v1334
      %v1336 = vpop.f32.mrb[0].mxu0
      %v1337 = vadd.f32 %v1165, %v1336
      %1338 = vmatprep.mubr.f32.mxu0 0.0
      %1339 = vmatmul.mubr.f32.gmra.mrb[0].mxu0 %v1076
      %v1340 = vpop.f32.mrb[0].mxu0
      %v1341 = vadd.f32 %v1161, %v1340
      %v1342 = vpop.f32.mrb[0].mxu0
      %v1343 = vadd.f32 %v1165, %v1342
      %1344 = vmatprep.mubr.f32.mxu0 0.0
      %1345 = vmatmul.mubr.f32.gmra.mrb[0].mxu0 %v1077
      %v1346 = vpop.f32.mrb[0].mxu0
      %v1347 = vadd.f32 %v1161, %v1346
      %v1348 = vpop.f32.mrb[0].mxu0
      %v1349 = vadd.f32 %v1165, %v1348
      %1350 = vmatprep.mubr.f32.mxu0 0.0
      %1351 = vmatmul.mubr.f32.gmra.mrb[0].mxu0 %v1078
      %v1352 = vpop.f32.mrb[0].mxu0
      %v1353 = vadd.f32 %v1161, %v1352
      %v1354 = vpop.f32.mrb[0].mxu0
      %v1355 = vadd.f32 %v1165, %v1354
      %1356 = vmatprep.mubr.f32.mxu0 0.0
      %1357 = vmatmul.mubr.f32.gmra.mrb[0].mxu0 %v1079
      %v1358 = vpop.f32.mrb[0].mxu0
      %v1359 = vadd.f32 %v1161, %v1358
      %v1360 = vpop.f32.mrb[0].mxu0
      %v1361 = vadd.f32 %v1165, %v1360
      %1362 = vmatprep.mubr.f32.mxu0 0.0
      %1363 = vmatmul.mubr.f32.gmra.mrb[0].mxu0 %v1080
      %v1364 = vpop.f32.mrb[0].mxu0
      %v1365 = vadd.f32 %v1161, %v1364
      %v1366 = vpop.f32.mrb[0].mxu0
      %v1367 = vadd.f32 %v1165, %v1366
      %1368 = vmatprep.mubr.f32.mxu0 0.0
      %1369 = vmatmul.mubr.f32.gmra.mrb[0].mxu0 %v1081
      %v1370 = vpop.f32.mrb[0].mxu0
      %v1371 = vadd.f32 %v1161, %v1370
      %v1372 = vpop.f32.mrb[0].mxu0
      %v1373 = vadd.f32 %v1165, %v1372
      %1374 = vmatprep.mubr.f32.mxu0 0.0
      %1375 = vmatmul.mubr.f32.gmra.mrb[0].mxu0 %v1082
      %v1376 = vpop.f32.mrb[0].mxu0
      %v1377 = vadd.f32 %v1161, %v1376
      %v1378 = vpop.f32.mrb[0].mxu0
      %v1379 = vadd.f32 %v1165, %v1378
      %1380 = vmatprep.mubr.f32.mxu0 0.0
      %1381 = vmatmul.mubr.f32.gmra.mrb[0].mxu0 %v1083
      %v1382 = vpop.f32.mrb[0].mxu0
      %v1383 = vadd.f32 %v1161, %v1382
      %v1384 = vpop.f32.mrb[0].mxu0
      %v1385 = vadd.f32 %v1165, %v1384
      %1386 = vmatprep.mubr.f32.mxu0 0.0
      %1387 = vmatmul.mubr.f32.gmra.mrb[0].mxu0 %v1084
      %v1388 = vpop.f32.mrb[0].mxu0
      %v1389 = vadd.f32 %v1161, %v1388
      %v1390 = vpop.f32.mrb[0].mxu0
      %v1391 = vadd.f32 %v1165, %v1390
      %1392 = vmatprep.mubr.f32.mxu0 0.0
      %1393 = vmatmul.mubr.f32.gmra.mrb[0].mxu0 %v1085
      %v1394 = vpop.f32.mrb[0].mxu0
      %v1395 = vadd.f32 %v1161, %v1394
      %v1396 = vpop.f32.mrb[0].mxu0
      %v1397 = vadd.f32 %v1165, %v1396
      %1398 = vmatprep.mubr.f32.mxu0 0.0
      %1399 = vmatmul.mubr.f32.gmra.mrb[0].mxu0 %v1086
      %v1400 = vpop.f32.mrb[0].mxu0
      %v1401 = vadd.f32 %v1161, %v1400
      %v1402 = vpop.f32.mrb[0].mxu0
      %v1403 = vadd.f32 %v1165, %v1402
      %1404 = vmatprep.mubr.f32.mxu0 0.0
      %1405 = vmatmul.mubr.f32.gmra.mrb[0].mxu0 %v1087
      %v1406 = vpop.f32.mrb[0].mxu0
      %v1407 = vadd.f32 %v1161, %v1406
      %v1408 = vpop.f32.mrb[0].mxu0
      %v1409 = vadd.f32 %v1165, %v1408
      %1410 = vmatprep.mubr.f32.mxu0 0.0
      %1411 = vmatmul.mubr.f32.gmra.mrb[0].mxu0 %v1088
      %v1412 = vpop.f32.mrb[0].mxu0
      %v1413 = vadd.f32 %v1161, %v1412
      %v1414 = vpop.f32.mrb[0].mxu0
      %v1415 = vadd.f32 %v1165, %v1414
      %1416 = vmatprep.mubr.f32.mxu0 0.0
      %1417 = vmatmul.mubr.f32.gmra.mrb[0].mxu0 %v1089
      %v1418 = vpop.f32.mrb[0].mxu0
      %v1419 = vadd.f32 %v1161, %v1418
      %v1420 = vpop.f32.mrb[0].mxu0
      %v1421 = vadd.f32 %v1165, %v1420
      %1422 = vmatprep.mubr.f32.mxu0 0.0
      %1423 = vmatmul.mubr.f32.gmra.mrb[0].mxu0 %v1090
      %v1424 = vpop.f32.mrb[0].mxu0
      %v1425 = vadd.f32 %v1161, %v1424
      %v1426 = vpop.f32.mrb[0].mxu0
      %v1427 = vadd.f32 %v1165, %v1426
      %1428 = vmatprep.mubr.f32.mxu0 0.0
      %1429 = vmatmul.mubr.f32.gmra.mrb[0].mxu0 %v1091
      %v1430 = vpop.f32.mrb[0].mxu0
      %v1431 = vadd.f32 %v1161, %v1430
      %v1432 = vpop.f32.mrb[0].mxu0
      %v1433 = vadd.f32 %v1165, %v1432
      %1434 = vdwg.mxu0
      %1435 = vmatprep.subr.mxu0 %v1095
      %1436 = vmatpush1.msra.mxu0 %v1094
      %1437 = vmatprep.subr.mxu0 %v1099
      %1438 = vmatpush1.msra.mxu0 %v1098
      %1439 = vmatprep.subr.mxu0 %v1103
      %1440 = vmatpush1.msra.mxu0 %v1102
      %1441 = vmatprep.subr.mxu0 %v1107
      %1442 = vmatpush1.msra.mxu0 %v1106
      %1443 = vmatprep.subr.mxu0 %v1111
      %1444 = vmatpush1.msra.mxu0 %v1110
      %1445 = vmatprep.subr.mxu0 %v1115
      %1446 = vmatpush1.msra.mxu0 %v1114
      %1447 = vmatprep.subr.mxu0 %v1119
      %1448 = vmatpush1.msra.mxu0 %v1118
      %1449 = vmatprep.subr.mxu0 %v1123
      %1450 = vmatpush1.msra.mxu0 %v1122
      %1451 = vmatprep.subr.mxu0 %v1127
      %1452 = vmatpush1.msra.mxu0 %v1126
      %1453 = vmatprep.subr.mxu0 %v1131
      %1454 = vmatpush1.msra.mxu0 %v1130
      %1455 = vmatprep.subr.mxu0 %v1135
      %1456 = vmatpush1.msra.mxu0 %v1134
      %1457 = vmatprep.subr.mxu0 %v1139
      %1458 = vmatpush1.msra.mxu0 %v1138
      %1459 = vmatprep.subr.mxu0 %v1143
      %1460 = vmatpush1.msra.mxu0 %v1142
      %1461 = vmatprep.subr.mxu0 %v1147
      %1462 = vmatpush1.msra.mxu0 %v1146
      %1463 = vmatprep.subr.mxu0 %v1151
      %1464 = vmatpush1.msra.mxu0 %v1150
      %1465 = vmatprep.subr.mxu0 %v1155
      %1466 = vmatpush1.msra.mxu0 %v1154
      %1467 = vmatprep.subr.mxu0 0.0
      %1468 = vmatpush1.msra.mxu0 0.0
      %1469 = vmatprep.subr.mxu0 0.0
      %1470 = vmatpush1.msra.mxu0 0.0
      %1471 = vmatprep.subr.mxu0 0.0
      %1472 = vmatpush1.msra.mxu0 0.0
      %1473 = vmatprep.subr.mxu0 0.0
      %1474 = vmatpush1.msra.mxu0 0.0
      %1475 = vmatprep.subr.mxu0 0.0
      %1476 = vmatpush1.msra.mxu0 0.0
      %1477 = vmatprep.subr.mxu0 0.0
      %1478 = vmatpush1.msra.mxu0 0.0
      %1479 = vmatprep.subr.mxu0 0.0
      %1480 = vmatpush1.msra.mxu0 0.0
      %1481 = vmatprep.subr.mxu0 0.0
      %1482 = vmatpush1.msra.mxu0 0.0
      %1483 = vmatprep.subr.mxu0 0.0
      %1484 = vmatpush1.msra.mxu0 0.0
      %1485 = vmatprep.subr.mxu0 0.0
      %1486 = vmatpush1.msra.mxu0 0.0
      %1487 = vmatprep.subr.mxu0 0.0
      %1488 = vmatpush1.msra.mxu0 0.0
      %1489 = vmatprep.subr.mxu0 0.0
      %1490 = vmatpush1.msra.mxu0 0.0
      %1491 = vmatprep.subr.mxu0 0.0
      %1492 = vmatpush1.msra.mxu0 0.0
      %1493 = vmatprep.subr.mxu0 0.0
      %1494 = vmatpush1.msra.mxu0 0.0
      %1495 = vmatprep.subr.mxu0 0.0
      %1496 = vmatpush1.msra.mxu0 0.0
      %1497 = vmatprep.subr.mxu0 0.0
      %1498 = vmatpush1.msra.mxu0 0.0
      %1499 = vmatprep.mubr.f32.mxu0 0.0
      %1500 = vmatmul.mubr.f32.gmra.mrb[0].mxu0 %v1060
      %v1501 = vpop.f32.mrb[0].mxu0
      %v1502 = vadd.f32 %v1169, %v1501
      %v1503 = vpop.f32.mrb[0].mxu0
      %v1504 = vadd.f32 %v1173, %v1503
      %1505 = vmatprep.mubr.f32.mxu0 0.0
      %1506 = vmatmul.mubr.f32.gmra.mrb[0].mxu0 %v1061
      %v1507 = vpop.f32.mrb[0].mxu0
      %v1508 = vadd.f32 %v1169, %v1507
      %v1509 = vpop.f32.mrb[0].mxu0
      %v1510 = vadd.f32 %v1173, %v1509
      %1511 = vmatprep.mubr.f32.mxu0 0.0
      %1512 = vmatmul.mubr.f32.gmra.mrb[0].mxu0 %v1062
      %v1513 = vpop.f32.mrb[0].mxu0
      %v1514 = vadd.f32 %v1169, %v1513
      %v1515 = vpop.f32.mrb[0].mxu0
      %v1516 = vadd.f32 %v1173, %v1515
      %1517 = vmatprep.mubr.f32.mxu0 0.0
      %1518 = vmatmul.mubr.f32.gmra.mrb[0].mxu0 %v1063
      %v1519 = vpop.f32.mrb[0].mxu0
      %v1520 = vadd.f32 %v1169, %v1519
      %v1521 = vpop.f32.mrb[0].mxu0
      %v1522 = vadd.f32 %v1173, %v1521
      %1523 = vmatprep.mubr.f32.mxu0 0.0
      %1524 = vmatmul.mubr.f32.gmra.mrb[0].mxu0 %v1064
      %v1525 = vpop.f32.mrb[0].mxu0
      %v1526 = vadd.f32 %v1169, %v1525
      %v1527 = vpop.f32.mrb[0].mxu0
      %v1528 = vadd.f32 %v1173, %v1527
      %1529 = vmatprep.mubr.f32.mxu0 0.0
      %1530 = vmatmul.mubr.f32.gmra.mrb[0].mxu0 %v1065
      %v1531 = vpop.f32.mrb[0].mxu0
      %v1532 = vadd.f32 %v1169, %v1531
      %v1533 = vpop.f32.mrb[0].mxu0
      %v1534 = vadd.f32 %v1173, %v1533
      %1535 = vmatprep.mubr.f32.mxu0 0.0
      %1536 = vmatmul.mubr.f32.gmra.mrb[0].mxu0 %v1066
      %v1537 = vpop.f32.mrb[0].mxu0
      %v1538 = vadd.f32 %v1169, %v1537
      %v1539 = vpop.f32.mrb[0].mxu0
      %v1540 = vadd.f32 %v1173, %v1539
      %1541 = vmatprep.mubr.f32.mxu0 0.0
      %1542 = vmatmul.mubr.f32.gmra.mrb[0].mxu0 %v1067
      %v1543 = vpop.f32.mrb[0].mxu0
      %v1544 = vadd.f32 %v1169, %v1543
      %v1545 = vpop.f32.mrb[0].mxu0
      %v1546 = vadd.f32 %v1173, %v1545
      %1547 = vmatprep.mubr.f32.mxu0 0.0
      %1548 = vmatmul.mubr.f32.gmra.mrb[0].mxu0 %v1068
      %v1549 = vpop.f32.mrb[0].mxu0
      %v1550 = vadd.f32 %v1169, %v1549
      %v1551 = vpop.f32.mrb[0].mxu0
      %v1552 = vadd.f32 %v1173, %v1551
      %1553 = vmatprep.mubr.f32.mxu0 0.0
      %1554 = vmatmul.mubr.f32.gmra.mrb[0].mxu0 %v1069
      %v1555 = vpop.f32.mrb[0].mxu0
      %v1556 = vadd.f32 %v1169, %v1555
      %v1557 = vpop.f32.mrb[0].mxu0
      %v1558 = vadd.f32 %v1173, %v1557
      %1559 = vmatprep.mubr.f32.mxu0 0.0
      %1560 = vmatmul.mubr.f32.gmra.mrb[0].mxu0 %v1070
      %v1561 = vpop.f32.mrb[0].mxu0
      %v1562 = vadd.f32 %v1169, %v1561
      %v1563 = vpop.f32.mrb[0].mxu0
      %v1564 = vadd.f32 %v1173, %v1563
      %1565 = vmatprep.mubr.f32.mxu0 0.0
      %1566 = vmatmul.mubr.f32.gmra.mrb[0].mxu0 %v1071
      %v1567 = vpop.f32.mrb[0].mxu0
      %v1568 = vadd.f32 %v1169, %v1567
      %v1569 = vpop.f32.mrb[0].mxu0
      %v1570 = vadd.f32 %v1173, %v1569
      %1571 = vmatprep.mubr.f32.mxu0 0.0
      %1572 = vmatmul.mubr.f32.gmra.mrb[0].mxu0 %v1072
      %v1573 = vpop.f32.mrb[0].mxu0
      %v1574 = vadd.f32 %v1169, %v1573
      %v1575 = vpop.f32.mrb[0].mxu0
      %v1576 = vadd.f32 %v1173, %v1575
      %1577 = vmatprep.mubr.f32.mxu0 0.0
      %1578 = vmatmul.mubr.f32.gmra.mrb[0].mxu0 %v1073
      %v1579 = vpop.f32.mrb[0].mxu0
      %v1580 = vadd.f32 %v1169, %v1579
      %v1581 = vpop.f32.mrb[0].mxu0
      %v1582 = vadd.f32 %v1173, %v1581
      %1583 = vmatprep.mubr.f32.mxu0 0.0
      %1584 = vmatmul.mubr.f32.gmra.mrb[0].mxu0 %v1074
      %v1585 = vpop.f32.mrb[0].mxu0
      %v1586 = vadd.f32 %v1169, %v1585
      %v1587 = vpop.f32.mrb[0].mxu0
      %v1588 = vadd.f32 %v1173, %v1587
      %1589 = vmatprep.mubr.f32.mxu0 0.0
      %1590 = vmatmul.mubr.f32.gmra.mrb[0].mxu0 %v1075
      %v1591 = vpop.f32.mrb[0].mxu0
      %v1592 = vadd.f32 %v1169, %v1591
      %v1593 = vpop.f32.mrb[0].mxu0
      %v1594 = vadd.f32 %v1173, %v1593
      %1595 = vmatprep.mubr.f32.mxu0 0.0
      %1596 = vmatmul.mubr.f32.gmra.mrb[0].mxu0 %v1076
      %v1597 = vpop.f32.mrb[0].mxu0
      %v1598 = vadd.f32 %v1169, %v1597
      %v1599 = vpop.f32.mrb[0].mxu0
      %v1600 = vadd.f32 %v1173, %v1599
      %1601 = vmatprep.mubr.f32.mxu0 0.0
      %1602 = vmatmul.mubr.f32.gmra.mrb[0].mxu0 %v1077
      %v1603 = vpop.f32.mrb[0].mxu0
      %v1604 = vadd.f32 %v1169, %v1603
      %v1605 = vpop.f32.mrb[0].mxu0
      %v1606 = vadd.f32 %v1173, %v1605
      %1607 = vmatprep.mubr.f32.mxu0 0.0
      %1608 = vmatmul.mubr.f32.gmra.mrb[0].mxu0 %v1078
      %v1609 = vpop.f32.mrb[0].mxu0
      %v1610 = vadd.f32 %v1169, %v1609
      %v1611 = vpop.f32.mrb[0].mxu0
      %v1612 = vadd.f32 %v1173, %v1611
      %1613 = vmatprep.mubr.f32.mxu0 0.0
      %1614 = vmatmul.mubr.f32.gmra.mrb[0].mxu0 %v1079
      %v1615 = vpop.f32.mrb[0].mxu0
      %v1616 = vadd.f32 %v1169, %v1615
      %v1617 = vpop.f32.mrb[0].mxu0
      %v1618 = vadd.f32 %v1173, %v1617
      %1619 = vmatprep.mubr.f32.mxu0 0.0
      %1620 = vmatmul.mubr.f32.gmra.mrb[0].mxu0 %v1080
      %v1621 = vpop.f32.mrb[0].mxu0
      %v1622 = vadd.f32 %v1169, %v1621
      %v1623 = vpop.f32.mrb[0].mxu0
      %v1624 = vadd.f32 %v1173, %v1623
      %1625 = vmatprep.mubr.f32.mxu0 0.0
      %1626 = vmatmul.mubr.f32.gmra.mrb[0].mxu0 %v1081
      %v1627 = vpop.f32.mrb[0].mxu0
      %v1628 = vadd.f32 %v1169, %v1627
      %v1629 = vpop.f32.mrb[0].mxu0
      %v1630 = vadd.f32 %v1173, %v1629
      %1631 = vmatprep.mubr.f32.mxu0 0.0
      %1632 = vmatmul.mubr.f32.gmra.mrb[0].mxu0 %v1082
      %v1633 = vpop.f32.mrb[0].mxu0
      %v1634 = vadd.f32 %v1169, %v1633
      %v1635 = vpop.f32.mrb[0].mxu0
      %v1636 = vadd.f32 %v1173, %v1635
      %1637 = vmatprep.mubr.f32.mxu0 0.0
      %1638 = vmatmul.mubr.f32.gmra.mrb[0].mxu0 %v1083
      %v1639 = vpop.f32.mrb[0].mxu0
      %v1640 = vadd.f32 %v1169, %v1639
      %v1641 = vpop.f32.mrb[0].mxu0
      %v1642 = vadd.f32 %v1173, %v1641
      %1643 = vmatprep.mubr.f32.mxu0 0.0
      %1644 = vmatmul.mubr.f32.gmra.mrb[0].mxu0 %v1084
      %v1645 = vpop.f32.mrb[0].mxu0
      %v1646 = vadd.f32 %v1169, %v1645
      %v1647 = vpop.f32.mrb[0].mxu0
      %v1648 = vadd.f32 %v1173, %v1647
      %1649 = vmatprep.mubr.f32.mxu0 0.0
      %1650 = vmatmul.mubr.f32.gmra.mrb[0].mxu0 %v1085
      %v1651 = vpop.f32.mrb[0].mxu0
      %v1652 = vadd.f32 %v1169, %v1651
      %v1653 = vpop.f32.mrb[0].mxu0
      %v1654 = vadd.f32 %v1173, %v1653
      %1655 = vmatprep.mubr.f32.mxu0 0.0
      %1656 = vmatmul.mubr.f32.gmra.mrb[0].mxu0 %v1086
      %v1657 = vpop.f32.mrb[0].mxu0
      %v1658 = vadd.f32 %v1169, %v1657
      %v1659 = vpop.f32.mrb[0].mxu0
      %v1660 = vadd.f32 %v1173, %v1659
      %1661 = vmatprep.mubr.f32.mxu0 0.0
      %1662 = vmatmul.mubr.f32.gmra.mrb[0].mxu0 %v1087
      %v1663 = vpop.f32.mrb[0].mxu0
      %v1664 = vadd.f32 %v1169, %v1663
      %v1665 = vpop.f32.mrb[0].mxu0
      %v1666 = vadd.f32 %v1173, %v1665
      %1667 = vmatprep.mubr.f32.mxu0 0.0
      %1668 = vmatmul.mubr.f32.gmra.mrb[0].mxu0 %v1088
      %v1669 = vpop.f32.mrb[0].mxu0
      %v1670 = vadd.f32 %v1169, %v1669
      %v1671 = vpop.f32.mrb[0].mxu0
      %v1672 = vadd.f32 %v1173, %v1671
      %1673 = vmatprep.mubr.f32.mxu0 0.0
      %1674 = vmatmul.mubr.f32.gmra.mrb[0].mxu0 %v1089
      %v1675 = vpop.f32.mrb[0].mxu0
      %v1676 = vadd.f32 %v1169, %v1675
      %v1677 = vpop.f32.mrb[0].mxu0
      %v1678 = vadd.f32 %v1173, %v1677
      %1679 = vmatprep.mubr.f32.mxu0 0.0
      %1680 = vmatmul.mubr.f32.gmra.mrb[0].mxu0 %v1090
      %v1681 = vpop.f32.mrb[0].mxu0
      %v1682 = vadd.f32 %v1169, %v1681
      %v1683 = vpop.f32.mrb[0].mxu0
      %v1684 = vadd.f32 %v1173, %v1683
      %1685 = vmatprep.mubr.f32.mxu0 0.0
      %1686 = vmatmul.mubr.f32.gmra.mrb[0].mxu0 %v1091
      %v1687 = vpop.f32.mrb[0].mxu0
      %v1688 = vadd.f32 %v1169, %v1687
      %v1689 = vpop.f32.mrb[0].mxu0
      %v1690 = vadd.f32 %v1173, %v1689
      %1691 = vdwg.mxu0
      %1692 = vst [vmem:[#allocation14] sm:$0xff] %v1245
      %1693 = vst [vmem:[#allocation14 + $0x8] sm:$0xff] %v1251
      %1694 = vst [vmem:[#allocation14 + $0x10] sm:$0xff] %v1257
      %1695 = vst [vmem:[#allocation14 + $0x18] sm:$0xff] %v1263
      %1696 = vst [vmem:[#allocation14 + $0x20] sm:$0xff] %v1269
      %1697 = vst [vmem:[#allocation14 + $0x28] sm:$0xff] %v1275
      %1698 = vst [vmem:[#allocation14 + $0x30] sm:$0xff] %v1281
      %1699 = vst [vmem:[#allocation14 + $0x38] sm:$0xff] %v1287
      %1700 = vst [vmem:[#allocation14 + $0x40] sm:$0xff] %v1293
      %1701 = vst [vmem:[#allocation14 + $0x48] sm:$0xff] %v1299
      %1702 = vst [vmem:[#allocation14 + $0x50] sm:$0xff] %v1305
      %1703 = vst [vmem:[#allocation14 + $0x58] sm:$0xff] %v1311
      %1704 = vst [vmem:[#allocation14 + $0x60] sm:$0xff] %v1317
      %1705 = vst [vmem:[#allocation14 + $0x68] sm:$0xff] %v1323
      %1706 = vst [vmem:[#allocation14 + $0x70] sm:$0xff] %v1329
      %1707 = vst [vmem:[#allocation14 + $0x78] sm:$0xff] %v1335
      %1708 = vst [vmem:[#allocation14 + $0x80] sm:$0xff] %v1341
      %1709 = vst [vmem:[#allocation14 + $0x88] sm:$0xff] %v1347
      %1710 = vst [vmem:[#allocation14 + $0x90] sm:$0xff] %v1353
      %1711 = vst [vmem:[#allocation14 + $0x98] sm:$0xff] %v1359
      %1712 = vst [vmem:[#allocation14 + $0xa0] sm:$0xff] %v1365
      %1713 = vst [vmem:[#allocation14 + $0xa8] sm:$0xff] %v1371
      %1714 = vst [vmem:[#allocation14 + $0xb0] sm:$0xff] %v1377
      %1715 = vst [vmem:[#allocation14 + $0xb8] sm:$0xff] %v1383
      %1716 = vst [vmem:[#allocation14 + $0xc0] sm:$0xff] %v1389
      %1717 = vst [vmem:[#allocation14 + $0xc8] sm:$0xff] %v1395
      %1718 = vst [vmem:[#allocation14 + $0xd0] sm:$0xff] %v1401
      %1719 = vst [vmem:[#allocation14 + $0xd8] sm:$0xff] %v1407
      %1720 = vst [vmem:[#allocation14 + $0xe0] sm:$0xff] %v1413
      %1721 = vst [vmem:[#allocation14 + $0xe8] sm:$0xff] %v1419
      %1722 = vst [vmem:[#allocation14 + $0xf0] sm:$0xff] %v1425
      %1723 = vst [vmem:[#allocation14 + $0xf8] sm:$0xff] %v1431
      %s1724 = scalar_lea.vmem [#allocation14], 256
      %1725 = vst [vmem:[%s1724] sm:$0xff] %v1247
      %1726 = vst [vmem:[%s1724 + $0x8] sm:$0xff] %v1253
      %1727 = vst [vmem:[%s1724 + $0x10] sm:$0xff] %v1259
      %1728 = vst [vmem:[%s1724 + $0x18] sm:$0xff] %v1265
      %1729 = vst [vmem:[%s1724 + $0x20] sm:$0xff] %v1271
      %1730 = vst [vmem:[%s1724 + $0x28] sm:$0xff] %v1277
      %1731 = vst [vmem:[%s1724 + $0x30] sm:$0xff] %v1283
      %1732 = vst [vmem:[%s1724 + $0x38] sm:$0xff] %v1289
      %1733 = vst [vmem:[%s1724 + $0x40] sm:$0xff] %v1295
      %1734 = vst [vmem:[%s1724 + $0x48] sm:$0xff] %v1301
      %1735 = vst [vmem:[%s1724 + $0x50] sm:$0xff] %v1307
      %1736 = vst [vmem:[%s1724 + $0x58] sm:$0xff] %v1313
      %1737 = vst [vmem:[%s1724 + $0x60] sm:$0xff] %v1319
      %1738 = vst [vmem:[%s1724 + $0x68] sm:$0xff] %v1325
      %1739 = vst [vmem:[%s1724 + $0x70] sm:$0xff] %v1331
      %1740 = vst [vmem:[%s1724 + $0x78] sm:$0xff] %v1337
      %1741 = vst [vmem:[%s1724 + $0x80] sm:$0xff] %v1343
      %1742 = vst [vmem:[%s1724 + $0x88] sm:$0xff] %v1349
      %1743 = vst [vmem:[%s1724 + $0x90] sm:$0xff] %v1355
      %1744 = vst [vmem:[%s1724 + $0x98] sm:$0xff] %v1361
      %1745 = vst [vmem:[%s1724 + $0xa0] sm:$0xff] %v1367
      %1746 = vst [vmem:[%s1724 + $0xa8] sm:$0xff] %v1373
      %1747 = vst [vmem:[%s1724 + $0xb0] sm:$0xff] %v1379
      %1748 = vst [vmem:[%s1724 + $0xb8] sm:$0xff] %v1385
      %1749 = vst [vmem:[%s1724 + $0xc0] sm:$0xff] %v1391
      %1750 = vst [vmem:[%s1724 + $0xc8] sm:$0xff] %v1397
      %1751 = vst [vmem:[%s1724 + $0xd0] sm:$0xff] %v1403
      %1752 = vst [vmem:[%s1724 + $0xd8] sm:$0xff] %v1409
      %1753 = vst [vmem:[%s1724 + $0xe0] sm:$0xff] %v1415
      %1754 = vst [vmem:[%s1724 + $0xe8] sm:$0xff] %v1421
      %1755 = vst [vmem:[%s1724 + $0xf0] sm:$0xff] %v1427
      %1756 = vst [vmem:[%s1724 + $0xf8] sm:$0xff] %v1433
      %s1757 = scalar_lea.vmem [#allocation14], 512
      %1758 = vst [vmem:[%s1757] sm:$0xff] %v1502
      %1759 = vst [vmem:[%s1757 + $0x8] sm:$0xff] %v1508
      %1760 = vst [vmem:[%s1757 + $0x10] sm:$0xff] %v1514
      %1761 = vst [vmem:[%s1757 + $0x18] sm:$0xff] %v1520
      %1762 = vst [vmem:[%s1757 + $0x20] sm:$0xff] %v1526
      %1763 = vst [vmem:[%s1757 + $0x28] sm:$0xff] %v1532
      %1764 = vst [vmem:[%s1757 + $0x30] sm:$0xff] %v1538
      %1765 = vst [vmem:[%s1757 + $0x38] sm:$0xff] %v1544
      %1766 = vst [vmem:[%s1757 + $0x40] sm:$0xff] %v1550
      %1767 = vst [vmem:[%s1757 + $0x48] sm:$0xff] %v1556
      %1768 = vst [vmem:[%s1757 + $0x50] sm:$0xff] %v1562
      %1769 = vst [vmem:[%s1757 + $0x58] sm:$0xff] %v1568
      %1770 = vst [vmem:[%s1757 + $0x60] sm:$0xff] %v1574
      %1771 = vst [vmem:[%s1757 + $0x68] sm:$0xff] %v1580
      %1772 = vst [vmem:[%s1757 + $0x70] sm:$0xff] %v1586
      %1773 = vst [vmem:[%s1757 + $0x78] sm:$0xff] %v1592
      %1774 = vst [vmem:[%s1757 + $0x80] sm:$0xff] %v1598
      %1775 = vst [vmem:[%s1757 + $0x88] sm:$0xff] %v1604
      %1776 = vst [vmem:[%s1757 + $0x90] sm:$0xff] %v1610
      %1777 = vst [vmem:[%s1757 + $0x98] sm:$0xff] %v1616
      %1778 = vst [vmem:[%s1757 + $0xa0] sm:$0xff] %v1622
      %1779 = vst [vmem:[%s1757 + $0xa8] sm:$0xff] %v1628
      %1780 = vst [vmem:[%s1757 + $0xb0] sm:$0xff] %v1634
      %1781 = vst [vmem:[%s1757 + $0xb8] sm:$0xff] %v1640
      %1782 = vst [vmem:[%s1757 + $0xc0] sm:$0xff] %v1646
      %1783 = vst [vmem:[%s1757 + $0xc8] sm:$0xff] %v1652
      %1784 = vst [vmem:[%s1757 + $0xd0] sm:$0xff] %v1658
      %1785 = vst [vmem:[%s1757 + $0xd8] sm:$0xff] %v1664
      %1786 = vst [vmem:[%s1757 + $0xe0] sm:$0xff] %v1670
      %1787 = vst [vmem:[%s1757 + $0xe8] sm:$0xff] %v1676
      %1788 = vst [vmem:[%s1757 + $0xf0] sm:$0xff] %v1682
      %1789 = vst [vmem:[%s1757 + $0xf8] sm:$0xff] %v1688
      %1790 = vst [vmem:[#allocation15] sm:$0xff] %v1504
      %1791 = vst [vmem:[#allocation15 + $0x8] sm:$0xff] %v1510
      %1792 = vst [vmem:[#allocation15 + $0x10] sm:$0xff] %v1516
      %1793 = vst [vmem:[#allocation15 + $0x18] sm:$0xff] %v1522
      %1794 = vst [vmem:[#allocation15 + $0x20] sm:$0xff] %v1528
      %1795 = vst [vmem:[#allocation15 + $0x28] sm:$0xff] %v1534
      %1796 = vst [vmem:[#allocation15 + $0x30] sm:$0xff] %v1540
      %1797 = vst [vmem:[#allocation15 + $0x38] sm:$0xff] %v1546
      %1798 = vst [vmem:[#allocation15 + $0x40] sm:$0xff] %v1552
      %1799 = vst [vmem:[#allocation15 + $0x48] sm:$0xff] %v1558
      %1800 = vst [vmem:[#allocation15 + $0x50] sm:$0xff] %v1564
      %1801 = vst [vmem:[#allocation15 + $0x58] sm:$0xff] %v1570
      %1802 = vst [vmem:[#allocation15 + $0x60] sm:$0xff] %v1576
      %1803 = vst [vmem:[#allocation15 + $0x68] sm:$0xff] %v1582
      %1804 = vst [vmem:[#allocation15 + $0x70] sm:$0xff] %v1588
      %1805 = vst [vmem:[#allocation15 + $0x78] sm:$0xff] %v1594
      %1806 = vst [vmem:[#allocation15 + $0x80] sm:$0xff] %v1600
      %1807 = vst [vmem:[#allocation15 + $0x88] sm:$0xff] %v1606
      %1808 = vst [vmem:[#allocation15 + $0x90] sm:$0xff] %v1612
      %1809 = vst [vmem:[#allocation15 + $0x98] sm:$0xff] %v1618
      %1810 = vst [vmem:[#allocation15 + $0xa0] sm:$0xff] %v1624
      %1811 = vst [vmem:[#allocation15 + $0xa8] sm:$0xff] %v1630
      %1812 = vst [vmem:[#allocation15 + $0xb0] sm:$0xff] %v1636
      %1813 = vst [vmem:[#allocation15 + $0xb8] sm:$0xff] %v1642
      %1814 = vst [vmem:[#allocation15 + $0xc0] sm:$0xff] %v1648
      %1815 = vst [vmem:[#allocation15 + $0xc8] sm:$0xff] %v1654
      %1816 = vst [vmem:[#allocation15 + $0xd0] sm:$0xff] %v1660
      %1817 = vst [vmem:[#allocation15 + $0xd8] sm:$0xff] %v1666
      %1818 = vst [vmem:[#allocation15 + $0xe0] sm:$0xff] %v1672
      %1819 = vst [vmem:[#allocation15 + $0xe8] sm:$0xff] %v1678
      %1820 = vst [vmem:[#allocation15 + $0xf0] sm:$0xff] %v1684
      %1821 = vst [vmem:[#allocation15 + $0xf8] sm:$0xff] %v1690
    $region57: #{graph_trans_conv.6} parent=1 // pred_fallthru
      _
    // Predicated region
    $region58: #{graph_trans_conv.6} parent=1 // pred_check
      _
    $region59: #{graph_trans_conv.6} parent=1 // pred_check_branch
      %1823 = sbr.rel (0) target = $region61
    $region60: #{graph_trans_conv.6} parent=1 // pred_region
      %s1825 = ssub.s32 12288, 12288
      %1826 = vsyncadd [#allocation5], %s1825
      %s1827 = sshll.u32 [#allocation14], 4
      %s1828 = int_to_ptr.vmem [resolvable:$true] %s1827
      %1833 = dma.vmem_to_hbm [thread:$0]  %s1828, 12288, %s6, [#allocation5], 128, 128, 8
    $region61: #{graph_trans_conv.6} parent=1 // pred_fallthru
      _
    // Predicated region
    $region62: #{graph_trans_conv.6} parent=1 // pred_check
      _
    $region63: #{graph_trans_conv.6} parent=1 // pred_check_branch
      %1835 = sbr.rel (0) target = $region65
    $region64: #{graph_trans_conv.6} parent=1 // pred_region
      %s1837 = ssub.s32 4096, 4096
      %1838 = vsyncadd [#allocation16], %s1837
      %s1839 = sshll.u32 [#allocation15], 4
      %s1840 = int_to_ptr.vmem [resolvable:$true] %s1839
      %1845 = dma.vmem_to_hbm [thread:$0]  %s1840, 4096, %s7, [#allocation16], 128, 128, 8
    $region65: #{graph_trans_conv.6} parent=1 // pred_fallthru
      _
    // Predicated region
    $region66: #{graph_trans_conv.6} parent=1 // pred_check
      _
    $region67: #{graph_trans_conv.6} parent=1 // pred_check_branch
      %1847 = sbr.rel (0) target = $region69
    $region68: #{graph_trans_conv.6} parent=1 // pred_region
      %1848 = dma.done [#allocation5], 12288
    $region69: #{graph_trans_conv.6} parent=1 // pred_fallthru
      _
    // Predicated region
    $region70: #{graph_trans_conv.6} parent=1 // pred_check
      _
    $region71: #{graph_trans_conv.6} parent=1 // pred_check_branch
      %1850 = sbr.rel (0) target = $region73
    $region72: #{graph_trans_conv.6} parent=1 // pred_region
      %1851 = dma.done [#allocation16], 4096
    $region73: #{graph_trans_conv.6} parent=1 // pred_fallthru
      _
    %1852 = vsyncpa [#allocation4], 1
    %1853 = vsyncpa [#allocation7], 1
    %1854 = vsyncpa [#allocation10], 1
    %1855 = vsyncpa [#allocation13], 1
    %1856 = vsyncpa [#allocation5], 1
    %1857 = vsyncpa [#allocation16], 1

// kernel: graph_trans_conv.5
$region0: #{graph_trans_conv.5}
  #allocation0 [shape = 'u32[]', space=smem, size = 0x4, offset = 0x4, fixed_abs, tag = 'smem constant byte address 0x4 - core index']
  #allocation1 [shape = 'u32[144,128]{1,0:T(1,128)}', space=vmem, size = 0x12000, scoped, tag = 'internal scratch']
  #allocation2 [shape = 'f32[256,1]{1,0:T(8,128)}', space=vmem, size = 0x20000, scoped, tag = 'scratch operand']
  #allocation3 [shape = 'f32[256,1]{1,0:T(8,128)}', space=vmem, size = 0x20000, scoped, tag = 'scratch operand']
  #allocation4 [shape = 'f32[256,128]{1,0:T(8,128)}', space=vmem, size = 0x20000, scoped, tag = 'scratch operand']
  %s0 = inlined_call_operand.hbm [shape: f32[3,256,128], index: 0, kind: input, shape index: {}, may-alias: {0,1,2}]
  %s1 = inlined_call_operand.hbm [shape: f32[3,256,128], index: 1, kind: input, shape index: {}, may-alias: {0,1,2}]
  %s2 = inlined_call_operand.hbm [shape: f32[3,256,128], index: 2, kind: input, shape index: {}, may-alias: {0,1,2}]
  %s3 = inlined_call_operand.hbm [shape: f32[256,128], index: 3, kind: input, shape index: {}]
  %s4 = inlined_call_operand.hbm [shape: s8[256,256], index: 4, kind: input, shape index: {}]
  %s5 = inlined_call_operand.hbm [shape: f32[3,128], index: 5, kind: input, shape index: {}]
  %s6 = inlined_call_operand.hbm [shape: f32[2,128], index: 6, kind: input, shape index: {}]
  %s7 = inlined_call_operand.hbm [shape: f32[256,128], index: 7, kind: output, shape index: {}]
  %s8 = sld [smem:[#allocation0]]
  $region74: #{graph_trans_conv.5} parent=0
    _
  %s10 = ssub.s32 1, %s8
  %s11 = scalar_select 0, %s10, %s8
  $region1: #{graph_trans_conv.5} parent=0
    #allocation5 [shape = 'u8[131072]{0}', space=vmem, size = 0x20000, scoped, tag = 'input window, operand 0, single buffered']
    #allocation6 [shape = 's32[1]{0}', space=sflag, size = 0x4, scoped, tag = 'scoped memory for graph_trans_conv.5']
    #allocation7 [shape = 's32[1]{0}', space=sflag, size = 0x4, scoped, tag = 'scoped memory for graph_trans_conv.5']
    #allocation8 [shape = 'u8[131072]{0}', space=vmem, size = 0x20000, scoped, tag = 'input window, operand 1, single buffered']
    #allocation9 [shape = 's32[1]{0}', space=sflag, size = 0x4, scoped, tag = 'scoped memory for graph_trans_conv.5']
    #allocation10 [shape = 'u8[131072]{0}', space=vmem, size = 0x20000, scoped, tag = 'input window, operand 2, single buffered']
    #allocation11 [shape = 'u8[131072]{0}', space=vmem, size = 0x20000, scoped, tag = 'input window, operand 3, single buffered']
    #allocation12 [shape = 's32[1]{0}', space=sflag, size = 0x4, scoped, tag = 'scoped memory for graph_trans_conv.5']
    #allocation13 [shape = 'u8[65536]{0}', space=vmem, size = 0x10000, scoped, tag = 'input window, operand 4, single buffered']
    #allocation14 [shape = 'u8[2048]{0}', space=vmem, size = 0x800, scoped, tag = 'input window, operand 5, single buffered']
    #allocation15 [shape = 's32[1]{0}', space=sflag, size = 0x4, scoped, tag = 'scoped memory for graph_trans_conv.5']
    #allocation16 [shape = 'u8[1024]{0}', space=vmem, size = 0x400, scoped, tag = 'input window, operand 6, single buffered']
    #allocation17 [shape = 'u8[131072]{0}', space=vmem, size = 0x20000, scoped, tag = 'output window, operand 0, single buffered']
    %12 = vsyncpa [#allocation6], 0
    %13 = vsyncpa [#allocation9], 0
    %14 = vsyncpa [#allocation12], 0
    %15 = vsyncpa [#allocation15], 0
    %16 = vsyncpa [#allocation7], 0
    // Predicated region
    $region2: #{graph_trans_conv.5} parent=1 // pred_check
      _
    $region3: #{graph_trans_conv.5} parent=1 // pred_check_branch
      %18 = sbr.rel (0) target = $region5
    $region4: #{graph_trans_conv.5} parent=1 // pred_region
      %s20 = ssub.s32 4096, 4096
      %21 = vsyncadd [#allocation6], %s20
      %s22 = sshll.u32 [#allocation5], 4
      %s23 = int_to_ptr.vmem [resolvable:$true] %s22
      %28 = dma.hbm_to_vmem [thread:$0]  %s0, 4096, %s23, [#allocation6], 128, 128, 8
    $region5: #{graph_trans_conv.5} parent=1 // pred_fallthru
      _
    // Predicated region
    $region6: #{graph_trans_conv.5} parent=1 // pred_check
      _
    $region7: #{graph_trans_conv.5} parent=1 // pred_check_branch
      %30 = sbr.rel (0) target = $region9
    $region8: #{graph_trans_conv.5} parent=1 // pred_region
      %s32 = ssub.s32 4096, 4096
      %33 = vsyncadd [#allocation9], %s32
      %s34 = scalar_lea.hbm %s1, 4096
      %s35 = sshll.u32 [#allocation8], 4
      %s36 = int_to_ptr.vmem [resolvable:$true] %s35
      %41 = dma.hbm_to_vmem [thread:$0]  %s34, 4096, %s36, [#allocation9], 128, 128, 8
    $region9: #{graph_trans_conv.5} parent=1 // pred_fallthru
      _
    // Predicated region
    $region10: #{graph_trans_conv.5} parent=1 // pred_check
      _
    $region11: #{graph_trans_conv.5} parent=1 // pred_check_branch
      %43 = sbr.rel (0) target = $region13
    $region12: #{graph_trans_conv.5} parent=1 // pred_region
      %s45 = ssub.s32 4096, 4096
      %46 = vsyncadd [#allocation9], %s45
      %s47 = scalar_lea.hbm %s2, 8192
      %s48 = sshll.u32 [#allocation10], 4
      %s49 = int_to_ptr.vmem [resolvable:$true] %s48
      %54 = dma.hbm_to_vmem [thread:$0]  %s47, 4096, %s49, [#allocation9], 128, 128, 8
    $region13: #{graph_trans_conv.5} parent=1 // pred_fallthru
      _
    // Predicated region
    $region14: #{graph_trans_conv.5} parent=1 // pred_check
      _
    $region15: #{graph_trans_conv.5} parent=1 // pred_check_branch
      %56 = sbr.rel (0) target = $region17
    $region16: #{graph_trans_conv.5} parent=1 // pred_region
      %s58 = ssub.s32 4096, 4096
      %59 = vsyncadd [#allocation12], %s58
      %s60 = sshll.u32 [#allocation11], 4
      %s61 = int_to_ptr.vmem [resolvable:$true] %s60
      %66 = dma.hbm_to_vmem [thread:$0]  %s3, 4096, %s61, [#allocation12], 128, 128, 8
    $region17: #{graph_trans_conv.5} parent=1 // pred_fallthru
      _
    // Predicated region
    $region18: #{graph_trans_conv.5} parent=1 // pred_check
      _
    $region19: #{graph_trans_conv.5} parent=1 // pred_check_branch
      %68 = sbr.rel (0) target = $region21
    $region20: #{graph_trans_conv.5} parent=1 // pred_region
      %s70 = ssub.s32 2048, 2048
      %71 = vsyncadd [#allocation12], %s70
      %s72 = sshll.u32 [#allocation13], 4
      %s73 = int_to_ptr.vmem [resolvable:$true] %s72
      %78 = dma.hbm_to_vmem [thread:$0]  %s4, 2048, %s73, [#allocation12], 256, 256, 16
    $region21: #{graph_trans_conv.5} parent=1 // pred_fallthru
      _
    // Predicated region
    $region22: #{graph_trans_conv.5} parent=1 // pred_check
      _
    $region23: #{graph_trans_conv.5} parent=1 // pred_check_branch
      %80 = sbr.rel (0) target = $region25
    $region24: #{graph_trans_conv.5} parent=1 // pred_region
      %s82 = ssub.s32 64, 64
      %83 = vsyncadd [#allocation15], %s82
      %s85 = sshll.u32 [#allocation14], 4
      %s86 = int_to_ptr.vmem [resolvable:$true] %s85
      %88 = dma.hbm_to_vmem [thread:$0]  %s5, 64, %s86, [#allocation15]
    $region25: #{graph_trans_conv.5} parent=1 // pred_fallthru
      _
    // Predicated region
    $region26: #{graph_trans_conv.5} parent=1 // pred_check
      _
    $region27: #{graph_trans_conv.5} parent=1 // pred_check_branch
      %90 = sbr.rel (0) target = $region29
    $region28: #{graph_trans_conv.5} parent=1 // pred_region
      %s92 = ssub.s32 32, 32
      %93 = vsyncadd [#allocation15], %s92
      %s95 = sshll.u32 [#allocation16], 4
      %s96 = int_to_ptr.vmem [resolvable:$true] %s95
      %98 = dma.hbm_to_vmem [thread:$0]  %s6, 32, %s96, [#allocation15]
    $region29: #{graph_trans_conv.5} parent=1 // pred_fallthru
      _
    // Predicated region
    $region30: #{graph_trans_conv.5} parent=1 // pred_check
      _
    $region31: #{graph_trans_conv.5} parent=1 // pred_check_branch
      %100 = sbr.rel (0) target = $region33
    $region32: #{graph_trans_conv.5} parent=1 // pred_region
      %101 = dma.done [#allocation6], 4096
    $region33: #{graph_trans_conv.5} parent=1 // pred_fallthru
      _
    // Predicated region
    $region34: #{graph_trans_conv.5} parent=1 // pred_check
      _
    $region35: #{graph_trans_conv.5} parent=1 // pred_check_branch
      %103 = sbr.rel (0) target = $region37
    $region36: #{graph_trans_conv.5} parent=1 // pred_region
      %104 = dma.done [#allocation9], 4096
    $region37: #{graph_trans_conv.5} parent=1 // pred_fallthru
      _
    // Predicated region
    $region38: #{graph_trans_conv.5} parent=1 // pred_check
      _
    $region39: #{graph_trans_conv.5} parent=1 // pred_check_branch
      %106 = sbr.rel (0) target = $region41
    $region40: #{graph_trans_conv.5} parent=1 // pred_region
      %107 = dma.done [#allocation9], 4096
    $region41: #{graph_trans_conv.5} parent=1 // pred_fallthru
      _
    // Predicated region
    $region42: #{graph_trans_conv.5} parent=1 // pred_check
      _
    $region43: #{graph_trans_conv.5} parent=1 // pred_check_branch
      %109 = sbr.rel (0) target = $region45
    $region44: #{graph_trans_conv.5} parent=1 // pred_region
      %110 = dma.done [#allocation12], 4096
    $region45: #{graph_trans_conv.5} parent=1 // pred_fallthru
      _
    // Predicated region
    $region46: #{graph_trans_conv.5} parent=1 // pred_check
      _
    $region47: #{graph_trans_conv.5} parent=1 // pred_check_branch
      %112 = sbr.rel (0) target = $region49
    $region48: #{graph_trans_conv.5} parent=1 // pred_region
      %113 = dma.done [#allocation12], 2048
    $region49: #{graph_trans_conv.5} parent=1 // pred_fallthru
      _
    // Predicated region
    $region50: #{graph_trans_conv.5} parent=1 // pred_check
      _
    $region51: #{graph_trans_conv.5} parent=1 // pred_check_branch
      %115 = sbr.rel (0) target = $region53
    $region52: #{graph_trans_conv.5} parent=1 // pred_region
      %116 = dma.done [#allocation15], 64
    $region53: #{graph_trans_conv.5} parent=1 // pred_fallthru
      _
    // Predicated region
    $region54: #{graph_trans_conv.5} parent=1 // pred_check
      _
    $region55: #{graph_trans_conv.5} parent=1 // pred_check_branch
      %118 = sbr.rel (0) target = $region57
    $region56: #{graph_trans_conv.5} parent=1 // pred_region
      %119 = dma.done [#allocation15], 32
    $region57: #{graph_trans_conv.5} parent=1 // pred_fallthru
      _
    %p122 = scmp.eq.s32.totalorder 0, 0
    // Predicated region
    $region58: #{graph_trans_conv.5} parent=1 // pred_check
      %p123 = pneg %p122
    $region59: #{graph_trans_conv.5} parent=1 // pred_check_branch
      %125 = sbr.rel (%p123) target = $region61
    $region60: #{graph_trans_conv.5} parent=1 // pred_region
      %vm126 = vcmask 7168
      %127 = vst.msk [vmem:[#allocation2] sm:$0xff] %vm126, -1e+30
      %128 = vst.msk [vmem:[#allocation2 + $0x8] sm:$0xff] %vm126, -1e+30
      %129 = vst.msk [vmem:[#allocation2 + $0x10] sm:$0xff] %vm126, -1e+30
      %130 = vst.msk [vmem:[#allocation2 + $0x18] sm:$0xff] %vm126, -1e+30
      %131 = vst.msk [vmem:[#allocation2 + $0x20] sm:$0xff] %vm126, -1e+30
      %132 = vst.msk [vmem:[#allocation2 + $0x28] sm:$0xff] %vm126, -1e+30
      %133 = vst.msk [vmem:[#allocation2 + $0x30] sm:$0xff] %vm126, -1e+30
      %134 = vst.msk [vmem:[#allocation2 + $0x38] sm:$0xff] %vm126, -1e+30
      %135 = vst.msk [vmem:[#allocation2 + $0x40] sm:$0xff] %vm126, -1e+30
      %136 = vst.msk [vmem:[#allocation2 + $0x48] sm:$0xff] %vm126, -1e+30
      %137 = vst.msk [vmem:[#allocation2 + $0x50] sm:$0xff] %vm126, -1e+30
      %138 = vst.msk [vmem:[#allocation2 + $0x58] sm:$0xff] %vm126, -1e+30
      %139 = vst.msk [vmem:[#allocation2 + $0x60] sm:$0xff] %vm126, -1e+30
      %140 = vst.msk [vmem:[#allocation2 + $0x68] sm:$0xff] %vm126, -1e+30
      %141 = vst.msk [vmem:[#allocation2 + $0x70] sm:$0xff] %vm126, -1e+30
      %142 = vst.msk [vmem:[#allocation2 + $0x78] sm:$0xff] %vm126, -1e+30
      %143 = vst.msk [vmem:[#allocation2 + $0x80] sm:$0xff] %vm126, -1e+30
      %144 = vst.msk [vmem:[#allocation2 + $0x88] sm:$0xff] %vm126, -1e+30
      %145 = vst.msk [vmem:[#allocation2 + $0x90] sm:$0xff] %vm126, -1e+30
      %146 = vst.msk [vmem:[#allocation2 + $0x98] sm:$0xff] %vm126, -1e+30
      %147 = vst.msk [vmem:[#allocation2 + $0xa0] sm:$0xff] %vm126, -1e+30
      %148 = vst.msk [vmem:[#allocation2 + $0xa8] sm:$0xff] %vm126, -1e+30
      %149 = vst.msk [vmem:[#allocation2 + $0xb0] sm:$0xff] %vm126, -1e+30
      %150 = vst.msk [vmem:[#allocation2 + $0xb8] sm:$0xff] %vm126, -1e+30
      %151 = vst.msk [vmem:[#allocation2 + $0xc0] sm:$0xff] %vm126, -1e+30
      %152 = vst.msk [vmem:[#allocation2 + $0xc8] sm:$0xff] %vm126, -1e+30
      %153 = vst.msk [vmem:[#allocation2 + $0xd0] sm:$0xff] %vm126, -1e+30
      %154 = vst.msk [vmem:[#allocation2 + $0xd8] sm:$0xff] %vm126, -1e+30
      %155 = vst.msk [vmem:[#allocation2 + $0xe0] sm:$0xff] %vm126, -1e+30
      %156 = vst.msk [vmem:[#allocation2 + $0xe8] sm:$0xff] %vm126, -1e+30
      %157 = vst.msk [vmem:[#allocation2 + $0xf0] sm:$0xff] %vm126, -1e+30
      %158 = vst.msk [vmem:[#allocation2 + $0xf8] sm:$0xff] %vm126, -1e+30
      %159 = vst.msk [vmem:[#allocation3] sm:$0xff] %vm126, 0.0
      %160 = vst.msk [vmem:[#allocation3 + $0x8] sm:$0xff] %vm126, 0.0
      %161 = vst.msk [vmem:[#allocation3 + $0x10] sm:$0xff] %vm126, 0.0
      %162 = vst.msk [vmem:[#allocation3 + $0x18] sm:$0xff] %vm126, 0.0
      %163 = vst.msk [vmem:[#allocation3 + $0x20] sm:$0xff] %vm126, 0.0
      %164 = vst.msk [vmem:[#allocation3 + $0x28] sm:$0xff] %vm126, 0.0
      %165 = vst.msk [vmem:[#allocation3 + $0x30] sm:$0xff] %vm126, 0.0
      %166 = vst.msk [vmem:[#allocation3 + $0x38] sm:$0xff] %vm126, 0.0
      %167 = vst.msk [vmem:[#allocation3 + $0x40] sm:$0xff] %vm126, 0.0
      %168 = vst.msk [vmem:[#allocation3 + $0x48] sm:$0xff] %vm126, 0.0
      %169 = vst.msk [vmem:[#allocation3 + $0x50] sm:$0xff] %vm126, 0.0
      %170 = vst.msk [vmem:[#allocation3 + $0x58] sm:$0xff] %vm126, 0.0
      %171 = vst.msk [vmem:[#allocation3 + $0x60] sm:$0xff] %vm126, 0.0
      %172 = vst.msk [vmem:[#allocation3 + $0x68] sm:$0xff] %vm126, 0.0
      %173 = vst.msk [vmem:[#allocation3 + $0x70] sm:$0xff] %vm126, 0.0
      %174 = vst.msk [vmem:[#allocation3 + $0x78] sm:$0xff] %vm126, 0.0
      %175 = vst.msk [vmem:[#allocation3 + $0x80] sm:$0xff] %vm126, 0.0
      %176 = vst.msk [vmem:[#allocation3 + $0x88] sm:$0xff] %vm126, 0.0
      %177 = vst.msk [vmem:[#allocation3 + $0x90] sm:$0xff] %vm126, 0.0
      %178 = vst.msk [vmem:[#allocation3 + $0x98] sm:$0xff] %vm126, 0.0
      %179 = vst.msk [vmem:[#allocation3 + $0xa0] sm:$0xff] %vm126, 0.0
      %180 = vst.msk [vmem:[#allocation3 + $0xa8] sm:$0xff] %vm126, 0.0
      %181 = vst.msk [vmem:[#allocation3 + $0xb0] sm:$0xff] %vm126, 0.0
      %182 = vst.msk [vmem:[#allocation3 + $0xb8] sm:$0xff] %vm126, 0.0
      %183 = vst.msk [vmem:[#allocation3 + $0xc0] sm:$0xff] %vm126, 0.0
      %184 = vst.msk [vmem:[#allocation3 + $0xc8] sm:$0xff] %vm126, 0.0
      %185 = vst.msk [vmem:[#allocation3 + $0xd0] sm:$0xff] %vm126, 0.0
      %186 = vst.msk [vmem:[#allocation3 + $0xd8] sm:$0xff] %vm126, 0.0
      %187 = vst.msk [vmem:[#allocation3 + $0xe0] sm:$0xff] %vm126, 0.0
      %188 = vst.msk [vmem:[#allocation3 + $0xe8] sm:$0xff] %vm126, 0.0
      %189 = vst.msk [vmem:[#allocation3 + $0xf0] sm:$0xff] %vm126, 0.0
      %190 = vst.msk [vmem:[#allocation3 + $0xf8] sm:$0xff] %vm126, 0.0
      %191 = vst [vmem:[#allocation4] sm:$0xff] 0.0
      %192 = vst [vmem:[#allocation4 + $0x8] sm:$0xff] 0.0
      %193 = vst [vmem:[#allocation4 + $0x10] sm:$0xff] 0.0
      %194 = vst [vmem:[#allocation4 + $0x18] sm:$0xff] 0.0
      %195 = vst [vmem:[#allocation4 + $0x20] sm:$0xff] 0.0
      %196 = vst [vmem:[#allocation4 + $0x28] sm:$0xff] 0.0
      %197 = vst [vmem:[#allocation4 + $0x30] sm:$0xff] 0.0
      %198 = vst [vmem:[#allocation4 + $0x38] sm:$0xff] 0.0
      %199 = vst [vmem:[#allocation4 + $0x40] sm:$0xff] 0.0
      %200 = vst [vmem:[#allocation4 + $0x48] sm:$0xff] 0.0
      %201 = vst [vmem:[#allocation4 + $0x50] sm:$0xff] 0.0
      %202 = vst [vmem:[#allocation4 + $0x58] sm:$0xff] 0.0
      %203 = vst [vmem:[#allocation4 + $0x60] sm:$0xff] 0.0
      %204 = vst [vmem:[#allocation4 + $0x68] sm:$0xff] 0.0
      %205 = vst [vmem:[#allocation4 + $0x70] sm:$0xff] 0.0
      %206 = vst [vmem:[#allocation4 + $0x78] sm:$0xff] 0.0
      %207 = vst [vmem:[#allocation4 + $0x80] sm:$0xff] 0.0
      %208 = vst [vmem:[#allocation4 + $0x88] sm:$0xff] 0.0
      %209 = vst [vmem:[#allocation4 + $0x90] sm:$0xff] 0.0
      %210 = vst [vmem:[#allocation4 + $0x98] sm:$0xff] 0.0
      %211 = vst [vmem:[#allocation4 + $0xa0] sm:$0xff] 0.0
      %212 = vst [vmem:[#allocation4 + $0xa8] sm:$0xff] 0.0
      %213 = vst [vmem:[#allocation4 + $0xb0] sm:$0xff] 0.0
      %214 = vst [vmem:[#allocation4 + $0xb8] sm:$0xff] 0.0
      %215 = vst [vmem:[#allocation4 + $0xc0] sm:$0xff] 0.0
      %216 = vst [vmem:[#allocation4 + $0xc8] sm:$0xff] 0.0
      %217 = vst [vmem:[#allocation4 + $0xd0] sm:$0xff] 0.0
      %218 = vst [vmem:[#allocation4 + $0xd8] sm:$0xff] 0.0
      %219 = vst [vmem:[#allocation4 + $0xe0] sm:$0xff] 0.0
      %220 = vst [vmem:[#allocation4 + $0xe8] sm:$0xff] 0.0
      %221 = vst [vmem:[#allocation4 + $0xf0] sm:$0xff] 0.0
      %222 = vst [vmem:[#allocation4 + $0xf8] sm:$0xff] 0.0
    $region61: #{graph_trans_conv.5} parent=1 // pred_fallthru
      _
    %v223 = vld [vmem:[#allocation5] sm:$0xff]
    %v224 = vld [vmem:[#allocation5 + $0x8] sm:$0xff]
    %v225 = vld [vmem:[#allocation5 + $0x10] sm:$0xff]
    %v226 = vld [vmem:[#allocation5 + $0x18] sm:$0xff]
    %v227 = vld [vmem:[#allocation5 + $0x20] sm:$0xff]
    %v228 = vld [vmem:[#allocation5 + $0x28] sm:$0xff]
    %v229 = vld [vmem:[#allocation5 + $0x30] sm:$0xff]
    %v230 = vld [vmem:[#allocation5 + $0x38] sm:$0xff]
    %v231 = vld [vmem:[#allocation5 + $0x40] sm:$0xff]
    %v232 = vld [vmem:[#allocation5 + $0x48] sm:$0xff]
    %v233 = vld [vmem:[#allocation5 + $0x50] sm:$0xff]
    %v234 = vld [vmem:[#allocation5 + $0x58] sm:$0xff]
    %v235 = vld [vmem:[#allocation5 + $0x60] sm:$0xff]
    %v236 = vld [vmem:[#allocation5 + $0x68] sm:$0xff]
    %v237 = vld [vmem:[#allocation5 + $0x70] sm:$0xff]
    %v238 = vld [vmem:[#allocation5 + $0x78] sm:$0xff]
    %v239 = vld [vmem:[#allocation5 + $0x80] sm:$0xff]
    %v240 = vld [vmem:[#allocation5 + $0x88] sm:$0xff]
    %v241 = vld [vmem:[#allocation5 + $0x90] sm:$0xff]
    %v242 = vld [vmem:[#allocation5 + $0x98] sm:$0xff]
    %v243 = vld [vmem:[#allocation5 + $0xa0] sm:$0xff]
    %v244 = vld [vmem:[#allocation5 + $0xa8] sm:$0xff]
    %v245 = vld [vmem:[#allocation5 + $0xb0] sm:$0xff]
    %v246 = vld [vmem:[#allocation5 + $0xb8] sm:$0xff]
    %v247 = vld [vmem:[#allocation5 + $0xc0] sm:$0xff]
    %v248 = vld [vmem:[#allocation5 + $0xc8] sm:$0xff]
    %v249 = vld [vmem:[#allocation5 + $0xd0] sm:$0xff]
    %v250 = vld [vmem:[#allocation5 + $0xd8] sm:$0xff]
    %v251 = vld [vmem:[#allocation5 + $0xe0] sm:$0xff]
    %v252 = vld [vmem:[#allocation5 + $0xe8] sm:$0xff]
    %v253 = vld [vmem:[#allocation5 + $0xf0] sm:$0xff]
    %v254 = vld [vmem:[#allocation5 + $0xf8] sm:$0xff]
    %v255 = vld [vmem:[#allocation8] sm:$0xff]
    %v256 = vld [vmem:[#allocation8 + $0x8] sm:$0xff]
    %v257 = vld [vmem:[#allocation8 + $0x10] sm:$0xff]
    %v258 = vld [vmem:[#allocation8 + $0x18] sm:$0xff]
    %v259 = vld [vmem:[#allocation8 + $0x20] sm:$0xff]
    %v260 = vld [vmem:[#allocation8 + $0x28] sm:$0xff]
    %v261 = vld [vmem:[#allocation8 + $0x30] sm:$0xff]
    %v262 = vld [vmem:[#allocation8 + $0x38] sm:$0xff]
    %v263 = vld [vmem:[#allocation8 + $0x40] sm:$0xff]
    %v264 = vld [vmem:[#allocation8 + $0x48] sm:$0xff]
    %v265 = vld [vmem:[#allocation8 + $0x50] sm:$0xff]
    %v266 = vld [vmem:[#allocation8 + $0x58] sm:$0xff]
    %v267 = vld [vmem:[#allocation8 + $0x60] sm:$0xff]
    %v268 = vld [vmem:[#allocation8 + $0x68] sm:$0xff]
    %v269 = vld [vmem:[#allocation8 + $0x70] sm:$0xff]
    %v270 = vld [vmem:[#allocation8 + $0x78] sm:$0xff]
    %v271 = vld [vmem:[#allocation8 + $0x80] sm:$0xff]
    %v272 = vld [vmem:[#allocation8 + $0x88] sm:$0xff]
    %v273 = vld [vmem:[#allocation8 + $0x90] sm:$0xff]
    %v274 = vld [vmem:[#allocation8 + $0x98] sm:$0xff]
    %v275 = vld [vmem:[#allocation8 + $0xa0] sm:$0xff]
    %v276 = vld [vmem:[#allocation8 + $0xa8] sm:$0xff]
    %v277 = vld [vmem:[#allocation8 + $0xb0] sm:$0xff]
    %v278 = vld [vmem:[#allocation8 + $0xb8] sm:$0xff]
    %v279 = vld [vmem:[#allocation8 + $0xc0] sm:$0xff]
    %v280 = vld [vmem:[#allocation8 + $0xc8] sm:$0xff]
    %v281 = vld [vmem:[#allocation8 + $0xd0] sm:$0xff]
    %v282 = vld [vmem:[#allocation8 + $0xd8] sm:$0xff]
    %v283 = vld [vmem:[#allocation8 + $0xe0] sm:$0xff]
    %v284 = vld [vmem:[#allocation8 + $0xe8] sm:$0xff]
    %v285 = vld [vmem:[#allocation8 + $0xf0] sm:$0xff]
    %v286 = vld [vmem:[#allocation8 + $0xf8] sm:$0xff]
    %287 = vmatprep.subr.mxu0 0.0
    %288 = vmatpush1.xpose.msra.mxu0 %v255
    %289 = vmatprep.subr.mxu0 0.0
    %290 = vmatpush1.xpose.msra.mxu0 %v256
    %291 = vmatprep.subr.mxu0 0.0
    %292 = vmatpush1.xpose.msra.mxu0 %v257
    %293 = vmatprep.subr.mxu0 0.0
    %294 = vmatpush1.xpose.msra.mxu0 %v258
    %295 = vmatprep.subr.mxu0 0.0
    %296 = vmatpush1.xpose.msra.mxu0 %v259
    %297 = vmatprep.subr.mxu0 0.0
    %298 = vmatpush1.xpose.msra.mxu0 %v260
    %299 = vmatprep.subr.mxu0 0.0
    %300 = vmatpush1.xpose.msra.mxu0 %v261
    %301 = vmatprep.subr.mxu0 0.0
    %302 = vmatpush1.xpose.msra.mxu0 %v262
    %303 = vmatprep.subr.mxu0 0.0
    %304 = vmatpush1.xpose.msra.mxu0 %v263
    %305 = vmatprep.subr.mxu0 0.0
    %306 = vmatpush1.xpose.msra.mxu0 %v264
    %307 = vmatprep.subr.mxu0 0.0
    %308 = vmatpush1.xpose.msra.mxu0 %v265
    %309 = vmatprep.subr.mxu0 0.0
    %310 = vmatpush1.xpose.msra.mxu0 %v266
    %311 = vmatprep.subr.mxu0 0.0
    %312 = vmatpush1.xpose.msra.mxu0 %v267
    %313 = vmatprep.subr.mxu0 0.0
    %314 = vmatpush1.xpose.msra.mxu0 %v268
    %315 = vmatprep.subr.mxu0 0.0
    %316 = vmatpush1.xpose.msra.mxu0 %v269
    %317 = vmatprep.subr.mxu0 0.0
    %318 = vmatpush1.xpose.msra.mxu0 %v270
    %319 = vmatprep.subr.mxu0 0.0
    %320 = vmatpush1.xpose.msra.mxu0 %v271
    %321 = vmatprep.subr.mxu0 0.0
    %322 = vmatpush1.xpose.msra.mxu0 %v272
    %323 = vmatprep.subr.mxu0 0.0
    %324 = vmatpush1.xpose.msra.mxu0 %v273
    %325 = vmatprep.subr.mxu0 0.0
    %326 = vmatpush1.xpose.msra.mxu0 %v274
    %327 = vmatprep.subr.mxu0 0.0
    %328 = vmatpush1.xpose.msra.mxu0 %v275
    %329 = vmatprep.subr.mxu0 0.0
    %330 = vmatpush1.xpose.msra.mxu0 %v276
    %331 = vmatprep.subr.mxu0 0.0
    %332 = vmatpush1.xpose.msra.mxu0 %v277
    %333 = vmatprep.subr.mxu0 0.0
    %334 = vmatpush1.xpose.msra.mxu0 %v278
    %335 = vmatprep.subr.mxu0 0.0
    %336 = vmatpush1.xpose.msra.mxu0 %v279
    %337 = vmatprep.subr.mxu0 0.0
    %338 = vmatpush1.xpose.msra.mxu0 %v280
    %339 = vmatprep.subr.mxu0 0.0
    %340 = vmatpush1.xpose.msra.mxu0 %v281
    %341 = vmatprep.subr.mxu0 0.0
    %342 = vmatpush1.xpose.msra.mxu0 %v282
    %343 = vmatprep.subr.mxu0 0.0
    %344 = vmatpush1.xpose.msra.mxu0 %v283
    %345 = vmatprep.subr.mxu0 0.0
    %346 = vmatpush1.xpose.msra.mxu0 %v284
    %347 = vmatprep.subr.mxu0 0.0
    %348 = vmatpush1.xpose.msra.mxu0 %v285
    %349 = vmatprep.subr.mxu0 0.0
    %350 = vmatpush1.xpose.msra.mxu0 %v286
    %351 = vmatprep.mubr.f32.mxu0 0.0
    %352 = vmatmul.mubr.f32.gmra.mrb[0].mxu0 %v223
    %v353 = vpop.f32.mrb[0].mxu0
    %v354 = vadd.f32 0.0, %v353
    %v355 = vpop.f32.mrb[0].mxu0
    %v356 = vadd.f32 0.0, %v355
    %357 = vmatprep.mubr.f32.mxu0 0.0
    %358 = vmatmul.mubr.f32.gmra.mrb[0].mxu0 %v224
    %v359 = vpop.f32.mrb[0].mxu0
    %v360 = vadd.f32 0.0, %v359
    %v361 = vpop.f32.mrb[0].mxu0
    %v362 = vadd.f32 0.0, %v361
    %363 = vmatprep.mubr.f32.mxu0 0.0
    %364 = vmatmul.mubr.f32.gmra.mrb[0].mxu0 %v225
    %v365 = vpop.f32.mrb[0].mxu0
    %v366 = vadd.f32 0.0, %v365
    %v367 = vpop.f32.mrb[0].mxu0
    %v368 = vadd.f32 0.0, %v367
    %369 = vmatprep.mubr.f32.mxu0 0.0
    %370 = vmatmul.mubr.f32.gmra.mrb[0].mxu0 %v226
    %v371 = vpop.f32.mrb[0].mxu0
    %v372 = vadd.f32 0.0, %v371
    %v373 = vpop.f32.mrb[0].mxu0
    %v374 = vadd.f32 0.0, %v373
    %375 = vmatprep.mubr.f32.mxu0 0.0
    %376 = vmatmul.mubr.f32.gmra.mrb[0].mxu0 %v227
    %v377 = vpop.f32.mrb[0].mxu0
    %v378 = vadd.f32 0.0, %v377
    %v379 = vpop.f32.mrb[0].mxu0
    %v380 = vadd.f32 0.0, %v379
    %381 = vmatprep.mubr.f32.mxu0 0.0
    %382 = vmatmul.mubr.f32.gmra.mrb[0].mxu0 %v228
    %v383 = vpop.f32.mrb[0].mxu0
    %v384 = vadd.f32 0.0, %v383
    %v385 = vpop.f32.mrb[0].mxu0
    %v386 = vadd.f32 0.0, %v385
    %387 = vmatprep.mubr.f32.mxu0 0.0
    %388 = vmatmul.mubr.f32.gmra.mrb[0].mxu0 %v229
    %v389 = vpop.f32.mrb[0].mxu0
    %v390 = vadd.f32 0.0, %v389
    %v391 = vpop.f32.mrb[0].mxu0
    %v392 = vadd.f32 0.0, %v391
    %393 = vmatprep.mubr.f32.mxu0 0.0
    %394 = vmatmul.mubr.f32.gmra.mrb[0].mxu0 %v230
    %v395 = vpop.f32.mrb[0].mxu0
    %v396 = vadd.f32 0.0, %v395
    %v397 = vpop.f32.mrb[0].mxu0
    %v398 = vadd.f32 0.0, %v397
    %399 = vmatprep.mubr.f32.mxu0 0.0
    %400 = vmatmul.mubr.f32.gmra.mrb[0].mxu0 %v231
    %v401 = vpop.f32.mrb[0].mxu0
    %v402 = vadd.f32 0.0, %v401
    %v403 = vpop.f32.mrb[0].mxu0
    %v404 = vadd.f32 0.0, %v403
    %405 = vmatprep.mubr.f32.mxu0 0.0
    %406 = vmatmul.mubr.f32.gmra.mrb[0].mxu0 %v232
    %v407 = vpop.f32.mrb[0].mxu0
    %v408 = vadd.f32 0.0, %v407
    %v409 = vpop.f32.mrb[0].mxu0
    %v410 = vadd.f32 0.0, %v409
    %411 = vmatprep.mubr.f32.mxu0 0.0
    %412 = vmatmul.mubr.f32.gmra.mrb[0].mxu0 %v233
    %v413 = vpop.f32.mrb[0].mxu0
    %v414 = vadd.f32 0.0, %v413
    %v415 = vpop.f32.mrb[0].mxu0
    %v416 = vadd.f32 0.0, %v415
    %417 = vmatprep.mubr.f32.mxu0 0.0
    %418 = vmatmul.mubr.f32.gmra.mrb[0].mxu0 %v234
    %v419 = vpop.f32.mrb[0].mxu0
    %v420 = vadd.f32 0.0, %v419
    %v421 = vpop.f32.mrb[0].mxu0
    %v422 = vadd.f32 0.0, %v421
    %423 = vmatprep.mubr.f32.mxu0 0.0
    %424 = vmatmul.mubr.f32.gmra.mrb[0].mxu0 %v235
    %v425 = vpop.f32.mrb[0].mxu0
    %v426 = vadd.f32 0.0, %v425
    %v427 = vpop.f32.mrb[0].mxu0
    %v428 = vadd.f32 0.0, %v427
    %429 = vmatprep.mubr.f32.mxu0 0.0
    %430 = vmatmul.mubr.f32.gmra.mrb[0].mxu0 %v236
    %v431 = vpop.f32.mrb[0].mxu0
    %v432 = vadd.f32 0.0, %v431
    %v433 = vpop.f32.mrb[0].mxu0
    %v434 = vadd.f32 0.0, %v433
    %435 = vmatprep.mubr.f32.mxu0 0.0
    %436 = vmatmul.mubr.f32.gmra.mrb[0].mxu0 %v237
    %v437 = vpop.f32.mrb[0].mxu0
    %v438 = vadd.f32 0.0, %v437
    %v439 = vpop.f32.mrb[0].mxu0
    %v440 = vadd.f32 0.0, %v439
    %441 = vmatprep.mubr.f32.mxu0 0.0
    %442 = vmatmul.mubr.f32.gmra.mrb[0].mxu0 %v238
    %v443 = vpop.f32.mrb[0].mxu0
    %v444 = vadd.f32 0.0, %v443
    %v445 = vpop.f32.mrb[0].mxu0
    %v446 = vadd.f32 0.0, %v445
    %447 = vmatprep.mubr.f32.mxu0 0.0
    %448 = vmatmul.mubr.f32.gmra.mrb[0].mxu0 %v239
    %v449 = vpop.f32.mrb[0].mxu0
    %v450 = vadd.f32 0.0, %v449
    %v451 = vpop.f32.mrb[0].mxu0
    %v452 = vadd.f32 0.0, %v451
    %453 = vmatprep.mubr.f32.mxu0 0.0
    %454 = vmatmul.mubr.f32.gmra.mrb[0].mxu0 %v240
    %v455 = vpop.f32.mrb[0].mxu0
    %v456 = vadd.f32 0.0, %v455
    %v457 = vpop.f32.mrb[0].mxu0
    %v458 = vadd.f32 0.0, %v457
    %459 = vmatprep.mubr.f32.mxu0 0.0
    %460 = vmatmul.mubr.f32.gmra.mrb[0].mxu0 %v241
    %v461 = vpop.f32.mrb[0].mxu0
    %v462 = vadd.f32 0.0, %v461
    %v463 = vpop.f32.mrb[0].mxu0
    %v464 = vadd.f32 0.0, %v463
    %465 = vmatprep.mubr.f32.mxu0 0.0
    %466 = vmatmul.mubr.f32.gmra.mrb[0].mxu0 %v242
    %v467 = vpop.f32.mrb[0].mxu0
    %v468 = vadd.f32 0.0, %v467
    %v469 = vpop.f32.mrb[0].mxu0
    %v470 = vadd.f32 0.0, %v469
    %471 = vmatprep.mubr.f32.mxu0 0.0
    %472 = vmatmul.mubr.f32.gmra.mrb[0].mxu0 %v243
    %v473 = vpop.f32.mrb[0].mxu0
    %v474 = vadd.f32 0.0, %v473
    %v475 = vpop.f32.mrb[0].mxu0
    %v476 = vadd.f32 0.0, %v475
    %477 = vmatprep.mubr.f32.mxu0 0.0
    %478 = vmatmul.mubr.f32.gmra.mrb[0].mxu0 %v244
    %v479 = vpop.f32.mrb[0].mxu0
    %v480 = vadd.f32 0.0, %v479
    %v481 = vpop.f32.mrb[0].mxu0
    %v482 = vadd.f32 0.0, %v481
    %483 = vmatprep.mubr.f32.mxu0 0.0
    %484 = vmatmul.mubr.f32.gmra.mrb[0].mxu0 %v245
    %v485 = vpop.f32.mrb[0].mxu0
    %v486 = vadd.f32 0.0, %v485
    %v487 = vpop.f32.mrb[0].mxu0
    %v488 = vadd.f32 0.0, %v487
    %489 = vmatprep.mubr.f32.mxu0 0.0
    %490 = vmatmul.mubr.f32.gmra.mrb[0].mxu0 %v246
    %v491 = vpop.f32.mrb[0].mxu0
    %v492 = vadd.f32 0.0, %v491
    %v493 = vpop.f32.mrb[0].mxu0
    %v494 = vadd.f32 0.0, %v493
    %495 = vmatprep.mubr.f32.mxu0 0.0
    %496 = vmatmul.mubr.f32.gmra.mrb[0].mxu0 %v247
    %v497 = vpop.f32.mrb[0].mxu0
    %v498 = vadd.f32 0.0, %v497
    %v499 = vpop.f32.mrb[0].mxu0
    %v500 = vadd.f32 0.0, %v499
    %501 = vmatprep.mubr.f32.mxu0 0.0
    %502 = vmatmul.mubr.f32.gmra.mrb[0].mxu0 %v248
    %v503 = vpop.f32.mrb[0].mxu0
    %v504 = vadd.f32 0.0, %v503
    %v505 = vpop.f32.mrb[0].mxu0
    %v506 = vadd.f32 0.0, %v505
    %507 = vmatprep.mubr.f32.mxu0 0.0
    %508 = vmatmul.mubr.f32.gmra.mrb[0].mxu0 %v249
    %v509 = vpop.f32.mrb[0].mxu0
    %v510 = vadd.f32 0.0, %v509
    %v511 = vpop.f32.mrb[0].mxu0
    %v512 = vadd.f32 0.0, %v511
    %513 = vmatprep.mubr.f32.mxu0 0.0
    %514 = vmatmul.mubr.f32.gmra.mrb[0].mxu0 %v250
    %v515 = vpop.f32.mrb[0].mxu0
    %v516 = vadd.f32 0.0, %v515
    %v517 = vpop.f32.mrb[0].mxu0
    %v518 = vadd.f32 0.0, %v517
    %519 = vmatprep.mubr.f32.mxu0 0.0
    %520 = vmatmul.mubr.f32.gmra.mrb[0].mxu0 %v251
    %v521 = vpop.f32.mrb[0].mxu0
    %v522 = vadd.f32 0.0, %v521
    %v523 = vpop.f32.mrb[0].mxu0
    %v524 = vadd.f32 0.0, %v523
    %525 = vmatprep.mubr.f32.mxu0 0.0
    %526 = vmatmul.mubr.f32.gmra.mrb[0].mxu0 %v252
    %v527 = vpop.f32.mrb[0].mxu0
    %v528 = vadd.f32 0.0, %v527
    %v529 = vpop.f32.mrb[0].mxu0
    %v530 = vadd.f32 0.0, %v529
    %531 = vmatprep.mubr.f32.mxu0 0.0
    %532 = vmatmul.mubr.f32.gmra.mrb[0].mxu0 %v253
    %v533 = vpop.f32.mrb[0].mxu0
    %v534 = vadd.f32 0.0, %v533
    %v535 = vpop.f32.mrb[0].mxu0
    %v536 = vadd.f32 0.0, %v535
    %537 = vmatprep.mubr.f32.mxu0 0.0
    %538 = vmatmul.mubr.f32.gmra.mrb[0].mxu0 %v254
    %v539 = vpop.f32.mrb[0].mxu0
    %v540 = vadd.f32 0.0, %v539
    %v541 = vpop.f32.mrb[0].mxu0
    %v542 = vadd.f32 0.0, %v541
    %543 = vdwg.mxu0
    %v544 = vld [vmem:[#allocation13] sm:$0xff]
    %v545 = vld [vmem:[#allocation13 + $0x8] sm:$0xff]
    %v546 = vld [vmem:[#allocation13 + $0x10] sm:$0xff]
    %v547 = vld [vmem:[#allocation13 + $0x18] sm:$0xff]
    %v548 = vld [vmem:[#allocation13 + $0x20] sm:$0xff]
    %v549 = vld [vmem:[#allocation13 + $0x28] sm:$0xff]
    %v550 = vld [vmem:[#allocation13 + $0x30] sm:$0xff]
    %v551 = vld [vmem:[#allocation13 + $0x38] sm:$0xff]
    %v552 = vld [vmem:[#allocation13 + $0x40] sm:$0xff]
    %v553 = vld [vmem:[#allocation13 + $0x48] sm:$0xff]
    %v554 = vld [vmem:[#allocation13 + $0x50] sm:$0xff]
    %v555 = vld [vmem:[#allocation13 + $0x58] sm:$0xff]
    %v556 = vld [vmem:[#allocation13 + $0x60] sm:$0xff]
    %v557 = vld [vmem:[#allocation13 + $0x68] sm:$0xff]
    %v558 = vld [vmem:[#allocation13 + $0x70] sm:$0xff]
    %v559 = vld [vmem:[#allocation13 + $0x78] sm:$0xff]
    %vm560 = vnez %v544
    %vm561 = vnez %v545
    %vm562 = vnez %v546
    %vm563 = vnez %v547
    %vm564 = vnez %v548
    %vm565 = vnez %v549
    %vm566 = vnez %v550
    %vm567 = vnez %v551
    %vm568 = vnez %v552
    %vm569 = vnez %v553
    %vm570 = vnez %v554
    %vm571 = vnez %v555
    %vm572 = vnez %v556
    %vm573 = vnez %v557
    %vm574 = vnez %v558
    %vm575 = vnez %v559
    %v576 = vsel %vm560, 16843009, 0
    %v577 = vsel %vm561, 16843009, 0
    %v578 = vsel %vm562, 16843009, 0
    %v579 = vsel %vm563, 16843009, 0
    %v580 = vsel %vm564, 16843009, 0
    %v581 = vsel %vm565, 16843009, 0
    %v582 = vsel %vm566, 16843009, 0
    %v583 = vsel %vm567, 16843009, 0
    %v584 = vsel %vm568, 16843009, 0
    %v585 = vsel %vm569, 16843009, 0
    %v586 = vsel %vm570, 16843009, 0
    %v587 = vsel %vm571, 16843009, 0
    %v588 = vsel %vm572, 16843009, 0
    %v589 = vsel %vm573, 16843009, 0
    %v590 = vsel %vm574, 16843009, 0
    %v591 = vsel %vm575, 16843009, 0
    %v592 = vunpack.c.0.s8 %v576
    %v593 = vunpack.c.0.s8 %v577
    %v594 = vunpack.c.1.s8 %v576
    %v595 = vunpack.c.1.s8 %v577
    %v596 = vunpack.c.2.s8 %v576
    %v597 = vunpack.c.2.s8 %v577
    %v598 = vunpack.c.3.s8 %v576
    %v599 = vunpack.c.3.s8 %v577
    %v600 = vunpack.c.0.s8 %v578
    %v601 = vunpack.c.0.s8 %v579
    %v602 = vunpack.c.1.s8 %v578
    %v603 = vunpack.c.1.s8 %v579
    %v604 = vunpack.c.2.s8 %v578
    %v605 = vunpack.c.2.s8 %v579
    %v606 = vunpack.c.3.s8 %v578
    %v607 = vunpack.c.3.s8 %v579
    %v608 = vunpack.c.0.s8 %v580
    %v609 = vunpack.c.0.s8 %v581
    %v610 = vunpack.c.1.s8 %v580
    %v611 = vunpack.c.1.s8 %v581
    %v612 = vunpack.c.2.s8 %v580
    %v613 = vunpack.c.2.s8 %v581
    %v614 = vunpack.c.3.s8 %v580
    %v615 = vunpack.c.3.s8 %v581
    %v616 = vunpack.c.0.s8 %v582
    %v617 = vunpack.c.0.s8 %v583
    %v618 = vunpack.c.1.s8 %v582
    %v619 = vunpack.c.1.s8 %v583
    %v620 = vunpack.c.2.s8 %v582
    %v621 = vunpack.c.2.s8 %v583
    %v622 = vunpack.c.3.s8 %v582
    %v623 = vunpack.c.3.s8 %v583
    %v624 = vunpack.c.0.s8 %v584
    %v625 = vunpack.c.0.s8 %v585
    %v626 = vunpack.c.1.s8 %v584
    %v627 = vunpack.c.1.s8 %v585
    %v628 = vunpack.c.2.s8 %v584
    %v629 = vunpack.c.2.s8 %v585
    %v630 = vunpack.c.3.s8 %v584
    %v631 = vunpack.c.3.s8 %v585
    %v632 = vunpack.c.0.s8 %v586
    %v633 = vunpack.c.0.s8 %v587
    %v634 = vunpack.c.1.s8 %v586
    %v635 = vunpack.c.1.s8 %v587
    %v636 = vunpack.c.2.s8 %v586
    %v637 = vunpack.c.2.s8 %v587
    %v638 = vunpack.c.3.s8 %v586
    %v639 = vunpack.c.3.s8 %v587
    %v640 = vunpack.c.0.s8 %v588
    %v641 = vunpack.c.0.s8 %v589
    %v642 = vunpack.c.1.s8 %v588
    %v643 = vunpack.c.1.s8 %v589
    %v644 = vunpack.c.2.s8 %v588
    %v645 = vunpack.c.2.s8 %v589
    %v646 = vunpack.c.3.s8 %v588
    %v647 = vunpack.c.3.s8 %v589
    %v648 = vunpack.c.0.s8 %v590
    %v649 = vunpack.c.0.s8 %v591
    %v650 = vunpack.c.1.s8 %v590
    %v651 = vunpack.c.1.s8 %v591
    %v652 = vunpack.c.2.s8 %v590
    %v653 = vunpack.c.2.s8 %v591
    %v654 = vunpack.c.3.s8 %v590
    %v655 = vunpack.c.3.s8 %v591
    %v656 = vpack.c.b16 %v593, %v592
    %v657 = vpack.c.b8 %v656, %v656
    %v658 = vpack.c.b16 %v595, %v594
    %v659 = vpack.c.b8 %v658, %v658
    %v660 = vpack.c.b16 %v597, %v596
    %v661 = vpack.c.b8 %v660, %v660
    %v662 = vpack.c.b16 %v599, %v598
    %v663 = vpack.c.b8 %v662, %v662
    %v664 = vpack.c.b16 %v601, %v600
    %v665 = vpack.c.b8 %v664, %v664
    %v666 = vpack.c.b16 %v603, %v602
    %v667 = vpack.c.b8 %v666, %v666
    %v668 = vpack.c.b16 %v605, %v604
    %v669 = vpack.c.b8 %v668, %v668
    %v670 = vpack.c.b16 %v607, %v606
    %v671 = vpack.c.b8 %v670, %v670
    %v672 = vpack.c.b16 %v609, %v608
    %v673 = vpack.c.b8 %v672, %v672
    %v674 = vpack.c.b16 %v611, %v610
    %v675 = vpack.c.b8 %v674, %v674
    %v676 = vpack.c.b16 %v613, %v612
    %v677 = vpack.c.b8 %v676, %v676
    %v678 = vpack.c.b16 %v615, %v614
    %v679 = vpack.c.b8 %v678, %v678
    %v680 = vpack.c.b16 %v617, %v616
    %v681 = vpack.c.b8 %v680, %v680
    %v682 = vpack.c.b16 %v619, %v618
    %v683 = vpack.c.b8 %v682, %v682
    %v684 = vpack.c.b16 %v621, %v620
    %v685 = vpack.c.b8 %v684, %v684
    %v686 = vpack.c.b16 %v623, %v622
    %v687 = vpack.c.b8 %v686, %v686
    %v688 = vpack.c.b16 %v625, %v624
    %v689 = vpack.c.b8 %v688, %v688
    %v690 = vpack.c.b16 %v627, %v626
    %v691 = vpack.c.b8 %v690, %v690
    %v692 = vpack.c.b16 %v629, %v628
    %v693 = vpack.c.b8 %v692, %v692
    %v694 = vpack.c.b16 %v631, %v630
    %v695 = vpack.c.b8 %v694, %v694
    %v696 = vpack.c.b16 %v633, %v632
    %v697 = vpack.c.b8 %v696, %v696
    %v698 = vpack.c.b16 %v635, %v634
    %v699 = vpack.c.b8 %v698, %v698
    %v700 = vpack.c.b16 %v637, %v636
    %v701 = vpack.c.b8 %v700, %v700
    %v702 = vpack.c.b16 %v639, %v638
    %v703 = vpack.c.b8 %v702, %v702
    %v704 = vpack.c.b16 %v641, %v640
    %v705 = vpack.c.b8 %v704, %v704
    %v706 = vpack.c.b16 %v643, %v642
    %v707 = vpack.c.b8 %v706, %v706
    %v708 = vpack.c.b16 %v645, %v644
    %v709 = vpack.c.b8 %v708, %v708
    %v710 = vpack.c.b16 %v647, %v646
    %v711 = vpack.c.b8 %v710, %v710
    %v712 = vpack.c.b16 %v649, %v648
    %v713 = vpack.c.b8 %v712, %v712
    %v714 = vpack.c.b16 %v651, %v650
    %v715 = vpack.c.b8 %v714, %v714
    %v716 = vpack.c.b16 %v653, %v652
    %v717 = vpack.c.b8 %v716, %v716
    %v718 = vpack.c.b16 %v655, %v654
    %v719 = vpack.c.b8 %v718, %v718
    %vm720 = vnez %v657
    %vm721 = vnez %v659
    %vm722 = vnez %v661
    %vm723 = vnez %v663
    %vm724 = vnez %v665
    %vm725 = vnez %v667
    %vm726 = vnez %v669
    %vm727 = vnez %v671
    %vm728 = vnez %v673
    %vm729 = vnez %v675
    %vm730 = vnez %v677
    %vm731 = vnez %v679
    %vm732 = vnez %v681
    %vm733 = vnez %v683
    %vm734 = vnez %v685
    %vm735 = vnez %v687
    %vm736 = vnez %v689
    %vm737 = vnez %v691
    %vm738 = vnez %v693
    %vm739 = vnez %v695
    %vm740 = vnez %v697
    %vm741 = vnez %v699
    %vm742 = vnez %v701
    %vm743 = vnez %v703
    %vm744 = vnez %v705
    %vm745 = vnez %v707
    %vm746 = vnez %v709
    %vm747 = vnez %v711
    %vm748 = vnez %v713
    %vm749 = vnez %v715
    %vm750 = vnez %v717
    %vm751 = vnez %v719
    %v752 = vsel %vm720, 16843009, 0
    %v753 = vsel %vm721, 16843009, 0
    %v754 = vsel %vm722, 16843009, 0
    %v755 = vsel %vm723, 16843009, 0
    %v756 = vsel %vm724, 16843009, 0
    %v757 = vsel %vm725, 16843009, 0
    %v758 = vsel %vm726, 16843009, 0
    %v759 = vsel %vm727, 16843009, 0
    %v760 = vsel %vm728, 16843009, 0
    %v761 = vsel %vm729, 16843009, 0
    %v762 = vsel %vm730, 16843009, 0
    %v763 = vsel %vm731, 16843009, 0
    %v764 = vsel %vm732, 16843009, 0
    %v765 = vsel %vm733, 16843009, 0
    %v766 = vsel %vm734, 16843009, 0
    %v767 = vsel %vm735, 16843009, 0
    %v768 = vsel %vm736, 16843009, 0
    %v769 = vsel %vm737, 16843009, 0
    %v770 = vsel %vm738, 16843009, 0
    %v771 = vsel %vm739, 16843009, 0
    %v772 = vsel %vm740, 16843009, 0
    %v773 = vsel %vm741, 16843009, 0
    %v774 = vsel %vm742, 16843009, 0
    %v775 = vsel %vm743, 16843009, 0
    %v776 = vsel %vm744, 16843009, 0
    %v777 = vsel %vm745, 16843009, 0
    %v778 = vsel %vm746, 16843009, 0
    %v779 = vsel %vm747, 16843009, 0
    %v780 = vsel %vm748, 16843009, 0
    %v781 = vsel %vm749, 16843009, 0
    %v782 = vsel %vm750, 16843009, 0
    %v783 = vsel %vm751, 16843009, 0
    %v784 = vunpack.c.0.s8 %v752
    %v785 = vunpack.c.1.s8 %v752
    %v786 = vunpack.c.0.s8 %v753
    %v787 = vunpack.c.1.s8 %v753
    %v788 = vunpack.c.0.s8 %v754
    %v789 = vunpack.c.1.s8 %v754
    %v790 = vunpack.c.0.s8 %v755
    %v791 = vunpack.c.1.s8 %v755
    %v792 = vunpack.c.0.s8 %v756
    %v793 = vunpack.c.1.s8 %v756
    %v794 = vunpack.c.0.s8 %v757
    %v795 = vunpack.c.1.s8 %v757
    %v796 = vunpack.c.0.s8 %v758
    %v797 = vunpack.c.1.s8 %v758
    %v798 = vunpack.c.0.s8 %v759
    %v799 = vunpack.c.1.s8 %v759
    %v800 = vunpack.c.0.s8 %v760
    %v801 = vunpack.c.1.s8 %v760
    %v802 = vunpack.c.0.s8 %v761
    %v803 = vunpack.c.1.s8 %v761
    %v804 = vunpack.c.0.s8 %v762
    %v805 = vunpack.c.1.s8 %v762
    %v806 = vunpack.c.0.s8 %v763
    %v807 = vunpack.c.1.s8 %v763
    %v808 = vunpack.c.0.s8 %v764
    %v809 = vunpack.c.1.s8 %v764
    %v810 = vunpack.c.0.s8 %v765
    %v811 = vunpack.c.1.s8 %v765
    %v812 = vunpack.c.0.s8 %v766
    %v813 = vunpack.c.1.s8 %v766
    %v814 = vunpack.c.0.s8 %v767
    %v815 = vunpack.c.1.s8 %v767
    %v816 = vunpack.c.0.s8 %v768
    %v817 = vunpack.c.1.s8 %v768
    %v818 = vunpack.c.0.s8 %v769
    %v819 = vunpack.c.1.s8 %v769
    %v820 = vunpack.c.0.s8 %v770
    %v821 = vunpack.c.1.s8 %v770
    %v822 = vunpack.c.0.s8 %v771
    %v823 = vunpack.c.1.s8 %v771
    %v824 = vunpack.c.0.s8 %v772
    %v825 = vunpack.c.1.s8 %v772
    %v826 = vunpack.c.0.s8 %v773
    %v827 = vunpack.c.1.s8 %v773
    %v828 = vunpack.c.0.s8 %v774
    %v829 = vunpack.c.1.s8 %v774
    %v830 = vunpack.c.0.s8 %v775
    %v831 = vunpack.c.1.s8 %v775
    %v832 = vunpack.c.0.s8 %v776
    %v833 = vunpack.c.1.s8 %v776
    %v834 = vunpack.c.0.s8 %v777
    %v835 = vunpack.c.1.s8 %v777
    %v836 = vunpack.c.0.s8 %v778
    %v837 = vunpack.c.1.s8 %v778
    %v838 = vunpack.c.0.s8 %v779
    %v839 = vunpack.c.1.s8 %v779
    %v840 = vunpack.c.0.s8 %v780
    %v841 = vunpack.c.1.s8 %v780
    %v842 = vunpack.c.0.s8 %v781
    %v843 = vunpack.c.1.s8 %v781
    %v844 = vunpack.c.0.s8 %v782
    %v845 = vunpack.c.1.s8 %v782
    %v846 = vunpack.c.0.s8 %v783
    %v847 = vunpack.c.1.s8 %v783
    %vm848 = vcmp.ne.s32.totalorder %v784, 0
    %vm849 = vcmp.ne.s32.totalorder %v785, 0
    %vm850 = vcmp.ne.s32.totalorder %v786, 0
    %vm851 = vcmp.ne.s32.totalorder %v787, 0
    %vm852 = vcmp.ne.s32.totalorder %v788, 0
    %vm853 = vcmp.ne.s32.totalorder %v789, 0
    %vm854 = vcmp.ne.s32.totalorder %v790, 0
    %vm855 = vcmp.ne.s32.totalorder %v791, 0
    %vm856 = vcmp.ne.s32.totalorder %v792, 0
    %vm857 = vcmp.ne.s32.totalorder %v793, 0
    %vm858 = vcmp.ne.s32.totalorder %v794, 0
    %vm859 = vcmp.ne.s32.totalorder %v795, 0
    %vm860 = vcmp.ne.s32.totalorder %v796, 0
    %vm861 = vcmp.ne.s32.totalorder %v797, 0
    %vm862 = vcmp.ne.s32.totalorder %v798, 0
    %vm863 = vcmp.ne.s32.totalorder %v799, 0
    %vm864 = vcmp.ne.s32.totalorder %v800, 0
    %vm865 = vcmp.ne.s32.totalorder %v801, 0
    %vm866 = vcmp.ne.s32.totalorder %v802, 0
    %vm867 = vcmp.ne.s32.totalorder %v803, 0
    %vm868 = vcmp.ne.s32.totalorder %v804, 0
    %vm869 = vcmp.ne.s32.totalorder %v805, 0
    %vm870 = vcmp.ne.s32.totalorder %v806, 0
    %vm871 = vcmp.ne.s32.totalorder %v807, 0
    %vm872 = vcmp.ne.s32.totalorder %v808, 0
    %vm873 = vcmp.ne.s32.totalorder %v809, 0
    %vm874 = vcmp.ne.s32.totalorder %v810, 0
    %vm875 = vcmp.ne.s32.totalorder %v811, 0
    %vm876 = vcmp.ne.s32.totalorder %v812, 0
    %vm877 = vcmp.ne.s32.totalorder %v813, 0
    %vm878 = vcmp.ne.s32.totalorder %v814, 0
    %vm879 = vcmp.ne.s32.totalorder %v815, 0
    %vm880 = vcmp.ne.s32.totalorder %v816, 0
    %vm881 = vcmp.ne.s32.totalorder %v817, 0
    %vm882 = vcmp.ne.s32.totalorder %v818, 0
    %vm883 = vcmp.ne.s32.totalorder %v819, 0
    %vm884 = vcmp.ne.s32.totalorder %v820, 0
    %vm885 = vcmp.ne.s32.totalorder %v821, 0
    %vm886 = vcmp.ne.s32.totalorder %v822, 0
    %vm887 = vcmp.ne.s32.totalorder %v823, 0
    %vm888 = vcmp.ne.s32.totalorder %v824, 0
    %vm889 = vcmp.ne.s32.totalorder %v825, 0
    %vm890 = vcmp.ne.s32.totalorder %v826, 0
    %vm891 = vcmp.ne.s32.totalorder %v827, 0
    %vm892 = vcmp.ne.s32.totalorder %v828, 0
    %vm893 = vcmp.ne.s32.totalorder %v829, 0
    %vm894 = vcmp.ne.s32.totalorder %v830, 0
    %vm895 = vcmp.ne.s32.totalorder %v831, 0
    %vm896 = vcmp.ne.s32.totalorder %v832, 0
    %vm897 = vcmp.ne.s32.totalorder %v833, 0
    %vm898 = vcmp.ne.s32.totalorder %v834, 0
    %vm899 = vcmp.ne.s32.totalorder %v835, 0
    %vm900 = vcmp.ne.s32.totalorder %v836, 0
    %vm901 = vcmp.ne.s32.totalorder %v837, 0
    %vm902 = vcmp.ne.s32.totalorder %v838, 0
    %vm903 = vcmp.ne.s32.totalorder %v839, 0
    %vm904 = vcmp.ne.s32.totalorder %v840, 0
    %vm905 = vcmp.ne.s32.totalorder %v841, 0
    %vm906 = vcmp.ne.s32.totalorder %v842, 0
    %vm907 = vcmp.ne.s32.totalorder %v843, 0
    %vm908 = vcmp.ne.s32.totalorder %v844, 0
    %vm909 = vcmp.ne.s32.totalorder %v845, 0
    %vm910 = vcmp.ne.s32.totalorder %v846, 0
    %vm911 = vcmp.ne.s32.totalorder %v847, 0
    %v912 = vsel %vm848, %v354, -1e+30
    %v913 = vsel %vm849, %v356, -1e+30
    %v914 = vsel %vm850, %v360, -1e+30
    %v915 = vsel %vm851, %v362, -1e+30
    %v916 = vsel %vm852, %v366, -1e+30
    %v917 = vsel %vm853, %v368, -1e+30
    %v918 = vsel %vm854, %v372, -1e+30
    %v919 = vsel %vm855, %v374, -1e+30
    %v920 = vsel %vm856, %v378, -1e+30
    %v921 = vsel %vm857, %v380, -1e+30
    %v922 = vsel %vm858, %v384, -1e+30
    %v923 = vsel %vm859, %v386, -1e+30
    %v924 = vsel %vm860, %v390, -1e+30
    %v925 = vsel %vm861, %v392, -1e+30
    %v926 = vsel %vm862, %v396, -1e+30
    %v927 = vsel %vm863, %v398, -1e+30
    %v928 = vsel %vm864, %v402, -1e+30
    %v929 = vsel %vm865, %v404, -1e+30
    %v930 = vsel %vm866, %v408, -1e+30
    %v931 = vsel %vm867, %v410, -1e+30
    %v932 = vsel %vm868, %v414, -1e+30
    %v933 = vsel %vm869, %v416, -1e+30
    %v934 = vsel %vm870, %v420, -1e+30
    %v935 = vsel %vm871, %v422, -1e+30
    %v936 = vsel %vm872, %v426, -1e+30
    %v937 = vsel %vm873, %v428, -1e+30
    %v938 = vsel %vm874, %v432, -1e+30
    %v939 = vsel %vm875, %v434, -1e+30
    %v940 = vsel %vm876, %v438, -1e+30
    %v941 = vsel %vm877, %v440, -1e+30
    %v942 = vsel %vm878, %v444, -1e+30
    %v943 = vsel %vm879, %v446, -1e+30
    %v944 = vsel %vm880, %v450, -1e+30
    %v945 = vsel %vm881, %v452, -1e+30
    %v946 = vsel %vm882, %v456, -1e+30
    %v947 = vsel %vm883, %v458, -1e+30
    %v948 = vsel %vm884, %v462, -1e+30
    %v949 = vsel %vm885, %v464, -1e+30
    %v950 = vsel %vm886, %v468, -1e+30
    %v951 = vsel %vm887, %v470, -1e+30
    %v952 = vsel %vm888, %v474, -1e+30
    %v953 = vsel %vm889, %v476, -1e+30
    %v954 = vsel %vm890, %v480, -1e+30
    %v955 = vsel %vm891, %v482, -1e+30
    %v956 = vsel %vm892, %v486, -1e+30
    %v957 = vsel %vm893, %v488, -1e+30
    %v958 = vsel %vm894, %v492, -1e+30
    %v959 = vsel %vm895, %v494, -1e+30
    %v960 = vsel %vm896, %v498, -1e+30
    %v961 = vsel %vm897, %v500, -1e+30
    %v962 = vsel %vm898, %v504, -1e+30
    %v963 = vsel %vm899, %v506, -1e+30
    %v964 = vsel %vm900, %v510, -1e+30
    %v965 = vsel %vm901, %v512, -1e+30
    %v966 = vsel %vm902, %v516, -1e+30
    %v967 = vsel %vm903, %v518, -1e+30
    %v968 = vsel %vm904, %v522, -1e+30
    %v969 = vsel %vm905, %v524, -1e+30
    %v970 = vsel %vm906, %v528, -1e+30
    %v971 = vsel %vm907, %v530, -1e+30
    %v972 = vsel %vm908, %v534, -1e+30
    %v973 = vsel %vm909, %v536, -1e+30
    %v974 = vsel %vm910, %v540, -1e+30
    %v975 = vsel %vm911, %v542, -1e+30
    %v976 = vld [vmem:[#allocation2] sm:$0xff]
    %v977 = vld [vmem:[#allocation2 + $0x8] sm:$0xff]
    %v978 = vld [vmem:[#allocation2 + $0x10] sm:$0xff]
    %v979 = vld [vmem:[#allocation2 + $0x18] sm:$0xff]
    %v980 = vld [vmem:[#allocation2 + $0x20] sm:$0xff]
    %v981 = vld [vmem:[#allocation2 + $0x28] sm:$0xff]
    %v982 = vld [vmem:[#allocation2 + $0x30] sm:$0xff]
    %v983 = vld [vmem:[#allocation2 + $0x38] sm:$0xff]
    %v984 = vld [vmem:[#allocation2 + $0x40] sm:$0xff]
    %v985 = vld [vmem:[#allocation2 + $0x48] sm:$0xff]
    %v986 = vld [vmem:[#allocation2 + $0x50] sm:$0xff]
    %v987 = vld [vmem:[#allocation2 + $0x58] sm:$0xff]
    %v988 = vld [vmem:[#allocation2 + $0x60] sm:$0xff]
    %v989 = vld [vmem:[#allocation2 + $0x68] sm:$0xff]
    %v990 = vld [vmem:[#allocation2 + $0x70] sm:$0xff]
    %v991 = vld [vmem:[#allocation2 + $0x78] sm:$0xff]
    %v992 = vld [vmem:[#allocation2 + $0x80] sm:$0xff]
    %v993 = vld [vmem:[#allocation2 + $0x88] sm:$0xff]
    %v994 = vld [vmem:[#allocation2 + $0x90] sm:$0xff]
    %v995 = vld [vmem:[#allocation2 + $0x98] sm:$0xff]
    %v996 = vld [vmem:[#allocation2 + $0xa0] sm:$0xff]
    %v997 = vld [vmem:[#allocation2 + $0xa8] sm:$0xff]
    %v998 = vld [vmem:[#allocation2 + $0xb0] sm:$0xff]
    %v999 = vld [vmem:[#allocation2 + $0xb8] sm:$0xff]
    %v1000 = vld [vmem:[#allocation2 + $0xc0] sm:$0xff]
    %v1001 = vld [vmem:[#allocation2 + $0xc8] sm:$0xff]
    %v1002 = vld [vmem:[#allocation2 + $0xd0] sm:$0xff]
    %v1003 = vld [vmem:[#allocation2 + $0xd8] sm:$0xff]
    %v1004 = vld [vmem:[#allocation2 + $0xe0] sm:$0xff]
    %v1005 = vld [vmem:[#allocation2 + $0xe8] sm:$0xff]
    %v1006 = vld [vmem:[#allocation2 + $0xf0] sm:$0xff]
    %v1007 = vld [vmem:[#allocation2 + $0xf8] sm:$0xff]
    %v1008 = vmax.f32 %v912, %v913
    %1009 = vmax.xlane.f32.xlu0 %v1008
    %v1010 = vpop.xlane.xlu0 %1009
    %v1011 = vmax.f32 %v914, %v915
    %1012 = vmax.xlane.f32.xlu0 %v1011
    %v1013 = vpop.xlane.xlu0 %1012
    %v1014 = vmax.f32 %v916, %v917
    %1015 = vmax.xlane.f32.xlu0 %v1014
    %v1016 = vpop.xlane.xlu0 %1015
    %v1017 = vmax.f32 %v918, %v919
    %1018 = vmax.xlane.f32.xlu0 %v1017
    %v1019 = vpop.xlane.xlu0 %1018
    %v1020 = vmax.f32 %v920, %v921
    %1021 = vmax.xlane.f32.xlu0 %v1020
    %v1022 = vpop.xlane.xlu0 %1021
    %v1023 = vmax.f32 %v922, %v923
    %1024 = vmax.xlane.f32.xlu0 %v1023
    %v1025 = vpop.xlane.xlu0 %1024
    %v1026 = vmax.f32 %v924, %v925
    %1027 = vmax.xlane.f32.xlu0 %v1026
    %v1028 = vpop.xlane.xlu0 %1027
    %v1029 = vmax.f32 %v926, %v927
    %1030 = vmax.xlane.f32.xlu0 %v1029
    %v1031 = vpop.xlane.xlu0 %1030
    %v1032 = vmax.f32 %v928, %v929
    %1033 = vmax.xlane.f32.xlu0 %v1032
    %v1034 = vpop.xlane.xlu0 %1033
    %v1035 = vmax.f32 %v930, %v931
    %1036 = vmax.xlane.f32.xlu0 %v1035
    %v1037 = vpop.xlane.xlu0 %1036
    %v1038 = vmax.f32 %v932, %v933
    %1039 = vmax.xlane.f32.xlu0 %v1038
    %v1040 = vpop.xlane.xlu0 %1039
    %v1041 = vmax.f32 %v934, %v935
    %1042 = vmax.xlane.f32.xlu0 %v1041
    %v1043 = vpop.xlane.xlu0 %1042
    %v1044 = vmax.f32 %v936, %v937
    %1045 = vmax.xlane.f32.xlu0 %v1044
    %v1046 = vpop.xlane.xlu0 %1045
    %v1047 = vmax.f32 %v938, %v939
    %1048 = vmax.xlane.f32.xlu0 %v1047
    %v1049 = vpop.xlane.xlu0 %1048
    %v1050 = vmax.f32 %v940, %v941
    %1051 = vmax.xlane.f32.xlu0 %v1050
    %v1052 = vpop.xlane.xlu0 %1051
    %v1053 = vmax.f32 %v942, %v943
    %1054 = vmax.xlane.f32.xlu0 %v1053
    %v1055 = vpop.xlane.xlu0 %1054
    %v1056 = vmax.f32 %v944, %v945
    %1057 = vmax.xlane.f32.xlu0 %v1056
    %v1058 = vpop.xlane.xlu0 %1057
    %v1059 = vmax.f32 %v946, %v947
    %1060 = vmax.xlane.f32.xlu0 %v1059
    %v1061 = vpop.xlane.xlu0 %1060
    %v1062 = vmax.f32 %v948, %v949
    %1063 = vmax.xlane.f32.xlu0 %v1062
    %v1064 = vpop.xlane.xlu0 %1063
    %v1065 = vmax.f32 %v950, %v951
    %1066 = vmax.xlane.f32.xlu0 %v1065
    %v1067 = vpop.xlane.xlu0 %1066
    %v1068 = vmax.f32 %v952, %v953
    %1069 = vmax.xlane.f32.xlu0 %v1068
    %v1070 = vpop.xlane.xlu0 %1069
    %v1071 = vmax.f32 %v954, %v955
    %1072 = vmax.xlane.f32.xlu0 %v1071
    %v1073 = vpop.xlane.xlu0 %1072
    %v1074 = vmax.f32 %v956, %v957
    %1075 = vmax.xlane.f32.xlu0 %v1074
    %v1076 = vpop.xlane.xlu0 %1075
    %v1077 = vmax.f32 %v958, %v959
    %1078 = vmax.xlane.f32.xlu0 %v1077
    %v1079 = vpop.xlane.xlu0 %1078
    %v1080 = vmax.f32 %v960, %v961
    %1081 = vmax.xlane.f32.xlu0 %v1080
    %v1082 = vpop.xlane.xlu0 %1081
    %v1083 = vmax.f32 %v962, %v963
    %1084 = vmax.xlane.f32.xlu0 %v1083
    %v1085 = vpop.xlane.xlu0 %1084
    %v1086 = vmax.f32 %v964, %v965
    %1087 = vmax.xlane.f32.xlu0 %v1086
    %v1088 = vpop.xlane.xlu0 %1087
    %v1089 = vmax.f32 %v966, %v967
    %1090 = vmax.xlane.f32.xlu0 %v1089
    %v1091 = vpop.xlane.xlu0 %1090
    %v1092 = vmax.f32 %v968, %v969
    %1093 = vmax.xlane.f32.xlu0 %v1092
    %v1094 = vpop.xlane.xlu0 %1093
    %v1095 = vmax.f32 %v970, %v971
    %1096 = vmax.xlane.f32.xlu0 %v1095
    %v1097 = vpop.xlane.xlu0 %1096
    %v1098 = vmax.f32 %v972, %v973
    %1099 = vmax.xlane.f32.xlu0 %v1098
    %v1100 = vpop.xlane.xlu0 %1099
    %v1101 = vmax.f32 %v974, %v975
    %1102 = vmax.xlane.f32.xlu0 %v1101
    %v1103 = vpop.xlane.xlu0 %1102
    %v1104 = vmax.f32 %v976, %v1010
    %v1105 = vmax.f32 %v977, %v1013
    %v1106 = vmax.f32 %v978, %v1016
    %v1107 = vmax.f32 %v979, %v1019
    %v1108 = vmax.f32 %v980, %v1022
    %v1109 = vmax.f32 %v981, %v1025
    %v1110 = vmax.f32 %v982, %v1028
    %v1111 = vmax.f32 %v983, %v1031
    %v1112 = vmax.f32 %v984, %v1034
    %v1113 = vmax.f32 %v985, %v1037
    %v1114 = vmax.f32 %v986, %v1040
    %v1115 = vmax.f32 %v987, %v1043
    %v1116 = vmax.f32 %v988, %v1046
    %v1117 = vmax.f32 %v989, %v1049
    %v1118 = vmax.f32 %v990, %v1052
    %v1119 = vmax.f32 %v991, %v1055
    %v1120 = vmax.f32 %v992, %v1058
    %v1121 = vmax.f32 %v993, %v1061
    %v1122 = vmax.f32 %v994, %v1064
    %v1123 = vmax.f32 %v995, %v1067
    %v1124 = vmax.f32 %v996, %v1070
    %v1125 = vmax.f32 %v997, %v1073
    %v1126 = vmax.f32 %v998, %v1076
    %v1127 = vmax.f32 %v999, %v1079
    %v1128 = vmax.f32 %v1000, %v1082
    %v1129 = vmax.f32 %v1001, %v1085
    %v1130 = vmax.f32 %v1002, %v1088
    %v1131 = vmax.f32 %v1003, %v1091
    %v1132 = vmax.f32 %v1004, %v1094
    %v1133 = vmax.f32 %v1005, %v1097
    %v1134 = vmax.f32 %v1006, %v1100
    %v1135 = vmax.f32 %v1007, %v1103
    %v1136 = vsub.f32 %v976, %v1104
    %v1137 = vsub.f32 %v977, %v1105
    %v1138 = vsub.f32 %v978, %v1106
    %v1139 = vsub.f32 %v979, %v1107
    %v1140 = vsub.f32 %v980, %v1108
    %v1141 = vsub.f32 %v981, %v1109
    %v1142 = vsub.f32 %v982, %v1110
    %v1143 = vsub.f32 %v983, %v1111
    %v1144 = vsub.f32 %v984, %v1112
    %v1145 = vsub.f32 %v985, %v1113
    %v1146 = vsub.f32 %v986, %v1114
    %v1147 = vsub.f32 %v987, %v1115
    %v1148 = vsub.f32 %v988, %v1116
    %v1149 = vsub.f32 %v989, %v1117
    %v1150 = vsub.f32 %v990, %v1118
    %v1151 = vsub.f32 %v991, %v1119
    %v1152 = vsub.f32 %v992, %v1120
    %v1153 = vsub.f32 %v993, %v1121
    %v1154 = vsub.f32 %v994, %v1122
    %v1155 = vsub.f32 %v995, %v1123
    %v1156 = vsub.f32 %v996, %v1124
    %v1157 = vsub.f32 %v997, %v1125
    %v1158 = vsub.f32 %v998, %v1126
    %v1159 = vsub.f32 %v999, %v1127
    %v1160 = vsub.f32 %v1000, %v1128
    %v1161 = vsub.f32 %v1001, %v1129
    %v1162 = vsub.f32 %v1002, %v1130
    %v1163 = vsub.f32 %v1003, %v1131
    %v1164 = vsub.f32 %v1004, %v1132
    %v1165 = vsub.f32 %v1005, %v1133
    %v1166 = vsub.f32 %v1006, %v1134
    %v1167 = vsub.f32 %v1007, %v1135
    %v1168 = vmul.f32 %v1136, 1.442695
    %v1169 = vpow.pop %v1168
    %v1170 = vmul.f32 %v1137, 1.442695
    %v1171 = vpow.pop %v1170
    %v1172 = vmul.f32 %v1138, 1.442695
    %v1173 = vpow.pop %v1172
    %v1174 = vmul.f32 %v1139, 1.442695
    %v1175 = vpow.pop %v1174
    %v1176 = vmul.f32 %v1140, 1.442695
    %v1177 = vpow.pop %v1176
    %v1178 = vmul.f32 %v1141, 1.442695
    %v1179 = vpow.pop %v1178
    %v1180 = vmul.f32 %v1142, 1.442695
    %v1181 = vpow.pop %v1180
    %v1182 = vmul.f32 %v1143, 1.442695
    %v1183 = vpow.pop %v1182
    %v1184 = vmul.f32 %v1144, 1.442695
    %v1185 = vpow.pop %v1184
    %v1186 = vmul.f32 %v1145, 1.442695
    %v1187 = vpow.pop %v1186
    %v1188 = vmul.f32 %v1146, 1.442695
    %v1189 = vpow.pop %v1188
    %v1190 = vmul.f32 %v1147, 1.442695
    %v1191 = vpow.pop %v1190
    %v1192 = vmul.f32 %v1148, 1.442695
    %v1193 = vpow.pop %v1192
    %v1194 = vmul.f32 %v1149, 1.442695
    %v1195 = vpow.pop %v1194
    %v1196 = vmul.f32 %v1150, 1.442695
    %v1197 = vpow.pop %v1196
    %v1198 = vmul.f32 %v1151, 1.442695
    %v1199 = vpow.pop %v1198
    %v1200 = vmul.f32 %v1152, 1.442695
    %v1201 = vpow.pop %v1200
    %v1202 = vmul.f32 %v1153, 1.442695
    %v1203 = vpow.pop %v1202
    %v1204 = vmul.f32 %v1154, 1.442695
    %v1205 = vpow.pop %v1204
    %v1206 = vmul.f32 %v1155, 1.442695
    %v1207 = vpow.pop %v1206
    %v1208 = vmul.f32 %v1156, 1.442695
    %v1209 = vpow.pop %v1208
    %v1210 = vmul.f32 %v1157, 1.442695
    %v1211 = vpow.pop %v1210
    %v1212 = vmul.f32 %v1158, 1.442695
    %v1213 = vpow.pop %v1212
    %v1214 = vmul.f32 %v1159, 1.442695
    %v1215 = vpow.pop %v1214
    %v1216 = vmul.f32 %v1160, 1.442695
    %v1217 = vpow.pop %v1216
    %v1218 = vmul.f32 %v1161, 1.442695
    %v1219 = vpow.pop %v1218
    %v1220 = vmul.f32 %v1162, 1.442695
    %v1221 = vpow.pop %v1220
    %v1222 = vmul.f32 %v1163, 1.442695
    %v1223 = vpow.pop %v1222
    %v1224 = vmul.f32 %v1164, 1.442695
    %v1225 = vpow.pop %v1224
    %v1226 = vmul.f32 %v1165, 1.442695
    %v1227 = vpow.pop %v1226
    %v1228 = vmul.f32 %v1166, 1.442695
    %v1229 = vpow.pop %v1228
    %v1230 = vmul.f32 %v1167, 1.442695
    %v1231 = vpow.pop %v1230
    %1233 = vset.pattern.permute.xlu0 0
    %1234 = vperm.xlu0 %1233, %v1104
    %v1235 = vpop.permute.xlu0 %1234
    %1238 = vset.pattern.permute.xlu0 0
    %1239 = vperm.xlu0 %1238, %v1105
    %v1240 = vpop.permute.xlu0 %1239
    %1243 = vset.pattern.permute.xlu0 0
    %1244 = vperm.xlu0 %1243, %v1106
    %v1245 = vpop.permute.xlu0 %1244
    %1248 = vset.pattern.permute.xlu0 0
    %1249 = vperm.xlu0 %1248, %v1107
    %v1250 = vpop.permute.xlu0 %1249
    %1253 = vset.pattern.permute.xlu0 0
    %1254 = vperm.xlu0 %1253, %v1108
    %v1255 = vpop.permute.xlu0 %1254
    %1258 = vset.pattern.permute.xlu0 0
    %1259 = vperm.xlu0 %1258, %v1109
    %v1260 = vpop.permute.xlu0 %1259
    %1263 = vset.pattern.permute.xlu0 0
    %1264 = vperm.xlu0 %1263, %v1110
    %v1265 = vpop.permute.xlu0 %1264
    %1268 = vset.pattern.permute.xlu0 0
    %1269 = vperm.xlu0 %1268, %v1111
    %v1270 = vpop.permute.xlu0 %1269
    %1273 = vset.pattern.permute.xlu0 0
    %1274 = vperm.xlu0 %1273, %v1112
    %v1275 = vpop.permute.xlu0 %1274
    %1278 = vset.pattern.permute.xlu0 0
    %1279 = vperm.xlu0 %1278, %v1113
    %v1280 = vpop.permute.xlu0 %1279
    %1283 = vset.pattern.permute.xlu0 0
    %1284 = vperm.xlu0 %1283, %v1114
    %v1285 = vpop.permute.xlu0 %1284
    %1288 = vset.pattern.permute.xlu0 0
    %1289 = vperm.xlu0 %1288, %v1115
    %v1290 = vpop.permute.xlu0 %1289
    %1293 = vset.pattern.permute.xlu0 0
    %1294 = vperm.xlu0 %1293, %v1116
    %v1295 = vpop.permute.xlu0 %1294
    %1298 = vset.pattern.permute.xlu0 0
    %1299 = vperm.xlu0 %1298, %v1117
    %v1300 = vpop.permute.xlu0 %1299
    %1303 = vset.pattern.permute.xlu0 0
    %1304 = vperm.xlu0 %1303, %v1118
    %v1305 = vpop.permute.xlu0 %1304
    %1308 = vset.pattern.permute.xlu0 0
    %1309 = vperm.xlu0 %1308, %v1119
    %v1310 = vpop.permute.xlu0 %1309
    %1313 = vset.pattern.permute.xlu0 0
    %1314 = vperm.xlu0 %1313, %v1120
    %v1315 = vpop.permute.xlu0 %1314
    %1318 = vset.pattern.permute.xlu0 0
    %1319 = vperm.xlu0 %1318, %v1121
    %v1320 = vpop.permute.xlu0 %1319
    %1323 = vset.pattern.permute.xlu0 0
    %1324 = vperm.xlu0 %1323, %v1122
    %v1325 = vpop.permute.xlu0 %1324
    %1328 = vset.pattern.permute.xlu0 0
    %1329 = vperm.xlu0 %1328, %v1123
    %v1330 = vpop.permute.xlu0 %1329
    %1333 = vset.pattern.permute.xlu0 0
    %1334 = vperm.xlu0 %1333, %v1124
    %v1335 = vpop.permute.xlu0 %1334
    %1338 = vset.pattern.permute.xlu0 0
    %1339 = vperm.xlu0 %1338, %v1125
    %v1340 = vpop.permute.xlu0 %1339
    %1343 = vset.pattern.permute.xlu0 0
    %1344 = vperm.xlu0 %1343, %v1126
    %v1345 = vpop.permute.xlu0 %1344
    %1348 = vset.pattern.permute.xlu0 0
    %1349 = vperm.xlu0 %1348, %v1127
    %v1350 = vpop.permute.xlu0 %1349
    %1353 = vset.pattern.permute.xlu0 0
    %1354 = vperm.xlu0 %1353, %v1128
    %v1355 = vpop.permute.xlu0 %1354
    %1358 = vset.pattern.permute.xlu0 0
    %1359 = vperm.xlu0 %1358, %v1129
    %v1360 = vpop.permute.xlu0 %1359
    %1363 = vset.pattern.permute.xlu0 0
    %1364 = vperm.xlu0 %1363, %v1130
    %v1365 = vpop.permute.xlu0 %1364
    %1368 = vset.pattern.permute.xlu0 0
    %1369 = vperm.xlu0 %1368, %v1131
    %v1370 = vpop.permute.xlu0 %1369
    %1373 = vset.pattern.permute.xlu0 0
    %1374 = vperm.xlu0 %1373, %v1132
    %v1375 = vpop.permute.xlu0 %1374
    %1378 = vset.pattern.permute.xlu0 0
    %1379 = vperm.xlu0 %1378, %v1133
    %v1380 = vpop.permute.xlu0 %1379
    %1383 = vset.pattern.permute.xlu0 0
    %1384 = vperm.xlu0 %1383, %v1134
    %v1385 = vpop.permute.xlu0 %1384
    %1388 = vset.pattern.permute.xlu0 0
    %1389 = vperm.xlu0 %1388, %v1135
    %v1390 = vpop.permute.xlu0 %1389
    %v1392 = vsub.f32 %v912, %v1235
    %v1393 = vsub.f32 %v913, %v1235
    %v1394 = vsub.f32 %v914, %v1240
    %v1395 = vsub.f32 %v915, %v1240
    %v1396 = vsub.f32 %v916, %v1245
    %v1397 = vsub.f32 %v917, %v1245
    %v1398 = vsub.f32 %v918, %v1250
    %v1399 = vsub.f32 %v919, %v1250
    %v1400 = vsub.f32 %v920, %v1255
    %v1401 = vsub.f32 %v921, %v1255
    %v1402 = vsub.f32 %v922, %v1260
    %v1403 = vsub.f32 %v923, %v1260
    %v1404 = vsub.f32 %v924, %v1265
    %v1405 = vsub.f32 %v925, %v1265
    %v1406 = vsub.f32 %v926, %v1270
    %v1407 = vsub.f32 %v927, %v1270
    %v1408 = vsub.f32 %v928, %v1275
    %v1409 = vsub.f32 %v929, %v1275
    %v1410 = vsub.f32 %v930, %v1280
    %v1411 = vsub.f32 %v931, %v1280
    %v1412 = vsub.f32 %v932, %v1285
    %v1413 = vsub.f32 %v933, %v1285
    %v1414 = vsub.f32 %v934, %v1290
    %v1415 = vsub.f32 %v935, %v1290
    %v1416 = vsub.f32 %v936, %v1295
    %v1417 = vsub.f32 %v937, %v1295
    %v1418 = vsub.f32 %v938, %v1300
    %v1419 = vsub.f32 %v939, %v1300
    %v1420 = vsub.f32 %v940, %v1305
    %v1421 = vsub.f32 %v941, %v1305
    %v1422 = vsub.f32 %v942, %v1310
    %v1423 = vsub.f32 %v943, %v1310
    %v1424 = vsub.f32 %v944, %v1315
    %v1425 = vsub.f32 %v945, %v1315
    %v1426 = vsub.f32 %v946, %v1320
    %v1427 = vsub.f32 %v947, %v1320
    %v1428 = vsub.f32 %v948, %v1325
    %v1429 = vsub.f32 %v949, %v1325
    %v1430 = vsub.f32 %v950, %v1330
    %v1431 = vsub.f32 %v951, %v1330
    %v1432 = vsub.f32 %v952, %v1335
    %v1433 = vsub.f32 %v953, %v1335
    %v1434 = vsub.f32 %v954, %v1340
    %v1435 = vsub.f32 %v955, %v1340
    %v1436 = vsub.f32 %v956, %v1345
    %v1437 = vsub.f32 %v957, %v1345
    %v1438 = vsub.f32 %v958, %v1350
    %v1439 = vsub.f32 %v959, %v1350
    %v1440 = vsub.f32 %v960, %v1355
    %v1441 = vsub.f32 %v961, %v1355
    %v1442 = vsub.f32 %v962, %v1360
    %v1443 = vsub.f32 %v963, %v1360
    %v1444 = vsub.f32 %v964, %v1365
    %v1445 = vsub.f32 %v965, %v1365
    %v1446 = vsub.f32 %v966, %v1370
    %v1447 = vsub.f32 %v967, %v1370
    %v1448 = vsub.f32 %v968, %v1375
    %v1449 = vsub.f32 %v969, %v1375
    %v1450 = vsub.f32 %v970, %v1380
    %v1451 = vsub.f32 %v971, %v1380
    %v1452 = vsub.f32 %v972, %v1385
    %v1453 = vsub.f32 %v973, %v1385
    %v1454 = vsub.f32 %v974, %v1390
    %v1455 = vsub.f32 %v975, %v1390
    %v1456 = vmul.f32 %v1392, 1.442695
    %v1457 = vpow.pop %v1456
    %v1458 = vmul.f32 %v1393, 1.442695
    %v1459 = vpow.pop %v1458
    %v1460 = vmul.f32 %v1394, 1.442695
    %v1461 = vpow.pop %v1460
    %v1462 = vmul.f32 %v1395, 1.442695
    %v1463 = vpow.pop %v1462
    %v1464 = vmul.f32 %v1396, 1.442695
    %v1465 = vpow.pop %v1464
    %v1466 = vmul.f32 %v1397, 1.442695
    %v1467 = vpow.pop %v1466
    %v1468 = vmul.f32 %v1398, 1.442695
    %v1469 = vpow.pop %v1468
    %v1470 = vmul.f32 %v1399, 1.442695
    %v1471 = vpow.pop %v1470
    %v1472 = vmul.f32 %v1400, 1.442695
    %v1473 = vpow.pop %v1472
    %v1474 = vmul.f32 %v1401, 1.442695
    %v1475 = vpow.pop %v1474
    %v1476 = vmul.f32 %v1402, 1.442695
    %v1477 = vpow.pop %v1476
    %v1478 = vmul.f32 %v1403, 1.442695
    %v1479 = vpow.pop %v1478
    %v1480 = vmul.f32 %v1404, 1.442695
    %v1481 = vpow.pop %v1480
    %v1482 = vmul.f32 %v1405, 1.442695
    %v1483 = vpow.pop %v1482
    %v1484 = vmul.f32 %v1406, 1.442695
    %v1485 = vpow.pop %v1484
    %v1486 = vmul.f32 %v1407, 1.442695
    %v1487 = vpow.pop %v1486
    %v1488 = vmul.f32 %v1408, 1.442695
    %v1489 = vpow.pop %v1488
    %v1490 = vmul.f32 %v1409, 1.442695
    %v1491 = vpow.pop %v1490
    %v1492 = vmul.f32 %v1410, 1.442695
    %v1493 = vpow.pop %v1492
    %v1494 = vmul.f32 %v1411, 1.442695
    %v1495 = vpow.pop %v1494
    %v1496 = vmul.f32 %v1412, 1.442695
    %v1497 = vpow.pop %v1496
    %v1498 = vmul.f32 %v1413, 1.442695
    %v1499 = vpow.pop %v1498
    %v1500 = vmul.f32 %v1414, 1.442695
    %v1501 = vpow.pop %v1500
    %v1502 = vmul.f32 %v1415, 1.442695
    %v1503 = vpow.pop %v1502
    %v1504 = vmul.f32 %v1416, 1.442695
    %v1505 = vpow.pop %v1504
    %v1506 = vmul.f32 %v1417, 1.442695
    %v1507 = vpow.pop %v1506
    %v1508 = vmul.f32 %v1418, 1.442695
    %v1509 = vpow.pop %v1508
    %v1510 = vmul.f32 %v1419, 1.442695
    %v1511 = vpow.pop %v1510
    %v1512 = vmul.f32 %v1420, 1.442695
    %v1513 = vpow.pop %v1512
    %v1514 = vmul.f32 %v1421, 1.442695
    %v1515 = vpow.pop %v1514
    %v1516 = vmul.f32 %v1422, 1.442695
    %v1517 = vpow.pop %v1516
    %v1518 = vmul.f32 %v1423, 1.442695
    %v1519 = vpow.pop %v1518
    %v1520 = vmul.f32 %v1424, 1.442695
    %v1521 = vpow.pop %v1520
    %v1522 = vmul.f32 %v1425, 1.442695
    %v1523 = vpow.pop %v1522
    %v1524 = vmul.f32 %v1426, 1.442695
    %v1525 = vpow.pop %v1524
    %v1526 = vmul.f32 %v1427, 1.442695
    %v1527 = vpow.pop %v1526
    %v1528 = vmul.f32 %v1428, 1.442695
    %v1529 = vpow.pop %v1528
    %v1530 = vmul.f32 %v1429, 1.442695
    %v1531 = vpow.pop %v1530
    %v1532 = vmul.f32 %v1430, 1.442695
    %v1533 = vpow.pop %v1532
    %v1534 = vmul.f32 %v1431, 1.442695
    %v1535 = vpow.pop %v1534
    %v1536 = vmul.f32 %v1432, 1.442695
    %v1537 = vpow.pop %v1536
    %v1538 = vmul.f32 %v1433, 1.442695
    %v1539 = vpow.pop %v1538
    %v1540 = vmul.f32 %v1434, 1.442695
    %v1541 = vpow.pop %v1540
    %v1542 = vmul.f32 %v1435, 1.442695
    %v1543 = vpow.pop %v1542
    %v1544 = vmul.f32 %v1436, 1.442695
    %v1545 = vpow.pop %v1544
    %v1546 = vmul.f32 %v1437, 1.442695
    %v1547 = vpow.pop %v1546
    %v1548 = vmul.f32 %v1438, 1.442695
    %v1549 = vpow.pop %v1548
    %v1550 = vmul.f32 %v1439, 1.442695
    %v1551 = vpow.pop %v1550
    %v1552 = vmul.f32 %v1440, 1.442695
    %v1553 = vpow.pop %v1552
    %v1554 = vmul.f32 %v1441, 1.442695
    %v1555 = vpow.pop %v1554
    %v1556 = vmul.f32 %v1442, 1.442695
    %v1557 = vpow.pop %v1556
    %v1558 = vmul.f32 %v1443, 1.442695
    %v1559 = vpow.pop %v1558
    %v1560 = vmul.f32 %v1444, 1.442695
    %v1561 = vpow.pop %v1560
    %v1562 = vmul.f32 %v1445, 1.442695
    %v1563 = vpow.pop %v1562
    %v1564 = vmul.f32 %v1446, 1.442695
    %v1565 = vpow.pop %v1564
    %v1566 = vmul.f32 %v1447, 1.442695
    %v1567 = vpow.pop %v1566
    %v1568 = vmul.f32 %v1448, 1.442695
    %v1569 = vpow.pop %v1568
    %v1570 = vmul.f32 %v1449, 1.442695
    %v1571 = vpow.pop %v1570
    %v1572 = vmul.f32 %v1450, 1.442695
    %v1573 = vpow.pop %v1572
    %v1574 = vmul.f32 %v1451, 1.442695
    %v1575 = vpow.pop %v1574
    %v1576 = vmul.f32 %v1452, 1.442695
    %v1577 = vpow.pop %v1576
    %v1578 = vmul.f32 %v1453, 1.442695
    %v1579 = vpow.pop %v1578
    %v1580 = vmul.f32 %v1454, 1.442695
    %v1581 = vpow.pop %v1580
    %v1582 = vmul.f32 %v1455, 1.442695
    %v1583 = vpow.pop %v1582
    %v1584 = vsel %vm848, %v1457, 0.0
    %v1585 = vsel %vm849, %v1459, 0.0
    %v1586 = vsel %vm850, %v1461, 0.0
    %v1587 = vsel %vm851, %v1463, 0.0
    %v1588 = vsel %vm852, %v1465, 0.0
    %v1589 = vsel %vm853, %v1467, 0.0
    %v1590 = vsel %vm854, %v1469, 0.0
    %v1591 = vsel %vm855, %v1471, 0.0
    %v1592 = vsel %vm856, %v1473, 0.0
    %v1593 = vsel %vm857, %v1475, 0.0
    %v1594 = vsel %vm858, %v1477, 0.0
    %v1595 = vsel %vm859, %v1479, 0.0
    %v1596 = vsel %vm860, %v1481, 0.0
    %v1597 = vsel %vm861, %v1483, 0.0
    %v1598 = vsel %vm862, %v1485, 0.0
    %v1599 = vsel %vm863, %v1487, 0.0
    %v1600 = vsel %vm864, %v1489, 0.0
    %v1601 = vsel %vm865, %v1491, 0.0
    %v1602 = vsel %vm866, %v1493, 0.0
    %v1603 = vsel %vm867, %v1495, 0.0
    %v1604 = vsel %vm868, %v1497, 0.0
    %v1605 = vsel %vm869, %v1499, 0.0
    %v1606 = vsel %vm870, %v1501, 0.0
    %v1607 = vsel %vm871, %v1503, 0.0
    %v1608 = vsel %vm872, %v1505, 0.0
    %v1609 = vsel %vm873, %v1507, 0.0
    %v1610 = vsel %vm874, %v1509, 0.0
    %v1611 = vsel %vm875, %v1511, 0.0
    %v1612 = vsel %vm876, %v1513, 0.0
    %v1613 = vsel %vm877, %v1515, 0.0
    %v1614 = vsel %vm878, %v1517, 0.0
    %v1615 = vsel %vm879, %v1519, 0.0
    %v1616 = vsel %vm880, %v1521, 0.0
    %v1617 = vsel %vm881, %v1523, 0.0
    %v1618 = vsel %vm882, %v1525, 0.0
    %v1619 = vsel %vm883, %v1527, 0.0
    %v1620 = vsel %vm884, %v1529, 0.0
    %v1621 = vsel %vm885, %v1531, 0.0
    %v1622 = vsel %vm886, %v1533, 0.0
    %v1623 = vsel %vm887, %v1535, 0.0
    %v1624 = vsel %vm888, %v1537, 0.0
    %v1625 = vsel %vm889, %v1539, 0.0
    %v1626 = vsel %vm890, %v1541, 0.0
    %v1627 = vsel %vm891, %v1543, 0.0
    %v1628 = vsel %vm892, %v1545, 0.0
    %v1629 = vsel %vm893, %v1547, 0.0
    %v1630 = vsel %vm894, %v1549, 0.0
    %v1631 = vsel %vm895, %v1551, 0.0
    %v1632 = vsel %vm896, %v1553, 0.0
    %v1633 = vsel %vm897, %v1555, 0.0
    %v1634 = vsel %vm898, %v1557, 0.0
    %v1635 = vsel %vm899, %v1559, 0.0
    %v1636 = vsel %vm900, %v1561, 0.0
    %v1637 = vsel %vm901, %v1563, 0.0
    %v1638 = vsel %vm902, %v1565, 0.0
    %v1639 = vsel %vm903, %v1567, 0.0
    %v1640 = vsel %vm904, %v1569, 0.0
    %v1641 = vsel %vm905, %v1571, 0.0
    %v1642 = vsel %vm906, %v1573, 0.0
    %v1643 = vsel %vm907, %v1575, 0.0
    %v1644 = vsel %vm908, %v1577, 0.0
    %v1645 = vsel %vm909, %v1579, 0.0
    %v1646 = vsel %vm910, %v1581, 0.0
    %v1647 = vsel %vm911, %v1583, 0.0
    %v1648 = vld [vmem:[#allocation3] sm:$0xff]
    %v1649 = vld [vmem:[#allocation3 + $0x8] sm:$0xff]
    %v1650 = vld [vmem:[#allocation3 + $0x10] sm:$0xff]
    %v1651 = vld [vmem:[#allocation3 + $0x18] sm:$0xff]
    %v1652 = vld [vmem:[#allocation3 + $0x20] sm:$0xff]
    %v1653 = vld [vmem:[#allocation3 + $0x28] sm:$0xff]
    %v1654 = vld [vmem:[#allocation3 + $0x30] sm:$0xff]
    %v1655 = vld [vmem:[#allocation3 + $0x38] sm:$0xff]
    %v1656 = vld [vmem:[#allocation3 + $0x40] sm:$0xff]
    %v1657 = vld [vmem:[#allocation3 + $0x48] sm:$0xff]
    %v1658 = vld [vmem:[#allocation3 + $0x50] sm:$0xff]
    %v1659 = vld [vmem:[#allocation3 + $0x58] sm:$0xff]
    %v1660 = vld [vmem:[#allocation3 + $0x60] sm:$0xff]
    %v1661 = vld [vmem:[#allocation3 + $0x68] sm:$0xff]
    %v1662 = vld [vmem:[#allocation3 + $0x70] sm:$0xff]
    %v1663 = vld [vmem:[#allocation3 + $0x78] sm:$0xff]
    %v1664 = vld [vmem:[#allocation3 + $0x80] sm:$0xff]
    %v1665 = vld [vmem:[#allocation3 + $0x88] sm:$0xff]
    %v1666 = vld [vmem:[#allocation3 + $0x90] sm:$0xff]
    %v1667 = vld [vmem:[#allocation3 + $0x98] sm:$0xff]
    %v1668 = vld [vmem:[#allocation3 + $0xa0] sm:$0xff]
    %v1669 = vld [vmem:[#allocation3 + $0xa8] sm:$0xff]
    %v1670 = vld [vmem:[#allocation3 + $0xb0] sm:$0xff]
    %v1671 = vld [vmem:[#allocation3 + $0xb8] sm:$0xff]
    %v1672 = vld [vmem:[#allocation3 + $0xc0] sm:$0xff]
    %v1673 = vld [vmem:[#allocation3 + $0xc8] sm:$0xff]
    %v1674 = vld [vmem:[#allocation3 + $0xd0] sm:$0xff]
    %v1675 = vld [vmem:[#allocation3 + $0xd8] sm:$0xff]
    %v1676 = vld [vmem:[#allocation3 + $0xe0] sm:$0xff]
    %v1677 = vld [vmem:[#allocation3 + $0xe8] sm:$0xff]
    %v1678 = vld [vmem:[#allocation3 + $0xf0] sm:$0xff]
    %v1679 = vld [vmem:[#allocation3 + $0xf8] sm:$0xff]
    %v1680 = vmul.f32 %v1169, %v1648
    %v1681 = vmul.f32 %v1171, %v1649
    %v1682 = vmul.f32 %v1173, %v1650
    %v1683 = vmul.f32 %v1175, %v1651
    %v1684 = vmul.f32 %v1177, %v1652
    %v1685 = vmul.f32 %v1179, %v1653
    %v1686 = vmul.f32 %v1181, %v1654
    %v1687 = vmul.f32 %v1183, %v1655
    %v1688 = vmul.f32 %v1185, %v1656
    %v1689 = vmul.f32 %v1187, %v1657
    %v1690 = vmul.f32 %v1189, %v1658
    %v1691 = vmul.f32 %v1191, %v1659
    %v1692 = vmul.f32 %v1193, %v1660
    %v1693 = vmul.f32 %v1195, %v1661
    %v1694 = vmul.f32 %v1197, %v1662
    %v1695 = vmul.f32 %v1199, %v1663
    %v1696 = vmul.f32 %v1201, %v1664
    %v1697 = vmul.f32 %v1203, %v1665
    %v1698 = vmul.f32 %v1205, %v1666
    %v1699 = vmul.f32 %v1207, %v1667
    %v1700 = vmul.f32 %v1209, %v1668
    %v1701 = vmul.f32 %v1211, %v1669
    %v1702 = vmul.f32 %v1213, %v1670
    %v1703 = vmul.f32 %v1215, %v1671
    %v1704 = vmul.f32 %v1217, %v1672
    %v1705 = vmul.f32 %v1219, %v1673
    %v1706 = vmul.f32 %v1221, %v1674
    %v1707 = vmul.f32 %v1223, %v1675
    %v1708 = vmul.f32 %v1225, %v1676
    %v1709 = vmul.f32 %v1227, %v1677
    %v1710 = vmul.f32 %v1229, %v1678
    %v1711 = vmul.f32 %v1231, %v1679
    %v1712 = vadd.f32 %v1584, %v1585
    %1713 = vadd.xlane.f32.xlu0 %v1712
    %v1714 = vpop.xlane.xlu0 %1713
    %v1715 = vadd.f32 %v1586, %v1587
    %1716 = vadd.xlane.f32.xlu0 %v1715
    %v1717 = vpop.xlane.xlu0 %1716
    %v1718 = vadd.f32 %v1588, %v1589
    %1719 = vadd.xlane.f32.xlu0 %v1718
    %v1720 = vpop.xlane.xlu0 %1719
    %v1721 = vadd.f32 %v1590, %v1591
    %1722 = vadd.xlane.f32.xlu0 %v1721
    %v1723 = vpop.xlane.xlu0 %1722
    %v1724 = vadd.f32 %v1592, %v1593
    %1725 = vadd.xlane.f32.xlu0 %v1724
    %v1726 = vpop.xlane.xlu0 %1725
    %v1727 = vadd.f32 %v1594, %v1595
    %1728 = vadd.xlane.f32.xlu0 %v1727
    %v1729 = vpop.xlane.xlu0 %1728
    %v1730 = vadd.f32 %v1596, %v1597
    %1731 = vadd.xlane.f32.xlu0 %v1730
    %v1732 = vpop.xlane.xlu0 %1731
    %v1733 = vadd.f32 %v1598, %v1599
    %1734 = vadd.xlane.f32.xlu0 %v1733
    %v1735 = vpop.xlane.xlu0 %1734
    %v1736 = vadd.f32 %v1600, %v1601
    %1737 = vadd.xlane.f32.xlu0 %v1736
    %v1738 = vpop.xlane.xlu0 %1737
    %v1739 = vadd.f32 %v1602, %v1603
    %1740 = vadd.xlane.f32.xlu0 %v1739
    %v1741 = vpop.xlane.xlu0 %1740
    %v1742 = vadd.f32 %v1604, %v1605
    %1743 = vadd.xlane.f32.xlu0 %v1742
    %v1744 = vpop.xlane.xlu0 %1743
    %v1745 = vadd.f32 %v1606, %v1607
    %1746 = vadd.xlane.f32.xlu0 %v1745
    %v1747 = vpop.xlane.xlu0 %1746
    %v1748 = vadd.f32 %v1608, %v1609
    %1749 = vadd.xlane.f32.xlu0 %v1748
    %v1750 = vpop.xlane.xlu0 %1749
    %v1751 = vadd.f32 %v1610, %v1611
    %1752 = vadd.xlane.f32.xlu0 %v1751
    %v1753 = vpop.xlane.xlu0 %1752
    %v1754 = vadd.f32 %v1612, %v1613
    %1755 = vadd.xlane.f32.xlu0 %v1754
    %v1756 = vpop.xlane.xlu0 %1755
    %v1757 = vadd.f32 %v1614, %v1615
    %1758 = vadd.xlane.f32.xlu0 %v1757
    %v1759 = vpop.xlane.xlu0 %1758
    %v1760 = vadd.f32 %v1616, %v1617
    %1761 = vadd.xlane.f32.xlu0 %v1760
    %v1762 = vpop.xlane.xlu0 %1761
    %v1763 = vadd.f32 %v1618, %v1619
    %1764 = vadd.xlane.f32.xlu0 %v1763
    %v1765 = vpop.xlane.xlu0 %1764
    %v1766 = vadd.f32 %v1620, %v1621
    %1767 = vadd.xlane.f32.xlu0 %v1766
    %v1768 = vpop.xlane.xlu0 %1767
    %v1769 = vadd.f32 %v1622, %v1623
    %1770 = vadd.xlane.f32.xlu0 %v1769
    %v1771 = vpop.xlane.xlu0 %1770
    %v1772 = vadd.f32 %v1624, %v1625
    %1773 = vadd.xlane.f32.xlu0 %v1772
    %v1774 = vpop.xlane.xlu0 %1773
    %v1775 = vadd.f32 %v1626, %v1627
    %1776 = vadd.xlane.f32.xlu0 %v1775
    %v1777 = vpop.xlane.xlu0 %1776
    %v1778 = vadd.f32 %v1628, %v1629
    %1779 = vadd.xlane.f32.xlu0 %v1778
    %v1780 = vpop.xlane.xlu0 %1779
    %v1781 = vadd.f32 %v1630, %v1631
    %1782 = vadd.xlane.f32.xlu0 %v1781
    %v1783 = vpop.xlane.xlu0 %1782
    %v1784 = vadd.f32 %v1632, %v1633
    %1785 = vadd.xlane.f32.xlu0 %v1784
    %v1786 = vpop.xlane.xlu0 %1785
    %v1787 = vadd.f32 %v1634, %v1635
    %1788 = vadd.xlane.f32.xlu0 %v1787
    %v1789 = vpop.xlane.xlu0 %1788
    %v1790 = vadd.f32 %v1636, %v1637
    %1791 = vadd.xlane.f32.xlu0 %v1790
    %v1792 = vpop.xlane.xlu0 %1791
    %v1793 = vadd.f32 %v1638, %v1639
    %1794 = vadd.xlane.f32.xlu0 %v1793
    %v1795 = vpop.xlane.xlu0 %1794
    %v1796 = vadd.f32 %v1640, %v1641
    %1797 = vadd.xlane.f32.xlu0 %v1796
    %v1798 = vpop.xlane.xlu0 %1797
    %v1799 = vadd.f32 %v1642, %v1643
    %1800 = vadd.xlane.f32.xlu0 %v1799
    %v1801 = vpop.xlane.xlu0 %1800
    %v1802 = vadd.f32 %v1644, %v1645
    %1803 = vadd.xlane.f32.xlu0 %v1802
    %v1804 = vpop.xlane.xlu0 %1803
    %v1805 = vadd.f32 %v1646, %v1647
    %1806 = vadd.xlane.f32.xlu0 %v1805
    %v1807 = vpop.xlane.xlu0 %1806
    %v1808 = vadd.f32 %v1680, %v1714
    %v1809 = vadd.f32 %v1681, %v1717
    %v1810 = vadd.f32 %v1682, %v1720
    %v1811 = vadd.f32 %v1683, %v1723
    %v1812 = vadd.f32 %v1684, %v1726
    %v1813 = vadd.f32 %v1685, %v1729
    %v1814 = vadd.f32 %v1686, %v1732
    %v1815 = vadd.f32 %v1687, %v1735
    %v1816 = vadd.f32 %v1688, %v1738
    %v1817 = vadd.f32 %v1689, %v1741
    %v1818 = vadd.f32 %v1690, %v1744
    %v1819 = vadd.f32 %v1691, %v1747
    %v1820 = vadd.f32 %v1692, %v1750
    %v1821 = vadd.f32 %v1693, %v1753
    %v1822 = vadd.f32 %v1694, %v1756
    %v1823 = vadd.f32 %v1695, %v1759
    %v1824 = vadd.f32 %v1696, %v1762
    %v1825 = vadd.f32 %v1697, %v1765
    %v1826 = vadd.f32 %v1698, %v1768
    %v1827 = vadd.f32 %v1699, %v1771
    %v1828 = vadd.f32 %v1700, %v1774
    %v1829 = vadd.f32 %v1701, %v1777
    %v1830 = vadd.f32 %v1702, %v1780
    %v1831 = vadd.f32 %v1703, %v1783
    %v1832 = vadd.f32 %v1704, %v1786
    %v1833 = vadd.f32 %v1705, %v1789
    %v1834 = vadd.f32 %v1706, %v1792
    %v1835 = vadd.f32 %v1707, %v1795
    %v1836 = vadd.f32 %v1708, %v1798
    %v1837 = vadd.f32 %v1709, %v1801
    %v1838 = vadd.f32 %v1710, %v1804
    %v1839 = vadd.f32 %v1711, %v1807
    %vm1840 = vcmask 7168
    %1841 = vst.msk [vmem:[#allocation3] sm:$0xff] %vm1840, %v1808
    %1842 = vst.msk [vmem:[#allocation3 + $0x8] sm:$0xff] %vm1840, %v1809
    %1843 = vst.msk [vmem:[#allocation3 + $0x10] sm:$0xff] %vm1840, %v1810
    %1844 = vst.msk [vmem:[#allocation3 + $0x18] sm:$0xff] %vm1840, %v1811
    %1845 = vst.msk [vmem:[#allocation3 + $0x20] sm:$0xff] %vm1840, %v1812
    %1846 = vst.msk [vmem:[#allocation3 + $0x28] sm:$0xff] %vm1840, %v1813
    %1847 = vst.msk [vmem:[#allocation3 + $0x30] sm:$0xff] %vm1840, %v1814
    %1848 = vst.msk [vmem:[#allocation3 + $0x38] sm:$0xff] %vm1840, %v1815
    %1849 = vst.msk [vmem:[#allocation3 + $0x40] sm:$0xff] %vm1840, %v1816
    %1850 = vst.msk [vmem:[#allocation3 + $0x48] sm:$0xff] %vm1840, %v1817
    %1851 = vst.msk [vmem:[#allocation3 + $0x50] sm:$0xff] %vm1840, %v1818
    %1852 = vst.msk [vmem:[#allocation3 + $0x58] sm:$0xff] %vm1840, %v1819
    %1853 = vst.msk [vmem:[#allocation3 + $0x60] sm:$0xff] %vm1840, %v1820
    %1854 = vst.msk [vmem:[#allocation3 + $0x68] sm:$0xff] %vm1840, %v1821
    %1855 = vst.msk [vmem:[#allocation3 + $0x70] sm:$0xff] %vm1840, %v1822
    %1856 = vst.msk [vmem:[#allocation3 + $0x78] sm:$0xff] %vm1840, %v1823
    %1857 = vst.msk [vmem:[#allocation3 + $0x80] sm:$0xff] %vm1840, %v1824
    %1858 = vst.msk [vmem:[#allocation3 + $0x88] sm:$0xff] %vm1840, %v1825
    %1859 = vst.msk [vmem:[#allocation3 + $0x90] sm:$0xff] %vm1840, %v1826
    %1860 = vst.msk [vmem:[#allocation3 + $0x98] sm:$0xff] %vm1840, %v1827
    %1861 = vst.msk [vmem:[#allocation3 + $0xa0] sm:$0xff] %vm1840, %v1828
    %1862 = vst.msk [vmem:[#allocation3 + $0xa8] sm:$0xff] %vm1840, %v1829
    %1863 = vst.msk [vmem:[#allocation3 + $0xb0] sm:$0xff] %vm1840, %v1830
    %1864 = vst.msk [vmem:[#allocation3 + $0xb8] sm:$0xff] %vm1840, %v1831
    %1865 = vst.msk [vmem:[#allocation3 + $0xc0] sm:$0xff] %vm1840, %v1832
    %1866 = vst.msk [vmem:[#allocation3 + $0xc8] sm:$0xff] %vm1840, %v1833
    %1867 = vst.msk [vmem:[#allocation3 + $0xd0] sm:$0xff] %vm1840, %v1834
    %1868 = vst.msk [vmem:[#allocation3 + $0xd8] sm:$0xff] %vm1840, %v1835
    %1869 = vst.msk [vmem:[#allocation3 + $0xe0] sm:$0xff] %vm1840, %v1836
    %1870 = vst.msk [vmem:[#allocation3 + $0xe8] sm:$0xff] %vm1840, %v1837
    %1871 = vst.msk [vmem:[#allocation3 + $0xf0] sm:$0xff] %vm1840, %v1838
    %1872 = vst.msk [vmem:[#allocation3 + $0xf8] sm:$0xff] %vm1840, %v1839
    %v1873 = vld [vmem:[#allocation4] sm:$0xff]
    %v1874 = vld [vmem:[#allocation4 + $0x8] sm:$0xff]
    %v1875 = vld [vmem:[#allocation4 + $0x10] sm:$0xff]
    %v1876 = vld [vmem:[#allocation4 + $0x18] sm:$0xff]
    %v1877 = vld [vmem:[#allocation4 + $0x20] sm:$0xff]
    %v1878 = vld [vmem:[#allocation4 + $0x28] sm:$0xff]
    %v1879 = vld [vmem:[#allocation4 + $0x30] sm:$0xff]
    %v1880 = vld [vmem:[#allocation4 + $0x38] sm:$0xff]
    %v1881 = vld [vmem:[#allocation4 + $0x40] sm:$0xff]
    %v1882 = vld [vmem:[#allocation4 + $0x48] sm:$0xff]
    %v1883 = vld [vmem:[#allocation4 + $0x50] sm:$0xff]
    %v1884 = vld [vmem:[#allocation4 + $0x58] sm:$0xff]
    %v1885 = vld [vmem:[#allocation4 + $0x60] sm:$0xff]
    %v1886 = vld [vmem:[#allocation4 + $0x68] sm:$0xff]
    %v1887 = vld [vmem:[#allocation4 + $0x70] sm:$0xff]
    %v1888 = vld [vmem:[#allocation4 + $0x78] sm:$0xff]
    %v1889 = vld [vmem:[#allocation4 + $0x80] sm:$0xff]
    %v1890 = vld [vmem:[#allocation4 + $0x88] sm:$0xff]
    %v1891 = vld [vmem:[#allocation4 + $0x90] sm:$0xff]
    %v1892 = vld [vmem:[#allocation4 + $0x98] sm:$0xff]
    %v1893 = vld [vmem:[#allocation4 + $0xa0] sm:$0xff]
    %v1894 = vld [vmem:[#allocation4 + $0xa8] sm:$0xff]
    %v1895 = vld [vmem:[#allocation4 + $0xb0] sm:$0xff]
    %v1896 = vld [vmem:[#allocation4 + $0xb8] sm:$0xff]
    %v1897 = vld [vmem:[#allocation4 + $0xc0] sm:$0xff]
    %v1898 = vld [vmem:[#allocation4 + $0xc8] sm:$0xff]
    %v1899 = vld [vmem:[#allocation4 + $0xd0] sm:$0xff]
    %v1900 = vld [vmem:[#allocation4 + $0xd8] sm:$0xff]
    %v1901 = vld [vmem:[#allocation4 + $0xe0] sm:$0xff]
    %v1902 = vld [vmem:[#allocation4 + $0xe8] sm:$0xff]
    %v1903 = vld [vmem:[#allocation4 + $0xf0] sm:$0xff]
    %v1904 = vld [vmem:[#allocation4 + $0xf8] sm:$0xff]
    %1906 = vset.pattern.permute.xlu0 0
    %1907 = vperm.xlu0 %1906, %v1169
    %v1908 = vpop.permute.xlu0 %1907
    %1911 = vset.pattern.permute.xlu0 0
    %1912 = vperm.xlu0 %1911, %v1171
    %v1913 = vpop.permute.xlu0 %1912
    %1916 = vset.pattern.permute.xlu0 0
    %1917 = vperm.xlu0 %1916, %v1173
    %v1918 = vpop.permute.xlu0 %1917
    %1921 = vset.pattern.permute.xlu0 0
    %1922 = vperm.xlu0 %1921, %v1175
    %v1923 = vpop.permute.xlu0 %1922
    %1926 = vset.pattern.permute.xlu0 0
    %1927 = vperm.xlu0 %1926, %v1177
    %v1928 = vpop.permute.xlu0 %1927
    %1931 = vset.pattern.permute.xlu0 0
    %1932 = vperm.xlu0 %1931, %v1179
    %v1933 = vpop.permute.xlu0 %1932
    %1936 = vset.pattern.permute.xlu0 0
    %1937 = vperm.xlu0 %1936, %v1181
    %v1938 = vpop.permute.xlu0 %1937
    %1941 = vset.pattern.permute.xlu0 0
    %1942 = vperm.xlu0 %1941, %v1183
    %v1943 = vpop.permute.xlu0 %1942
    %1946 = vset.pattern.permute.xlu0 0
    %1947 = vperm.xlu0 %1946, %v1185
    %v1948 = vpop.permute.xlu0 %1947
    %1951 = vset.pattern.permute.xlu0 0
    %1952 = vperm.xlu0 %1951, %v1187
    %v1953 = vpop.permute.xlu0 %1952
    %1956 = vset.pattern.permute.xlu0 0
    %1957 = vperm.xlu0 %1956, %v1189
    %v1958 = vpop.permute.xlu0 %1957
    %1961 = vset.pattern.permute.xlu0 0
    %1962 = vperm.xlu0 %1961, %v1191
    %v1963 = vpop.permute.xlu0 %1962
    %1966 = vset.pattern.permute.xlu0 0
    %1967 = vperm.xlu0 %1966, %v1193
    %v1968 = vpop.permute.xlu0 %1967
    %1971 = vset.pattern.permute.xlu0 0
    %1972 = vperm.xlu0 %1971, %v1195
    %v1973 = vpop.permute.xlu0 %1972
    %1976 = vset.pattern.permute.xlu0 0
    %1977 = vperm.xlu0 %1976, %v1197
    %v1978 = vpop.permute.xlu0 %1977
    %1981 = vset.pattern.permute.xlu0 0
    %1982 = vperm.xlu0 %1981, %v1199
    %v1983 = vpop.permute.xlu0 %1982
    %1986 = vset.pattern.permute.xlu0 0
    %1987 = vperm.xlu0 %1986, %v1201
    %v1988 = vpop.permute.xlu0 %1987
    %1991 = vset.pattern.permute.xlu0 0
    %1992 = vperm.xlu0 %1991, %v1203
    %v1993 = vpop.permute.xlu0 %1992
    %1996 = vset.pattern.permute.xlu0 0
    %1997 = vperm.xlu0 %1996, %v1205
    %v1998 = vpop.permute.xlu0 %1997
    %2001 = vset.pattern.permute.xlu0 0
    %2002 = vperm.xlu0 %2001, %v1207
    %v2003 = vpop.permute.xlu0 %2002
    %2006 = vset.pattern.permute.xlu0 0
    %2007 = vperm.xlu0 %2006, %v1209
    %v2008 = vpop.permute.xlu0 %2007
    %2011 = vset.pattern.permute.xlu0 0
    %2012 = vperm.xlu0 %2011, %v1211
    %v2013 = vpop.permute.xlu0 %2012
    %2016 = vset.pattern.permute.xlu0 0
    %2017 = vperm.xlu0 %2016, %v1213
    %v2018 = vpop.permute.xlu0 %2017
    %2021 = vset.pattern.permute.xlu0 0
    %2022 = vperm.xlu0 %2021, %v1215
    %v2023 = vpop.permute.xlu0 %2022
    %2026 = vset.pattern.permute.xlu0 0
    %2027 = vperm.xlu0 %2026, %v1217
    %v2028 = vpop.permute.xlu0 %2027
    %2031 = vset.pattern.permute.xlu0 0
    %2032 = vperm.xlu0 %2031, %v1219
    %v2033 = vpop.permute.xlu0 %2032
    %2036 = vset.pattern.permute.xlu0 0
    %2037 = vperm.xlu0 %2036, %v1221
    %v2038 = vpop.permute.xlu0 %2037
    %2041 = vset.pattern.permute.xlu0 0
    %2042 = vperm.xlu0 %2041, %v1223
    %v2043 = vpop.permute.xlu0 %2042
    %2046 = vset.pattern.permute.xlu0 0
    %2047 = vperm.xlu0 %2046, %v1225
    %v2048 = vpop.permute.xlu0 %2047
    %2051 = vset.pattern.permute.xlu0 0
    %2052 = vperm.xlu0 %2051, %v1227
    %v2053 = vpop.permute.xlu0 %2052
    %2056 = vset.pattern.permute.xlu0 0
    %2057 = vperm.xlu0 %2056, %v1229
    %v2058 = vpop.permute.xlu0 %2057
    %2061 = vset.pattern.permute.xlu0 0
    %2062 = vperm.xlu0 %2061, %v1231
    %v2063 = vpop.permute.xlu0 %2062
    %v2065 = vmul.f32 %v1908, %v1873
    %v2066 = vmul.f32 %v1913, %v1874
    %v2067 = vmul.f32 %v1918, %v1875
    %v2068 = vmul.f32 %v1923, %v1876
    %v2069 = vmul.f32 %v1928, %v1877
    %v2070 = vmul.f32 %v1933, %v1878
    %v2071 = vmul.f32 %v1938, %v1879
    %v2072 = vmul.f32 %v1943, %v1880
    %v2073 = vmul.f32 %v1948, %v1881
    %v2074 = vmul.f32 %v1953, %v1882
    %v2075 = vmul.f32 %v1958, %v1883
    %v2076 = vmul.f32 %v1963, %v1884
    %v2077 = vmul.f32 %v1968, %v1885
    %v2078 = vmul.f32 %v1973, %v1886
    %v2079 = vmul.f32 %v1978, %v1887
    %v2080 = vmul.f32 %v1983, %v1888
    %v2081 = vmul.f32 %v1988, %v1889
    %v2082 = vmul.f32 %v1993, %v1890
    %v2083 = vmul.f32 %v1998, %v1891
    %v2084 = vmul.f32 %v2003, %v1892
    %v2085 = vmul.f32 %v2008, %v1893
    %v2086 = vmul.f32 %v2013, %v1894
    %v2087 = vmul.f32 %v2018, %v1895
    %v2088 = vmul.f32 %v2023, %v1896
    %v2089 = vmul.f32 %v2028, %v1897
    %v2090 = vmul.f32 %v2033, %v1898
    %v2091 = vmul.f32 %v2038, %v1899
    %v2092 = vmul.f32 %v2043, %v1900
    %v2093 = vmul.f32 %v2048, %v1901
    %v2094 = vmul.f32 %v2053, %v1902
    %v2095 = vmul.f32 %v2058, %v1903
    %v2096 = vmul.f32 %v2063, %v1904
    %v2097 = vld [vmem:[#allocation10] sm:$0xff]
    %v2098 = vld [vmem:[#allocation10 + $0x8] sm:$0xff]
    %v2099 = vld [vmem:[#allocation10 + $0x10] sm:$0xff]
    %v2100 = vld [vmem:[#allocation10 + $0x18] sm:$0xff]
    %v2101 = vld [vmem:[#allocation10 + $0x20] sm:$0xff]
    %v2102 = vld [vmem:[#allocation10 + $0x28] sm:$0xff]
    %v2103 = vld [vmem:[#allocation10 + $0x30] sm:$0xff]
    %v2104 = vld [vmem:[#allocation10 + $0x38] sm:$0xff]
    %v2105 = vld [vmem:[#allocation10 + $0x40] sm:$0xff]
    %v2106 = vld [vmem:[#allocation10 + $0x48] sm:$0xff]
    %v2107 = vld [vmem:[#allocation10 + $0x50] sm:$0xff]
    %v2108 = vld [vmem:[#allocation10 + $0x58] sm:$0xff]
    %v2109 = vld [vmem:[#allocation10 + $0x60] sm:$0xff]
    %v2110 = vld [vmem:[#allocation10 + $0x68] sm:$0xff]
    %v2111 = vld [vmem:[#allocation10 + $0x70] sm:$0xff]
    %v2112 = vld [vmem:[#allocation10 + $0x78] sm:$0xff]
    %v2113 = vld [vmem:[#allocation10 + $0x80] sm:$0xff]
    %v2114 = vld [vmem:[#allocation10 + $0x88] sm:$0xff]
    %v2115 = vld [vmem:[#allocation10 + $0x90] sm:$0xff]
    %v2116 = vld [vmem:[#allocation10 + $0x98] sm:$0xff]
    %v2117 = vld [vmem:[#allocation10 + $0xa0] sm:$0xff]
    %v2118 = vld [vmem:[#allocation10 + $0xa8] sm:$0xff]
    %v2119 = vld [vmem:[#allocation10 + $0xb0] sm:$0xff]
    %v2120 = vld [vmem:[#allocation10 + $0xb8] sm:$0xff]
    %v2121 = vld [vmem:[#allocation10 + $0xc0] sm:$0xff]
    %v2122 = vld [vmem:[#allocation10 + $0xc8] sm:$0xff]
    %v2123 = vld [vmem:[#allocation10 + $0xd0] sm:$0xff]
    %v2124 = vld [vmem:[#allocation10 + $0xd8] sm:$0xff]
    %v2125 = vld [vmem:[#allocation10 + $0xe0] sm:$0xff]
    %v2126 = vld [vmem:[#allocation10 + $0xe8] sm:$0xff]
    %v2127 = vld [vmem:[#allocation10 + $0xf0] sm:$0xff]
    %v2128 = vld [vmem:[#allocation10 + $0xf8] sm:$0xff]
    %2129 = vmatprep.subr.mxu0 0.0
    %2130 = vmatpush1.msra.mxu0 %v2097
    %2131 = vmatprep.subr.mxu0 0.0
    %2132 = vmatpush1.msra.mxu0 %v2098
    %2133 = vmatprep.subr.mxu0 0.0
    %2134 = vmatpush1.msra.mxu0 %v2099
    %2135 = vmatprep.subr.mxu0 0.0
    %2136 = vmatpush1.msra.mxu0 %v2100
    %2137 = vmatprep.subr.mxu0 0.0
    %2138 = vmatpush1.msra.mxu0 %v2101
    %2139 = vmatprep.subr.mxu0 0.0
    %2140 = vmatpush1.msra.mxu0 %v2102
    %2141 = vmatprep.subr.mxu0 0.0
    %2142 = vmatpush1.msra.mxu0 %v2103
    %2143 = vmatprep.subr.mxu0 0.0
    %2144 = vmatpush1.msra.mxu0 %v2104
    %2145 = vmatprep.subr.mxu0 0.0
    %2146 = vmatpush1.msra.mxu0 %v2105
    %2147 = vmatprep.subr.mxu0 0.0
    %2148 = vmatpush1.msra.mxu0 %v2106
    %2149 = vmatprep.subr.mxu0 0.0
    %2150 = vmatpush1.msra.mxu0 %v2107
    %2151 = vmatprep.subr.mxu0 0.0
    %2152 = vmatpush1.msra.mxu0 %v2108
    %2153 = vmatprep.subr.mxu0 0.0
    %2154 = vmatpush1.msra.mxu0 %v2109
    %2155 = vmatprep.subr.mxu0 0.0
    %2156 = vmatpush1.msra.mxu0 %v2110
    %2157 = vmatprep.subr.mxu0 0.0
    %2158 = vmatpush1.msra.mxu0 %v2111
    %2159 = vmatprep.subr.mxu0 0.0
    %2160 = vmatpush1.msra.mxu0 %v2112
    %2161 = vmatprep.subr.mxu0 0.0
    %2162 = vmatpush1.msra.mxu0 %v2113
    %2163 = vmatprep.subr.mxu0 0.0
    %2164 = vmatpush1.msra.mxu0 %v2114
    %2165 = vmatprep.subr.mxu0 0.0
    %2166 = vmatpush1.msra.mxu0 %v2115
    %2167 = vmatprep.subr.mxu0 0.0
    %2168 = vmatpush1.msra.mxu0 %v2116
    %2169 = vmatprep.subr.mxu0 0.0
    %2170 = vmatpush1.msra.mxu0 %v2117
    %2171 = vmatprep.subr.mxu0 0.0
    %2172 = vmatpush1.msra.mxu0 %v2118
    %2173 = vmatprep.subr.mxu0 0.0
    %2174 = vmatpush1.msra.mxu0 %v2119
    %2175 = vmatprep.subr.mxu0 0.0
    %2176 = vmatpush1.msra.mxu0 %v2120
    %2177 = vmatprep.subr.mxu0 0.0
    %2178 = vmatpush1.msra.mxu0 %v2121
    %2179 = vmatprep.subr.mxu0 0.0
    %2180 = vmatpush1.msra.mxu0 %v2122
    %2181 = vmatprep.subr.mxu0 0.0
    %2182 = vmatpush1.msra.mxu0 %v2123
    %2183 = vmatprep.subr.mxu0 0.0
    %2184 = vmatpush1.msra.mxu0 %v2124
    %2185 = vmatprep.subr.mxu0 0.0
    %2186 = vmatpush1.msra.mxu0 %v2125
    %2187 = vmatprep.subr.mxu0 0.0
    %2188 = vmatpush1.msra.mxu0 %v2126
    %2189 = vmatprep.subr.mxu0 0.0
    %2190 = vmatpush1.msra.mxu0 %v2127
    %2191 = vmatprep.subr.mxu0 0.0
    %2192 = vmatpush1.msra.mxu0 %v2128
    %2193 = vmatprep.mubr.f32.mxu0 %v1585
    %2194 = vmatmul.mubr.f32.gmra.mrb[0].mxu0 %v1584
    %v2195 = vpop.f32.mrb[0].mxu0
    %v2196 = vadd.f32 0.0, %v2195
    %v2197 = vpop.f32.mrb[0].mxu0
    %2198 = vmatprep.mubr.f32.mxu0 %v1587
    %2199 = vmatmul.mubr.f32.gmra.mrb[0].mxu0 %v1586
    %v2200 = vpop.f32.mrb[0].mxu0
    %v2201 = vadd.f32 0.0, %v2200
    %v2202 = vpop.f32.mrb[0].mxu0
    %2203 = vmatprep.mubr.f32.mxu0 %v1589
    %2204 = vmatmul.mubr.f32.gmra.mrb[0].mxu0 %v1588
    %v2205 = vpop.f32.mrb[0].mxu0
    %v2206 = vadd.f32 0.0, %v2205
    %v2207 = vpop.f32.mrb[0].mxu0
    %2208 = vmatprep.mubr.f32.mxu0 %v1591
    %2209 = vmatmul.mubr.f32.gmra.mrb[0].mxu0 %v1590
    %v2210 = vpop.f32.mrb[0].mxu0
    %v2211 = vadd.f32 0.0, %v2210
    %v2212 = vpop.f32.mrb[0].mxu0
    %2213 = vmatprep.mubr.f32.mxu0 %v1593
    %2214 = vmatmul.mubr.f32.gmra.mrb[0].mxu0 %v1592
    %v2215 = vpop.f32.mrb[0].mxu0
    %v2216 = vadd.f32 0.0, %v2215
    %v2217 = vpop.f32.mrb[0].mxu0
    %2218 = vmatprep.mubr.f32.mxu0 %v1595
    %2219 = vmatmul.mubr.f32.gmra.mrb[0].mxu0 %v1594
    %v2220 = vpop.f32.mrb[0].mxu0
    %v2221 = vadd.f32 0.0, %v2220
    %v2222 = vpop.f32.mrb[0].mxu0
    %2223 = vmatprep.mubr.f32.mxu0 %v1597
    %2224 = vmatmul.mubr.f32.gmra.mrb[0].mxu0 %v1596
    %v2225 = vpop.f32.mrb[0].mxu0
    %v2226 = vadd.f32 0.0, %v2225
    %v2227 = vpop.f32.mrb[0].mxu0
    %2228 = vmatprep.mubr.f32.mxu0 %v1599
    %2229 = vmatmul.mubr.f32.gmra.mrb[0].mxu0 %v1598
    %v2230 = vpop.f32.mrb[0].mxu0
    %v2231 = vadd.f32 0.0, %v2230
    %v2232 = vpop.f32.mrb[0].mxu0
    %2233 = vmatprep.mubr.f32.mxu0 %v1601
    %2234 = vmatmul.mubr.f32.gmra.mrb[0].mxu0 %v1600
    %v2235 = vpop.f32.mrb[0].mxu0
    %v2236 = vadd.f32 0.0, %v2235
    %v2237 = vpop.f32.mrb[0].mxu0
    %2238 = vmatprep.mubr.f32.mxu0 %v1603
    %2239 = vmatmul.mubr.f32.gmra.mrb[0].mxu0 %v1602
    %v2240 = vpop.f32.mrb[0].mxu0
    %v2241 = vadd.f32 0.0, %v2240
    %v2242 = vpop.f32.mrb[0].mxu0
    %2243 = vmatprep.mubr.f32.mxu0 %v1605
    %2244 = vmatmul.mubr.f32.gmra.mrb[0].mxu0 %v1604
    %v2245 = vpop.f32.mrb[0].mxu0
    %v2246 = vadd.f32 0.0, %v2245
    %v2247 = vpop.f32.mrb[0].mxu0
    %2248 = vmatprep.mubr.f32.mxu0 %v1607
    %2249 = vmatmul.mubr.f32.gmra.mrb[0].mxu0 %v1606
    %v2250 = vpop.f32.mrb[0].mxu0
    %v2251 = vadd.f32 0.0, %v2250
    %v2252 = vpop.f32.mrb[0].mxu0
    %2253 = vmatprep.mubr.f32.mxu0 %v1609
    %2254 = vmatmul.mubr.f32.gmra.mrb[0].mxu0 %v1608
    %v2255 = vpop.f32.mrb[0].mxu0
    %v2256 = vadd.f32 0.0, %v2255
    %v2257 = vpop.f32.mrb[0].mxu0
    %2258 = vmatprep.mubr.f32.mxu0 %v1611
    %2259 = vmatmul.mubr.f32.gmra.mrb[0].mxu0 %v1610
    %v2260 = vpop.f32.mrb[0].mxu0
    %v2261 = vadd.f32 0.0, %v2260
    %v2262 = vpop.f32.mrb[0].mxu0
    %2263 = vmatprep.mubr.f32.mxu0 %v1613
    %2264 = vmatmul.mubr.f32.gmra.mrb[0].mxu0 %v1612
    %v2265 = vpop.f32.mrb[0].mxu0
    %v2266 = vadd.f32 0.0, %v2265
    %v2267 = vpop.f32.mrb[0].mxu0
    %2268 = vmatprep.mubr.f32.mxu0 %v1615
    %2269 = vmatmul.mubr.f32.gmra.mrb[0].mxu0 %v1614
    %v2270 = vpop.f32.mrb[0].mxu0
    %v2271 = vadd.f32 0.0, %v2270
    %v2272 = vpop.f32.mrb[0].mxu0
    %2273 = vmatprep.mubr.f32.mxu0 %v1617
    %2274 = vmatmul.mubr.f32.gmra.mrb[0].mxu0 %v1616
    %v2275 = vpop.f32.mrb[0].mxu0
    %v2276 = vadd.f32 0.0, %v2275
    %v2277 = vpop.f32.mrb[0].mxu0
    %2278 = vmatprep.mubr.f32.mxu0 %v1619
    %2279 = vmatmul.mubr.f32.gmra.mrb[0].mxu0 %v1618
    %v2280 = vpop.f32.mrb[0].mxu0
    %v2281 = vadd.f32 0.0, %v2280
    %v2282 = vpop.f32.mrb[0].mxu0
    %2283 = vmatprep.mubr.f32.mxu0 %v1621
    %2284 = vmatmul.mubr.f32.gmra.mrb[0].mxu0 %v1620
    %v2285 = vpop.f32.mrb[0].mxu0
    %v2286 = vadd.f32 0.0, %v2285
    %v2287 = vpop.f32.mrb[0].mxu0
    %2288 = vmatprep.mubr.f32.mxu0 %v1623
    %2289 = vmatmul.mubr.f32.gmra.mrb[0].mxu0 %v1622
    %v2290 = vpop.f32.mrb[0].mxu0
    %v2291 = vadd.f32 0.0, %v2290
    %v2292 = vpop.f32.mrb[0].mxu0
    %2293 = vmatprep.mubr.f32.mxu0 %v1625
    %2294 = vmatmul.mubr.f32.gmra.mrb[0].mxu0 %v1624
    %v2295 = vpop.f32.mrb[0].mxu0
    %v2296 = vadd.f32 0.0, %v2295
    %v2297 = vpop.f32.mrb[0].mxu0
    %2298 = vmatprep.mubr.f32.mxu0 %v1627
    %2299 = vmatmul.mubr.f32.gmra.mrb[0].mxu0 %v1626
    %v2300 = vpop.f32.mrb[0].mxu0
    %v2301 = vadd.f32 0.0, %v2300
    %v2302 = vpop.f32.mrb[0].mxu0
    %2303 = vmatprep.mubr.f32.mxu0 %v1629
    %2304 = vmatmul.mubr.f32.gmra.mrb[0].mxu0 %v1628
    %v2305 = vpop.f32.mrb[0].mxu0
    %v2306 = vadd.f32 0.0, %v2305
    %v2307 = vpop.f32.mrb[0].mxu0
    %2308 = vmatprep.mubr.f32.mxu0 %v1631
    %2309 = vmatmul.mubr.f32.gmra.mrb[0].mxu0 %v1630
    %v2310 = vpop.f32.mrb[0].mxu0
    %v2311 = vadd.f32 0.0, %v2310
    %v2312 = vpop.f32.mrb[0].mxu0
    %2313 = vmatprep.mubr.f32.mxu0 %v1633
    %2314 = vmatmul.mubr.f32.gmra.mrb[0].mxu0 %v1632
    %v2315 = vpop.f32.mrb[0].mxu0
    %v2316 = vadd.f32 0.0, %v2315
    %v2317 = vpop.f32.mrb[0].mxu0
    %2318 = vmatprep.mubr.f32.mxu0 %v1635
    %2319 = vmatmul.mubr.f32.gmra.mrb[0].mxu0 %v1634
    %v2320 = vpop.f32.mrb[0].mxu0
    %v2321 = vadd.f32 0.0, %v2320
    %v2322 = vpop.f32.mrb[0].mxu0
    %2323 = vmatprep.mubr.f32.mxu0 %v1637
    %2324 = vmatmul.mubr.f32.gmra.mrb[0].mxu0 %v1636
    %v2325 = vpop.f32.mrb[0].mxu0
    %v2326 = vadd.f32 0.0, %v2325
    %v2327 = vpop.f32.mrb[0].mxu0
    %2328 = vmatprep.mubr.f32.mxu0 %v1639
    %2329 = vmatmul.mubr.f32.gmra.mrb[0].mxu0 %v1638
    %v2330 = vpop.f32.mrb[0].mxu0
    %v2331 = vadd.f32 0.0, %v2330
    %v2332 = vpop.f32.mrb[0].mxu0
    %2333 = vmatprep.mubr.f32.mxu0 %v1641
    %2334 = vmatmul.mubr.f32.gmra.mrb[0].mxu0 %v1640
    %v2335 = vpop.f32.mrb[0].mxu0
    %v2336 = vadd.f32 0.0, %v2335
    %v2337 = vpop.f32.mrb[0].mxu0
    %2338 = vmatprep.mubr.f32.mxu0 %v1643
    %2339 = vmatmul.mubr.f32.gmra.mrb[0].mxu0 %v1642
    %v2340 = vpop.f32.mrb[0].mxu0
    %v2341 = vadd.f32 0.0, %v2340
    %v2342 = vpop.f32.mrb[0].mxu0
    %2343 = vmatprep.mubr.f32.mxu0 %v1645
    %2344 = vmatmul.mubr.f32.gmra.mrb[0].mxu0 %v1644
    %v2345 = vpop.f32.mrb[0].mxu0
    %v2346 = vadd.f32 0.0, %v2345
    %v2347 = vpop.f32.mrb[0].mxu0
    %2348 = vmatprep.mubr.f32.mxu0 %v1647
    %2349 = vmatmul.mubr.f32.gmra.mrb[0].mxu0 %v1646
    %v2350 = vpop.f32.mrb[0].mxu0
    %v2351 = vadd.f32 0.0, %v2350
    %v2352 = vpop.f32.mrb[0].mxu0
    %2353 = vdwg.mxu0
    %v2354 = vadd.f32 %v2065, %v2196
    %v2355 = vadd.f32 %v2066, %v2201
    %v2356 = vadd.f32 %v2067, %v2206
    %v2357 = vadd.f32 %v2068, %v2211
    %v2358 = vadd.f32 %v2069, %v2216
    %v2359 = vadd.f32 %v2070, %v2221
    %v2360 = vadd.f32 %v2071, %v2226
    %v2361 = vadd.f32 %v2072, %v2231
    %v2362 = vadd.f32 %v2073, %v2236
    %v2363 = vadd.f32 %v2074, %v2241
    %v2364 = vadd.f32 %v2075, %v2246
    %v2365 = vadd.f32 %v2076, %v2251
    %v2366 = vadd.f32 %v2077, %v2256
    %v2367 = vadd.f32 %v2078, %v2261
    %v2368 = vadd.f32 %v2079, %v2266
    %v2369 = vadd.f32 %v2080, %v2271
    %v2370 = vadd.f32 %v2081, %v2276
    %v2371 = vadd.f32 %v2082, %v2281
    %v2372 = vadd.f32 %v2083, %v2286
    %v2373 = vadd.f32 %v2084, %v2291
    %v2374 = vadd.f32 %v2085, %v2296
    %v2375 = vadd.f32 %v2086, %v2301
    %v2376 = vadd.f32 %v2087, %v2306
    %v2377 = vadd.f32 %v2088, %v2311
    %v2378 = vadd.f32 %v2089, %v2316
    %v2379 = vadd.f32 %v2090, %v2321
    %v2380 = vadd.f32 %v2091, %v2326
    %v2381 = vadd.f32 %v2092, %v2331
    %v2382 = vadd.f32 %v2093, %v2336
    %v2383 = vadd.f32 %v2094, %v2341
    %v2384 = vadd.f32 %v2095, %v2346
    %v2385 = vadd.f32 %v2096, %v2351
    %2386 = vst [vmem:[#allocation4] sm:$0xff] %v2354
    %2387 = vst [vmem:[#allocation4 + $0x8] sm:$0xff] %v2355
    %2388 = vst [vmem:[#allocation4 + $0x10] sm:$0xff] %v2356
    %2389 = vst [vmem:[#allocation4 + $0x18] sm:$0xff] %v2357
    %2390 = vst [vmem:[#allocation4 + $0x20] sm:$0xff] %v2358
    %2391 = vst [vmem:[#allocation4 + $0x28] sm:$0xff] %v2359
    %2392 = vst [vmem:[#allocation4 + $0x30] sm:$0xff] %v2360
    %2393 = vst [vmem:[#allocation4 + $0x38] sm:$0xff] %v2361
    %2394 = vst [vmem:[#allocation4 + $0x40] sm:$0xff] %v2362
    %2395 = vst [vmem:[#allocation4 + $0x48] sm:$0xff] %v2363
    %2396 = vst [vmem:[#allocation4 + $0x50] sm:$0xff] %v2364
    %2397 = vst [vmem:[#allocation4 + $0x58] sm:$0xff] %v2365
    %2398 = vst [vmem:[#allocation4 + $0x60] sm:$0xff] %v2366
    %2399 = vst [vmem:[#allocation4 + $0x68] sm:$0xff] %v2367
    %2400 = vst [vmem:[#allocation4 + $0x70] sm:$0xff] %v2368
    %2401 = vst [vmem:[#allocation4 + $0x78] sm:$0xff] %v2369
    %2402 = vst [vmem:[#allocation4 + $0x80] sm:$0xff] %v2370
    %2403 = vst [vmem:[#allocation4 + $0x88] sm:$0xff] %v2371
    %2404 = vst [vmem:[#allocation4 + $0x90] sm:$0xff] %v2372
    %2405 = vst [vmem:[#allocation4 + $0x98] sm:$0xff] %v2373
    %2406 = vst [vmem:[#allocation4 + $0xa0] sm:$0xff] %v2374
    %2407 = vst [vmem:[#allocation4 + $0xa8] sm:$0xff] %v2375
    %2408 = vst [vmem:[#allocation4 + $0xb0] sm:$0xff] %v2376
    %2409 = vst [vmem:[#allocation4 + $0xb8] sm:$0xff] %v2377
    %2410 = vst [vmem:[#allocation4 + $0xc0] sm:$0xff] %v2378
    %2411 = vst [vmem:[#allocation4 + $0xc8] sm:$0xff] %v2379
    %2412 = vst [vmem:[#allocation4 + $0xd0] sm:$0xff] %v2380
    %2413 = vst [vmem:[#allocation4 + $0xd8] sm:$0xff] %v2381
    %2414 = vst [vmem:[#allocation4 + $0xe0] sm:$0xff] %v2382
    %2415 = vst [vmem:[#allocation4 + $0xe8] sm:$0xff] %v2383
    %2416 = vst [vmem:[#allocation4 + $0xf0] sm:$0xff] %v2384
    %2417 = vst [vmem:[#allocation4 + $0xf8] sm:$0xff] %v2385
    %2418 = vst.msk [vmem:[#allocation2] sm:$0xff] %vm1840, %v1104
    %2419 = vst.msk [vmem:[#allocation2 + $0x8] sm:$0xff] %vm1840, %v1105
    %2420 = vst.msk [vmem:[#allocation2 + $0x10] sm:$0xff] %vm1840, %v1106
    %2421 = vst.msk [vmem:[#allocation2 + $0x18] sm:$0xff] %vm1840, %v1107
    %2422 = vst.msk [vmem:[#allocation2 + $0x20] sm:$0xff] %vm1840, %v1108
    %2423 = vst.msk [vmem:[#allocation2 + $0x28] sm:$0xff] %vm1840, %v1109
    %2424 = vst.msk [vmem:[#allocation2 + $0x30] sm:$0xff] %vm1840, %v1110
    %2425 = vst.msk [vmem:[#allocation2 + $0x38] sm:$0xff] %vm1840, %v1111
    %2426 = vst.msk [vmem:[#allocation2 + $0x40] sm:$0xff] %vm1840, %v1112
    %2427 = vst.msk [vmem:[#allocation2 + $0x48] sm:$0xff] %vm1840, %v1113
    %2428 = vst.msk [vmem:[#allocation2 + $0x50] sm:$0xff] %vm1840, %v1114
    %2429 = vst.msk [vmem:[#allocation2 + $0x58] sm:$0xff] %vm1840, %v1115
    %2430 = vst.msk [vmem:[#allocation2 + $0x60] sm:$0xff] %vm1840, %v1116
    %2431 = vst.msk [vmem:[#allocation2 + $0x68] sm:$0xff] %vm1840, %v1117
    %2432 = vst.msk [vmem:[#allocation2 + $0x70] sm:$0xff] %vm1840, %v1118
    %2433 = vst.msk [vmem:[#allocation2 + $0x78] sm:$0xff] %vm1840, %v1119
    %2434 = vst.msk [vmem:[#allocation2 + $0x80] sm:$0xff] %vm1840, %v1120
    %2435 = vst.msk [vmem:[#allocation2 + $0x88] sm:$0xff] %vm1840, %v1121
    %2436 = vst.msk [vmem:[#allocation2 + $0x90] sm:$0xff] %vm1840, %v1122
    %2437 = vst.msk [vmem:[#allocation2 + $0x98] sm:$0xff] %vm1840, %v1123
    %2438 = vst.msk [vmem:[#allocation2 + $0xa0] sm:$0xff] %vm1840, %v1124
    %2439 = vst.msk [vmem:[#allocation2 + $0xa8] sm:$0xff] %vm1840, %v1125
    %2440 = vst.msk [vmem:[#allocation2 + $0xb0] sm:$0xff] %vm1840, %v1126
    %2441 = vst.msk [vmem:[#allocation2 + $0xb8] sm:$0xff] %vm1840, %v1127
    %2442 = vst.msk [vmem:[#allocation2 + $0xc0] sm:$0xff] %vm1840, %v1128
    %2443 = vst.msk [vmem:[#allocation2 + $0xc8] sm:$0xff] %vm1840, %v1129
    %2444 = vst.msk [vmem:[#allocation2 + $0xd0] sm:$0xff] %vm1840, %v1130
    %2445 = vst.msk [vmem:[#allocation2 + $0xd8] sm:$0xff] %vm1840, %v1131
    %2446 = vst.msk [vmem:[#allocation2 + $0xe0] sm:$0xff] %vm1840, %v1132
    %2447 = vst.msk [vmem:[#allocation2 + $0xe8] sm:$0xff] %vm1840, %v1133
    %2448 = vst.msk [vmem:[#allocation2 + $0xf0] sm:$0xff] %vm1840, %v1134
    %2449 = vst.msk [vmem:[#allocation2 + $0xf8] sm:$0xff] %vm1840, %v1135
    // Predicated region
    $region62: #{graph_trans_conv.5} parent=1 // pred_check
      %p2450 = pneg %p122
    $region63: #{graph_trans_conv.5} parent=1 // pred_check_branch
      %2452 = sbr.rel (%p2450) target = $region65
    $region64: #{graph_trans_conv.5} parent=1 // pred_region
      %v2453 = vld [vmem:[#allocation3] sm:$0xff]
      %v2454 = vld [vmem:[#allocation3 + $0x8] sm:$0xff]
      %v2455 = vld [vmem:[#allocation3 + $0x10] sm:$0xff]
      %v2456 = vld [vmem:[#allocation3 + $0x18] sm:$0xff]
      %v2457 = vld [vmem:[#allocation3 + $0x20] sm:$0xff]
      %v2458 = vld [vmem:[#allocation3 + $0x28] sm:$0xff]
      %v2459 = vld [vmem:[#allocation3 + $0x30] sm:$0xff]
      %v2460 = vld [vmem:[#allocation3 + $0x38] sm:$0xff]
      %v2461 = vld [vmem:[#allocation3 + $0x40] sm:$0xff]
      %v2462 = vld [vmem:[#allocation3 + $0x48] sm:$0xff]
      %v2463 = vld [vmem:[#allocation3 + $0x50] sm:$0xff]
      %v2464 = vld [vmem:[#allocation3 + $0x58] sm:$0xff]
      %v2465 = vld [vmem:[#allocation3 + $0x60] sm:$0xff]
      %v2466 = vld [vmem:[#allocation3 + $0x68] sm:$0xff]
      %v2467 = vld [vmem:[#allocation3 + $0x70] sm:$0xff]
      %v2468 = vld [vmem:[#allocation3 + $0x78] sm:$0xff]
      %v2469 = vld [vmem:[#allocation3 + $0x80] sm:$0xff]
      %v2470 = vld [vmem:[#allocation3 + $0x88] sm:$0xff]
      %v2471 = vld [vmem:[#allocation3 + $0x90] sm:$0xff]
      %v2472 = vld [vmem:[#allocation3 + $0x98] sm:$0xff]
      %v2473 = vld [vmem:[#allocation3 + $0xa0] sm:$0xff]
      %v2474 = vld [vmem:[#allocation3 + $0xa8] sm:$0xff]
      %v2475 = vld [vmem:[#allocation3 + $0xb0] sm:$0xff]
      %v2476 = vld [vmem:[#allocation3 + $0xb8] sm:$0xff]
      %v2477 = vld [vmem:[#allocation3 + $0xc0] sm:$0xff]
      %v2478 = vld [vmem:[#allocation3 + $0xc8] sm:$0xff]
      %v2479 = vld [vmem:[#allocation3 + $0xd0] sm:$0xff]
      %v2480 = vld [vmem:[#allocation3 + $0xd8] sm:$0xff]
      %v2481 = vld [vmem:[#allocation3 + $0xe0] sm:$0xff]
      %v2482 = vld [vmem:[#allocation3 + $0xe8] sm:$0xff]
      %v2483 = vld [vmem:[#allocation3 + $0xf0] sm:$0xff]
      %v2484 = vld [vmem:[#allocation3 + $0xf8] sm:$0xff]
      %vm2485 = vcmp.gt.f32.partialorder %v2453, 0.0
      %vm2486 = vcmp.gt.f32.partialorder %v2454, 0.0
      %vm2487 = vcmp.gt.f32.partialorder %v2455, 0.0
      %vm2488 = vcmp.gt.f32.partialorder %v2456, 0.0
      %vm2489 = vcmp.gt.f32.partialorder %v2457, 0.0
      %vm2490 = vcmp.gt.f32.partialorder %v2458, 0.0
      %vm2491 = vcmp.gt.f32.partialorder %v2459, 0.0
      %vm2492 = vcmp.gt.f32.partialorder %v2460, 0.0
      %vm2493 = vcmp.gt.f32.partialorder %v2461, 0.0
      %vm2494 = vcmp.gt.f32.partialorder %v2462, 0.0
      %vm2495 = vcmp.gt.f32.partialorder %v2463, 0.0
      %vm2496 = vcmp.gt.f32.partialorder %v2464, 0.0
      %vm2497 = vcmp.gt.f32.partialorder %v2465, 0.0
      %vm2498 = vcmp.gt.f32.partialorder %v2466, 0.0
      %vm2499 = vcmp.gt.f32.partialorder %v2467, 0.0
      %vm2500 = vcmp.gt.f32.partialorder %v2468, 0.0
      %vm2501 = vcmp.gt.f32.partialorder %v2469, 0.0
      %vm2502 = vcmp.gt.f32.partialorder %v2470, 0.0
      %vm2503 = vcmp.gt.f32.partialorder %v2471, 0.0
      %vm2504 = vcmp.gt.f32.partialorder %v2472, 0.0
      %vm2505 = vcmp.gt.f32.partialorder %v2473, 0.0
      %vm2506 = vcmp.gt.f32.partialorder %v2474, 0.0
      %vm2507 = vcmp.gt.f32.partialorder %v2475, 0.0
      %vm2508 = vcmp.gt.f32.partialorder %v2476, 0.0
      %vm2509 = vcmp.gt.f32.partialorder %v2477, 0.0
      %vm2510 = vcmp.gt.f32.partialorder %v2478, 0.0
      %vm2511 = vcmp.gt.f32.partialorder %v2479, 0.0
      %vm2512 = vcmp.gt.f32.partialorder %v2480, 0.0
      %vm2513 = vcmp.gt.f32.partialorder %v2481, 0.0
      %vm2514 = vcmp.gt.f32.partialorder %v2482, 0.0
      %vm2515 = vcmp.gt.f32.partialorder %v2483, 0.0
      %vm2516 = vcmp.gt.f32.partialorder %v2484, 0.0
      %v2517 = vrcp.pop %v2453
      %v2518 = vrcp.pop %v2454
      %v2519 = vrcp.pop %v2455
      %v2520 = vrcp.pop %v2456
      %v2521 = vrcp.pop %v2457
      %v2522 = vrcp.pop %v2458
      %v2523 = vrcp.pop %v2459
      %v2524 = vrcp.pop %v2460
      %v2525 = vrcp.pop %v2461
      %v2526 = vrcp.pop %v2462
      %v2527 = vrcp.pop %v2463
      %v2528 = vrcp.pop %v2464
      %v2529 = vrcp.pop %v2465
      %v2530 = vrcp.pop %v2466
      %v2531 = vrcp.pop %v2467
      %v2532 = vrcp.pop %v2468
      %v2533 = vrcp.pop %v2469
      %v2534 = vrcp.pop %v2470
      %v2535 = vrcp.pop %v2471
      %v2536 = vrcp.pop %v2472
      %v2537 = vrcp.pop %v2473
      %v2538 = vrcp.pop %v2474
      %v2539 = vrcp.pop %v2475
      %v2540 = vrcp.pop %v2476
      %v2541 = vrcp.pop %v2477
      %v2542 = vrcp.pop %v2478
      %v2543 = vrcp.pop %v2479
      %v2544 = vrcp.pop %v2480
      %v2545 = vrcp.pop %v2481
      %v2546 = vrcp.pop %v2482
      %v2547 = vrcp.pop %v2483
      %v2548 = vrcp.pop %v2484
      %v2549 = vsel %vm2485, %v2517, 0.0
      %v2550 = vsel %vm2486, %v2518, 0.0
      %v2551 = vsel %vm2487, %v2519, 0.0
      %v2552 = vsel %vm2488, %v2520, 0.0
      %v2553 = vsel %vm2489, %v2521, 0.0
      %v2554 = vsel %vm2490, %v2522, 0.0
      %v2555 = vsel %vm2491, %v2523, 0.0
      %v2556 = vsel %vm2492, %v2524, 0.0
      %v2557 = vsel %vm2493, %v2525, 0.0
      %v2558 = vsel %vm2494, %v2526, 0.0
      %v2559 = vsel %vm2495, %v2527, 0.0
      %v2560 = vsel %vm2496, %v2528, 0.0
      %v2561 = vsel %vm2497, %v2529, 0.0
      %v2562 = vsel %vm2498, %v2530, 0.0
      %v2563 = vsel %vm2499, %v2531, 0.0
      %v2564 = vsel %vm2500, %v2532, 0.0
      %v2565 = vsel %vm2501, %v2533, 0.0
      %v2566 = vsel %vm2502, %v2534, 0.0
      %v2567 = vsel %vm2503, %v2535, 0.0
      %v2568 = vsel %vm2504, %v2536, 0.0
      %v2569 = vsel %vm2505, %v2537, 0.0
      %v2570 = vsel %vm2506, %v2538, 0.0
      %v2571 = vsel %vm2507, %v2539, 0.0
      %v2572 = vsel %vm2508, %v2540, 0.0
      %v2573 = vsel %vm2509, %v2541, 0.0
      %v2574 = vsel %vm2510, %v2542, 0.0
      %v2575 = vsel %vm2511, %v2543, 0.0
      %v2576 = vsel %vm2512, %v2544, 0.0
      %v2577 = vsel %vm2513, %v2545, 0.0
      %v2578 = vsel %vm2514, %v2546, 0.0
      %v2579 = vsel %vm2515, %v2547, 0.0
      %v2580 = vsel %vm2516, %v2548, 0.0
      %v2581 = vld [vmem:[#allocation4] sm:$0xff]
      %v2582 = vld [vmem:[#allocation4 + $0x8] sm:$0xff]
      %v2583 = vld [vmem:[#allocation4 + $0x10] sm:$0xff]
      %v2584 = vld [vmem:[#allocation4 + $0x18] sm:$0xff]
      %v2585 = vld [vmem:[#allocation4 + $0x20] sm:$0xff]
      %v2586 = vld [vmem:[#allocation4 + $0x28] sm:$0xff]
      %v2587 = vld [vmem:[#allocation4 + $0x30] sm:$0xff]
      %v2588 = vld [vmem:[#allocation4 + $0x38] sm:$0xff]
      %v2589 = vld [vmem:[#allocation4 + $0x40] sm:$0xff]
      %v2590 = vld [vmem:[#allocation4 + $0x48] sm:$0xff]
      %v2591 = vld [vmem:[#allocation4 + $0x50] sm:$0xff]
      %v2592 = vld [vmem:[#allocation4 + $0x58] sm:$0xff]
      %v2593 = vld [vmem:[#allocation4 + $0x60] sm:$0xff]
      %v2594 = vld [vmem:[#allocation4 + $0x68] sm:$0xff]
      %v2595 = vld [vmem:[#allocation4 + $0x70] sm:$0xff]
      %v2596 = vld [vmem:[#allocation4 + $0x78] sm:$0xff]
      %v2597 = vld [vmem:[#allocation4 + $0x80] sm:$0xff]
      %v2598 = vld [vmem:[#allocation4 + $0x88] sm:$0xff]
      %v2599 = vld [vmem:[#allocation4 + $0x90] sm:$0xff]
      %v2600 = vld [vmem:[#allocation4 + $0x98] sm:$0xff]
      %v2601 = vld [vmem:[#allocation4 + $0xa0] sm:$0xff]
      %v2602 = vld [vmem:[#allocation4 + $0xa8] sm:$0xff]
      %v2603 = vld [vmem:[#allocation4 + $0xb0] sm:$0xff]
      %v2604 = vld [vmem:[#allocation4 + $0xb8] sm:$0xff]
      %v2605 = vld [vmem:[#allocation4 + $0xc0] sm:$0xff]
      %v2606 = vld [vmem:[#allocation4 + $0xc8] sm:$0xff]
      %v2607 = vld [vmem:[#allocation4 + $0xd0] sm:$0xff]
      %v2608 = vld [vmem:[#allocation4 + $0xd8] sm:$0xff]
      %v2609 = vld [vmem:[#allocation4 + $0xe0] sm:$0xff]
      %v2610 = vld [vmem:[#allocation4 + $0xe8] sm:$0xff]
      %v2611 = vld [vmem:[#allocation4 + $0xf0] sm:$0xff]
      %v2612 = vld [vmem:[#allocation4 + $0xf8] sm:$0xff]
      %2614 = vset.pattern.permute.xlu0 0
      %2615 = vperm.xlu0 %2614, %v2549
      %v2616 = vpop.permute.xlu0 %2615
      %2619 = vset.pattern.permute.xlu0 0
      %2620 = vperm.xlu0 %2619, %v2550
      %v2621 = vpop.permute.xlu0 %2620
      %2624 = vset.pattern.permute.xlu0 0
      %2625 = vperm.xlu0 %2624, %v2551
      %v2626 = vpop.permute.xlu0 %2625
      %2629 = vset.pattern.permute.xlu0 0
      %2630 = vperm.xlu0 %2629, %v2552
      %v2631 = vpop.permute.xlu0 %2630
      %2634 = vset.pattern.permute.xlu0 0
      %2635 = vperm.xlu0 %2634, %v2553
      %v2636 = vpop.permute.xlu0 %2635
      %2639 = vset.pattern.permute.xlu0 0
      %2640 = vperm.xlu0 %2639, %v2554
      %v2641 = vpop.permute.xlu0 %2640
      %2644 = vset.pattern.permute.xlu0 0
      %2645 = vperm.xlu0 %2644, %v2555
      %v2646 = vpop.permute.xlu0 %2645
      %2649 = vset.pattern.permute.xlu0 0
      %2650 = vperm.xlu0 %2649, %v2556
      %v2651 = vpop.permute.xlu0 %2650
      %2654 = vset.pattern.permute.xlu0 0
      %2655 = vperm.xlu0 %2654, %v2557
      %v2656 = vpop.permute.xlu0 %2655
      %2659 = vset.pattern.permute.xlu0 0
      %2660 = vperm.xlu0 %2659, %v2558
      %v2661 = vpop.permute.xlu0 %2660
      %2664 = vset.pattern.permute.xlu0 0
      %2665 = vperm.xlu0 %2664, %v2559
      %v2666 = vpop.permute.xlu0 %2665
      %2669 = vset.pattern.permute.xlu0 0
      %2670 = vperm.xlu0 %2669, %v2560
      %v2671 = vpop.permute.xlu0 %2670
      %2674 = vset.pattern.permute.xlu0 0
      %2675 = vperm.xlu0 %2674, %v2561
      %v2676 = vpop.permute.xlu0 %2675
      %2679 = vset.pattern.permute.xlu0 0
      %2680 = vperm.xlu0 %2679, %v2562
      %v2681 = vpop.permute.xlu0 %2680
      %2684 = vset.pattern.permute.xlu0 0
      %2685 = vperm.xlu0 %2684, %v2563
      %v2686 = vpop.permute.xlu0 %2685
      %2689 = vset.pattern.permute.xlu0 0
      %2690 = vperm.xlu0 %2689, %v2564
      %v2691 = vpop.permute.xlu0 %2690
      %2694 = vset.pattern.permute.xlu0 0
      %2695 = vperm.xlu0 %2694, %v2565
      %v2696 = vpop.permute.xlu0 %2695
      %2699 = vset.pattern.permute.xlu0 0
      %2700 = vperm.xlu0 %2699, %v2566
      %v2701 = vpop.permute.xlu0 %2700
      %2704 = vset.pattern.permute.xlu0 0
      %2705 = vperm.xlu0 %2704, %v2567
      %v2706 = vpop.permute.xlu0 %2705
      %2709 = vset.pattern.permute.xlu0 0
      %2710 = vperm.xlu0 %2709, %v2568
      %v2711 = vpop.permute.xlu0 %2710
      %2714 = vset.pattern.permute.xlu0 0
      %2715 = vperm.xlu0 %2714, %v2569
      %v2716 = vpop.permute.xlu0 %2715
      %2719 = vset.pattern.permute.xlu0 0
      %2720 = vperm.xlu0 %2719, %v2570
      %v2721 = vpop.permute.xlu0 %2720
      %2724 = vset.pattern.permute.xlu0 0
      %2725 = vperm.xlu0 %2724, %v2571
      %v2726 = vpop.permute.xlu0 %2725
      %2729 = vset.pattern.permute.xlu0 0
      %2730 = vperm.xlu0 %2729, %v2572
      %v2731 = vpop.permute.xlu0 %2730
      %2734 = vset.pattern.permute.xlu0 0
      %2735 = vperm.xlu0 %2734, %v2573
      %v2736 = vpop.permute.xlu0 %2735
      %2739 = vset.pattern.permute.xlu0 0
      %2740 = vperm.xlu0 %2739, %v2574
      %v2741 = vpop.permute.xlu0 %2740
      %2744 = vset.pattern.permute.xlu0 0
      %2745 = vperm.xlu0 %2744, %v2575
      %v2746 = vpop.permute.xlu0 %2745
      %2749 = vset.pattern.permute.xlu0 0
      %2750 = vperm.xlu0 %2749, %v2576
      %v2751 = vpop.permute.xlu0 %2750
      %2754 = vset.pattern.permute.xlu0 0
      %2755 = vperm.xlu0 %2754, %v2577
      %v2756 = vpop.permute.xlu0 %2755
      %2759 = vset.pattern.permute.xlu0 0
      %2760 = vperm.xlu0 %2759, %v2578
      %v2761 = vpop.permute.xlu0 %2760
      %2764 = vset.pattern.permute.xlu0 0
      %2765 = vperm.xlu0 %2764, %v2579
      %v2766 = vpop.permute.xlu0 %2765
      %2769 = vset.pattern.permute.xlu0 0
      %2770 = vperm.xlu0 %2769, %v2580
      %v2771 = vpop.permute.xlu0 %2770
      %v2773 = vmul.f32 %v2581, %v2616
      %v2774 = vmul.f32 %v2582, %v2621
      %v2775 = vmul.f32 %v2583, %v2626
      %v2776 = vmul.f32 %v2584, %v2631
      %v2777 = vmul.f32 %v2585, %v2636
      %v2778 = vmul.f32 %v2586, %v2641
      %v2779 = vmul.f32 %v2587, %v2646
      %v2780 = vmul.f32 %v2588, %v2651
      %v2781 = vmul.f32 %v2589, %v2656
      %v2782 = vmul.f32 %v2590, %v2661
      %v2783 = vmul.f32 %v2591, %v2666
      %v2784 = vmul.f32 %v2592, %v2671
      %v2785 = vmul.f32 %v2593, %v2676
      %v2786 = vmul.f32 %v2594, %v2681
      %v2787 = vmul.f32 %v2595, %v2686
      %v2788 = vmul.f32 %v2596, %v2691
      %v2789 = vmul.f32 %v2597, %v2696
      %v2790 = vmul.f32 %v2598, %v2701
      %v2791 = vmul.f32 %v2599, %v2706
      %v2792 = vmul.f32 %v2600, %v2711
      %v2793 = vmul.f32 %v2601, %v2716
      %v2794 = vmul.f32 %v2602, %v2721
      %v2795 = vmul.f32 %v2603, %v2726
      %v2796 = vmul.f32 %v2604, %v2731
      %v2797 = vmul.f32 %v2605, %v2736
      %v2798 = vmul.f32 %v2606, %v2741
      %v2799 = vmul.f32 %v2607, %v2746
      %v2800 = vmul.f32 %v2608, %v2751
      %v2801 = vmul.f32 %v2609, %v2756
      %v2802 = vmul.f32 %v2610, %v2761
      %v2803 = vmul.f32 %v2611, %v2766
      %v2804 = vmul.f32 %v2612, %v2771
      %v2805 = vld [vmem:[#allocation11] sm:$0xff]
      %v2806 = vld [vmem:[#allocation11 + $0x8] sm:$0xff]
      %v2807 = vld [vmem:[#allocation11 + $0x10] sm:$0xff]
      %v2808 = vld [vmem:[#allocation11 + $0x18] sm:$0xff]
      %v2809 = vld [vmem:[#allocation11 + $0x20] sm:$0xff]
      %v2810 = vld [vmem:[#allocation11 + $0x28] sm:$0xff]
      %v2811 = vld [vmem:[#allocation11 + $0x30] sm:$0xff]
      %v2812 = vld [vmem:[#allocation11 + $0x38] sm:$0xff]
      %v2813 = vld [vmem:[#allocation11 + $0x40] sm:$0xff]
      %v2814 = vld [vmem:[#allocation11 + $0x48] sm:$0xff]
      %v2815 = vld [vmem:[#allocation11 + $0x50] sm:$0xff]
      %v2816 = vld [vmem:[#allocation11 + $0x58] sm:$0xff]
      %v2817 = vld [vmem:[#allocation11 + $0x60] sm:$0xff]
      %v2818 = vld [vmem:[#allocation11 + $0x68] sm:$0xff]
      %v2819 = vld [vmem:[#allocation11 + $0x70] sm:$0xff]
      %v2820 = vld [vmem:[#allocation11 + $0x78] sm:$0xff]
      %v2821 = vld [vmem:[#allocation11 + $0x80] sm:$0xff]
      %v2822 = vld [vmem:[#allocation11 + $0x88] sm:$0xff]
      %v2823 = vld [vmem:[#allocation11 + $0x90] sm:$0xff]
      %v2824 = vld [vmem:[#allocation11 + $0x98] sm:$0xff]
      %v2825 = vld [vmem:[#allocation11 + $0xa0] sm:$0xff]
      %v2826 = vld [vmem:[#allocation11 + $0xa8] sm:$0xff]
      %v2827 = vld [vmem:[#allocation11 + $0xb0] sm:$0xff]
      %v2828 = vld [vmem:[#allocation11 + $0xb8] sm:$0xff]
      %v2829 = vld [vmem:[#allocation11 + $0xc0] sm:$0xff]
      %v2830 = vld [vmem:[#allocation11 + $0xc8] sm:$0xff]
      %v2831 = vld [vmem:[#allocation11 + $0xd0] sm:$0xff]
      %v2832 = vld [vmem:[#allocation11 + $0xd8] sm:$0xff]
      %v2833 = vld [vmem:[#allocation11 + $0xe0] sm:$0xff]
      %v2834 = vld [vmem:[#allocation11 + $0xe8] sm:$0xff]
      %v2835 = vld [vmem:[#allocation11 + $0xf0] sm:$0xff]
      %v2836 = vld [vmem:[#allocation11 + $0xf8] sm:$0xff]
      %v2837 = vld [vmem:[#allocation14] sm:$0x7]
      %v2838 = vlaneseq
      %v2839 = vshrl.u32 %v2838, 7
      %v2840 = vsub.s32 0, %v2839
      %v2841 = vrot.slane %v2837, %v2840
      %v2842 = vmul.f32 %v2773, %v2841
      %v2843 = vmul.f32 %v2774, %v2841
      %v2844 = vmul.f32 %v2775, %v2841
      %v2845 = vmul.f32 %v2776, %v2841
      %v2846 = vmul.f32 %v2777, %v2841
      %v2847 = vmul.f32 %v2778, %v2841
      %v2848 = vmul.f32 %v2779, %v2841
      %v2849 = vmul.f32 %v2780, %v2841
      %v2850 = vmul.f32 %v2781, %v2841
      %v2851 = vmul.f32 %v2782, %v2841
      %v2852 = vmul.f32 %v2783, %v2841
      %v2853 = vmul.f32 %v2784, %v2841
      %v2854 = vmul.f32 %v2785, %v2841
      %v2855 = vmul.f32 %v2786, %v2841
      %v2856 = vmul.f32 %v2787, %v2841
      %v2857 = vmul.f32 %v2788, %v2841
      %v2858 = vmul.f32 %v2789, %v2841
      %v2859 = vmul.f32 %v2790, %v2841
      %v2860 = vmul.f32 %v2791, %v2841
      %v2861 = vmul.f32 %v2792, %v2841
      %v2862 = vmul.f32 %v2793, %v2841
      %v2863 = vmul.f32 %v2794, %v2841
      %v2864 = vmul.f32 %v2795, %v2841
      %v2865 = vmul.f32 %v2796, %v2841
      %v2866 = vmul.f32 %v2797, %v2841
      %v2867 = vmul.f32 %v2798, %v2841
      %v2868 = vmul.f32 %v2799, %v2841
      %v2869 = vmul.f32 %v2800, %v2841
      %v2870 = vmul.f32 %v2801, %v2841
      %v2871 = vmul.f32 %v2802, %v2841
      %v2872 = vmul.f32 %v2803, %v2841
      %v2873 = vmul.f32 %v2804, %v2841
      %v2874 = vlaneseq
      %v2875 = vshrl.u32 %v2874, 7
      %v2876 = vsub.s32 1, %v2875
      %v2877 = vrot.slane %v2837, %v2876
      %v2878 = vmul.f32 %v2805, %v2877
      %v2879 = vmul.f32 %v2806, %v2877
      %v2880 = vmul.f32 %v2807, %v2877
      %v2881 = vmul.f32 %v2808, %v2877
      %v2882 = vmul.f32 %v2809, %v2877
      %v2883 = vmul.f32 %v2810, %v2877
      %v2884 = vmul.f32 %v2811, %v2877
      %v2885 = vmul.f32 %v2812, %v2877
      %v2886 = vmul.f32 %v2813, %v2877
      %v2887 = vmul.f32 %v2814, %v2877
      %v2888 = vmul.f32 %v2815, %v2877
      %v2889 = vmul.f32 %v2816, %v2877
      %v2890 = vmul.f32 %v2817, %v2877
      %v2891 = vmul.f32 %v2818, %v2877
      %v2892 = vmul.f32 %v2819, %v2877
      %v2893 = vmul.f32 %v2820, %v2877
      %v2894 = vmul.f32 %v2821, %v2877
      %v2895 = vmul.f32 %v2822, %v2877
      %v2896 = vmul.f32 %v2823, %v2877
      %v2897 = vmul.f32 %v2824, %v2877
      %v2898 = vmul.f32 %v2825, %v2877
      %v2899 = vmul.f32 %v2826, %v2877
      %v2900 = vmul.f32 %v2827, %v2877
      %v2901 = vmul.f32 %v2828, %v2877
      %v2902 = vmul.f32 %v2829, %v2877
      %v2903 = vmul.f32 %v2830, %v2877
      %v2904 = vmul.f32 %v2831, %v2877
      %v2905 = vmul.f32 %v2832, %v2877
      %v2906 = vmul.f32 %v2833, %v2877
      %v2907 = vmul.f32 %v2834, %v2877
      %v2908 = vmul.f32 %v2835, %v2877
      %v2909 = vmul.f32 %v2836, %v2877
      %v2910 = vadd.f32 %v2842, %v2878
      %v2911 = vadd.f32 %v2843, %v2879
      %v2912 = vadd.f32 %v2844, %v2880
      %v2913 = vadd.f32 %v2845, %v2881
      %v2914 = vadd.f32 %v2846, %v2882
      %v2915 = vadd.f32 %v2847, %v2883
      %v2916 = vadd.f32 %v2848, %v2884
      %v2917 = vadd.f32 %v2849, %v2885
      %v2918 = vadd.f32 %v2850, %v2886
      %v2919 = vadd.f32 %v2851, %v2887
      %v2920 = vadd.f32 %v2852, %v2888
      %v2921 = vadd.f32 %v2853, %v2889
      %v2922 = vadd.f32 %v2854, %v2890
      %v2923 = vadd.f32 %v2855, %v2891
      %v2924 = vadd.f32 %v2856, %v2892
      %v2925 = vadd.f32 %v2857, %v2893
      %v2926 = vadd.f32 %v2858, %v2894
      %v2927 = vadd.f32 %v2859, %v2895
      %v2928 = vadd.f32 %v2860, %v2896
      %v2929 = vadd.f32 %v2861, %v2897
      %v2930 = vadd.f32 %v2862, %v2898
      %v2931 = vadd.f32 %v2863, %v2899
      %v2932 = vadd.f32 %v2864, %v2900
      %v2933 = vadd.f32 %v2865, %v2901
      %v2934 = vadd.f32 %v2866, %v2902
      %v2935 = vadd.f32 %v2867, %v2903
      %v2936 = vadd.f32 %v2868, %v2904
      %v2937 = vadd.f32 %v2869, %v2905
      %v2938 = vadd.f32 %v2870, %v2906
      %v2939 = vadd.f32 %v2871, %v2907
      %v2940 = vadd.f32 %v2872, %v2908
      %v2941 = vadd.f32 %v2873, %v2909
      %v2942 = vsub.f32 %v2773, %v2805
      %v2943 = vsub.f32 %v2774, %v2806
      %v2944 = vsub.f32 %v2775, %v2807
      %v2945 = vsub.f32 %v2776, %v2808
      %v2946 = vsub.f32 %v2777, %v2809
      %v2947 = vsub.f32 %v2778, %v2810
      %v2948 = vsub.f32 %v2779, %v2811
      %v2949 = vsub.f32 %v2780, %v2812
      %v2950 = vsub.f32 %v2781, %v2813
      %v2951 = vsub.f32 %v2782, %v2814
      %v2952 = vsub.f32 %v2783, %v2815
      %v2953 = vsub.f32 %v2784, %v2816
      %v2954 = vsub.f32 %v2785, %v2817
      %v2955 = vsub.f32 %v2786, %v2818
      %v2956 = vsub.f32 %v2787, %v2819
      %v2957 = vsub.f32 %v2788, %v2820
      %v2958 = vsub.f32 %v2789, %v2821
      %v2959 = vsub.f32 %v2790, %v2822
      %v2960 = vsub.f32 %v2791, %v2823
      %v2961 = vsub.f32 %v2792, %v2824
      %v2962 = vsub.f32 %v2793, %v2825
      %v2963 = vsub.f32 %v2794, %v2826
      %v2964 = vsub.f32 %v2795, %v2827
      %v2965 = vsub.f32 %v2796, %v2828
      %v2966 = vsub.f32 %v2797, %v2829
      %v2967 = vsub.f32 %v2798, %v2830
      %v2968 = vsub.f32 %v2799, %v2831
      %v2969 = vsub.f32 %v2800, %v2832
      %v2970 = vsub.f32 %v2801, %v2833
      %v2971 = vsub.f32 %v2802, %v2834
      %v2972 = vsub.f32 %v2803, %v2835
      %v2973 = vsub.f32 %v2804, %v2836
      %v2974 = vlaneseq
      %v2975 = vshrl.u32 %v2974, 7
      %v2976 = vsub.s32 2, %v2975
      %v2977 = vrot.slane %v2837, %v2976
      %v2978 = vmul.f32 %v2942, %v2977
      %v2979 = vmul.f32 %v2943, %v2977
      %v2980 = vmul.f32 %v2944, %v2977
      %v2981 = vmul.f32 %v2945, %v2977
      %v2982 = vmul.f32 %v2946, %v2977
      %v2983 = vmul.f32 %v2947, %v2977
      %v2984 = vmul.f32 %v2948, %v2977
      %v2985 = vmul.f32 %v2949, %v2977
      %v2986 = vmul.f32 %v2950, %v2977
      %v2987 = vmul.f32 %v2951, %v2977
      %v2988 = vmul.f32 %v2952, %v2977
      %v2989 = vmul.f32 %v2953, %v2977
      %v2990 = vmul.f32 %v2954, %v2977
      %v2991 = vmul.f32 %v2955, %v2977
      %v2992 = vmul.f32 %v2956, %v2977
      %v2993 = vmul.f32 %v2957, %v2977
      %v2994 = vmul.f32 %v2958, %v2977
      %v2995 = vmul.f32 %v2959, %v2977
      %v2996 = vmul.f32 %v2960, %v2977
      %v2997 = vmul.f32 %v2961, %v2977
      %v2998 = vmul.f32 %v2962, %v2977
      %v2999 = vmul.f32 %v2963, %v2977
      %v3000 = vmul.f32 %v2964, %v2977
      %v3001 = vmul.f32 %v2965, %v2977
      %v3002 = vmul.f32 %v2966, %v2977
      %v3003 = vmul.f32 %v2967, %v2977
      %v3004 = vmul.f32 %v2968, %v2977
      %v3005 = vmul.f32 %v2969, %v2977
      %v3006 = vmul.f32 %v2970, %v2977
      %v3007 = vmul.f32 %v2971, %v2977
      %v3008 = vmul.f32 %v2972, %v2977
      %v3009 = vmul.f32 %v2973, %v2977
      %v3010 = vadd.f32 %v2910, %v2978
      %v3011 = vadd.f32 %v2911, %v2979
      %v3012 = vadd.f32 %v2912, %v2980
      %v3013 = vadd.f32 %v2913, %v2981
      %v3014 = vadd.f32 %v2914, %v2982
      %v3015 = vadd.f32 %v2915, %v2983
      %v3016 = vadd.f32 %v2916, %v2984
      %v3017 = vadd.f32 %v2917, %v2985
      %v3018 = vadd.f32 %v2918, %v2986
      %v3019 = vadd.f32 %v2919, %v2987
      %v3020 = vadd.f32 %v2920, %v2988
      %v3021 = vadd.f32 %v2921, %v2989
      %v3022 = vadd.f32 %v2922, %v2990
      %v3023 = vadd.f32 %v2923, %v2991
      %v3024 = vadd.f32 %v2924, %v2992
      %v3025 = vadd.f32 %v2925, %v2993
      %v3026 = vadd.f32 %v2926, %v2994
      %v3027 = vadd.f32 %v2927, %v2995
      %v3028 = vadd.f32 %v2928, %v2996
      %v3029 = vadd.f32 %v2929, %v2997
      %v3030 = vadd.f32 %v2930, %v2998
      %v3031 = vadd.f32 %v2931, %v2999
      %v3032 = vadd.f32 %v2932, %v3000
      %v3033 = vadd.f32 %v2933, %v3001
      %v3034 = vadd.f32 %v2934, %v3002
      %v3035 = vadd.f32 %v2935, %v3003
      %v3036 = vadd.f32 %v2936, %v3004
      %v3037 = vadd.f32 %v2937, %v3005
      %v3038 = vadd.f32 %v2938, %v3006
      %v3039 = vadd.f32 %v2939, %v3007
      %v3040 = vadd.f32 %v2940, %v3008
      %v3041 = vadd.f32 %v2941, %v3009
      %3042 = vadd.xlane.f32.xlu0 %v3010
      %v3043 = vpop.xlane.xlu0 %3042
      %3044 = vadd.xlane.f32.xlu0 %v3011
      %v3045 = vpop.xlane.xlu0 %3044
      %3046 = vadd.xlane.f32.xlu0 %v3012
      %v3047 = vpop.xlane.xlu0 %3046
      %3048 = vadd.xlane.f32.xlu0 %v3013
      %v3049 = vpop.xlane.xlu0 %3048
      %3050 = vadd.xlane.f32.xlu0 %v3014
      %v3051 = vpop.xlane.xlu0 %3050
      %3052 = vadd.xlane.f32.xlu0 %v3015
      %v3053 = vpop.xlane.xlu0 %3052
      %3054 = vadd.xlane.f32.xlu0 %v3016
      %v3055 = vpop.xlane.xlu0 %3054
      %3056 = vadd.xlane.f32.xlu0 %v3017
      %v3057 = vpop.xlane.xlu0 %3056
      %3058 = vadd.xlane.f32.xlu0 %v3018
      %v3059 = vpop.xlane.xlu0 %3058
      %3060 = vadd.xlane.f32.xlu0 %v3019
      %v3061 = vpop.xlane.xlu0 %3060
      %3062 = vadd.xlane.f32.xlu0 %v3020
      %v3063 = vpop.xlane.xlu0 %3062
      %3064 = vadd.xlane.f32.xlu0 %v3021
      %v3065 = vpop.xlane.xlu0 %3064
      %3066 = vadd.xlane.f32.xlu0 %v3022
      %v3067 = vpop.xlane.xlu0 %3066
      %3068 = vadd.xlane.f32.xlu0 %v3023
      %v3069 = vpop.xlane.xlu0 %3068
      %3070 = vadd.xlane.f32.xlu0 %v3024
      %v3071 = vpop.xlane.xlu0 %3070
      %3072 = vadd.xlane.f32.xlu0 %v3025
      %v3073 = vpop.xlane.xlu0 %3072
      %3074 = vadd.xlane.f32.xlu0 %v3026
      %v3075 = vpop.xlane.xlu0 %3074
      %3076 = vadd.xlane.f32.xlu0 %v3027
      %v3077 = vpop.xlane.xlu0 %3076
      %3078 = vadd.xlane.f32.xlu0 %v3028
      %v3079 = vpop.xlane.xlu0 %3078
      %3080 = vadd.xlane.f32.xlu0 %v3029
      %v3081 = vpop.xlane.xlu0 %3080
      %3082 = vadd.xlane.f32.xlu0 %v3030
      %v3083 = vpop.xlane.xlu0 %3082
      %3084 = vadd.xlane.f32.xlu0 %v3031
      %v3085 = vpop.xlane.xlu0 %3084
      %3086 = vadd.xlane.f32.xlu0 %v3032
      %v3087 = vpop.xlane.xlu0 %3086
      %3088 = vadd.xlane.f32.xlu0 %v3033
      %v3089 = vpop.xlane.xlu0 %3088
      %3090 = vadd.xlane.f32.xlu0 %v3034
      %v3091 = vpop.xlane.xlu0 %3090
      %3092 = vadd.xlane.f32.xlu0 %v3035
      %v3093 = vpop.xlane.xlu0 %3092
      %3094 = vadd.xlane.f32.xlu0 %v3036
      %v3095 = vpop.xlane.xlu0 %3094
      %3096 = vadd.xlane.f32.xlu0 %v3037
      %v3097 = vpop.xlane.xlu0 %3096
      %3098 = vadd.xlane.f32.xlu0 %v3038
      %v3099 = vpop.xlane.xlu0 %3098
      %3100 = vadd.xlane.f32.xlu0 %v3039
      %v3101 = vpop.xlane.xlu0 %3100
      %3102 = vadd.xlane.f32.xlu0 %v3040
      %v3103 = vpop.xlane.xlu0 %3102
      %3104 = vadd.xlane.f32.xlu0 %v3041
      %v3105 = vpop.xlane.xlu0 %3104
      %v3106 = vxor.u32 %v3043, 2147483648
      %v3107 = vxor.u32 %v3045, 2147483648
      %v3108 = vxor.u32 %v3047, 2147483648
      %v3109 = vxor.u32 %v3049, 2147483648
      %v3110 = vxor.u32 %v3051, 2147483648
      %v3111 = vxor.u32 %v3053, 2147483648
      %v3112 = vxor.u32 %v3055, 2147483648
      %v3113 = vxor.u32 %v3057, 2147483648
      %v3114 = vxor.u32 %v3059, 2147483648
      %v3115 = vxor.u32 %v3061, 2147483648
      %v3116 = vxor.u32 %v3063, 2147483648
      %v3117 = vxor.u32 %v3065, 2147483648
      %v3118 = vxor.u32 %v3067, 2147483648
      %v3119 = vxor.u32 %v3069, 2147483648
      %v3120 = vxor.u32 %v3071, 2147483648
      %v3121 = vxor.u32 %v3073, 2147483648
      %v3122 = vxor.u32 %v3075, 2147483648
      %v3123 = vxor.u32 %v3077, 2147483648
      %v3124 = vxor.u32 %v3079, 2147483648
      %v3125 = vxor.u32 %v3081, 2147483648
      %v3126 = vxor.u32 %v3083, 2147483648
      %v3127 = vxor.u32 %v3085, 2147483648
      %v3128 = vxor.u32 %v3087, 2147483648
      %v3129 = vxor.u32 %v3089, 2147483648
      %v3130 = vxor.u32 %v3091, 2147483648
      %v3131 = vxor.u32 %v3093, 2147483648
      %v3132 = vxor.u32 %v3095, 2147483648
      %v3133 = vxor.u32 %v3097, 2147483648
      %v3134 = vxor.u32 %v3099, 2147483648
      %v3135 = vxor.u32 %v3101, 2147483648
      %v3136 = vxor.u32 %v3103, 2147483648
      %v3137 = vxor.u32 %v3105, 2147483648
      %v3138 = vmul.f32 %v3106, 1.442695
      %v3139 = vpow.pop %v3138
      %v3140 = vmul.f32 %v3107, 1.442695
      %v3141 = vpow.pop %v3140
      %v3142 = vmul.f32 %v3108, 1.442695
      %v3143 = vpow.pop %v3142
      %v3144 = vmul.f32 %v3109, 1.442695
      %v3145 = vpow.pop %v3144
      %v3146 = vmul.f32 %v3110, 1.442695
      %v3147 = vpow.pop %v3146
      %v3148 = vmul.f32 %v3111, 1.442695
      %v3149 = vpow.pop %v3148
      %v3150 = vmul.f32 %v3112, 1.442695
      %v3151 = vpow.pop %v3150
      %v3152 = vmul.f32 %v3113, 1.442695
      %v3153 = vpow.pop %v3152
      %v3154 = vmul.f32 %v3114, 1.442695
      %v3155 = vpow.pop %v3154
      %v3156 = vmul.f32 %v3115, 1.442695
      %v3157 = vpow.pop %v3156
      %v3158 = vmul.f32 %v3116, 1.442695
      %v3159 = vpow.pop %v3158
      %v3160 = vmul.f32 %v3117, 1.442695
      %v3161 = vpow.pop %v3160
      %v3162 = vmul.f32 %v3118, 1.442695
      %v3163 = vpow.pop %v3162
      %v3164 = vmul.f32 %v3119, 1.442695
      %v3165 = vpow.pop %v3164
      %v3166 = vmul.f32 %v3120, 1.442695
      %v3167 = vpow.pop %v3166
      %v3168 = vmul.f32 %v3121, 1.442695
      %v3169 = vpow.pop %v3168
      %v3170 = vmul.f32 %v3122, 1.442695
      %v3171 = vpow.pop %v3170
      %v3172 = vmul.f32 %v3123, 1.442695
      %v3173 = vpow.pop %v3172
      %v3174 = vmul.f32 %v3124, 1.442695
      %v3175 = vpow.pop %v3174
      %v3176 = vmul.f32 %v3125, 1.442695
      %v3177 = vpow.pop %v3176
      %v3178 = vmul.f32 %v3126, 1.442695
      %v3179 = vpow.pop %v3178
      %v3180 = vmul.f32 %v3127, 1.442695
      %v3181 = vpow.pop %v3180
      %v3182 = vmul.f32 %v3128, 1.442695
      %v3183 = vpow.pop %v3182
      %v3184 = vmul.f32 %v3129, 1.442695
      %v3185 = vpow.pop %v3184
      %v3186 = vmul.f32 %v3130, 1.442695
      %v3187 = vpow.pop %v3186
      %v3188 = vmul.f32 %v3131, 1.442695
      %v3189 = vpow.pop %v3188
      %v3190 = vmul.f32 %v3132, 1.442695
      %v3191 = vpow.pop %v3190
      %v3192 = vmul.f32 %v3133, 1.442695
      %v3193 = vpow.pop %v3192
      %v3194 = vmul.f32 %v3134, 1.442695
      %v3195 = vpow.pop %v3194
      %v3196 = vmul.f32 %v3135, 1.442695
      %v3197 = vpow.pop %v3196
      %v3198 = vmul.f32 %v3136, 1.442695
      %v3199 = vpow.pop %v3198
      %v3200 = vmul.f32 %v3137, 1.442695
      %v3201 = vpow.pop %v3200
      %v3202 = vadd.f32 %v3139, 1.0
      %v3203 = vadd.f32 %v3141, 1.0
      %v3204 = vadd.f32 %v3143, 1.0
      %v3205 = vadd.f32 %v3145, 1.0
      %v3206 = vadd.f32 %v3147, 1.0
      %v3207 = vadd.f32 %v3149, 1.0
      %v3208 = vadd.f32 %v3151, 1.0
      %v3209 = vadd.f32 %v3153, 1.0
      %v3210 = vadd.f32 %v3155, 1.0
      %v3211 = vadd.f32 %v3157, 1.0
      %v3212 = vadd.f32 %v3159, 1.0
      %v3213 = vadd.f32 %v3161, 1.0
      %v3214 = vadd.f32 %v3163, 1.0
      %v3215 = vadd.f32 %v3165, 1.0
      %v3216 = vadd.f32 %v3167, 1.0
      %v3217 = vadd.f32 %v3169, 1.0
      %v3218 = vadd.f32 %v3171, 1.0
      %v3219 = vadd.f32 %v3173, 1.0
      %v3220 = vadd.f32 %v3175, 1.0
      %v3221 = vadd.f32 %v3177, 1.0
      %v3222 = vadd.f32 %v3179, 1.0
      %v3223 = vadd.f32 %v3181, 1.0
      %v3224 = vadd.f32 %v3183, 1.0
      %v3225 = vadd.f32 %v3185, 1.0
      %v3226 = vadd.f32 %v3187, 1.0
      %v3227 = vadd.f32 %v3189, 1.0
      %v3228 = vadd.f32 %v3191, 1.0
      %v3229 = vadd.f32 %v3193, 1.0
      %v3230 = vadd.f32 %v3195, 1.0
      %v3231 = vadd.f32 %v3197, 1.0
      %v3232 = vadd.f32 %v3199, 1.0
      %v3233 = vadd.f32 %v3201, 1.0
      %v3234 = vrcp.pop %v3202
      %v3235 = vmul.f32 1.0, %v3234
      %v3236 = vrcp.pop %v3203
      %v3237 = vmul.f32 1.0, %v3236
      %v3238 = vrcp.pop %v3204
      %v3239 = vmul.f32 1.0, %v3238
      %v3240 = vrcp.pop %v3205
      %v3241 = vmul.f32 1.0, %v3240
      %v3242 = vrcp.pop %v3206
      %v3243 = vmul.f32 1.0, %v3242
      %v3244 = vrcp.pop %v3207
      %v3245 = vmul.f32 1.0, %v3244
      %v3246 = vrcp.pop %v3208
      %v3247 = vmul.f32 1.0, %v3246
      %v3248 = vrcp.pop %v3209
      %v3249 = vmul.f32 1.0, %v3248
      %v3250 = vrcp.pop %v3210
      %v3251 = vmul.f32 1.0, %v3250
      %v3252 = vrcp.pop %v3211
      %v3253 = vmul.f32 1.0, %v3252
      %v3254 = vrcp.pop %v3212
      %v3255 = vmul.f32 1.0, %v3254
      %v3256 = vrcp.pop %v3213
      %v3257 = vmul.f32 1.0, %v3256
      %v3258 = vrcp.pop %v3214
      %v3259 = vmul.f32 1.0, %v3258
      %v3260 = vrcp.pop %v3215
      %v3261 = vmul.f32 1.0, %v3260
      %v3262 = vrcp.pop %v3216
      %v3263 = vmul.f32 1.0, %v3262
      %v3264 = vrcp.pop %v3217
      %v3265 = vmul.f32 1.0, %v3264
      %v3266 = vrcp.pop %v3218
      %v3267 = vmul.f32 1.0, %v3266
      %v3268 = vrcp.pop %v3219
      %v3269 = vmul.f32 1.0, %v3268
      %v3270 = vrcp.pop %v3220
      %v3271 = vmul.f32 1.0, %v3270
      %v3272 = vrcp.pop %v3221
      %v3273 = vmul.f32 1.0, %v3272
      %v3274 = vrcp.pop %v3222
      %v3275 = vmul.f32 1.0, %v3274
      %v3276 = vrcp.pop %v3223
      %v3277 = vmul.f32 1.0, %v3276
      %v3278 = vrcp.pop %v3224
      %v3279 = vmul.f32 1.0, %v3278
      %v3280 = vrcp.pop %v3225
      %v3281 = vmul.f32 1.0, %v3280
      %v3282 = vrcp.pop %v3226
      %v3283 = vmul.f32 1.0, %v3282
      %v3284 = vrcp.pop %v3227
      %v3285 = vmul.f32 1.0, %v3284
      %v3286 = vrcp.pop %v3228
      %v3287 = vmul.f32 1.0, %v3286
      %v3288 = vrcp.pop %v3229
      %v3289 = vmul.f32 1.0, %v3288
      %v3290 = vrcp.pop %v3230
      %v3291 = vmul.f32 1.0, %v3290
      %v3292 = vrcp.pop %v3231
      %v3293 = vmul.f32 1.0, %v3292
      %v3294 = vrcp.pop %v3232
      %v3295 = vmul.f32 1.0, %v3294
      %v3296 = vrcp.pop %v3233
      %v3297 = vmul.f32 1.0, %v3296
      %v3298 = vmul.f32 %v3235, %v2805
      %v3299 = vmul.f32 %v3237, %v2806
      %v3300 = vmul.f32 %v3239, %v2807
      %v3301 = vmul.f32 %v3241, %v2808
      %v3302 = vmul.f32 %v3243, %v2809
      %v3303 = vmul.f32 %v3245, %v2810
      %v3304 = vmul.f32 %v3247, %v2811
      %v3305 = vmul.f32 %v3249, %v2812
      %v3306 = vmul.f32 %v3251, %v2813
      %v3307 = vmul.f32 %v3253, %v2814
      %v3308 = vmul.f32 %v3255, %v2815
      %v3309 = vmul.f32 %v3257, %v2816
      %v3310 = vmul.f32 %v3259, %v2817
      %v3311 = vmul.f32 %v3261, %v2818
      %v3312 = vmul.f32 %v3263, %v2819
      %v3313 = vmul.f32 %v3265, %v2820
      %v3314 = vmul.f32 %v3267, %v2821
      %v3315 = vmul.f32 %v3269, %v2822
      %v3316 = vmul.f32 %v3271, %v2823
      %v3317 = vmul.f32 %v3273, %v2824
      %v3318 = vmul.f32 %v3275, %v2825
      %v3319 = vmul.f32 %v3277, %v2826
      %v3320 = vmul.f32 %v3279, %v2827
      %v3321 = vmul.f32 %v3281, %v2828
      %v3322 = vmul.f32 %v3283, %v2829
      %v3323 = vmul.f32 %v3285, %v2830
      %v3324 = vmul.f32 %v3287, %v2831
      %v3325 = vmul.f32 %v3289, %v2832
      %v3326 = vmul.f32 %v3291, %v2833
      %v3327 = vmul.f32 %v3293, %v2834
      %v3328 = vmul.f32 %v3295, %v2835
      %v3329 = vmul.f32 %v3297, %v2836
      %v3330 = vsub.f32 1.0, %v3235
      %v3331 = vsub.f32 1.0, %v3237
      %v3332 = vsub.f32 1.0, %v3239
      %v3333 = vsub.f32 1.0, %v3241
      %v3334 = vsub.f32 1.0, %v3243
      %v3335 = vsub.f32 1.0, %v3245
      %v3336 = vsub.f32 1.0, %v3247
      %v3337 = vsub.f32 1.0, %v3249
      %v3338 = vsub.f32 1.0, %v3251
      %v3339 = vsub.f32 1.0, %v3253
      %v3340 = vsub.f32 1.0, %v3255
      %v3341 = vsub.f32 1.0, %v3257
      %v3342 = vsub.f32 1.0, %v3259
      %v3343 = vsub.f32 1.0, %v3261
      %v3344 = vsub.f32 1.0, %v3263
      %v3345 = vsub.f32 1.0, %v3265
      %v3346 = vsub.f32 1.0, %v3267
      %v3347 = vsub.f32 1.0, %v3269
      %v3348 = vsub.f32 1.0, %v3271
      %v3349 = vsub.f32 1.0, %v3273
      %v3350 = vsub.f32 1.0, %v3275
      %v3351 = vsub.f32 1.0, %v3277
      %v3352 = vsub.f32 1.0, %v3279
      %v3353 = vsub.f32 1.0, %v3281
      %v3354 = vsub.f32 1.0, %v3283
      %v3355 = vsub.f32 1.0, %v3285
      %v3356 = vsub.f32 1.0, %v3287
      %v3357 = vsub.f32 1.0, %v3289
      %v3358 = vsub.f32 1.0, %v3291
      %v3359 = vsub.f32 1.0, %v3293
      %v3360 = vsub.f32 1.0, %v3295
      %v3361 = vsub.f32 1.0, %v3297
      %v3362 = vmul.f32 %v3330, %v2773
      %v3363 = vmul.f32 %v3331, %v2774
      %v3364 = vmul.f32 %v3332, %v2775
      %v3365 = vmul.f32 %v3333, %v2776
      %v3366 = vmul.f32 %v3334, %v2777
      %v3367 = vmul.f32 %v3335, %v2778
      %v3368 = vmul.f32 %v3336, %v2779
      %v3369 = vmul.f32 %v3337, %v2780
      %v3370 = vmul.f32 %v3338, %v2781
      %v3371 = vmul.f32 %v3339, %v2782
      %v3372 = vmul.f32 %v3340, %v2783
      %v3373 = vmul.f32 %v3341, %v2784
      %v3374 = vmul.f32 %v3342, %v2785
      %v3375 = vmul.f32 %v3343, %v2786
      %v3376 = vmul.f32 %v3344, %v2787
      %v3377 = vmul.f32 %v3345, %v2788
      %v3378 = vmul.f32 %v3346, %v2789
      %v3379 = vmul.f32 %v3347, %v2790
      %v3380 = vmul.f32 %v3348, %v2791
      %v3381 = vmul.f32 %v3349, %v2792
      %v3382 = vmul.f32 %v3350, %v2793
      %v3383 = vmul.f32 %v3351, %v2794
      %v3384 = vmul.f32 %v3352, %v2795
      %v3385 = vmul.f32 %v3353, %v2796
      %v3386 = vmul.f32 %v3354, %v2797
      %v3387 = vmul.f32 %v3355, %v2798
      %v3388 = vmul.f32 %v3356, %v2799
      %v3389 = vmul.f32 %v3357, %v2800
      %v3390 = vmul.f32 %v3358, %v2801
      %v3391 = vmul.f32 %v3359, %v2802
      %v3392 = vmul.f32 %v3360, %v2803
      %v3393 = vmul.f32 %v3361, %v2804
      %v3394 = vadd.f32 %v3298, %v3362
      %v3395 = vadd.f32 %v3299, %v3363
      %v3396 = vadd.f32 %v3300, %v3364
      %v3397 = vadd.f32 %v3301, %v3365
      %v3398 = vadd.f32 %v3302, %v3366
      %v3399 = vadd.f32 %v3303, %v3367
      %v3400 = vadd.f32 %v3304, %v3368
      %v3401 = vadd.f32 %v3305, %v3369
      %v3402 = vadd.f32 %v3306, %v3370
      %v3403 = vadd.f32 %v3307, %v3371
      %v3404 = vadd.f32 %v3308, %v3372
      %v3405 = vadd.f32 %v3309, %v3373
      %v3406 = vadd.f32 %v3310, %v3374
      %v3407 = vadd.f32 %v3311, %v3375
      %v3408 = vadd.f32 %v3312, %v3376
      %v3409 = vadd.f32 %v3313, %v3377
      %v3410 = vadd.f32 %v3314, %v3378
      %v3411 = vadd.f32 %v3315, %v3379
      %v3412 = vadd.f32 %v3316, %v3380
      %v3413 = vadd.f32 %v3317, %v3381
      %v3414 = vadd.f32 %v3318, %v3382
      %v3415 = vadd.f32 %v3319, %v3383
      %v3416 = vadd.f32 %v3320, %v3384
      %v3417 = vadd.f32 %v3321, %v3385
      %v3418 = vadd.f32 %v3322, %v3386
      %v3419 = vadd.f32 %v3323, %v3387
      %v3420 = vadd.f32 %v3324, %v3388
      %v3421 = vadd.f32 %v3325, %v3389
      %v3422 = vadd.f32 %v3326, %v3390
      %v3423 = vadd.f32 %v3327, %v3391
      %v3424 = vadd.f32 %v3328, %v3392
      %v3425 = vadd.f32 %v3329, %v3393
      %v3426 = vlaneseq
      %v3427 = vand.u32 %v3426, 127
      %vm3428 = vcmp.lt.s32.totalorder %v3427, 32
      %3429 = vadd.xlane.f32.xlu0 %v3394
      %v3430 = vpop.xlane.xlu0 %3429
      %3431 = vadd.xlane.f32.xlu0 %v3395
      %v3432 = vpop.xlane.xlu0 %3431
      %3433 = vadd.xlane.f32.xlu0 %v3396
      %v3434 = vpop.xlane.xlu0 %3433
      %3435 = vadd.xlane.f32.xlu0 %v3397
      %v3436 = vpop.xlane.xlu0 %3435
      %3437 = vadd.xlane.f32.xlu0 %v3398
      %v3438 = vpop.xlane.xlu0 %3437
      %3439 = vadd.xlane.f32.xlu0 %v3399
      %v3440 = vpop.xlane.xlu0 %3439
      %3441 = vadd.xlane.f32.xlu0 %v3400
      %v3442 = vpop.xlane.xlu0 %3441
      %3443 = vadd.xlane.f32.xlu0 %v3401
      %v3444 = vpop.xlane.xlu0 %3443
      %3445 = vadd.xlane.f32.xlu0 %v3402
      %v3446 = vpop.xlane.xlu0 %3445
      %3447 = vadd.xlane.f32.xlu0 %v3403
      %v3448 = vpop.xlane.xlu0 %3447
      %3449 = vadd.xlane.f32.xlu0 %v3404
      %v3450 = vpop.xlane.xlu0 %3449
      %3451 = vadd.xlane.f32.xlu0 %v3405
      %v3452 = vpop.xlane.xlu0 %3451
      %3453 = vadd.xlane.f32.xlu0 %v3406
      %v3454 = vpop.xlane.xlu0 %3453
      %3455 = vadd.xlane.f32.xlu0 %v3407
      %v3456 = vpop.xlane.xlu0 %3455
      %3457 = vadd.xlane.f32.xlu0 %v3408
      %v3458 = vpop.xlane.xlu0 %3457
      %3459 = vadd.xlane.f32.xlu0 %v3409
      %v3460 = vpop.xlane.xlu0 %3459
      %3461 = vadd.xlane.f32.xlu0 %v3410
      %v3462 = vpop.xlane.xlu0 %3461
      %3463 = vadd.xlane.f32.xlu0 %v3411
      %v3464 = vpop.xlane.xlu0 %3463
      %3465 = vadd.xlane.f32.xlu0 %v3412
      %v3466 = vpop.xlane.xlu0 %3465
      %3467 = vadd.xlane.f32.xlu0 %v3413
      %v3468 = vpop.xlane.xlu0 %3467
      %3469 = vadd.xlane.f32.xlu0 %v3414
      %v3470 = vpop.xlane.xlu0 %3469
      %3471 = vadd.xlane.f32.xlu0 %v3415
      %v3472 = vpop.xlane.xlu0 %3471
      %3473 = vadd.xlane.f32.xlu0 %v3416
      %v3474 = vpop.xlane.xlu0 %3473
      %3475 = vadd.xlane.f32.xlu0 %v3417
      %v3476 = vpop.xlane.xlu0 %3475
      %3477 = vadd.xlane.f32.xlu0 %v3418
      %v3478 = vpop.xlane.xlu0 %3477
      %3479 = vadd.xlane.f32.xlu0 %v3419
      %v3480 = vpop.xlane.xlu0 %3479
      %3481 = vadd.xlane.f32.xlu0 %v3420
      %v3482 = vpop.xlane.xlu0 %3481
      %3483 = vadd.xlane.f32.xlu0 %v3421
      %v3484 = vpop.xlane.xlu0 %3483
      %3485 = vadd.xlane.f32.xlu0 %v3422
      %v3486 = vpop.xlane.xlu0 %3485
      %3487 = vadd.xlane.f32.xlu0 %v3423
      %v3488 = vpop.xlane.xlu0 %3487
      %3489 = vadd.xlane.f32.xlu0 %v3424
      %v3490 = vpop.xlane.xlu0 %3489
      %3491 = vadd.xlane.f32.xlu0 %v3425
      %v3492 = vpop.xlane.xlu0 %3491
      %v3493 = vmul.f32 %v3430, 0.03125
      %v3494 = vmul.f32 %v3432, 0.03125
      %v3495 = vmul.f32 %v3434, 0.03125
      %v3496 = vmul.f32 %v3436, 0.03125
      %v3497 = vmul.f32 %v3438, 0.03125
      %v3498 = vmul.f32 %v3440, 0.03125
      %v3499 = vmul.f32 %v3442, 0.03125
      %v3500 = vmul.f32 %v3444, 0.03125
      %v3501 = vmul.f32 %v3446, 0.03125
      %v3502 = vmul.f32 %v3448, 0.03125
      %v3503 = vmul.f32 %v3450, 0.03125
      %v3504 = vmul.f32 %v3452, 0.03125
      %v3505 = vmul.f32 %v3454, 0.03125
      %v3506 = vmul.f32 %v3456, 0.03125
      %v3507 = vmul.f32 %v3458, 0.03125
      %v3508 = vmul.f32 %v3460, 0.03125
      %v3509 = vmul.f32 %v3462, 0.03125
      %v3510 = vmul.f32 %v3464, 0.03125
      %v3511 = vmul.f32 %v3466, 0.03125
      %v3512 = vmul.f32 %v3468, 0.03125
      %v3513 = vmul.f32 %v3470, 0.03125
      %v3514 = vmul.f32 %v3472, 0.03125
      %v3515 = vmul.f32 %v3474, 0.03125
      %v3516 = vmul.f32 %v3476, 0.03125
      %v3517 = vmul.f32 %v3478, 0.03125
      %v3518 = vmul.f32 %v3480, 0.03125
      %v3519 = vmul.f32 %v3482, 0.03125
      %v3520 = vmul.f32 %v3484, 0.03125
      %v3521 = vmul.f32 %v3486, 0.03125
      %v3522 = vmul.f32 %v3488, 0.03125
      %v3523 = vmul.f32 %v3490, 0.03125
      %v3524 = vmul.f32 %v3492, 0.03125
      %v3525 = vsub.f32 %v3394, %v3493
      %v3526 = vsub.f32 %v3395, %v3494
      %v3527 = vsub.f32 %v3396, %v3495
      %v3528 = vsub.f32 %v3397, %v3496
      %v3529 = vsub.f32 %v3398, %v3497
      %v3530 = vsub.f32 %v3399, %v3498
      %v3531 = vsub.f32 %v3400, %v3499
      %v3532 = vsub.f32 %v3401, %v3500
      %v3533 = vsub.f32 %v3402, %v3501
      %v3534 = vsub.f32 %v3403, %v3502
      %v3535 = vsub.f32 %v3404, %v3503
      %v3536 = vsub.f32 %v3405, %v3504
      %v3537 = vsub.f32 %v3406, %v3505
      %v3538 = vsub.f32 %v3407, %v3506
      %v3539 = vsub.f32 %v3408, %v3507
      %v3540 = vsub.f32 %v3409, %v3508
      %v3541 = vsub.f32 %v3410, %v3509
      %v3542 = vsub.f32 %v3411, %v3510
      %v3543 = vsub.f32 %v3412, %v3511
      %v3544 = vsub.f32 %v3413, %v3512
      %v3545 = vsub.f32 %v3414, %v3513
      %v3546 = vsub.f32 %v3415, %v3514
      %v3547 = vsub.f32 %v3416, %v3515
      %v3548 = vsub.f32 %v3417, %v3516
      %v3549 = vsub.f32 %v3418, %v3517
      %v3550 = vsub.f32 %v3419, %v3518
      %v3551 = vsub.f32 %v3420, %v3519
      %v3552 = vsub.f32 %v3421, %v3520
      %v3553 = vsub.f32 %v3422, %v3521
      %v3554 = vsub.f32 %v3423, %v3522
      %v3555 = vsub.f32 %v3424, %v3523
      %v3556 = vsub.f32 %v3425, %v3524
      %v3557 = vsel %vm3428, %v3525, 0.0
      %v3558 = vsel %vm3428, %v3526, 0.0
      %v3559 = vsel %vm3428, %v3527, 0.0
      %v3560 = vsel %vm3428, %v3528, 0.0
      %v3561 = vsel %vm3428, %v3529, 0.0
      %v3562 = vsel %vm3428, %v3530, 0.0
      %v3563 = vsel %vm3428, %v3531, 0.0
      %v3564 = vsel %vm3428, %v3532, 0.0
      %v3565 = vsel %vm3428, %v3533, 0.0
      %v3566 = vsel %vm3428, %v3534, 0.0
      %v3567 = vsel %vm3428, %v3535, 0.0
      %v3568 = vsel %vm3428, %v3536, 0.0
      %v3569 = vsel %vm3428, %v3537, 0.0
      %v3570 = vsel %vm3428, %v3538, 0.0
      %v3571 = vsel %vm3428, %v3539, 0.0
      %v3572 = vsel %vm3428, %v3540, 0.0
      %v3573 = vsel %vm3428, %v3541, 0.0
      %v3574 = vsel %vm3428, %v3542, 0.0
      %v3575 = vsel %vm3428, %v3543, 0.0
      %v3576 = vsel %vm3428, %v3544, 0.0
      %v3577 = vsel %vm3428, %v3545, 0.0
      %v3578 = vsel %vm3428, %v3546, 0.0
      %v3579 = vsel %vm3428, %v3547, 0.0
      %v3580 = vsel %vm3428, %v3548, 0.0
      %v3581 = vsel %vm3428, %v3549, 0.0
      %v3582 = vsel %vm3428, %v3550, 0.0
      %v3583 = vsel %vm3428, %v3551, 0.0
      %v3584 = vsel %vm3428, %v3552, 0.0
      %v3585 = vsel %vm3428, %v3553, 0.0
      %v3586 = vsel %vm3428, %v3554, 0.0
      %v3587 = vsel %vm3428, %v3555, 0.0
      %v3588 = vsel %vm3428, %v3556, 0.0
      %v3589 = vmul.f32 %v3557, %v3557
      %v3590 = vmul.f32 %v3558, %v3558
      %v3591 = vmul.f32 %v3559, %v3559
      %v3592 = vmul.f32 %v3560, %v3560
      %v3593 = vmul.f32 %v3561, %v3561
      %v3594 = vmul.f32 %v3562, %v3562
      %v3595 = vmul.f32 %v3563, %v3563
      %v3596 = vmul.f32 %v3564, %v3564
      %v3597 = vmul.f32 %v3565, %v3565
      %v3598 = vmul.f32 %v3566, %v3566
      %v3599 = vmul.f32 %v3567, %v3567
      %v3600 = vmul.f32 %v3568, %v3568
      %v3601 = vmul.f32 %v3569, %v3569
      %v3602 = vmul.f32 %v3570, %v3570
      %v3603 = vmul.f32 %v3571, %v3571
      %v3604 = vmul.f32 %v3572, %v3572
      %v3605 = vmul.f32 %v3573, %v3573
      %v3606 = vmul.f32 %v3574, %v3574
      %v3607 = vmul.f32 %v3575, %v3575
      %v3608 = vmul.f32 %v3576, %v3576
      %v3609 = vmul.f32 %v3577, %v3577
      %v3610 = vmul.f32 %v3578, %v3578
      %v3611 = vmul.f32 %v3579, %v3579
      %v3612 = vmul.f32 %v3580, %v3580
      %v3613 = vmul.f32 %v3581, %v3581
      %v3614 = vmul.f32 %v3582, %v3582
      %v3615 = vmul.f32 %v3583, %v3583
      %v3616 = vmul.f32 %v3584, %v3584
      %v3617 = vmul.f32 %v3585, %v3585
      %v3618 = vmul.f32 %v3586, %v3586
      %v3619 = vmul.f32 %v3587, %v3587
      %v3620 = vmul.f32 %v3588, %v3588
      %3621 = vadd.xlane.f32.xlu0 %v3589
      %v3622 = vpop.xlane.xlu0 %3621
      %3623 = vadd.xlane.f32.xlu0 %v3590
      %v3624 = vpop.xlane.xlu0 %3623
      %3625 = vadd.xlane.f32.xlu0 %v3591
      %v3626 = vpop.xlane.xlu0 %3625
      %3627 = vadd.xlane.f32.xlu0 %v3592
      %v3628 = vpop.xlane.xlu0 %3627
      %3629 = vadd.xlane.f32.xlu0 %v3593
      %v3630 = vpop.xlane.xlu0 %3629
      %3631 = vadd.xlane.f32.xlu0 %v3594
      %v3632 = vpop.xlane.xlu0 %3631
      %3633 = vadd.xlane.f32.xlu0 %v3595
      %v3634 = vpop.xlane.xlu0 %3633
      %3635 = vadd.xlane.f32.xlu0 %v3596
      %v3636 = vpop.xlane.xlu0 %3635
      %3637 = vadd.xlane.f32.xlu0 %v3597
      %v3638 = vpop.xlane.xlu0 %3637
      %3639 = vadd.xlane.f32.xlu0 %v3598
      %v3640 = vpop.xlane.xlu0 %3639
      %3641 = vadd.xlane.f32.xlu0 %v3599
      %v3642 = vpop.xlane.xlu0 %3641
      %3643 = vadd.xlane.f32.xlu0 %v3600
      %v3644 = vpop.xlane.xlu0 %3643
      %3645 = vadd.xlane.f32.xlu0 %v3601
      %v3646 = vpop.xlane.xlu0 %3645
      %3647 = vadd.xlane.f32.xlu0 %v3602
      %v3648 = vpop.xlane.xlu0 %3647
      %3649 = vadd.xlane.f32.xlu0 %v3603
      %v3650 = vpop.xlane.xlu0 %3649
      %3651 = vadd.xlane.f32.xlu0 %v3604
      %v3652 = vpop.xlane.xlu0 %3651
      %3653 = vadd.xlane.f32.xlu0 %v3605
      %v3654 = vpop.xlane.xlu0 %3653
      %3655 = vadd.xlane.f32.xlu0 %v3606
      %v3656 = vpop.xlane.xlu0 %3655
      %3657 = vadd.xlane.f32.xlu0 %v3607
      %v3658 = vpop.xlane.xlu0 %3657
      %3659 = vadd.xlane.f32.xlu0 %v3608
      %v3660 = vpop.xlane.xlu0 %3659
      %3661 = vadd.xlane.f32.xlu0 %v3609
      %v3662 = vpop.xlane.xlu0 %3661
      %3663 = vadd.xlane.f32.xlu0 %v3610
      %v3664 = vpop.xlane.xlu0 %3663
      %3665 = vadd.xlane.f32.xlu0 %v3611
      %v3666 = vpop.xlane.xlu0 %3665
      %3667 = vadd.xlane.f32.xlu0 %v3612
      %v3668 = vpop.xlane.xlu0 %3667
      %3669 = vadd.xlane.f32.xlu0 %v3613
      %v3670 = vpop.xlane.xlu0 %3669
      %3671 = vadd.xlane.f32.xlu0 %v3614
      %v3672 = vpop.xlane.xlu0 %3671
      %3673 = vadd.xlane.f32.xlu0 %v3615
      %v3674 = vpop.xlane.xlu0 %3673
      %3675 = vadd.xlane.f32.xlu0 %v3616
      %v3676 = vpop.xlane.xlu0 %3675
      %3677 = vadd.xlane.f32.xlu0 %v3617
      %v3678 = vpop.xlane.xlu0 %3677
      %3679 = vadd.xlane.f32.xlu0 %v3618
      %v3680 = vpop.xlane.xlu0 %3679
      %3681 = vadd.xlane.f32.xlu0 %v3619
      %v3682 = vpop.xlane.xlu0 %3681
      %3683 = vadd.xlane.f32.xlu0 %v3620
      %v3684 = vpop.xlane.xlu0 %3683
      %v3685 = vmul.f32 %v3622, 0.03125
      %v3686 = vmul.f32 %v3624, 0.03125
      %v3687 = vmul.f32 %v3626, 0.03125
      %v3688 = vmul.f32 %v3628, 0.03125
      %v3689 = vmul.f32 %v3630, 0.03125
      %v3690 = vmul.f32 %v3632, 0.03125
      %v3691 = vmul.f32 %v3634, 0.03125
      %v3692 = vmul.f32 %v3636, 0.03125
      %v3693 = vmul.f32 %v3638, 0.03125
      %v3694 = vmul.f32 %v3640, 0.03125
      %v3695 = vmul.f32 %v3642, 0.03125
      %v3696 = vmul.f32 %v3644, 0.03125
      %v3697 = vmul.f32 %v3646, 0.03125
      %v3698 = vmul.f32 %v3648, 0.03125
      %v3699 = vmul.f32 %v3650, 0.03125
      %v3700 = vmul.f32 %v3652, 0.03125
      %v3701 = vmul.f32 %v3654, 0.03125
      %v3702 = vmul.f32 %v3656, 0.03125
      %v3703 = vmul.f32 %v3658, 0.03125
      %v3704 = vmul.f32 %v3660, 0.03125
      %v3705 = vmul.f32 %v3662, 0.03125
      %v3706 = vmul.f32 %v3664, 0.03125
      %v3707 = vmul.f32 %v3666, 0.03125
      %v3708 = vmul.f32 %v3668, 0.03125
      %v3709 = vmul.f32 %v3670, 0.03125
      %v3710 = vmul.f32 %v3672, 0.03125
      %v3711 = vmul.f32 %v3674, 0.03125
      %v3712 = vmul.f32 %v3676, 0.03125
      %v3713 = vmul.f32 %v3678, 0.03125
      %v3714 = vmul.f32 %v3680, 0.03125
      %v3715 = vmul.f32 %v3682, 0.03125
      %v3716 = vmul.f32 %v3684, 0.03125
      %v3717 = vadd.f32 %v3685, 1e-05
      %v3718 = vadd.f32 %v3686, 1e-05
      %v3719 = vadd.f32 %v3687, 1e-05
      %v3720 = vadd.f32 %v3688, 1e-05
      %v3721 = vadd.f32 %v3689, 1e-05
      %v3722 = vadd.f32 %v3690, 1e-05
      %v3723 = vadd.f32 %v3691, 1e-05
      %v3724 = vadd.f32 %v3692, 1e-05
      %v3725 = vadd.f32 %v3693, 1e-05
      %v3726 = vadd.f32 %v3694, 1e-05
      %v3727 = vadd.f32 %v3695, 1e-05
      %v3728 = vadd.f32 %v3696, 1e-05
      %v3729 = vadd.f32 %v3697, 1e-05
      %v3730 = vadd.f32 %v3698, 1e-05
      %v3731 = vadd.f32 %v3699, 1e-05
      %v3732 = vadd.f32 %v3700, 1e-05
      %v3733 = vadd.f32 %v3701, 1e-05
      %v3734 = vadd.f32 %v3702, 1e-05
      %v3735 = vadd.f32 %v3703, 1e-05
      %v3736 = vadd.f32 %v3704, 1e-05
      %v3737 = vadd.f32 %v3705, 1e-05
      %v3738 = vadd.f32 %v3706, 1e-05
      %v3739 = vadd.f32 %v3707, 1e-05
      %v3740 = vadd.f32 %v3708, 1e-05
      %v3741 = vadd.f32 %v3709, 1e-05
      %v3742 = vadd.f32 %v3710, 1e-05
      %v3743 = vadd.f32 %v3711, 1e-05
      %v3744 = vadd.f32 %v3712, 1e-05
      %v3745 = vadd.f32 %v3713, 1e-05
      %v3746 = vadd.f32 %v3714, 1e-05
      %v3747 = vadd.f32 %v3715, 1e-05
      %v3748 = vadd.f32 %v3716, 1e-05
      %v3749 = vrsqrt.pop %v3717
      %v3750 = vrsqrt.pop %v3718
      %v3751 = vrsqrt.pop %v3719
      %v3752 = vrsqrt.pop %v3720
      %v3753 = vrsqrt.pop %v3721
      %v3754 = vrsqrt.pop %v3722
      %v3755 = vrsqrt.pop %v3723
      %v3756 = vrsqrt.pop %v3724
      %v3757 = vrsqrt.pop %v3725
      %v3758 = vrsqrt.pop %v3726
      %v3759 = vrsqrt.pop %v3727
      %v3760 = vrsqrt.pop %v3728
      %v3761 = vrsqrt.pop %v3729
      %v3762 = vrsqrt.pop %v3730
      %v3763 = vrsqrt.pop %v3731
      %v3764 = vrsqrt.pop %v3732
      %v3765 = vrsqrt.pop %v3733
      %v3766 = vrsqrt.pop %v3734
      %v3767 = vrsqrt.pop %v3735
      %v3768 = vrsqrt.pop %v3736
      %v3769 = vrsqrt.pop %v3737
      %v3770 = vrsqrt.pop %v3738
      %v3771 = vrsqrt.pop %v3739
      %v3772 = vrsqrt.pop %v3740
      %v3773 = vrsqrt.pop %v3741
      %v3774 = vrsqrt.pop %v3742
      %v3775 = vrsqrt.pop %v3743
      %v3776 = vrsqrt.pop %v3744
      %v3777 = vrsqrt.pop %v3745
      %v3778 = vrsqrt.pop %v3746
      %v3779 = vrsqrt.pop %v3747
      %v3780 = vrsqrt.pop %v3748
      %v3781 = vmul.f32 %v3557, %v3749
      %v3782 = vmul.f32 %v3558, %v3750
      %v3783 = vmul.f32 %v3559, %v3751
      %v3784 = vmul.f32 %v3560, %v3752
      %v3785 = vmul.f32 %v3561, %v3753
      %v3786 = vmul.f32 %v3562, %v3754
      %v3787 = vmul.f32 %v3563, %v3755
      %v3788 = vmul.f32 %v3564, %v3756
      %v3789 = vmul.f32 %v3565, %v3757
      %v3790 = vmul.f32 %v3566, %v3758
      %v3791 = vmul.f32 %v3567, %v3759
      %v3792 = vmul.f32 %v3568, %v3760
      %v3793 = vmul.f32 %v3569, %v3761
      %v3794 = vmul.f32 %v3570, %v3762
      %v3795 = vmul.f32 %v3571, %v3763
      %v3796 = vmul.f32 %v3572, %v3764
      %v3797 = vmul.f32 %v3573, %v3765
      %v3798 = vmul.f32 %v3574, %v3766
      %v3799 = vmul.f32 %v3575, %v3767
      %v3800 = vmul.f32 %v3576, %v3768
      %v3801 = vmul.f32 %v3577, %v3769
      %v3802 = vmul.f32 %v3578, %v3770
      %v3803 = vmul.f32 %v3579, %v3771
      %v3804 = vmul.f32 %v3580, %v3772
      %v3805 = vmul.f32 %v3581, %v3773
      %v3806 = vmul.f32 %v3582, %v3774
      %v3807 = vmul.f32 %v3583, %v3775
      %v3808 = vmul.f32 %v3584, %v3776
      %v3809 = vmul.f32 %v3585, %v3777
      %v3810 = vmul.f32 %v3586, %v3778
      %v3811 = vmul.f32 %v3587, %v3779
      %v3812 = vmul.f32 %v3588, %v3780
      %v3813 = vld [vmem:[#allocation16] sm:$0x1]
      %v3814 = vlaneseq
      %v3815 = vshrl.u32 %v3814, 7
      %v3816 = vsub.s32 0, %v3815
      %v3817 = vrot.slane %v3813, %v3816
      %v3818 = vmul.f32 %v3781, %v3817
      %v3819 = vmul.f32 %v3782, %v3817
      %v3820 = vmul.f32 %v3783, %v3817
      %v3821 = vmul.f32 %v3784, %v3817
      %v3822 = vmul.f32 %v3785, %v3817
      %v3823 = vmul.f32 %v3786, %v3817
      %v3824 = vmul.f32 %v3787, %v3817
      %v3825 = vmul.f32 %v3788, %v3817
      %v3826 = vmul.f32 %v3789, %v3817
      %v3827 = vmul.f32 %v3790, %v3817
      %v3828 = vmul.f32 %v3791, %v3817
      %v3829 = vmul.f32 %v3792, %v3817
      %v3830 = vmul.f32 %v3793, %v3817
      %v3831 = vmul.f32 %v3794, %v3817
      %v3832 = vmul.f32 %v3795, %v3817
      %v3833 = vmul.f32 %v3796, %v3817
      %v3834 = vmul.f32 %v3797, %v3817
      %v3835 = vmul.f32 %v3798, %v3817
      %v3836 = vmul.f32 %v3799, %v3817
      %v3837 = vmul.f32 %v3800, %v3817
      %v3838 = vmul.f32 %v3801, %v3817
      %v3839 = vmul.f32 %v3802, %v3817
      %v3840 = vmul.f32 %v3803, %v3817
      %v3841 = vmul.f32 %v3804, %v3817
      %v3842 = vmul.f32 %v3805, %v3817
      %v3843 = vmul.f32 %v3806, %v3817
      %v3844 = vmul.f32 %v3807, %v3817
      %v3845 = vmul.f32 %v3808, %v3817
      %v3846 = vmul.f32 %v3809, %v3817
      %v3847 = vmul.f32 %v3810, %v3817
      %v3848 = vmul.f32 %v3811, %v3817
      %v3849 = vmul.f32 %v3812, %v3817
      %v3850 = vld [vmem:[#allocation16 + $0x1] sm:$0x1]
      %v3851 = vlaneseq
      %v3852 = vshrl.u32 %v3851, 7
      %v3853 = vsub.s32 0, %v3852
      %v3854 = vrot.slane %v3850, %v3853
      %v3855 = vadd.f32 %v3818, %v3854
      %v3856 = vadd.f32 %v3819, %v3854
      %v3857 = vadd.f32 %v3820, %v3854
      %v3858 = vadd.f32 %v3821, %v3854
      %v3859 = vadd.f32 %v3822, %v3854
      %v3860 = vadd.f32 %v3823, %v3854
      %v3861 = vadd.f32 %v3824, %v3854
      %v3862 = vadd.f32 %v3825, %v3854
      %v3863 = vadd.f32 %v3826, %v3854
      %v3864 = vadd.f32 %v3827, %v3854
      %v3865 = vadd.f32 %v3828, %v3854
      %v3866 = vadd.f32 %v3829, %v3854
      %v3867 = vadd.f32 %v3830, %v3854
      %v3868 = vadd.f32 %v3831, %v3854
      %v3869 = vadd.f32 %v3832, %v3854
      %v3870 = vadd.f32 %v3833, %v3854
      %v3871 = vadd.f32 %v3834, %v3854
      %v3872 = vadd.f32 %v3835, %v3854
      %v3873 = vadd.f32 %v3836, %v3854
      %v3874 = vadd.f32 %v3837, %v3854
      %v3875 = vadd.f32 %v3838, %v3854
      %v3876 = vadd.f32 %v3839, %v3854
      %v3877 = vadd.f32 %v3840, %v3854
      %v3878 = vadd.f32 %v3841, %v3854
      %v3879 = vadd.f32 %v3842, %v3854
      %v3880 = vadd.f32 %v3843, %v3854
      %v3881 = vadd.f32 %v3844, %v3854
      %v3882 = vadd.f32 %v3845, %v3854
      %v3883 = vadd.f32 %v3846, %v3854
      %v3884 = vadd.f32 %v3847, %v3854
      %v3885 = vadd.f32 %v3848, %v3854
      %v3886 = vadd.f32 %v3849, %v3854
      %v3887 = vmax.f32 %v3855, 0.0
      %v3888 = vmax.f32 %v3856, 0.0
      %v3889 = vmax.f32 %v3857, 0.0
      %v3890 = vmax.f32 %v3858, 0.0
      %v3891 = vmax.f32 %v3859, 0.0
      %v3892 = vmax.f32 %v3860, 0.0
      %v3893 = vmax.f32 %v3861, 0.0
      %v3894 = vmax.f32 %v3862, 0.0
      %v3895 = vmax.f32 %v3863, 0.0
      %v3896 = vmax.f32 %v3864, 0.0
      %v3897 = vmax.f32 %v3865, 0.0
      %v3898 = vmax.f32 %v3866, 0.0
      %v3899 = vmax.f32 %v3867, 0.0
      %v3900 = vmax.f32 %v3868, 0.0
      %v3901 = vmax.f32 %v3869, 0.0
      %v3902 = vmax.f32 %v3870, 0.0
      %v3903 = vmax.f32 %v3871, 0.0
      %v3904 = vmax.f32 %v3872, 0.0
      %v3905 = vmax.f32 %v3873, 0.0
      %v3906 = vmax.f32 %v3874, 0.0
      %v3907 = vmax.f32 %v3875, 0.0
      %v3908 = vmax.f32 %v3876, 0.0
      %v3909 = vmax.f32 %v3877, 0.0
      %v3910 = vmax.f32 %v3878, 0.0
      %v3911 = vmax.f32 %v3879, 0.0
      %v3912 = vmax.f32 %v3880, 0.0
      %v3913 = vmax.f32 %v3881, 0.0
      %v3914 = vmax.f32 %v3882, 0.0
      %v3915 = vmax.f32 %v3883, 0.0
      %v3916 = vmax.f32 %v3884, 0.0
      %v3917 = vmax.f32 %v3885, 0.0
      %v3918 = vmax.f32 %v3886, 0.0
      %3919 = vst [vmem:[#allocation17] sm:$0xff] %v3887
      %3920 = vst [vmem:[#allocation17 + $0x8] sm:$0xff] %v3888
      %3921 = vst [vmem:[#allocation17 + $0x10] sm:$0xff] %v3889
      %3922 = vst [vmem:[#allocation17 + $0x18] sm:$0xff] %v3890
      %3923 = vst [vmem:[#allocation17 + $0x20] sm:$0xff] %v3891
      %3924 = vst [vmem:[#allocation17 + $0x28] sm:$0xff] %v3892
      %3925 = vst [vmem:[#allocation17 + $0x30] sm:$0xff] %v3893
      %3926 = vst [vmem:[#allocation17 + $0x38] sm:$0xff] %v3894
      %3927 = vst [vmem:[#allocation17 + $0x40] sm:$0xff] %v3895
      %3928 = vst [vmem:[#allocation17 + $0x48] sm:$0xff] %v3896
      %3929 = vst [vmem:[#allocation17 + $0x50] sm:$0xff] %v3897
      %3930 = vst [vmem:[#allocation17 + $0x58] sm:$0xff] %v3898
      %3931 = vst [vmem:[#allocation17 + $0x60] sm:$0xff] %v3899
      %3932 = vst [vmem:[#allocation17 + $0x68] sm:$0xff] %v3900
      %3933 = vst [vmem:[#allocation17 + $0x70] sm:$0xff] %v3901
      %3934 = vst [vmem:[#allocation17 + $0x78] sm:$0xff] %v3902
      %3935 = vst [vmem:[#allocation17 + $0x80] sm:$0xff] %v3903
      %3936 = vst [vmem:[#allocation17 + $0x88] sm:$0xff] %v3904
      %3937 = vst [vmem:[#allocation17 + $0x90] sm:$0xff] %v3905
      %3938 = vst [vmem:[#allocation17 + $0x98] sm:$0xff] %v3906
      %3939 = vst [vmem:[#allocation17 + $0xa0] sm:$0xff] %v3907
      %3940 = vst [vmem:[#allocation17 + $0xa8] sm:$0xff] %v3908
      %3941 = vst [vmem:[#allocation17 + $0xb0] sm:$0xff] %v3909
      %3942 = vst [vmem:[#allocation17 + $0xb8] sm:$0xff] %v3910
      %3943 = vst [vmem:[#allocation17 + $0xc0] sm:$0xff] %v3911
      %3944 = vst [vmem:[#allocation17 + $0xc8] sm:$0xff] %v3912
      %3945 = vst [vmem:[#allocation17 + $0xd0] sm:$0xff] %v3913
      %3946 = vst [vmem:[#allocation17 + $0xd8] sm:$0xff] %v3914
      %3947 = vst [vmem:[#allocation17 + $0xe0] sm:$0xff] %v3915
      %3948 = vst [vmem:[#allocation17 + $0xe8] sm:$0xff] %v3916
      %3949 = vst [vmem:[#allocation17 + $0xf0] sm:$0xff] %v3917
      %3950 = vst [vmem:[#allocation17 + $0xf8] sm:$0xff] %v3918
    $region65: #{graph_trans_conv.5} parent=1 // pred_fallthru
      _
    // Predicated region
    $region66: #{graph_trans_conv.5} parent=1 // pred_check
      _
    $region67: #{graph_trans_conv.5} parent=1 // pred_check_branch
      %3952 = sbr.rel (0) target = $region69
    $region68: #{graph_trans_conv.5} parent=1 // pred_region
      %s3954 = ssub.s32 4096, 4096
      %3955 = vsyncadd [#allocation7], %s3954
      %s3956 = sshll.u32 [#allocation17], 4
      %s3957 = int_to_ptr.vmem [resolvable:$true] %s3956
      %3962 = dma.vmem_to_hbm [thread:$0]  %s3957, 4096, %s7, [#allocation7], 128, 128, 8
    $region69: #{graph_trans_conv.5} parent=1 // pred_fallthru
      _
    // Predicated region
    $region70: #{graph_trans_conv.5} parent=1 // pred_check
      _
    $region71: #{graph_trans_conv.5} parent=1 // pred_check_branch
      %3964 = sbr.rel (0) target = $region73
    $region72: #{graph_trans_conv.5} parent=1 // pred_region
      %3965 = dma.done [#allocation7], 4096
    $region73: #{graph_trans_conv.5} parent=1 // pred_fallthru
      _
    %3966 = vsyncpa [#allocation6], 1
    %3967 = vsyncpa [#allocation9], 1
    %3968 = vsyncpa [#allocation12], 1
    %3969 = vsyncpa [#allocation15], 1
    %3970 = vsyncpa [#allocation7], 1

</llo_original>
